<compile_context>
chip_gen: v6e
topology: v6e:2x2x1
jax: 0.10.0
libtpu: 0.0.40
codegen_flags: <defaults>
</compile_context>

<pallas_src>
import functools

import jax
import jax.numpy as jnp
from jax import lax
from jax.experimental import pallas as pl
from jax.experimental.pallas import tpu as pltpu

_HIGH = lax.Precision.HIGHEST
_VMEM_LIMIT = 32 * 1024 * 1024  # explicit scoped-VMEM budget (safe v5e..v7x)


def _dot(a, b):
    # MXU dot with f32 accumulation; precision scoped per-dot (no global cfg).
    return jnp.dot(a, b, preferred_element_type=jnp.float32, precision=_HIGH)


def _pick_chunk(l, max_chunk=256):
    """Largest power-of-two chunk <= max_chunk dividing L (cumsum tiling)."""
    c = max_chunk
    while c > 8:
        if l % c == 0:
            return c
        c //= 2
    return l


def _time_tile(l, max_tile=512):
    """Lane-dense time tile for the pointwise 1x1 convs."""
    if l <= max_tile:
        return l
    for t in (512, 384, 256, 128):
        if l % t == 0:
            return t
    return l


def _rep_spec(shape):
    # Small parameter tensor replicated across all grid steps.
    return pl.BlockSpec(tuple(shape), lambda *_: (0,) * len(shape))


# ---------------------------------------------------------------------------
# In-kernel building blocks (operate on (C, L) f32 slabs held in VMEM/vregs)
# ---------------------------------------------------------------------------
def _prelu(x, a):
    return jnp.maximum(x, 0.0) + a * jnp.minimum(x, 0.0)


def _cumulative_stats(y, tchunk):
    """Blocked cumulative (sum, power-sum) over time of a (C, L) slab."""
    _, l = y.shape
    s = jnp.sum(y, axis=0, keepdims=True)          # (1, L) channel sum
    p = jnp.sum(y * y, axis=0, keepdims=True)      # (1, L) channel power sum
    sp = jnp.concatenate([s, p], axis=0)           # (2, L) stacked operand
    row = lax.broadcasted_iota(jnp.int32, (tchunk, tchunk), 0)
    col = lax.broadcasted_iota(jnp.int32, (tchunk, tchunk), 1)
    tri = (row <= col).astype(jnp.float32)         # tri[s, t] = 1 iff s <= t
    nch = l // tchunk
    if nch <= 1:
        cum = _dot(sp, tri)
    else:
        carry = jnp.zeros((2, 1), jnp.float32)     # running prefix (f32)
        chunks = []
        for i in range(nch):                       # static unroll (few chunks)
            blk = sp[:, i * tchunk:(i + 1) * tchunk]
            cb = _dot(blk, tri) + carry
            chunks.append(cb)
            carry = cb[:, tchunk - 1:tchunk]
        cum = jnp.concatenate(chunks, axis=1)
    return cum[0:1, :], cum[1:2, :]


def _prelu_cln(x, a, gain, bias, eps, tchunk):
    """PReLU1d + CumulativeLayerNorm1d on a (C, L) f32 slab."""
    c, l = x.shape
    y = _prelu(x, a)
    cum_s, cum_p = _cumulative_stats(y, tchunk)    # f32 statistics
    cnt = (lax.broadcasted_iota(jnp.int32, (1, l), 1).astype(jnp.float32)
           + 1.0) * float(c)
    mean = cum_s / cnt
    var = (cum_p - 2.0 * mean * cum_s) / cnt + mean * mean
    inv_std = lax.rsqrt(var + eps)                 # EUP
    return (y - mean) * inv_std * gain + bias


def _causal_dconv3(y, w_stacked, b, dilation):
    """Causal dilated Conv1d (k=3) on a (C, L) slab; taps stacked along K."""
    c, l = y.shape
    pad = 2 * dilation
    # Causal left pad in-register (no HBM round trip).
    padded = jnp.concatenate([jnp.zeros((c, pad), y.dtype), y], axis=1)
    taps = jnp.concatenate(
        [padded[:, k * dilation:k * dilation + l] for k in range(3)], axis=0)
    return _dot(w_stacked, taps) + b               # (Cout, 3C) @ (3C, L)


# ---------------------------------------------------------------------------
# Kernels
# ---------------------------------------------------------------------------
def _stcm_block_kernel(x_ref, ciw_ref, cib_ref, d1w_ref, d1b_ref,
                       d2w_ref, d2b_ref, cow_ref, cob_ref,
                       pa_ref, pg_ref, pb_ref, o_ref,
                       *, dilation, eps, tchunk):
    # Whole STCMBlock on one (C, L) batch slab, activations stay on-chip.
    x = x_ref[0].astype(jnp.float32)                              # (C, L)
    h = _dot(ciw_ref[...], x) + cib_ref[...]                      # conv_in

    y1 = _prelu_cln(h, pa_ref[0], pg_ref[0], pb_ref[0], eps, tchunk)
    c1 = _causal_dconv3(y1, d1w_ref[...], d1b_ref[...], dilation)

    y2 = _prelu_cln(h, pa_ref[1], pg_ref[1], pb_ref[1], eps, tchunk)
    c2 = _causal_dconv3(y2, d2w_ref[...], d2b_ref[...], dilation)

    g = c1 * jax.nn.sigmoid(c2)                                   # GLU gate

    y3 = _prelu_cln(g, pa_ref[2], pg_ref[2], pb_ref[2], eps, tchunk)
    out = _dot(cow_ref[...], y3) + cob_ref[...] + x               # conv_out+res
    o_ref[...] = out[None].astype(o_ref.dtype)


def _pw_conv_kernel(x_ref, w_ref, b_ref, o_ref):
    # 1x1 Conv1d on a (Cin, TL) time tile.
    y = _dot(w_ref[...], x_ref[0]) + b_ref[...]
    o_ref[...] = y[None].astype(o_ref.dtype)


def _in_conv_kernel(f_ref, xr_ref, xi_ref, wf_ref, wr_ref, wi_ref, b_ref, o_ref):
    # conv2(cat([feat, x_real, x_imag], dim=1)) as three split MXU dots.
    y = _dot(wf_ref[...], f_ref[0])
    y = y + _dot(wr_ref[...], xr_ref[0])
    y = y + _dot(wi_ref[...], xi_ref[0])
    o_ref[...] = (y + b_ref[...])[None].astype(o_ref.dtype)


# ---------------------------------------------------------------------------
# Pallas wrappers
# ---------------------------------------------------------------------------
def _stack_taps(w):
    # (3, Cout, Cin) -> (Cout, 3*Cin); tap k lives in columns [k*Cin,(k+1)*Cin)
    return jnp.concatenate([w[0], w[1], w[2]], axis=1)


def stcm_block_fused(x, p, dilation):
    n, c, l = x.shape
    glu = p["glu"]
    d1w = _stack_taps(glu["convD1"]["w"])
    d2w = _stack_taps(glu["convD2"]["w"])
    pa = jnp.stack([glu["pn1"]["a"], glu["pn2"]["a"], p["pn"]["a"]])
    pg = jnp.stack([glu["pn1"]["gain"], glu["pn2"]["gain"], p["pn"]["gain"]])
    pb = jnp.stack([glu["pn1"]["bias"], glu["pn2"]["bias"], p["pn"]["bias"]])
    args = (x,
            p["conv_in"]["w"], p["conv_in"]["b"],
            d1w, glu["convD1"]["b"],
            d2w, glu["convD2"]["b"],
            p["conv_out"]["w"], p["conv_out"]["b"],
            pa, pg, pb)
    in_specs = ([pl.BlockSpec((1, c, l), lambda i: (i, 0, 0))]
                + [_rep_spec(a.shape) for a in args[1:]])
    kernel = functools.partial(_stcm_block_kernel, dilation=dilation,
                               eps=1e-5, tchunk=_pick_chunk(l))
    return pl.pallas_call(
        kernel,
        out_shape=jax.ShapeDtypeStruct((n, c, l), x.dtype),
        grid=(n,),
        in_specs=in_specs,
        out_specs=pl.BlockSpec((1, c, l), lambda i: (i, 0, 0)),
        compiler_params=pltpu.CompilerParams(
            dimension_semantics=("parallel",),
            vmem_limit_bytes=_VMEM_LIMIT),
    )(*args)


def pointwise_conv1d(x, w, b):
    n, cin, l = x.shape
    cout = w.shape[0]
    tl = _time_tile(l)
    return pl.pallas_call(
        _pw_conv_kernel,
        out_shape=jax.ShapeDtypeStruct((n, cout, l), x.dtype),
        grid=(n, l // tl),
        in_specs=[pl.BlockSpec((1, cin, tl), lambda i, t: (i, 0, t)),
                  _rep_spec(w.shape), _rep_spec(b.shape)],
        out_specs=pl.BlockSpec((1, cout, tl), lambda i, t: (i, 0, t)),
        compiler_params=pltpu.CompilerParams(
            dimension_semantics=("parallel", "parallel"),
            vmem_limit_bytes=_VMEM_LIMIT),
    )(x, w, b)


def fused_input_conv(feat, x_real, x_imag, w, b):
    n, nf, l = feat.shape
    ch = x_real.shape[1]
    cout = w.shape[0]
    wf = w[:, :nf]
    wr = w[:, nf:nf + ch]
    wi = w[:, nf + ch:nf + 2 * ch]
    tl = _time_tile(l)
    return pl.pallas_call(
        _in_conv_kernel,
        out_shape=jax.ShapeDtypeStruct((n, cout, l), feat.dtype),
        grid=(n, l // tl),
        in_specs=[pl.BlockSpec((1, nf, tl), lambda i, t: (i, 0, t)),
                  pl.BlockSpec((1, ch, tl), lambda i, t: (i, 0, t)),
                  pl.BlockSpec((1, ch, tl), lambda i, t: (i, 0, t)),
                  _rep_spec(wf.shape), _rep_spec(wr.shape), _rep_spec(wi.shape),
                  _rep_spec(b.shape)],
        out_specs=pl.BlockSpec((1, cout, tl), lambda i, t: (i, 0, t)),
        compiler_params=pltpu.CompilerParams(
            dimension_semantics=("parallel", "parallel"),
            vmem_limit_bytes=_VMEM_LIMIT),
    )(feat, x_real, x_imag, wf, wr, wi, b)


# ---------------------------------------------------------------------------
# Model composition (Pallas forward)
# ---------------------------------------------------------------------------
def stcm_fwd(blocks, x, dilations, num_repeats):
    idx = 0
    for _ in range(num_repeats):
        for d in dilations:
            x = stcm_block_fused(x, blocks[idx], d)
            idx += 1
    return x


def refine_block_fwd(p, feat, x_real, x_imag, *, dilations, num_repeats):
    ri = fused_input_conv(feat, x_real, x_imag, p["conv2"]["w"], p["conv2"]["b"])
    r = stcm_fwd(p["stcm_r"], ri, dilations, num_repeats)
    f_real = pointwise_conv1d(r, p["conv2_ro"]["w"], p["conv2_ro"]["b"])
    im = stcm_fwd(p["stcm_i"], ri, dilations, num_repeats)
    f_imag = pointwise_conv1d(im, p["conv2_io"]["w"], p["conv2_io"]["b"])
    return f_real, f_imag


# ---------------------------------------------------------------------------
# Parameter construction (matches the PyTorch module layout)
# ---------------------------------------------------------------------------
def _conv1x1_params(key, cin, cout, scale=0.1):
    kw, kb = jax.random.split(key)
    return {"w": scale * jax.random.normal(kw, (cout, cin), jnp.float32),
            "b": scale * jax.random.normal(kb, (cout, 1), jnp.float32)}


def _conv3_params(key, cin, cout, scale=0.1):
    kw, kb = jax.random.split(key)
    return {"w": scale * jax.random.normal(kw, (3, cout, cin), jnp.float32),
            "b": scale * jax.random.normal(kb, (cout, 1), jnp.float32)}


def _prelu_cln_params(c):
    return {"a": 0.25 * jnp.ones((c, 1), jnp.float32),
            "gain": jnp.ones((c, 1), jnp.float32),
            "bias": jnp.zeros((c, 1), jnp.float32)}


def _glu_block_params(key, hidden):
    k1, k2 = jax.random.split(key)
    return {"pn1": _prelu_cln_params(hidden), "convD1": _conv3_params(k1, hidden, hidden),
            "pn2": _prelu_cln_params(hidden), "convD2": _conv3_params(k2, hidden, hidden)}


def _stcm_block_params(key, channels, hidden):
    k1, k2, k3 = jax.random.split(key, 3)
    return {"conv_in": _conv1x1_params(k1, channels, hidden),
            "glu": _glu_block_params(k2, hidden),
            "pn": _prelu_cln_params(hidden),
            "conv_out": _conv1x1_params(k3, hidden, channels)}


def _stcm_params(key, channels, hidden, dilations, num_repeats):
    keys = jax.random.split(key, num_repeats * len(dilations))
    return [_stcm_block_params(k, channels, hidden) for k in keys]


def refine_block_params(key, channels, num_features, hidden, dilations, num_repeats):
    k = jax.random.split(key, 5)
    return {"conv2": _conv1x1_params(k[0], 2 * channels + num_features, num_features),
            "stcm_r": _stcm_params(k[1], num_features, hidden, dilations, num_repeats),
            "conv2_ro": _conv1x1_params(k[2], num_features, channels),
            "stcm_i": _stcm_params(k[3], num_features, hidden, dilations, num_repeats),
            "conv2_io": _conv1x1_params(k[4], num_features, channels)}


# ---------------------------------------------------------------------------
# Pure-JAX reference (mirrors PyTorch semantics)
# ---------------------------------------------------------------------------
def _ref_prelu(x, a):
    return jnp.clip(x, 0.0, None) + a[None] * jnp.clip(x, None, 0.0)


def _ref_cln(x, gain, bias, eps=1e-5):
    n, c, l = x.shape
    cs = jnp.cumsum(x.sum(1), axis=1)
    cp = jnp.cumsum((x * x).sum(1), axis=1)
    cnt = jnp.arange(c, c * l + 1, c, dtype=x.dtype).reshape(1, -1)
    mean = cs / cnt
    var = (cp - 2.0 * mean * cs) / cnt + mean * mean
    std = jnp.sqrt(var + eps)
    y = (x - mean[:, None, :]) / std[:, None, :]
    return y * gain[None] + bias[None]


def _ref_pw(x, w, b):
    return jnp.einsum("oc,ncl->nol", w, x, precision=_HIGH) + b[None]


def _ref_dconv(x, w, b, dilation):
    l = x.shape[-1]
    xp = jnp.pad(x, ((0, 0), (0, 0), (2 * dilation, 0)))
    out = b[None]
    for k in range(3):
        out = out + jnp.einsum("oc,ncl->nol", w[k],
                               xp[:, :, k * dilation:k * dilation + l],
                               precision=_HIGH)
    return out


def _ref_glu_block(p, x, dilation):
    y1 = _ref_cln(_ref_prelu(x, p["pn1"]["a"]), p["pn1"]["gain"], p["pn1"]["bias"])
    y1 = _ref_dconv(y1, p["convD1"]["w"], p["convD1"]["b"], dilation)
    y2 = _ref_cln(_ref_prelu(x, p["pn2"]["a"]), p["pn2"]["gain"], p["pn2"]["bias"])
    y2 = _ref_dconv(y2, p["convD2"]["w"], p["convD2"]["b"], dilation)
    return y1 * jax.nn.sigmoid(y2)


def _ref_stcm_block(p, x, dilation):
    h = _ref_pw(x, p["conv_in"]["w"], p["conv_in"]["b"])
    h = _ref_glu_block(p["glu"], h, dilation)
    h = _ref_cln(_ref_prelu(h, p["pn"]["a"]), p["pn"]["gain"], p["pn"]["bias"])
    return _ref_pw(h, p["conv_out"]["w"], p["conv_out"]["b"]) + x


def _ref_stcm(blocks, x, dilations, num_repeats):
    idx = 0
    for _ in range(num_repeats):
        for d in dilations:
            x = _ref_stcm_block(blocks[idx], x, d)
            idx += 1
    return x


def refine_block_ref(p, feat, x_real, x_imag, dilations, num_repeats):
    ri = jnp.concatenate([feat, x_real, x_imag], axis=1)
    ri = _ref_pw(ri, p["conv2"]["w"], p["conv2"]["b"])
    r = _ref_stcm(p["stcm_r"], ri, dilations, num_repeats)
    f_real = _ref_pw(r, p["conv2_ro"]["w"], p["conv2_ro"]["b"])
    im = _ref_stcm(p["stcm_i"], ri, dilations, num_repeats)
    f_imag = _ref_pw(im, p["conv2_io"]["w"], p["conv2_io"]["b"])
    return f_real, f_imag


# ---------------------------------------------------------------------------
if __name__ == "__main__":
    # Small shapes consistent with the module (real model: channels=161,
    # num_features=256, hidden=64, dilations=(1,2,5,9), num_repeats=2).
    CHANNELS, NUM_FEATURES, HIDDEN = 4, 8, 8
    DILATIONS, NUM_REPEATS = (1, 2), 1
    N, L = 2, 16

    key = jax.random.PRNGKey(0)
    kp, kf, kr, ki = jax.random.split(key, 4)
    params = refine_block_params(kp, CHANNELS, NUM_FEATURES, HIDDEN, DILATIONS, NUM_REPEATS)
    feat = jax.random.normal(kf, (N, NUM_FEATURES, L), jnp.float32)
    x_real = jax.random.normal(kr, (N, CHANNELS, L), jnp.float32)
    x_imag = jax.random.normal(ki, (N, CHANNELS, L), jnp.float32)

    fwd = jax.jit(functools.partial(refine_block_fwd,
                                    dilations=DILATIONS, num_repeats=NUM_REPEATS))
    f_real, f_imag = fwd(params, feat, x_real, x_imag)
    f_real = jax.block_until_ready(f_real)
    f_imag = jax.block_until_ready(f_imag)

    r_real, r_imag = refine_block_ref(params, feat, x_real, x_imag, DILATIONS, NUM_REPEATS)

    assert f_real.shape == (N, CHANNELS, L) and f_imag.shape == (N, CHANNELS, L)
    assert f_real.dtype == jnp.float32 and f_imag.dtype == jnp.float32
    err_r = float(jnp.max(jnp.abs(f_real - r_real)))
    err_i = float(jnp.max(jnp.abs(f_imag - r_imag)))
    assert jnp.allclose(f_real, r_real, atol=2e-3, rtol=2e-3), err_r
    assert jnp.allclose(f_imag, r_imag, atol=2e-3, rtol=2e-3), err_i

    print("KERNEL_OK")
</pallas_src>

<mosaic_0001>
module attributes {stable_mosaic.version = 11 : i64} {
  func.func @_in_conv_kernel(%arg0: i32, %arg1: i32, %arg2: memref<1x8x16xf32, #tpu.memory_space<vmem>>, %arg3: memref<1x4x16xf32, #tpu.memory_space<vmem>>, %arg4: memref<1x4x16xf32, #tpu.memory_space<vmem>>, %arg5: memref<8x8xf32, #tpu.memory_space<vmem>>, %arg6: memref<8x4xf32, #tpu.memory_space<vmem>>, %arg7: memref<8x4xf32, #tpu.memory_space<vmem>>, %arg8: memref<8x1xf32, #tpu.memory_space<vmem>>, %arg9: memref<1x8x16xf32, #tpu.memory_space<vmem>>) attributes {dimension_semantics = [#tpu.dimension_semantics<parallel>, #tpu.dimension_semantics<parallel>], iteration_bounds = array<i64: 2, 1>, scalar_prefetch = 0 : i64, scratch_operands = 0 : i64, tpu.core_type = #tpu.core_type<tc>, window_params = [{transform_indices = @transform_0, window_bounds = array<i64: 1, 8, 16>}, {transform_indices = @transform_1, window_bounds = array<i64: 1, 4, 16>}, {transform_indices = @transform_2, window_bounds = array<i64: 1, 4, 16>}, {pipeline_mode = #tpu.pipeline_mode<synchronous>, transform_indices = @transform_3, window_bounds = array<i64: 8, 8>}, {pipeline_mode = #tpu.pipeline_mode<synchronous>, transform_indices = @transform_4, window_bounds = array<i64: 8, 4>}, {pipeline_mode = #tpu.pipeline_mode<synchronous>, transform_indices = @transform_5, window_bounds = array<i64: 8, 4>}, {pipeline_mode = #tpu.pipeline_mode<synchronous>, transform_indices = @transform_6, window_bounds = array<i64: 8, 1>}, {transform_indices = @transform_7, window_bounds = array<i64: 1, 8, 16>}]} {
    %c0 = arith.constant 0 : index
    %c0_0 = arith.constant 0 : index
    %0 = vector.load %arg5[%c0, %c0_0] : memref<8x8xf32, #tpu.memory_space<vmem>>, vector<8x8xf32>
    %c0_1 = arith.constant 0 : index
    %c0_2 = arith.constant 0 : index
    %c0_3 = arith.constant 0 : index
    %1 = vector.load %arg2[%c0_1, %c0_2, %c0_3] : memref<1x8x16xf32, #tpu.memory_space<vmem>>, vector<1x8x16xf32>
    %2 = vector.shape_cast %1 : vector<1x8x16xf32> to vector<8x16xf32>
    %cst = arith.constant dense<0.000000e+00> : vector<8x16xf32>
    %3 = tpu.matmul %0, %2, %cst {dimension_numbers = #tpu.dot_dimension_numbers<[1], [0], [0], [1], [0, 0, 1, 1], [], []>, precision = #tpu.contract_precision<fp32>} : vector<8x8xf32>, vector<8x16xf32>, vector<8x16xf32> -> vector<8x16xf32>
    %c0_4 = arith.constant 0 : index
    %c0_5 = arith.constant 0 : index
    %4 = vector.load %arg6[%c0_4, %c0_5] : memref<8x4xf32, #tpu.memory_space<vmem>>, vector<8x4xf32>
    %c0_6 = arith.constant 0 : index
    %c0_7 = arith.constant 0 : index
    %c0_8 = arith.constant 0 : index
    %5 = vector.load %arg3[%c0_6, %c0_7, %c0_8] : memref<1x4x16xf32, #tpu.memory_space<vmem>>, vector<1x4x16xf32>
    %6 = vector.shape_cast %5 : vector<1x4x16xf32> to vector<4x16xf32>
    %cst_9 = arith.constant dense<0.000000e+00> : vector<8x16xf32>
    %7 = tpu.matmul %4, %6, %cst_9 {dimension_numbers = #tpu.dot_dimension_numbers<[1], [0], [0], [1], [0, 0, 1, 1], [], []>, precision = #tpu.contract_precision<fp32>} : vector<8x4xf32>, vector<4x16xf32>, vector<8x16xf32> -> vector<8x16xf32>
    %8 = arith.addf %3, %7 : vector<8x16xf32>
    %c0_10 = arith.constant 0 : index
    %c0_11 = arith.constant 0 : index
    %9 = vector.load %arg7[%c0_10, %c0_11] : memref<8x4xf32, #tpu.memory_space<vmem>>, vector<8x4xf32>
    %c0_12 = arith.constant 0 : index
    %c0_13 = arith.constant 0 : index
    %c0_14 = arith.constant 0 : index
    %10 = vector.load %arg4[%c0_12, %c0_13, %c0_14] : memref<1x4x16xf32, #tpu.memory_space<vmem>>, vector<1x4x16xf32>
    %11 = vector.shape_cast %10 : vector<1x4x16xf32> to vector<4x16xf32>
    %cst_15 = arith.constant dense<0.000000e+00> : vector<8x16xf32>
    %12 = tpu.matmul %9, %11, %cst_15 {dimension_numbers = #tpu.dot_dimension_numbers<[1], [0], [0], [1], [0, 0, 1, 1], [], []>, precision = #tpu.contract_precision<fp32>} : vector<8x4xf32>, vector<4x16xf32>, vector<8x16xf32> -> vector<8x16xf32>
    %13 = arith.addf %8, %12 : vector<8x16xf32>
    %c0_16 = arith.constant 0 : index
    %c0_17 = arith.constant 0 : index
    %14 = vector.load %arg8[%c0_16, %c0_17] : memref<8x1xf32, #tpu.memory_space<vmem>>, vector<8x1xf32>
    %15 = vector.broadcast %14 : vector<8x1xf32> to vector<8x16xf32>
    %16 = arith.addf %13, %15 : vector<8x16xf32>
    %17 = vector.shape_cast %16 : vector<8x16xf32> to vector<1x8x16xf32>
    %c0_18 = arith.constant 0 : index
    %c0_19 = arith.constant 0 : index
    %c0_20 = arith.constant 0 : index
    %18 = vector.load %arg9[%c0_18, %c0_19, %c0_20] : memref<1x8x16xf32, #tpu.memory_space<vmem>>, vector<1x8x16xf32>
    tpu.vector_store %arg9[%c0_18, %c0_19, %c0_20], %17 {strides = array<i32>} : memref<1x8x16xf32, #tpu.memory_space<vmem>>, vector<1x8x16xf32>,
    return
  }
  func.func @transform_0(%arg0: i32, %arg1: i32) -> (i32, i32, i32) {
    %c0_i32 = arith.constant 0 : i32
    %c0_i32_0 = arith.constant 0 : i32
    return %arg0, %c0_i32, %arg1 : i32, i32, i32
  }
  func.func @transform_1(%arg0: i32, %arg1: i32) -> (i32, i32, i32) {
    %c0_i32 = arith.constant 0 : i32
    %c0_i32_0 = arith.constant 0 : i32
    return %arg0, %c0_i32, %arg1 : i32, i32, i32
  }
  func.func @transform_2(%arg0: i32, %arg1: i32) -> (i32, i32, i32) {
    %c0_i32 = arith.constant 0 : i32
    %c0_i32_0 = arith.constant 0 : i32
    return %arg0, %c0_i32, %arg1 : i32, i32, i32
  }
  func.func @transform_3(%arg0: i32, %arg1: i32) -> (i32, i32) {
    %c0_i32 = arith.constant 0 : i32
    %c0_i32_0 = arith.constant 0 : i32
    %c0_i32_1 = arith.constant 0 : i32
    return %c0_i32, %c0_i32_0 : i32, i32
  }
  func.func @transform_4(%arg0: i32, %arg1: i32) -> (i32, i32) {
    %c0_i32 = arith.constant 0 : i32
    %c0_i32_0 = arith.constant 0 : i32
    %c0_i32_1 = arith.constant 0 : i32
    return %c0_i32, %c0_i32_0 : i32, i32
  }
  func.func @transform_5(%arg0: i32, %arg1: i32) -> (i32, i32) {
    %c0_i32 = arith.constant 0 : i32
    %c0_i32_0 = arith.constant 0 : i32
    %c0_i32_1 = arith.constant 0 : i32
    return %c0_i32, %c0_i32_0 : i32, i32
  }
  func.func @transform_6(%arg0: i32, %arg1: i32) -> (i32, i32) {
    %c0_i32 = arith.constant 0 : i32
    %c0_i32_0 = arith.constant 0 : i32
    %c0_i32_1 = arith.constant 0 : i32
    return %c0_i32, %c0_i32_0 : i32, i32
  }
  func.func @transform_7(%arg0: i32, %arg1: i32) -> (i32, i32, i32) {
    %c0_i32 = arith.constant 0 : i32
    %c0_i32_0 = arith.constant 0 : i32
    return %arg0, %c0_i32, %arg1 : i32, i32, i32
  }
}

module attributes {stable_mosaic.version = 11 : i64} {
  func.func @_stcm_block_kernel(%arg0: i32, %arg1: memref<1x8x16xf32, #tpu.memory_space<vmem>>, %arg2: memref<8x8xf32, #tpu.memory_space<vmem>>, %arg3: memref<8x1xf32, #tpu.memory_space<vmem>>, %arg4: memref<8x24xf32, #tpu.memory_space<vmem>>, %arg5: memref<8x1xf32, #tpu.memory_space<vmem>>, %arg6: memref<8x24xf32, #tpu.memory_space<vmem>>, %arg7: memref<8x1xf32, #tpu.memory_space<vmem>>, %arg8: memref<8x8xf32, #tpu.memory_space<vmem>>, %arg9: memref<8x1xf32, #tpu.memory_space<vmem>>, %arg10: memref<3x8x1xf32, #tpu.memory_space<vmem>>, %arg11: memref<3x8x1xf32, #tpu.memory_space<vmem>>, %arg12: memref<3x8x1xf32, #tpu.memory_space<vmem>>, %arg13: memref<1x8x16xf32, #tpu.memory_space<vmem>>) attributes {dimension_semantics = [#tpu.dimension_semantics<parallel>], iteration_bounds = array<i64: 2>, scalar_prefetch = 0 : i64, scratch_operands = 0 : i64, tpu.core_type = #tpu.core_type<tc>, window_params = [{transform_indices = @transform_0, window_bounds = array<i64: 1, 8, 16>}, {pipeline_mode = #tpu.pipeline_mode<synchronous>, transform_indices = @transform_1, window_bounds = array<i64: 8, 8>}, {pipeline_mode = #tpu.pipeline_mode<synchronous>, transform_indices = @transform_2, window_bounds = array<i64: 8, 1>}, {pipeline_mode = #tpu.pipeline_mode<synchronous>, transform_indices = @transform_3, window_bounds = array<i64: 8, 24>}, {pipeline_mode = #tpu.pipeline_mode<synchronous>, transform_indices = @transform_4, window_bounds = array<i64: 8, 1>}, {pipeline_mode = #tpu.pipeline_mode<synchronous>, transform_indices = @transform_5, window_bounds = array<i64: 8, 24>}, {pipeline_mode = #tpu.pipeline_mode<synchronous>, transform_indices = @transform_6, window_bounds = array<i64: 8, 1>}, {pipeline_mode = #tpu.pipeline_mode<synchronous>, transform_indices = @transform_7, window_bounds = array<i64: 8, 8>}, {pipeline_mode = #tpu.pipeline_mode<synchronous>, transform_indices = @transform_8, window_bounds = array<i64: 8, 1>}, {pipeline_mode = #tpu.pipeline_mode<synchronous>, transform_indices = @transform_9, window_bounds = array<i64: 3, 8, 1>}, {pipeline_mode = #tpu.pipeline_mode<synchronous>, transform_indices = @transform_10, window_bounds = array<i64: 3, 8, 1>}, {pipeline_mode = #tpu.pipeline_mode<synchronous>, transform_indices = @transform_11, window_bounds = array<i64: 3, 8, 1>}, {transform_indices = @transform_12, window_bounds = array<i64: 1, 8, 16>}]} {
    %c0 = arith.constant 0 : index
    %c0_0 = arith.constant 0 : index
    %c0_1 = arith.constant 0 : index
    %0 = vector.load %arg1[%c0, %c0_0, %c0_1] : memref<1x8x16xf32, #tpu.memory_space<vmem>>, vector<1x8x16xf32>
    %1 = vector.shape_cast %0 : vector<1x8x16xf32> to vector<8x16xf32>
    %c0_2 = arith.constant 0 : index
    %c0_3 = arith.constant 0 : index
    %2 = vector.load %arg2[%c0_2, %c0_3] : memref<8x8xf32, #tpu.memory_space<vmem>>, vector<8x8xf32>
    %cst = arith.constant dense<0.000000e+00> : vector<8x16xf32>
    %3 = tpu.matmul %2, %1, %cst {dimension_numbers = #tpu.dot_dimension_numbers<[1], [0], [0], [1], [0, 0, 1, 1], [], []>, precision = #tpu.contract_precision<fp32>} : vector<8x8xf32>, vector<8x16xf32>, vector<8x16xf32> -> vector<8x16xf32>
    %c0_4 = arith.constant 0 : index
    %c0_5 = arith.constant 0 : index
    %4 = vector.load %arg3[%c0_4, %c0_5] : memref<8x1xf32, #tpu.memory_space<vmem>>, vector<8x1xf32>
    %5 = vector.broadcast %4 : vector<8x1xf32> to vector<8x16xf32>
    %6 = arith.addf %3, %5 : vector<8x16xf32>
    %c0_6 = arith.constant 0 : index
    %c0_7 = arith.constant 0 : index
    %c0_8 = arith.constant 0 : index
    %7 = vector.load %arg10[%c0_6, %c0_7, %c0_8] : memref<3x8x1xf32, #tpu.memory_space<vmem>>, vector<1x8x1xf32>
    %8 = vector.shape_cast %7 : vector<1x8x1xf32> to vector<8x1xf32>
    %c0_9 = arith.constant 0 : index
    %c0_10 = arith.constant 0 : index
    %c0_11 = arith.constant 0 : index
    %9 = vector.load %arg11[%c0_9, %c0_10, %c0_11] : memref<3x8x1xf32, #tpu.memory_space<vmem>>, vector<1x8x1xf32>
    %10 = vector.shape_cast %9 : vector<1x8x1xf32> to vector<8x1xf32>
    %c0_12 = arith.constant 0 : index
    %c0_13 = arith.constant 0 : index
    %c0_14 = arith.constant 0 : index
    %11 = vector.load %arg12[%c0_12, %c0_13, %c0_14] : memref<3x8x1xf32, #tpu.memory_space<vmem>>, vector<1x8x1xf32>
    %12 = vector.shape_cast %11 : vector<1x8x1xf32> to vector<8x1xf32>
    %cst_15 = arith.constant 0.000000e+00 : f32
    %13 = vector.broadcast %cst_15 : f32 to vector<8x16xf32>
    %14 = arith.maximumf %6, %13 : vector<8x16xf32>
    %cst_16 = arith.constant 0.000000e+00 : f32
    %15 = vector.broadcast %cst_16 : f32 to vector<8x16xf32>
    %16 = arith.minimumf %6, %15 : vector<8x16xf32>
    %17 = vector.broadcast %8 : vector<8x1xf32> to vector<8x16xf32>
    %18 = arith.mulf %17, %16 : vector<8x16xf32>
    %19 = arith.addf %14, %18 : vector<8x16xf32>
    %cst_17 = arith.constant dense<0.000000e+00> : vector<16xf32>
    %20 = vector.multi_reduction <add>, %19, %cst_17 [0] : vector<8x16xf32> to vector<16xf32>
    %21 = vector.shape_cast %20 : vector<16xf32> to vector<1x16xf32>
    %22 = arith.mulf %19, %19 : vector<8x16xf32>
    %cst_18 = arith.constant dense<0.000000e+00> : vector<16xf32>
    %23 = vector.multi_reduction <add>, %22, %cst_18 [0] : vector<8x16xf32> to vector<16xf32>
    %24 = vector.shape_cast %23 : vector<16xf32> to vector<1x16xf32>
    %25 = tpu.concatenate %21, %24 in 0 : vector<1x16xf32>, vector<1x16xf32> -> vector<2x16xf32>
    %26 = tpu.iota {dimensions = array<i32: 0>} : vector<16x16xi32>
    %27 = tpu.iota {dimensions = array<i32: 1>} : vector<16x16xi32>
    %28 = arith.cmpi sle, %26, %27 : vector<16x16xi32>
    %29 = arith.extui %28 : vector<16x16xi1> to vector<16x16xi32>
    %30 = arith.sitofp %29 : vector<16x16xi32> to vector<16x16xf32>
    %cst_19 = arith.constant dense<0.000000e+00> : vector<2x16xf32>
    %31 = tpu.matmul %25, %30, %cst_19 {dimension_numbers = #tpu.dot_dimension_numbers<[1], [0], [0], [1], [0, 0, 1, 1], [], []>, precision = #tpu.contract_precision<fp32>} : vector<2x16xf32>, vector<16x16xf32>, vector<2x16xf32> -> vector<2x16xf32>
    %32 = vector.extract_strided_slice %31 {offsets = [0, 0], sizes = [1, 16], strides = [1, 1]} : vector<2x16xf32> to vector<1x16xf32>
    %33 = vector.extract_strided_slice %31 {offsets = [1, 0], sizes = [1, 16], strides = [1, 1]} : vector<2x16xf32> to vector<1x16xf32>
    %34 = tpu.iota {dimensions = array<i32: 1>} : vector<1x16xi32>
    %35 = arith.sitofp %34 : vector<1x16xi32> to vector<1x16xf32>
    %cst_20 = arith.constant 1.000000e+00 : f32
    %36 = vector.broadcast %cst_20 : f32 to vector<1x16xf32>
    %37 = arith.addf %35, %36 : vector<1x16xf32>
    %cst_21 = arith.constant 8.000000e+00 : f32
    %38 = vector.broadcast %cst_21 : f32 to vector<1x16xf32>
    %39 = arith.mulf %37, %38 : vector<1x16xf32>
    %40 = arith.divf %32, %39 : vector<1x16xf32>
    %cst_22 = arith.constant 2.000000e+00 : f32
    %41 = vector.broadcast %cst_22 : f32 to vector<1x16xf32>
    %42 = arith.mulf %41, %40 : vector<1x16xf32>
    %43 = arith.mulf %42, %32 : vector<1x16xf32>
    %44 = arith.subf %33, %43 : vector<1x16xf32>
    %45 = arith.divf %44, %39 : vector<1x16xf32>
    %46 = arith.mulf %40, %40 : vector<1x16xf32>
    %47 = arith.addf %45, %46 : vector<1x16xf32>
    %cst_23 = arith.constant 9.99999974E-6 : f32
    %48 = vector.broadcast %cst_23 : f32 to vector<1x16xf32>
    %49 = arith.addf %47, %48 : vector<1x16xf32>
    %50 = math.rsqrt %49 : vector<1x16xf32>
    %51 = vector.broadcast %40 : vector<1x16xf32> to vector<8x16xf32>
    %52 = arith.subf %19, %51 : vector<8x16xf32>
    %53 = vector.broadcast %50 : vector<1x16xf32> to vector<8x16xf32>
    %54 = arith.mulf %52, %53 : vector<8x16xf32>
    %55 = vector.broadcast %10 : vector<8x1xf32> to vector<8x16xf32>
    %56 = arith.mulf %54, %55 : vector<8x16xf32>
    %57 = vector.broadcast %12 : vector<8x1xf32> to vector<8x16xf32>
    %58 = arith.addf %56, %57 : vector<8x16xf32>
    %c0_24 = arith.constant 0 : index
    %c0_25 = arith.constant 0 : index
    %59 = vector.load %arg4[%c0_24, %c0_25] : memref<8x24xf32, #tpu.memory_space<vmem>>, vector<8x24xf32>
    %c0_26 = arith.constant 0 : index
    %c0_27 = arith.constant 0 : index
    %60 = vector.load %arg5[%c0_26, %c0_27] : memref<8x1xf32, #tpu.memory_space<vmem>>, vector<8x1xf32>
    %cst_28 = arith.constant 0.000000e+00 : f32
    %61 = vector.broadcast %cst_28 : f32 to vector<8x2xf32>
    %62 = tpu.concatenate %61, %58 in 1 : vector<8x2xf32>, vector<8x16xf32> -> vector<8x18xf32>
    %63 = vector.extract_strided_slice %62 {offsets = [0, 0], sizes = [8, 16], strides = [1, 1]} : vector<8x18xf32> to vector<8x16xf32>
    %64 = vector.extract_strided_slice %62 {offsets = [0, 1], sizes = [8, 16], strides = [1, 1]} : vector<8x18xf32> to vector<8x16xf32>
    %65 = vector.extract_strided_slice %62 {offsets = [0, 2], sizes = [8, 16], strides = [1, 1]} : vector<8x18xf32> to vector<8x16xf32>
    %66 = tpu.concatenate %63, %64, %65 in 0 : vector<8x16xf32>, vector<8x16xf32>, vector<8x16xf32> -> vector<24x16xf32>
    %cst_29 = arith.constant dense<0.000000e+00> : vector<8x16xf32>
    %67 = tpu.matmul %59, %66, %cst_29 {dimension_numbers = #tpu.dot_dimension_numbers<[1], [0], [0], [1], [0, 0, 1, 1], [], []>, precision = #tpu.contract_precision<fp32>} : vector<8x24xf32>, vector<24x16xf32>, vector<8x16xf32> -> vector<8x16xf32>
    %68 = vector.broadcast %60 : vector<8x1xf32> to vector<8x16xf32>
    %69 = arith.addf %67, %68 : vector<8x16xf32>
    %c1 = arith.constant 1 : index
    %c0_30 = arith.constant 0 : index
    %c0_31 = arith.constant 0 : index
    %70 = vector.load %arg10[%c1, %c0_30, %c0_31] : memref<3x8x1xf32, #tpu.memory_space<vmem>>, vector<1x8x1xf32>
    %71 = vector.shape_cast %70 : vector<1x8x1xf32> to vector<8x1xf32>
    %c1_32 = arith.constant 1 : index
    %c0_33 = arith.constant 0 : index
    %c0_34 = arith.constant 0 : index
    %72 = vector.load %arg11[%c1_32, %c0_33, %c0_34] : memref<3x8x1xf32, #tpu.memory_space<vmem>>, vector<1x8x1xf32>
    %73 = vector.shape_cast %72 : vector<1x8x1xf32> to vector<8x1xf32>
    %c1_35 = arith.constant 1 : index
    %c0_36 = arith.constant 0 : index
    %c0_37 = arith.constant 0 : index
    %74 = vector.load %arg12[%c1_35, %c0_36, %c0_37] : memref<3x8x1xf32, #tpu.memory_space<vmem>>, vector<1x8x1xf32>
    %75 = vector.shape_cast %74 : vector<1x8x1xf32> to vector<8x1xf32>
    %cst_38 = arith.constant 0.000000e+00 : f32
    %76 = vector.broadcast %cst_38 : f32 to vector<8x16xf32>
    %77 = arith.maximumf %6, %76 : vector<8x16xf32>
    %cst_39 = arith.constant 0.000000e+00 : f32
    %78 = vector.broadcast %cst_39 : f32 to vector<8x16xf32>
    %79 = arith.minimumf %6, %78 : vector<8x16xf32>
    %80 = vector.broadcast %71 : vector<8x1xf32> to vector<8x16xf32>
    %81 = arith.mulf %80, %79 : vector<8x16xf32>
    %82 = arith.addf %77, %81 : vector<8x16xf32>
    %cst_40 = arith.constant dense<0.000000e+00> : vector<16xf32>
    %83 = vector.multi_reduction <add>, %82, %cst_40 [0] : vector<8x16xf32> to vector<16xf32>
    %84 = vector.shape_cast %83 : vector<16xf32> to vector<1x16xf32>
    %85 = arith.mulf %82, %82 : vector<8x16xf32>
    %cst_41 = arith.constant dense<0.000000e+00> : vector<16xf32>
    %86 = vector.multi_reduction <add>, %85, %cst_41 [0] : vector<8x16xf32> to vector<16xf32>
    %87 = vector.shape_cast %86 : vector<16xf32> to vector<1x16xf32>
    %88 = tpu.concatenate %84, %87 in 0 : vector<1x16xf32>, vector<1x16xf32> -> vector<2x16xf32>
    %89 = tpu.iota {dimensions = array<i32: 0>} : vector<16x16xi32>
    %90 = tpu.iota {dimensions = array<i32: 1>} : vector<16x16xi32>
    %91 = arith.cmpi sle, %89, %90 : vector<16x16xi32>
    %92 = arith.extui %91 : vector<16x16xi1> to vector<16x16xi32>
    %93 = arith.sitofp %92 : vector<16x16xi32> to vector<16x16xf32>
    %cst_42 = arith.constant dense<0.000000e+00> : vector<2x16xf32>
    %94 = tpu.matmul %88, %93, %cst_42 {dimension_numbers = #tpu.dot_dimension_numbers<[1], [0], [0], [1], [0, 0, 1, 1], [], []>, precision = #tpu.contract_precision<fp32>} : vector<2x16xf32>, vector<16x16xf32>, vector<2x16xf32> -> vector<2x16xf32>
    %95 = vector.extract_strided_slice %94 {offsets = [0, 0], sizes = [1, 16], strides = [1, 1]} : vector<2x16xf32> to vector<1x16xf32>
    %96 = vector.extract_strided_slice %94 {offsets = [1, 0], sizes = [1, 16], strides = [1, 1]} : vector<2x16xf32> to vector<1x16xf32>
    %97 = tpu.iota {dimensions = array<i32: 1>} : vector<1x16xi32>
    %98 = arith.sitofp %97 : vector<1x16xi32> to vector<1x16xf32>
    %cst_43 = arith.constant 1.000000e+00 : f32
    %99 = vector.broadcast %cst_43 : f32 to vector<1x16xf32>
    %100 = arith.addf %98, %99 : vector<1x16xf32>
    %cst_44 = arith.constant 8.000000e+00 : f32
    %101 = vector.broadcast %cst_44 : f32 to vector<1x16xf32>
    %102 = arith.mulf %100, %101 : vector<1x16xf32>
    %103 = arith.divf %95, %102 : vector<1x16xf32>
    %cst_45 = arith.constant 2.000000e+00 : f32
    %104 = vector.broadcast %cst_45 : f32 to vector<1x16xf32>
    %105 = arith.mulf %104, %103 : vector<1x16xf32>
    %106 = arith.mulf %105, %95 : vector<1x16xf32>
    %107 = arith.subf %96, %106 : vector<1x16xf32>
    %108 = arith.divf %107, %102 : vector<1x16xf32>
    %109 = arith.mulf %103, %103 : vector<1x16xf32>
    %110 = arith.addf %108, %109 : vector<1x16xf32>
    %cst_46 = arith.constant 9.99999974E-6 : f32
    %111 = vector.broadcast %cst_46 : f32 to vector<1x16xf32>
    %112 = arith.addf %110, %111 : vector<1x16xf32>
    %113 = math.rsqrt %112 : vector<1x16xf32>
    %114 = vector.broadcast %103 : vector<1x16xf32> to vector<8x16xf32>
    %115 = arith.subf %82, %114 : vector<8x16xf32>
    %116 = vector.broadcast %113 : vector<1x16xf32> to vector<8x16xf32>
    %117 = arith.mulf %115, %116 : vector<8x16xf32>
    %118 = vector.broadcast %73 : vector<8x1xf32> to vector<8x16xf32>
    %119 = arith.mulf %117, %118 : vector<8x16xf32>
    %120 = vector.broadcast %75 : vector<8x1xf32> to vector<8x16xf32>
    %121 = arith.addf %119, %120 : vector<8x16xf32>
    %c0_47 = arith.constant 0 : index
    %c0_48 = arith.constant 0 : index
    %122 = vector.load %arg6[%c0_47, %c0_48] : memref<8x24xf32, #tpu.memory_space<vmem>>, vector<8x24xf32>
    %c0_49 = arith.constant 0 : index
    %c0_50 = arith.constant 0 : index
    %123 = vector.load %arg7[%c0_49, %c0_50] : memref<8x1xf32, #tpu.memory_space<vmem>>, vector<8x1xf32>
    %cst_51 = arith.constant 0.000000e+00 : f32
    %124 = vector.broadcast %cst_51 : f32 to vector<8x2xf32>
    %125 = tpu.concatenate %124, %121 in 1 : vector<8x2xf32>, vector<8x16xf32> -> vector<8x18xf32>
    %126 = vector.extract_strided_slice %125 {offsets = [0, 0], sizes = [8, 16], strides = [1, 1]} : vector<8x18xf32> to vector<8x16xf32>
    %127 = vector.extract_strided_slice %125 {offsets = [0, 1], sizes = [8, 16], strides = [1, 1]} : vector<8x18xf32> to vector<8x16xf32>
    %128 = vector.extract_strided_slice %125 {offsets = [0, 2], sizes = [8, 16], strides = [1, 1]} : vector<8x18xf32> to vector<8x16xf32>
    %129 = tpu.concatenate %126, %127, %128 in 0 : vector<8x16xf32>, vector<8x16xf32>, vector<8x16xf32> -> vector<24x16xf32>
    %cst_52 = arith.constant dense<0.000000e+00> : vector<8x16xf32>
    %130 = tpu.matmul %122, %129, %cst_52 {dimension_numbers = #tpu.dot_dimension_numbers<[1], [0], [0], [1], [0, 0, 1, 1], [], []>, precision = #tpu.contract_precision<fp32>} : vector<8x24xf32>, vector<24x16xf32>, vector<8x16xf32> -> vector<8x16xf32>
    %131 = vector.broadcast %123 : vector<8x1xf32> to vector<8x16xf32>
    %132 = arith.addf %130, %131 : vector<8x16xf32>
    %133 = arith.negf %132 : vector<8x16xf32>
    %134 = math.exp %133 : vector<8x16xf32>
    %cst_53 = arith.constant 1.000000e+00 : f32
    %135 = vector.broadcast %cst_53 : f32 to vector<8x16xf32>
    %136 = arith.addf %135, %134 : vector<8x16xf32>
    %137 = arith.divf %135, %136 : vector<8x16xf32>
    %138 = arith.mulf %69, %137 : vector<8x16xf32>
    %c2 = arith.constant 2 : index
    %c0_54 = arith.constant 0 : index
    %c0_55 = arith.constant 0 : index
    %139 = vector.load %arg10[%c2, %c0_54, %c0_55] : memref<3x8x1xf32, #tpu.memory_space<vmem>>, vector<1x8x1xf32>
    %140 = vector.shape_cast %139 : vector<1x8x1xf32> to vector<8x1xf32>
    %c2_56 = arith.constant 2 : index
    %c0_57 = arith.constant 0 : index
    %c0_58 = arith.constant 0 : index
    %141 = vector.load %arg11[%c2_56, %c0_57, %c0_58] : memref<3x8x1xf32, #tpu.memory_space<vmem>>, vector<1x8x1xf32>
    %142 = vector.shape_cast %141 : vector<1x8x1xf32> to vector<8x1xf32>
    %c2_59 = arith.constant 2 : index
    %c0_60 = arith.constant 0 : index
    %c0_61 = arith.constant 0 : index
    %143 = vector.load %arg12[%c2_59, %c0_60, %c0_61] : memref<3x8x1xf32, #tpu.memory_space<vmem>>, vector<1x8x1xf32>
    %144 = vector.shape_cast %143 : vector<1x8x1xf32> to vector<8x1xf32>
    %cst_62 = arith.constant 0.000000e+00 : f32
    %145 = vector.broadcast %cst_62 : f32 to vector<8x16xf32>
    %146 = arith.maximumf %138, %145 : vector<8x16xf32>
    %cst_63 = arith.constant 0.000000e+00 : f32
    %147 = vector.broadcast %cst_63 : f32 to vector<8x16xf32>
    %148 = arith.minimumf %138, %147 : vector<8x16xf32>
    %149 = vector.broadcast %140 : vector<8x1xf32> to vector<8x16xf32>
    %150 = arith.mulf %149, %148 : vector<8x16xf32>
    %151 = arith.addf %146, %150 : vector<8x16xf32>
    %cst_64 = arith.constant dense<0.000000e+00> : vector<16xf32>
    %152 = vector.multi_reduction <add>, %151, %cst_64 [0] : vector<8x16xf32> to vector<16xf32>
    %153 = vector.shape_cast %152 : vector<16xf32> to vector<1x16xf32>
    %154 = arith.mulf %151, %151 : vector<8x16xf32>
    %cst_65 = arith.constant dense<0.000000e+00> : vector<16xf32>
    %155 = vector.multi_reduction <add>, %154, %cst_65 [0] : vector<8x16xf32> to vector<16xf32>
    %156 = vector.shape_cast %155 : vector<16xf32> to vector<1x16xf32>
    %157 = tpu.concatenate %153, %156 in 0 : vector<1x16xf32>, vector<1x16xf32> -> vector<2x16xf32>
    %158 = tpu.iota {dimensions = array<i32: 0>} : vector<16x16xi32>
    %159 = tpu.iota {dimensions = array<i32: 1>} : vector<16x16xi32>
    %160 = arith.cmpi sle, %158, %159 : vector<16x16xi32>
    %161 = arith.extui %160 : vector<16x16xi1> to vector<16x16xi32>
    %162 = arith.sitofp %161 : vector<16x16xi32> to vector<16x16xf32>
    %cst_66 = arith.constant dense<0.000000e+00> : vector<2x16xf32>
    %163 = tpu.matmul %157, %162, %cst_66 {dimension_numbers = #tpu.dot_dimension_numbers<[1], [0], [0], [1], [0, 0, 1, 1], [], []>, precision = #tpu.contract_precision<fp32>} : vector<2x16xf32>, vector<16x16xf32>, vector<2x16xf32> -> vector<2x16xf32>
    %164 = vector.extract_strided_slice %163 {offsets = [0, 0], sizes = [1, 16], strides = [1, 1]} : vector<2x16xf32> to vector<1x16xf32>
    %165 = vector.extract_strided_slice %163 {offsets = [1, 0], sizes = [1, 16], strides = [1, 1]} : vector<2x16xf32> to vector<1x16xf32>
    %166 = tpu.iota {dimensions = array<i32: 1>} : vector<1x16xi32>
    %167 = arith.sitofp %166 : vector<1x16xi32> to vector<1x16xf32>
    %cst_67 = arith.constant 1.000000e+00 : f32
    %168 = vector.broadcast %cst_67 : f32 to vector<1x16xf32>
    %169 = arith.addf %167, %168 : vector<1x16xf32>
    %cst_68 = arith.constant 8.000000e+00 : f32
    %170 = vector.broadcast %cst_68 : f32 to vector<1x16xf32>
    %171 = arith.mulf %169, %170 : vector<1x16xf32>
    %172 = arith.divf %164, %171 : vector<1x16xf32>
    %cst_69 = arith.constant 2.000000e+00 : f32
    %173 = vector.broadcast %cst_69 : f32 to vector<1x16xf32>
    %174 = arith.mulf %173, %172 : vector<1x16xf32>
    %175 = arith.mulf %174, %164 : vector<1x16xf32>
    %176 = arith.subf %165, %175 : vector<1x16xf32>
    %177 = arith.divf %176, %171 : vector<1x16xf32>
    %178 = arith.mulf %172, %172 : vector<1x16xf32>
    %179 = arith.addf %177, %178 : vector<1x16xf32>
    %cst_70 = arith.constant 9.99999974E-6 : f32
    %180 = vector.broadcast %cst_70 : f32 to vector<1x16xf32>
    %181 = arith.addf %179, %180 : vector<1x16xf32>
    %182 = math.rsqrt %181 : vector<1x16xf32>
    %183 = vector.broadcast %172 : vector<1x16xf32> to vector<8x16xf32>
    %184 = arith.subf %151, %183 : vector<8x16xf32>
    %185 = vector.broadcast %182 : vector<1x16xf32> to vector<8x16xf32>
    %186 = arith.mulf %184, %185 : vector<8x16xf32>
    %187 = vector.broadcast %142 : vector<8x1xf32> to vector<8x16xf32>
    %188 = arith.mulf %186, %187 : vector<8x16xf32>
    %189 = vector.broadcast %144 : vector<8x1xf32> to vector<8x16xf32>
    %190 = arith.addf %188, %189 : vector<8x16xf32>
    %c0_71 = arith.constant 0 : index
    %c0_72 = arith.constant 0 : index
    %191 = vector.load %arg8[%c0_71, %c0_72] : memref<8x8xf32, #tpu.memory_space<vmem>>, vector<8x8xf32>
    %cst_73 = arith.constant dense<0.000000e+00> : vector<8x16xf32>
    %192 = tpu.matmul %191, %190, %cst_73 {dimension_numbers = #tpu.dot_dimension_numbers<[1], [0], [0], [1], [0, 0, 1, 1], [], []>, precision = #tpu.contract_precision<fp32>} : vector<8x8xf32>, vector<8x16xf32>, vector<8x16xf32> -> vector<8x16xf32>
    %c0_74 = arith.constant 0 : index
    %c0_75 = arith.constant 0 : index
    %193 = vector.load %arg9[%c0_74, %c0_75] : memref<8x1xf32, #tpu.memory_space<vmem>>, vector<8x1xf32>
    %194 = vector.broadcast %193 : vector<8x1xf32> to vector<8x16xf32>
    %195 = arith.addf %192, %194 : vector<8x16xf32>
    %196 = arith.addf %195, %1 : vector<8x16xf32>
    %197 = vector.shape_cast %196 : vector<8x16xf32> to vector<1x8x16xf32>
    %c0_76 = arith.constant 0 : index
    %c0_77 = arith.constant 0 : index
    %c0_78 = arith.constant 0 : index
    %198 = vector.load %arg13[%c0_76, %c0_77, %c0_78] : memref<1x8x16xf32, #tpu.memory_space<vmem>>, vector<1x8x16xf32>
    tpu.vector_store %arg13[%c0_76, %c0_77, %c0_78], %197 {strides = array<i32>} : memref<1x8x16xf32, #tpu.memory_space<vmem>>, vector<1x8x16xf32>,
    return
  }
  func.func @transform_0(%arg0: i32) -> (i32, i32, i32) {
    %c0_i32 = arith.constant 0 : i32
    %c0_i32_0 = arith.constant 0 : i32
    %c0_i32_1 = arith.constant 0 : i32
    return %arg0, %c0_i32, %c0_i32_0 : i32, i32, i32
  }
  func.func @transform_1(%arg0: i32) -> (i32, i32) {
    %c0_i32 = arith.constant 0 : i32
    %c0_i32_0 = arith.constant 0 : i32
    %c0_i32_1 = arith.constant 0 : i32
    return %c0_i32, %c0_i32_0 : i32, i32
  }
  func.func @transform_2(%arg0: i32) -> (i32, i32) {
    %c0_i32 = arith.constant 0 : i32
    %c0_i32_0 = arith.constant 0 : i32
    %c0_i32_1 = arith.constant 0 : i32
    return %c0_i32, %c0_i32_0 : i32, i32
  }
  func.func @transform_3(%arg0: i32) -> (i32, i32) {
    %c0_i32 = arith.constant 0 : i32
    %c0_i32_0 = arith.constant 0 : i32
    %c0_i32_1 = arith.constant 0 : i32
    return %c0_i32, %c0_i32_0 : i32, i32
  }
  func.func @transform_4(%arg0: i32) -> (i32, i32) {
    %c0_i32 = arith.constant 0 : i32
    %c0_i32_0 = arith.constant 0 : i32
    %c0_i32_1 = arith.constant 0 : i32
    return %c0_i32, %c0_i32_0 : i32, i32
  }
  func.func @transform_5(%arg0: i32) -> (i32, i32) {
    %c0_i32 = arith.constant 0 : i32
    %c0_i32_0 = arith.constant 0 : i32
    %c0_i32_1 = arith.constant 0 : i32
    return %c0_i32, %c0_i32_0 : i32, i32
  }
  func.func @transform_6(%arg0: i32) -> (i32, i32) {
    %c0_i32 = arith.constant 0 : i32
    %c0_i32_0 = arith.constant 0 : i32
    %c0_i32_1 = arith.constant 0 : i32
    return %c0_i32, %c0_i32_0 : i32, i32
  }
  func.func @transform_7(%arg0: i32) -> (i32, i32) {
    %c0_i32 = arith.constant 0 : i32
    %c0_i32_0 = arith.constant 0 : i32
    %c0_i32_1 = arith.constant 0 : i32
    return %c0_i32, %c0_i32_0 : i32, i32
  }
  func.func @transform_8(%arg0: i32) -> (i32, i32) {
    %c0_i32 = arith.constant 0 : i32
    %c0_i32_0 = arith.constant 0 : i32
    %c0_i32_1 = arith.constant 0 : i32
    return %c0_i32, %c0_i32_0 : i32, i32
  }
  func.func @transform_9(%arg0: i32) -> (i32, i32, i32) {
    %c0_i32 = arith.constant 0 : i32
    %c0_i32_0 = arith.constant 0 : i32
    %c0_i32_1 = arith.constant 0 : i32
    %c0_i32_2 = arith.constant 0 : i32
    return %c0_i32, %c0_i32_0, %c0_i32_1 : i32, i32, i32
  }
  func.func @transform_10(%arg0: i32) -> (i32, i32, i32) {
    %c0_i32 = arith.constant 0 : i32
    %c0_i32_0 = arith.constant 0 : i32
    %c0_i32_1 = arith.constant 0 : i32
    %c0_i32_2 = arith.constant 0 : i32
    return %c0_i32, %c0_i32_0, %c0_i32_1 : i32, i32, i32
  }
  func.func @transform_11(%arg0: i32) -> (i32, i32, i32) {
    %c0_i32 = arith.constant 0 : i32
    %c0_i32_0 = arith.constant 0 : i32
    %c0_i32_1 = arith.constant 0 : i32
    %c0_i32_2 = arith.constant 0 : i32
    return %c0_i32, %c0_i32_0, %c0_i32_1 : i32, i32, i32
  }
  func.func @transform_12(%arg0: i32) -> (i32, i32, i32) {
    %c0_i32 = arith.constant 0 : i32
    %c0_i32_0 = arith.constant 0 : i32
    %c0_i32_1 = arith.constant 0 : i32
    return %arg0, %c0_i32, %c0_i32_0 : i32, i32, i32
  }
}

module attributes {stable_mosaic.version = 11 : i64} {
  func.func @_pw_conv_kernel(%arg0: i32, %arg1: i32, %arg2: memref<1x8x16xf32, #tpu.memory_space<vmem>>, %arg3: memref<4x8xf32, #tpu.memory_space<vmem>>, %arg4: memref<4x1xf32, #tpu.memory_space<vmem>>, %arg5: memref<1x4x16xf32, #tpu.memory_space<vmem>>) attributes {dimension_semantics = [#tpu.dimension_semantics<parallel>, #tpu.dimension_semantics<parallel>], iteration_bounds = array<i64: 2, 1>, scalar_prefetch = 0 : i64, scratch_operands = 0 : i64, tpu.core_type = #tpu.core_type<tc>, window_params = [{transform_indices = @transform_0, window_bounds = array<i64: 1, 8, 16>}, {pipeline_mode = #tpu.pipeline_mode<synchronous>, transform_indices = @transform_1, window_bounds = array<i64: 4, 8>}, {pipeline_mode = #tpu.pipeline_mode<synchronous>, transform_indices = @transform_2, window_bounds = array<i64: 4, 1>}, {transform_indices = @transform_3, window_bounds = array<i64: 1, 4, 16>}]} {
    %c0 = arith.constant 0 : index
    %c0_0 = arith.constant 0 : index
    %0 = vector.load %arg3[%c0, %c0_0] : memref<4x8xf32, #tpu.memory_space<vmem>>, vector<4x8xf32>
    %c0_1 = arith.constant 0 : index
    %c0_2 = arith.constant 0 : index
    %c0_3 = arith.constant 0 : index
    %1 = vector.load %arg2[%c0_1, %c0_2, %c0_3] : memref<1x8x16xf32, #tpu.memory_space<vmem>>, vector<1x8x16xf32>
    %2 = vector.shape_cast %1 : vector<1x8x16xf32> to vector<8x16xf32>
    %cst = arith.constant dense<0.000000e+00> : vector<4x16xf32>
    %3 = tpu.matmul %0, %2, %cst {dimension_numbers = #tpu.dot_dimension_numbers<[1], [0], [0], [1], [0, 0, 1, 1], [], []>, precision = #tpu.contract_precision<fp32>} : vector<4x8xf32>, vector<8x16xf32>, vector<4x16xf32> -> vector<4x16xf32>
    %c0_4 = arith.constant 0 : index
    %c0_5 = arith.constant 0 : index
    %4 = vector.load %arg4[%c0_4, %c0_5] : memref<4x1xf32, #tpu.memory_space<vmem>>, vector<4x1xf32>
    %5 = vector.broadcast %4 : vector<4x1xf32> to vector<4x16xf32>
    %6 = arith.addf %3, %5 : vector<4x16xf32>
    %7 = vector.shape_cast %6 : vector<4x16xf32> to vector<1x4x16xf32>
    %c0_6 = arith.constant 0 : index
    %c0_7 = arith.constant 0 : index
    %c0_8 = arith.constant 0 : index
    %8 = vector.load %arg5[%c0_6, %c0_7, %c0_8] : memref<1x4x16xf32, #tpu.memory_space<vmem>>, vector<1x4x16xf32>
    tpu.vector_store %arg5[%c0_6, %c0_7, %c0_8], %7 {strides = array<i32>} : memref<1x4x16xf32, #tpu.memory_space<vmem>>, vector<1x4x16xf32>,
    return
  }
  func.func @transform_0(%arg0: i32, %arg1: i32) -> (i32, i32, i32) {
    %c0_i32 = arith.constant 0 : i32
    %c0_i32_0 = arith.constant 0 : i32
    return %arg0, %c0_i32, %arg1 : i32, i32, i32
  }
  func.func @transform_1(%arg0: i32, %arg1: i32) -> (i32, i32) {
    %c0_i32 = arith.constant 0 : i32
    %c0_i32_0 = arith.constant 0 : i32
    %c0_i32_1 = arith.constant 0 : i32
    return %c0_i32, %c0_i32_0 : i32, i32
  }
  func.func @transform_2(%arg0: i32, %arg1: i32) -> (i32, i32) {
    %c0_i32 = arith.constant 0 : i32
    %c0_i32_0 = arith.constant 0 : i32
    %c0_i32_1 = arith.constant 0 : i32
    return %c0_i32, %c0_i32_0 : i32, i32
  }
  func.func @transform_3(%arg0: i32, %arg1: i32) -> (i32, i32, i32) {
    %c0_i32 = arith.constant 0 : i32
    %c0_i32_0 = arith.constant 0 : i32
    return %arg0, %c0_i32, %arg1 : i32, i32, i32
  }
}

module attributes {stable_mosaic.version = 11 : i64} {
  func.func @_stcm_block_kernel(%arg0: i32, %arg1: memref<1x8x16xf32, #tpu.memory_space<vmem>>, %arg2: memref<8x8xf32, #tpu.memory_space<vmem>>, %arg3: memref<8x1xf32, #tpu.memory_space<vmem>>, %arg4: memref<8x24xf32, #tpu.memory_space<vmem>>, %arg5: memref<8x1xf32, #tpu.memory_space<vmem>>, %arg6: memref<8x24xf32, #tpu.memory_space<vmem>>, %arg7: memref<8x1xf32, #tpu.memory_space<vmem>>, %arg8: memref<8x8xf32, #tpu.memory_space<vmem>>, %arg9: memref<8x1xf32, #tpu.memory_space<vmem>>, %arg10: memref<3x8x1xf32, #tpu.memory_space<vmem>>, %arg11: memref<3x8x1xf32, #tpu.memory_space<vmem>>, %arg12: memref<3x8x1xf32, #tpu.memory_space<vmem>>, %arg13: memref<1x8x16xf32, #tpu.memory_space<vmem>>) attributes {dimension_semantics = [#tpu.dimension_semantics<parallel>], iteration_bounds = array<i64: 2>, scalar_prefetch = 0 : i64, scratch_operands = 0 : i64, tpu.core_type = #tpu.core_type<tc>, window_params = [{transform_indices = @transform_0, window_bounds = array<i64: 1, 8, 16>}, {pipeline_mode = #tpu.pipeline_mode<synchronous>, transform_indices = @transform_1, window_bounds = array<i64: 8, 8>}, {pipeline_mode = #tpu.pipeline_mode<synchronous>, transform_indices = @transform_2, window_bounds = array<i64: 8, 1>}, {pipeline_mode = #tpu.pipeline_mode<synchronous>, transform_indices = @transform_3, window_bounds = array<i64: 8, 24>}, {pipeline_mode = #tpu.pipeline_mode<synchronous>, transform_indices = @transform_4, window_bounds = array<i64: 8, 1>}, {pipeline_mode = #tpu.pipeline_mode<synchronous>, transform_indices = @transform_5, window_bounds = array<i64: 8, 24>}, {pipeline_mode = #tpu.pipeline_mode<synchronous>, transform_indices = @transform_6, window_bounds = array<i64: 8, 1>}, {pipeline_mode = #tpu.pipeline_mode<synchronous>, transform_indices = @transform_7, window_bounds = array<i64: 8, 8>}, {pipeline_mode = #tpu.pipeline_mode<synchronous>, transform_indices = @transform_8, window_bounds = array<i64: 8, 1>}, {pipeline_mode = #tpu.pipeline_mode<synchronous>, transform_indices = @transform_9, window_bounds = array<i64: 3, 8, 1>}, {pipeline_mode = #tpu.pipeline_mode<synchronous>, transform_indices = @transform_10, window_bounds = array<i64: 3, 8, 1>}, {pipeline_mode = #tpu.pipeline_mode<synchronous>, transform_indices = @transform_11, window_bounds = array<i64: 3, 8, 1>}, {transform_indices = @transform_12, window_bounds = array<i64: 1, 8, 16>}]} {
    %c0 = arith.constant 0 : index
    %c0_0 = arith.constant 0 : index
    %c0_1 = arith.constant 0 : index
    %0 = vector.load %arg1[%c0, %c0_0, %c0_1] : memref<1x8x16xf32, #tpu.memory_space<vmem>>, vector<1x8x16xf32>
    %1 = vector.shape_cast %0 : vector<1x8x16xf32> to vector<8x16xf32>
    %c0_2 = arith.constant 0 : index
    %c0_3 = arith.constant 0 : index
    %2 = vector.load %arg2[%c0_2, %c0_3] : memref<8x8xf32, #tpu.memory_space<vmem>>, vector<8x8xf32>
    %cst = arith.constant dense<0.000000e+00> : vector<8x16xf32>
    %3 = tpu.matmul %2, %1, %cst {dimension_numbers = #tpu.dot_dimension_numbers<[1], [0], [0], [1], [0, 0, 1, 1], [], []>, precision = #tpu.contract_precision<fp32>} : vector<8x8xf32>, vector<8x16xf32>, vector<8x16xf32> -> vector<8x16xf32>
    %c0_4 = arith.constant 0 : index
    %c0_5 = arith.constant 0 : index
    %4 = vector.load %arg3[%c0_4, %c0_5] : memref<8x1xf32, #tpu.memory_space<vmem>>, vector<8x1xf32>
    %5 = vector.broadcast %4 : vector<8x1xf32> to vector<8x16xf32>
    %6 = arith.addf %3, %5 : vector<8x16xf32>
    %c0_6 = arith.constant 0 : index
    %c0_7 = arith.constant 0 : index
    %c0_8 = arith.constant 0 : index
    %7 = vector.load %arg10[%c0_6, %c0_7, %c0_8] : memref<3x8x1xf32, #tpu.memory_space<vmem>>, vector<1x8x1xf32>
    %8 = vector.shape_cast %7 : vector<1x8x1xf32> to vector<8x1xf32>
    %c0_9 = arith.constant 0 : index
    %c0_10 = arith.constant 0 : index
    %c0_11 = arith.constant 0 : index
    %9 = vector.load %arg11[%c0_9, %c0_10, %c0_11] : memref<3x8x1xf32, #tpu.memory_space<vmem>>, vector<1x8x1xf32>
    %10 = vector.shape_cast %9 : vector<1x8x1xf32> to vector<8x1xf32>
    %c0_12 = arith.constant 0 : index
    %c0_13 = arith.constant 0 : index
    %c0_14 = arith.constant 0 : index
    %11 = vector.load %arg12[%c0_12, %c0_13, %c0_14] : memref<3x8x1xf32, #tpu.memory_space<vmem>>, vector<1x8x1xf32>
    %12 = vector.shape_cast %11 : vector<1x8x1xf32> to vector<8x1xf32>
    %cst_15 = arith.constant 0.000000e+00 : f32
    %13 = vector.broadcast %cst_15 : f32 to vector<8x16xf32>
    %14 = arith.maximumf %6, %13 : vector<8x16xf32>
    %cst_16 = arith.constant 0.000000e+00 : f32
    %15 = vector.broadcast %cst_16 : f32 to vector<8x16xf32>
    %16 = arith.minimumf %6, %15 : vector<8x16xf32>
    %17 = vector.broadcast %8 : vector<8x1xf32> to vector<8x16xf32>
    %18 = arith.mulf %17, %16 : vector<8x16xf32>
    %19 = arith.addf %14, %18 : vector<8x16xf32>
    %cst_17 = arith.constant dense<0.000000e+00> : vector<16xf32>
    %20 = vector.multi_reduction <add>, %19, %cst_17 [0] : vector<8x16xf32> to vector<16xf32>
    %21 = vector.shape_cast %20 : vector<16xf32> to vector<1x16xf32>
    %22 = arith.mulf %19, %19 : vector<8x16xf32>
    %cst_18 = arith.constant dense<0.000000e+00> : vector<16xf32>
    %23 = vector.multi_reduction <add>, %22, %cst_18 [0] : vector<8x16xf32> to vector<16xf32>
    %24 = vector.shape_cast %23 : vector<16xf32> to vector<1x16xf32>
    %25 = tpu.concatenate %21, %24 in 0 : vector<1x16xf32>, vector<1x16xf32> -> vector<2x16xf32>
    %26 = tpu.iota {dimensions = array<i32: 0>} : vector<16x16xi32>
    %27 = tpu.iota {dimensions = array<i32: 1>} : vector<16x16xi32>
    %28 = arith.cmpi sle, %26, %27 : vector<16x16xi32>
    %29 = arith.extui %28 : vector<16x16xi1> to vector<16x16xi32>
    %30 = arith.sitofp %29 : vector<16x16xi32> to vector<16x16xf32>
    %cst_19 = arith.constant dense<0.000000e+00> : vector<2x16xf32>
    %31 = tpu.matmul %25, %30, %cst_19 {dimension_numbers = #tpu.dot_dimension_numbers<[1], [0], [0], [1], [0, 0, 1, 1], [], []>, precision = #tpu.contract_precision<fp32>} : vector<2x16xf32>, vector<16x16xf32>, vector<2x16xf32> -> vector<2x16xf32>
    %32 = vector.extract_strided_slice %31 {offsets = [0, 0], sizes = [1, 16], strides = [1, 1]} : vector<2x16xf32> to vector<1x16xf32>
    %33 = vector.extract_strided_slice %31 {offsets = [1, 0], sizes = [1, 16], strides = [1, 1]} : vector<2x16xf32> to vector<1x16xf32>
    %34 = tpu.iota {dimensions = array<i32: 1>} : vector<1x16xi32>
    %35 = arith.sitofp %34 : vector<1x16xi32> to vector<1x16xf32>
    %cst_20 = arith.constant 1.000000e+00 : f32
    %36 = vector.broadcast %cst_20 : f32 to vector<1x16xf32>
    %37 = arith.addf %35, %36 : vector<1x16xf32>
    %cst_21 = arith.constant 8.000000e+00 : f32
    %38 = vector.broadcast %cst_21 : f32 to vector<1x16xf32>
    %39 = arith.mulf %37, %38 : vector<1x16xf32>
    %40 = arith.divf %32, %39 : vector<1x16xf32>
    %cst_22 = arith.constant 2.000000e+00 : f32
    %41 = vector.broadcast %cst_22 : f32 to vector<1x16xf32>
    %42 = arith.mulf %41, %40 : vector<1x16xf32>
    %43 = arith.mulf %42, %32 : vector<1x16xf32>
    %44 = arith.subf %33, %43 : vector<1x16xf32>
    %45 = arith.divf %44, %39 : vector<1x16xf32>
    %46 = arith.mulf %40, %40 : vector<1x16xf32>
    %47 = arith.addf %45, %46 : vector<1x16xf32>
    %cst_23 = arith.constant 9.99999974E-6 : f32
    %48 = vector.broadcast %cst_23 : f32 to vector<1x16xf32>
    %49 = arith.addf %47, %48 : vector<1x16xf32>
    %50 = math.rsqrt %49 : vector<1x16xf32>
    %51 = vector.broadcast %40 : vector<1x16xf32> to vector<8x16xf32>
    %52 = arith.subf %19, %51 : vector<8x16xf32>
    %53 = vector.broadcast %50 : vector<1x16xf32> to vector<8x16xf32>
    %54 = arith.mulf %52, %53 : vector<8x16xf32>
    %55 = vector.broadcast %10 : vector<8x1xf32> to vector<8x16xf32>
    %56 = arith.mulf %54, %55 : vector<8x16xf32>
    %57 = vector.broadcast %12 : vector<8x1xf32> to vector<8x16xf32>
    %58 = arith.addf %56, %57 : vector<8x16xf32>
    %c0_24 = arith.constant 0 : index
    %c0_25 = arith.constant 0 : index
    %59 = vector.load %arg4[%c0_24, %c0_25] : memref<8x24xf32, #tpu.memory_space<vmem>>, vector<8x24xf32>
    %c0_26 = arith.constant 0 : index
    %c0_27 = arith.constant 0 : index
    %60 = vector.load %arg5[%c0_26, %c0_27] : memref<8x1xf32, #tpu.memory_space<vmem>>, vector<8x1xf32>
    %cst_28 = arith.constant 0.000000e+00 : f32
    %61 = vector.broadcast %cst_28 : f32 to vector<8x4xf32>
    %62 = tpu.concatenate %61, %58 in 1 : vector<8x4xf32>, vector<8x16xf32> -> vector<8x20xf32>
    %63 = vector.extract_strided_slice %62 {offsets = [0, 0], sizes = [8, 16], strides = [1, 1]} : vector<8x20xf32> to vector<8x16xf32>
    %64 = vector.extract_strided_slice %62 {offsets = [0, 2], sizes = [8, 16], strides = [1, 1]} : vector<8x20xf32> to vector<8x16xf32>
    %65 = vector.extract_strided_slice %62 {offsets = [0, 4], sizes = [8, 16], strides = [1, 1]} : vector<8x20xf32> to vector<8x16xf32>
    %66 = tpu.concatenate %63, %64, %65 in 0 : vector<8x16xf32>, vector<8x16xf32>, vector<8x16xf32> -> vector<24x16xf32>
    %cst_29 = arith.constant dense<0.000000e+00> : vector<8x16xf32>
    %67 = tpu.matmul %59, %66, %cst_29 {dimension_numbers = #tpu.dot_dimension_numbers<[1], [0], [0], [1], [0, 0, 1, 1], [], []>, precision = #tpu.contract_precision<fp32>} : vector<8x24xf32>, vector<24x16xf32>, vector<8x16xf32> -> vector<8x16xf32>
    %68 = vector.broadcast %60 : vector<8x1xf32> to vector<8x16xf32>
    %69 = arith.addf %67, %68 : vector<8x16xf32>
    %c1 = arith.constant 1 : index
    %c0_30 = arith.constant 0 : index
    %c0_31 = arith.constant 0 : index
    %70 = vector.load %arg10[%c1, %c0_30, %c0_31] : memref<3x8x1xf32, #tpu.memory_space<vmem>>, vector<1x8x1xf32>
    %71 = vector.shape_cast %70 : vector<1x8x1xf32> to vector<8x1xf32>
    %c1_32 = arith.constant 1 : index
    %c0_33 = arith.constant 0 : index
    %c0_34 = arith.constant 0 : index
    %72 = vector.load %arg11[%c1_32, %c0_33, %c0_34] : memref<3x8x1xf32, #tpu.memory_space<vmem>>, vector<1x8x1xf32>
    %73 = vector.shape_cast %72 : vector<1x8x1xf32> to vector<8x1xf32>
    %c1_35 = arith.constant 1 : index
    %c0_36 = arith.constant 0 : index
    %c0_37 = arith.constant 0 : index
    %74 = vector.load %arg12[%c1_35, %c0_36, %c0_37] : memref<3x8x1xf32, #tpu.memory_space<vmem>>, vector<1x8x1xf32>
    %75 = vector.shape_cast %74 : vector<1x8x1xf32> to vector<8x1xf32>
    %cst_38 = arith.constant 0.000000e+00 : f32
    %76 = vector.broadcast %cst_38 : f32 to vector<8x16xf32>
    %77 = arith.maximumf %6, %76 : vector<8x16xf32>
    %cst_39 = arith.constant 0.000000e+00 : f32
    %78 = vector.broadcast %cst_39 : f32 to vector<8x16xf32>
    %79 = arith.minimumf %6, %78 : vector<8x16xf32>
    %80 = vector.broadcast %71 : vector<8x1xf32> to vector<8x16xf32>
    %81 = arith.mulf %80, %79 : vector<8x16xf32>
    %82 = arith.addf %77, %81 : vector<8x16xf32>
    %cst_40 = arith.constant dense<0.000000e+00> : vector<16xf32>
    %83 = vector.multi_reduction <add>, %82, %cst_40 [0] : vector<8x16xf32> to vector<16xf32>
    %84 = vector.shape_cast %83 : vector<16xf32> to vector<1x16xf32>
    %85 = arith.mulf %82, %82 : vector<8x16xf32>
    %cst_41 = arith.constant dense<0.000000e+00> : vector<16xf32>
    %86 = vector.multi_reduction <add>, %85, %cst_41 [0] : vector<8x16xf32> to vector<16xf32>
    %87 = vector.shape_cast %86 : vector<16xf32> to vector<1x16xf32>
    %88 = tpu.concatenate %84, %87 in 0 : vector<1x16xf32>, vector<1x16xf32> -> vector<2x16xf32>
    %89 = tpu.iota {dimensions = array<i32: 0>} : vector<16x16xi32>
    %90 = tpu.iota {dimensions = array<i32: 1>} : vector<16x16xi32>
    %91 = arith.cmpi sle, %89, %90 : vector<16x16xi32>
    %92 = arith.extui %91 : vector<16x16xi1> to vector<16x16xi32>
    %93 = arith.sitofp %92 : vector<16x16xi32> to vector<16x16xf32>
    %cst_42 = arith.constant dense<0.000000e+00> : vector<2x16xf32>
    %94 = tpu.matmul %88, %93, %cst_42 {dimension_numbers = #tpu.dot_dimension_numbers<[1], [0], [0], [1], [0, 0, 1, 1], [], []>, precision = #tpu.contract_precision<fp32>} : vector<2x16xf32>, vector<16x16xf32>, vector<2x16xf32> -> vector<2x16xf32>
    %95 = vector.extract_strided_slice %94 {offsets = [0, 0], sizes = [1, 16], strides = [1, 1]} : vector<2x16xf32> to vector<1x16xf32>
    %96 = vector.extract_strided_slice %94 {offsets = [1, 0], sizes = [1, 16], strides = [1, 1]} : vector<2x16xf32> to vector<1x16xf32>
    %97 = tpu.iota {dimensions = array<i32: 1>} : vector<1x16xi32>
    %98 = arith.sitofp %97 : vector<1x16xi32> to vector<1x16xf32>
    %cst_43 = arith.constant 1.000000e+00 : f32
    %99 = vector.broadcast %cst_43 : f32 to vector<1x16xf32>
    %100 = arith.addf %98, %99 : vector<1x16xf32>
    %cst_44 = arith.constant 8.000000e+00 : f32
    %101 = vector.broadcast %cst_44 : f32 to vector<1x16xf32>
    %102 = arith.mulf %100, %101 : vector<1x16xf32>
    %103 = arith.divf %95, %102 : vector<1x16xf32>
    %cst_45 = arith.constant 2.000000e+00 : f32
    %104 = vector.broadcast %cst_45 : f32 to vector<1x16xf32>
    %105 = arith.mulf %104, %103 : vector<1x16xf32>
    %106 = arith.mulf %105, %95 : vector<1x16xf32>
    %107 = arith.subf %96, %106 : vector<1x16xf32>
    %108 = arith.divf %107, %102 : vector<1x16xf32>
    %109 = arith.mulf %103, %103 : vector<1x16xf32>
    %110 = arith.addf %108, %109 : vector<1x16xf32>
    %cst_46 = arith.constant 9.99999974E-6 : f32
    %111 = vector.broadcast %cst_46 : f32 to vector<1x16xf32>
    %112 = arith.addf %110, %111 : vector<1x16xf32>
    %113 = math.rsqrt %112 : vector<1x16xf32>
    %114 = vector.broadcast %103 : vector<1x16xf32> to vector<8x16xf32>
    %115 = arith.subf %82, %114 : vector<8x16xf32>
    %116 = vector.broadcast %113 : vector<1x16xf32> to vector<8x16xf32>
    %117 = arith.mulf %115, %116 : vector<8x16xf32>
    %118 = vector.broadcast %73 : vector<8x1xf32> to vector<8x16xf32>
    %119 = arith.mulf %117, %118 : vector<8x16xf32>
    %120 = vector.broadcast %75 : vector<8x1xf32> to vector<8x16xf32>
    %121 = arith.addf %119, %120 : vector<8x16xf32>
    %c0_47 = arith.constant 0 : index
    %c0_48 = arith.constant 0 : index
    %122 = vector.load %arg6[%c0_47, %c0_48] : memref<8x24xf32, #tpu.memory_space<vmem>>, vector<8x24xf32>
    %c0_49 = arith.constant 0 : index
    %c0_50 = arith.constant 0 : index
    %123 = vector.load %arg7[%c0_49, %c0_50] : memref<8x1xf32, #tpu.memory_space<vmem>>, vector<8x1xf32>
    %cst_51 = arith.constant 0.000000e+00 : f32
    %124 = vector.broadcast %cst_51 : f32 to vector<8x4xf32>
    %125 = tpu.concatenate %124, %121 in 1 : vector<8x4xf32>, vector<8x16xf32> -> vector<8x20xf32>
    %126 = vector.extract_strided_slice %125 {offsets = [0, 0], sizes = [8, 16], strides = [1, 1]} : vector<8x20xf32> to vector<8x16xf32>
    %127 = vector.extract_strided_slice %125 {offsets = [0, 2], sizes = [8, 16], strides = [1, 1]} : vector<8x20xf32> to vector<8x16xf32>
    %128 = vector.extract_strided_slice %125 {offsets = [0, 4], sizes = [8, 16], strides = [1, 1]} : vector<8x20xf32> to vector<8x16xf32>
    %129 = tpu.concatenate %126, %127, %128 in 0 : vector<8x16xf32>, vector<8x16xf32>, vector<8x16xf32> -> vector<24x16xf32>
    %cst_52 = arith.constant dense<0.000000e+00> : vector<8x16xf32>
    %130 = tpu.matmul %122, %129, %cst_52 {dimension_numbers = #tpu.dot_dimension_numbers<[1], [0], [0], [1], [0, 0, 1, 1], [], []>, precision = #tpu.contract_precision<fp32>} : vector<8x24xf32>, vector<24x16xf32>, vector<8x16xf32> -> vector<8x16xf32>
    %131 = vector.broadcast %123 : vector<8x1xf32> to vector<8x16xf32>
    %132 = arith.addf %130, %131 : vector<8x16xf32>
    %133 = arith.negf %132 : vector<8x16xf32>
    %134 = math.exp %133 : vector<8x16xf32>
    %cst_53 = arith.constant 1.000000e+00 : f32
    %135 = vector.broadcast %cst_53 : f32 to vector<8x16xf32>
    %136 = arith.addf %135, %134 : vector<8x16xf32>
    %137 = arith.divf %135, %136 : vector<8x16xf32>
    %138 = arith.mulf %69, %137 : vector<8x16xf32>
    %c2 = arith.constant 2 : index
    %c0_54 = arith.constant 0 : index
    %c0_55 = arith.constant 0 : index
    %139 = vector.load %arg10[%c2, %c0_54, %c0_55] : memref<3x8x1xf32, #tpu.memory_space<vmem>>, vector<1x8x1xf32>
    %140 = vector.shape_cast %139 : vector<1x8x1xf32> to vector<8x1xf32>
    %c2_56 = arith.constant 2 : index
    %c0_57 = arith.constant 0 : index
    %c0_58 = arith.constant 0 : index
    %141 = vector.load %arg11[%c2_56, %c0_57, %c0_58] : memref<3x8x1xf32, #tpu.memory_space<vmem>>, vector<1x8x1xf32>
    %142 = vector.shape_cast %141 : vector<1x8x1xf32> to vector<8x1xf32>
    %c2_59 = arith.constant 2 : index
    %c0_60 = arith.constant 0 : index
    %c0_61 = arith.constant 0 : index
    %143 = vector.load %arg12[%c2_59, %c0_60, %c0_61] : memref<3x8x1xf32, #tpu.memory_space<vmem>>, vector<1x8x1xf32>
    %144 = vector.shape_cast %143 : vector<1x8x1xf32> to vector<8x1xf32>
    %cst_62 = arith.constant 0.000000e+00 : f32
    %145 = vector.broadcast %cst_62 : f32 to vector<8x16xf32>
    %146 = arith.maximumf %138, %145 : vector<8x16xf32>
    %cst_63 = arith.constant 0.000000e+00 : f32
    %147 = vector.broadcast %cst_63 : f32 to vector<8x16xf32>
    %148 = arith.minimumf %138, %147 : vector<8x16xf32>
    %149 = vector.broadcast %140 : vector<8x1xf32> to vector<8x16xf32>
    %150 = arith.mulf %149, %148 : vector<8x16xf32>
    %151 = arith.addf %146, %150 : vector<8x16xf32>
    %cst_64 = arith.constant dense<0.000000e+00> : vector<16xf32>
    %152 = vector.multi_reduction <add>, %151, %cst_64 [0] : vector<8x16xf32> to vector<16xf32>
    %153 = vector.shape_cast %152 : vector<16xf32> to vector<1x16xf32>
    %154 = arith.mulf %151, %151 : vector<8x16xf32>
    %cst_65 = arith.constant dense<0.000000e+00> : vector<16xf32>
    %155 = vector.multi_reduction <add>, %154, %cst_65 [0] : vector<8x16xf32> to vector<16xf32>
    %156 = vector.shape_cast %155 : vector<16xf32> to vector<1x16xf32>
    %157 = tpu.concatenate %153, %156 in 0 : vector<1x16xf32>, vector<1x16xf32> -> vector<2x16xf32>
    %158 = tpu.iota {dimensions = array<i32: 0>} : vector<16x16xi32>
    %159 = tpu.iota {dimensions = array<i32: 1>} : vector<16x16xi32>
    %160 = arith.cmpi sle, %158, %159 : vector<16x16xi32>
    %161 = arith.extui %160 : vector<16x16xi1> to vector<16x16xi32>
    %162 = arith.sitofp %161 : vector<16x16xi32> to vector<16x16xf32>
    %cst_66 = arith.constant dense<0.000000e+00> : vector<2x16xf32>
    %163 = tpu.matmul %157, %162, %cst_66 {dimension_numbers = #tpu.dot_dimension_numbers<[1], [0], [0], [1], [0, 0, 1, 1], [], []>, precision = #tpu.contract_precision<fp32>} : vector<2x16xf32>, vector<16x16xf32>, vector<2x16xf32> -> vector<2x16xf32>
    %164 = vector.extract_strided_slice %163 {offsets = [0, 0], sizes = [1, 16], strides = [1, 1]} : vector<2x16xf32> to vector<1x16xf32>
    %165 = vector.extract_strided_slice %163 {offsets = [1, 0], sizes = [1, 16], strides = [1, 1]} : vector<2x16xf32> to vector<1x16xf32>
    %166 = tpu.iota {dimensions = array<i32: 1>} : vector<1x16xi32>
    %167 = arith.sitofp %166 : vector<1x16xi32> to vector<1x16xf32>
    %cst_67 = arith.constant 1.000000e+00 : f32
    %168 = vector.broadcast %cst_67 : f32 to vector<1x16xf32>
    %169 = arith.addf %167, %168 : vector<1x16xf32>
    %cst_68 = arith.constant 8.000000e+00 : f32
    %170 = vector.broadcast %cst_68 : f32 to vector<1x16xf32>
    %171 = arith.mulf %169, %170 : vector<1x16xf32>
    %172 = arith.divf %164, %171 : vector<1x16xf32>
    %cst_69 = arith.constant 2.000000e+00 : f32
    %173 = vector.broadcast %cst_69 : f32 to vector<1x16xf32>
    %174 = arith.mulf %173, %172 : vector<1x16xf32>
    %175 = arith.mulf %174, %164 : vector<1x16xf32>
    %176 = arith.subf %165, %175 : vector<1x16xf32>
    %177 = arith.divf %176, %171 : vector<1x16xf32>
    %178 = arith.mulf %172, %172 : vector<1x16xf32>
    %179 = arith.addf %177, %178 : vector<1x16xf32>
    %cst_70 = arith.constant 9.99999974E-6 : f32
    %180 = vector.broadcast %cst_70 : f32 to vector<1x16xf32>
    %181 = arith.addf %179, %180 : vector<1x16xf32>
    %182 = math.rsqrt %181 : vector<1x16xf32>
    %183 = vector.broadcast %172 : vector<1x16xf32> to vector<8x16xf32>
    %184 = arith.subf %151, %183 : vector<8x16xf32>
    %185 = vector.broadcast %182 : vector<1x16xf32> to vector<8x16xf32>
    %186 = arith.mulf %184, %185 : vector<8x16xf32>
    %187 = vector.broadcast %142 : vector<8x1xf32> to vector<8x16xf32>
    %188 = arith.mulf %186, %187 : vector<8x16xf32>
    %189 = vector.broadcast %144 : vector<8x1xf32> to vector<8x16xf32>
    %190 = arith.addf %188, %189 : vector<8x16xf32>
    %c0_71 = arith.constant 0 : index
    %c0_72 = arith.constant 0 : index
    %191 = vector.load %arg8[%c0_71, %c0_72] : memref<8x8xf32, #tpu.memory_space<vmem>>, vector<8x8xf32>
    %cst_73 = arith.constant dense<0.000000e+00> : vector<8x16xf32>
    %192 = tpu.matmul %191, %190, %cst_73 {dimension_numbers = #tpu.dot_dimension_numbers<[1], [0], [0], [1], [0, 0, 1, 1], [], []>, precision = #tpu.contract_precision<fp32>} : vector<8x8xf32>, vector<8x16xf32>, vector<8x16xf32> -> vector<8x16xf32>
    %c0_74 = arith.constant 0 : index
    %c0_75 = arith.constant 0 : index
    %193 = vector.load %arg9[%c0_74, %c0_75] : memref<8x1xf32, #tpu.memory_space<vmem>>, vector<8x1xf32>
    %194 = vector.broadcast %193 : vector<8x1xf32> to vector<8x16xf32>
    %195 = arith.addf %192, %194 : vector<8x16xf32>
    %196 = arith.addf %195, %1 : vector<8x16xf32>
    %197 = vector.shape_cast %196 : vector<8x16xf32> to vector<1x8x16xf32>
    %c0_76 = arith.constant 0 : index
    %c0_77 = arith.constant 0 : index
    %c0_78 = arith.constant 0 : index
    %198 = vector.load %arg13[%c0_76, %c0_77, %c0_78] : memref<1x8x16xf32, #tpu.memory_space<vmem>>, vector<1x8x16xf32>
    tpu.vector_store %arg13[%c0_76, %c0_77, %c0_78], %197 {strides = array<i32>} : memref<1x8x16xf32, #tpu.memory_space<vmem>>, vector<1x8x16xf32>,
    return
  }
  func.func @transform_0(%arg0: i32) -> (i32, i32, i32) {
    %c0_i32 = arith.constant 0 : i32
    %c0_i32_0 = arith.constant 0 : i32
    %c0_i32_1 = arith.constant 0 : i32
    return %arg0, %c0_i32, %c0_i32_0 : i32, i32, i32
  }
  func.func @transform_1(%arg0: i32) -> (i32, i32) {
    %c0_i32 = arith.constant 0 : i32
    %c0_i32_0 = arith.constant 0 : i32
    %c0_i32_1 = arith.constant 0 : i32
    return %c0_i32, %c0_i32_0 : i32, i32
  }
  func.func @transform_2(%arg0: i32) -> (i32, i32) {
    %c0_i32 = arith.constant 0 : i32
    %c0_i32_0 = arith.constant 0 : i32
    %c0_i32_1 = arith.constant 0 : i32
    return %c0_i32, %c0_i32_0 : i32, i32
  }
  func.func @transform_3(%arg0: i32) -> (i32, i32) {
    %c0_i32 = arith.constant 0 : i32
    %c0_i32_0 = arith.constant 0 : i32
    %c0_i32_1 = arith.constant 0 : i32
    return %c0_i32, %c0_i32_0 : i32, i32
  }
  func.func @transform_4(%arg0: i32) -> (i32, i32) {
    %c0_i32 = arith.constant 0 : i32
    %c0_i32_0 = arith.constant 0 : i32
    %c0_i32_1 = arith.constant 0 : i32
    return %c0_i32, %c0_i32_0 : i32, i32
  }
  func.func @transform_5(%arg0: i32) -> (i32, i32) {
    %c0_i32 = arith.constant 0 : i32
    %c0_i32_0 = arith.constant 0 : i32
    %c0_i32_1 = arith.constant 0 : i32
    return %c0_i32, %c0_i32_0 : i32, i32
  }
  func.func @transform_6(%arg0: i32) -> (i32, i32) {
    %c0_i32 = arith.constant 0 : i32
    %c0_i32_0 = arith.constant 0 : i32
    %c0_i32_1 = arith.constant 0 : i32
    return %c0_i32, %c0_i32_0 : i32, i32
  }
  func.func @transform_7(%arg0: i32) -> (i32, i32) {
    %c0_i32 = arith.constant 0 : i32
    %c0_i32_0 = arith.constant 0 : i32
    %c0_i32_1 = arith.constant 0 : i32
    return %c0_i32, %c0_i32_0 : i32, i32
  }
  func.func @transform_8(%arg0: i32) -> (i32, i32) {
    %c0_i32 = arith.constant 0 : i32
    %c0_i32_0 = arith.constant 0 : i32
    %c0_i32_1 = arith.constant 0 : i32
    return %c0_i32, %c0_i32_0 : i32, i32
  }
  func.func @transform_9(%arg0: i32) -> (i32, i32, i32) {
    %c0_i32 = arith.constant 0 : i32
    %c0_i32_0 = arith.constant 0 : i32
    %c0_i32_1 = arith.constant 0 : i32
    %c0_i32_2 = arith.constant 0 : i32
    return %c0_i32, %c0_i32_0, %c0_i32_1 : i32, i32, i32
  }
  func.func @transform_10(%arg0: i32) -> (i32, i32, i32) {
    %c0_i32 = arith.constant 0 : i32
    %c0_i32_0 = arith.constant 0 : i32
    %c0_i32_1 = arith.constant 0 : i32
    %c0_i32_2 = arith.constant 0 : i32
    return %c0_i32, %c0_i32_0, %c0_i32_1 : i32, i32, i32
  }
  func.func @transform_11(%arg0: i32) -> (i32, i32, i32) {
    %c0_i32 = arith.constant 0 : i32
    %c0_i32_0 = arith.constant 0 : i32
    %c0_i32_1 = arith.constant 0 : i32
    %c0_i32_2 = arith.constant 0 : i32
    return %c0_i32, %c0_i32_0, %c0_i32_1 : i32, i32, i32
  }
  func.func @transform_12(%arg0: i32) -> (i32, i32, i32) {
    %c0_i32 = arith.constant 0 : i32
    %c0_i32_0 = arith.constant 0 : i32
    %c0_i32_1 = arith.constant 0 : i32
    return %arg0, %c0_i32, %c0_i32_0 : i32, i32, i32
  }
}

</mosaic_0001>

<llo_original>
// kernel: refine_block_fwd.13
$region0: #{refine_block_fwd.13}
  #allocation0 [shape = 'u32[]', space=smem, size = 0x4, offset = 0x4, fixed_abs, tag = 'smem constant byte address 0x4 - core index']
  #allocation1 [shape = 'u32[144,128]{1,0:T(1,128)}', space=vmem, size = 0x12000, scoped, tag = 'internal scratch']
  %s0 = inlined_call_operand.vmem [shape: f32[2,8,16], index: 0, kind: input, shape index: {}]
  %s1 = inlined_call_operand.vmem [shape: f32[4,8], index: 1, kind: input, shape index: {}]
  %s2 = inlined_call_operand.vmem [shape: f32[4,1], index: 2, kind: input, shape index: {}]
  %s3 = inlined_call_operand.hbm [shape: f32[2,4,16], index: 3, kind: output, shape index: {}]
  %s4 = sld [smem:[#allocation0]]
  $region45: #{refine_block_fwd.13} parent=0
    _
  %s6 = ssub.s32 1, %s4
  %s7 = scalar_select 0, %s6, %s4
  $region1: #{refine_block_fwd.13} parent=0
    #allocation2 [shape = 'u8[4096]{0}', space=vmem, size = 0x1000, scoped, tag = 'output window, operand 0']
    #allocation3 [shape = 's32[2]{0}', space=sflag, size = 0x8, scoped, tag = 'scoped memory for refine_block_fwd.13']
    %8 = vsyncpa [#allocation3], 0
    %s9 = scalar_lea.sflag [#allocation3], 1
    %10 = vsyncpa %s9, 0
    loop: start=0, step=1, limit=4
    $region2: #{refine_block_fwd.13} parent=1 // loop_pre_header
      _
    $region3: #{refine_block_fwd.13} parent=1 // loop_header
      %s12 = sphi 0, %s16
      %p13 = scmp.ge.s32.totalorder %s12, 4
      %s19 = sphi 0, %s31
      %s20 = sphi 0, %s27
      %s21 = sphi 0, %s19
      %s22 = sphi 0, %s20
      %s23 = sphi 0, %s21
      %s24 = sphi 0, %s22
      %s36 = sphi 0, %s38
      %s39 = sphi 0, %s36
      %s40 = sphi 0, %s39
      %s56 = sphi 0, %s40
      %s60 = sphi 0, %s60
      %s62 = sphi 0, %s60
      %s63 = sphi 0, %s62
      %s77 = sphi 0, %s63
      %s81 = sphi 0, %s81
      %s83 = sphi 0, %s81
      %s84 = sphi 0, %s83
      %s98 = sphi 0, %s84
      %s106 = sphi 0, %s108
      %s109 = sphi 0, %s106
      %s110 = sphi 0, %s109
      %s126 = sphi 0, %s110
    $region4: #{refine_block_fwd.13} parent=1 // loop_header_branch
      %15 = sbr.rel (%p13) target = $region8
    $region5: #{refine_block_fwd.13} parent=1 // loop_body
      %s17 = ssub.s32 %s12, 1
      %s18 = ssub.s32 %s12, 2
      %s25 = sadd.s32 1, %s20
      %p26 = scmp.ge.s32.totalorder %s25, 1
      %s27 = scalar_select %p26, 0, %s25
      %s28 = sadd.s32 1, %s19
      %s29 = scalar_select %p26, %s28, %s19
      %p30 = scmp.ge.s32.totalorder %s29, 2
      %s31 = scalar_select %p30, 0, %s29
      %s32 = ssub.s32 %s19, %s31
      %s33 = ssub.s32 %s20, %s27
      %s34 = sor.u32 %s32, %s33
      %p35 = scmp.eq.s32.totalorder %s34, 0
      %s37 = sadd.s32 %s36, 1
      %s38 = scalar_select %p35, %s36, %s37
      %p41 = pneg %p35
      %p42 = scmp.eq.s32.totalorder %s12, 1
      %p43 = por %p41, %p42
      %p44 = scmp.ne.s32.totalorder %s36, %s39
      %p45 = scmp.eq.s32.totalorder %s12, 0
      %p46 = por %p44, %p45
      %p47 = scmp.ne.s32.totalorder %s36, %s39
      %p48 = scmp.eq.s32.totalorder %s17, 1
      %p49 = por %p47, %p48
      %p50 = scmp.ne.s32.totalorder %s39, %s40
      %p51 = scmp.eq.s32.totalorder %s17, 0
      %p52 = por %p50, %p51
      %p53 = scmp.ne.s32.totalorder %s39, %s40
      %p54 = scmp.eq.s32.totalorder %s18, 1
      %p55 = por %p53, %p54
      %p57 = scmp.ne.s32.totalorder %s40, %s56
      %p58 = scmp.eq.s32.totalorder %s18, 0
      %p59 = por %p57, %p58
      %s61 = sadd.s32 %s60, 1
      %p64 = scmp.eq.s32.totalorder %s12, 1
      %p65 = scmp.ne.s32.totalorder %s60, %s62
      %p66 = scmp.eq.s32.totalorder %s12, 0
      %p67 = por %p65, %p66
      %p68 = scmp.ne.s32.totalorder %s60, %s62
      %p69 = scmp.eq.s32.totalorder %s17, 1
      %p70 = por %p68, %p69
      %p71 = scmp.ne.s32.totalorder %s62, %s63
      %p72 = scmp.eq.s32.totalorder %s17, 0
      %p73 = por %p71, %p72
      %p74 = scmp.ne.s32.totalorder %s62, %s63
      %p75 = scmp.eq.s32.totalorder %s18, 1
      %p76 = por %p74, %p75
      %p78 = scmp.ne.s32.totalorder %s63, %s77
      %p79 = scmp.eq.s32.totalorder %s18, 0
      %p80 = por %p78, %p79
      %s82 = sadd.s32 %s81, 1
      %p85 = scmp.eq.s32.totalorder %s12, 1
      %p86 = scmp.ne.s32.totalorder %s81, %s83
      %p87 = scmp.eq.s32.totalorder %s12, 0
      %p88 = por %p86, %p87
      %p89 = scmp.ne.s32.totalorder %s81, %s83
      %p90 = scmp.eq.s32.totalorder %s17, 1
      %p91 = por %p89, %p90
      %p92 = scmp.ne.s32.totalorder %s83, %s84
      %p93 = scmp.eq.s32.totalorder %s17, 0
      %p94 = por %p92, %p93
      %p95 = scmp.ne.s32.totalorder %s83, %s84
      %p96 = scmp.eq.s32.totalorder %s18, 1
      %p97 = por %p95, %p96
      %p99 = scmp.ne.s32.totalorder %s84, %s98
      %p100 = scmp.eq.s32.totalorder %s18, 0
      %p101 = por %p99, %p100
      %s102 = ssub.s32 %s19, %s31
      %s103 = ssub.s32 %s20, %s27
      %s104 = sor.u32 %s102, %s103
      %p105 = scmp.eq.s32.totalorder %s104, 0
      %s107 = sadd.s32 %s106, 1
      %s108 = scalar_select %p105, %s106, %s107
      %p111 = pneg %p105
      %p112 = scmp.eq.s32.totalorder %s12, 1
      %p113 = por %p111, %p112
      %p114 = scmp.ne.s32.totalorder %s106, %s109
      %p115 = scmp.eq.s32.totalorder %s12, 0
      %p116 = por %p114, %p115
      %p117 = scmp.ne.s32.totalorder %s106, %s109
      %p118 = scmp.eq.s32.totalorder %s17, 1
      %p119 = por %p117, %p118
      %p120 = scmp.ne.s32.totalorder %s109, %s110
      %p121 = scmp.eq.s32.totalorder %s17, 0
      %p122 = por %p120, %p121
      %p123 = scmp.ne.s32.totalorder %s109, %s110
      %p124 = scmp.eq.s32.totalorder %s18, 1
      %p125 = por %p123, %p124
      %p127 = scmp.ne.s32.totalorder %s110, %s126
      %p128 = scmp.eq.s32.totalorder %s18, 0
      %p129 = por %p127, %p128
      %p130 = scmp.le.s32.totalorder 1, %s12
      %p131 = scmp.lt.s32.totalorder %s12, 3
      %p132 = pnand %p130, %p131
      %p133 = pneg %p132
      // Predicated region
      $region9: #{refine_block_fwd.13} parent=5 // pred_check
        _
      $region10: #{refine_block_fwd.13} parent=5 // pred_check_branch
        %135 = sbr.rel (%p132) target = $region12
      $region11: #{refine_block_fwd.13} parent=5 // pred_region
        %s136 = ssub.s32 %s12, 1
        // Predicated region
        $region13: #{refine_block_fwd.13} parent=11 // pred_check
          %p137 = pneg %p73
        $region14: #{refine_block_fwd.13} parent=11 // pred_check_branch
          %139 = sbr.rel (%p137) target = $region16
        $region15: #{refine_block_fwd.13} parent=11 // pred_region
          _
        $region16: #{refine_block_fwd.13} parent=11 // pred_fallthru
          _
        // Predicated region
        $region17: #{refine_block_fwd.13} parent=11 // pred_check
          %p140 = pneg %p94
        $region18: #{refine_block_fwd.13} parent=11 // pred_check_branch
          %142 = sbr.rel (%p140) target = $region20
        $region19: #{refine_block_fwd.13} parent=11 // pred_region
          _
        $region20: #{refine_block_fwd.13} parent=11 // pred_fallthru
          _
      $region12: #{refine_block_fwd.13} parent=5 // pred_fallthru
        _
      %p143 = scmp.lt.s32.totalorder %s12, 2
      // Predicated region
      $region21: #{refine_block_fwd.13} parent=5 // pred_check
        %p144 = pneg %p143
      $region22: #{refine_block_fwd.13} parent=5 // pred_check_branch
        %146 = sbr.rel (%p144) target = $region24
      $region23: #{refine_block_fwd.13} parent=5 // pred_region
        // Predicated region
        $region25: #{refine_block_fwd.13} parent=23 // pred_check
          %p147 = pneg %p46
        $region26: #{refine_block_fwd.13} parent=23 // pred_check_branch
          %149 = sbr.rel (%p147) target = $region28
        $region27: #{refine_block_fwd.13} parent=23 // pred_region
          %p150 = scmp.lt.s32.totalorder %s19, 1
          %s151 = scalar_select %p150, %s19, 1
          %p152 = scmp.lt.s32.totalorder %s20, 0
          %s153 = scalar_select %p152, %s20, 0
          %s154 = sadd.s32 %s153, %s151
          %s155 = smul.addr %s154, 8
          %s156 = scalar_lea.vmem %s0, %s155
        $region28: #{refine_block_fwd.13} parent=23 // pred_fallthru
          _
      $region24: #{refine_block_fwd.13} parent=5 // pred_fallthru
        _
      %p157 = scmp.le.s32.totalorder 1, %s12
      %p158 = scmp.lt.s32.totalorder %s12, 3
      %p159 = pnand %p157, %p158
      %p160 = pneg %p159
      // Predicated region
      $region29: #{refine_block_fwd.13} parent=5 // pred_check
        _
      $region30: #{refine_block_fwd.13} parent=5 // pred_check_branch
        %162 = sbr.rel (%p159) target = $region32
      $region31: #{refine_block_fwd.13} parent=5 // pred_region
        %s163 = ssub.s32 %s12, 1
        %p164 = scmp.lt.s32.totalorder %s21, 1
        %s165 = scalar_select %p164, %s21, 1
        %p166 = scmp.lt.s32.totalorder %s22, 0
        %s167 = scalar_select %p166, %s22, 0
        %s168 = sadd.s32 %s167, %s165
        %s169 = smul.addr %s168, 8
        %s170 = scalar_lea.vmem %s0, %s169
        %p171 = pneg %p52
        %p172 = pneg %p49
        %p173 = pneg %p73
        %p174 = pneg %p70
        %p175 = pneg %p94
        %p176 = pneg %p91
        %p177 = pneg %p122
        %p178 = pneg %p119
        %s179 = sand.u32 %s109, 1
        %s180 = scalar_lea.sflag [#allocation3], %s179
        %s181 = sand.u32 %s109, 1
        %s182 = smul.addr %s181, 4
        %s183 = scalar_lea.vmem [#allocation2], %s182
        %p184 = scmp.lt.s32.totalorder %s21, 1
        %s185 = scalar_select %p184, %s21, 1
        %p186 = scmp.lt.s32.totalorder %s22, 0
        %s187 = scalar_select %p186, %s22, 0
        %s188 = sadd.s32 %s187, %s185
        %s189 = smul.addr %s188, 8
        %s190 = scalar_lea.vmem %s0, %s189
        %v191 = vld [vmem:[%s1] sm:$0xf]
        %v192 = vld [vmem:[%s190] sm:$0xff]
        %v193 = vld [vmem:[%s2] sm:$0xf]
        %195 = vset.pattern.permute.xlu0 0
        %196 = vperm.xlu0 %195, %v193
        %v197 = vpop.permute.xlu0 %196
        %vm199 = vcmask 64512
        %v201 = vsel %vm199, %v191, 0
        %203 = vmatprep.subr.mxu0 0.0
        %204 = vmatpush1.msra.mxu0 0.0
        %205 = vmatprep.subr.mxu0 0.0
        %206 = vmatpush1.msra.mxu0 0.0
        %207 = vmatprep.subr.mxu0 0.0
        %208 = vmatpush1.msra.mxu0 0.0
        %209 = vmatprep.subr.mxu0 0.0
        %210 = vmatpush1.msra.mxu0 0.0
        %211 = vmatprep.subr.mxu0 0.0
        %212 = vmatpush1.msra.mxu0 0.0
        %213 = vmatprep.subr.mxu0 0.0
        %214 = vmatpush1.msra.mxu0 0.0
        %215 = vmatprep.subr.mxu0 0.0
        %216 = vmatpush1.msra.mxu0 0.0
        %217 = vmatprep.subr.mxu0 0.0
        %218 = vmatpush1.msra.mxu0 0.0
        %219 = vmatprep.subr.mxu0 0.0
        %220 = vmatpush1.msra.mxu0 0.0
        %221 = vmatprep.subr.mxu0 0.0
        %222 = vmatpush1.msra.mxu0 0.0
        %223 = vmatprep.subr.mxu0 0.0
        %224 = vmatpush1.msra.mxu0 0.0
        %225 = vmatprep.subr.mxu0 0.0
        %226 = vmatpush1.msra.mxu0 0.0
        %227 = vmatprep.subr.mxu0 0.0
        %228 = vmatpush1.msra.mxu0 0.0
        %229 = vmatprep.subr.mxu0 0.0
        %230 = vmatpush1.msra.mxu0 0.0
        %231 = vmatprep.subr.mxu0 0.0
        %232 = vmatpush1.msra.mxu0 0.0
        %233 = vmatprep.subr.mxu0 0.0
        %v234 = vand.u32 %v192, 4294901760
        %235 = vmatpush1.msra.mxu0 %v234
        %236 = vmatprep.subr.mxu0 0.0
        %237 = vmatpush2.msra.mxu0 0.0
        %238 = vmatprep.subr.mxu0 0.0
        %239 = vmatpush2.msra.mxu0 0.0
        %240 = vmatprep.subr.mxu0 0.0
        %241 = vmatpush2.msra.mxu0 0.0
        %242 = vmatprep.subr.mxu0 0.0
        %243 = vmatpush2.msra.mxu0 0.0
        %244 = vmatprep.subr.mxu0 0.0
        %245 = vmatpush2.msra.mxu0 0.0
        %246 = vmatprep.subr.mxu0 0.0
        %247 = vmatpush2.msra.mxu0 0.0
        %248 = vmatprep.subr.mxu0 0.0
        %249 = vmatpush2.msra.mxu0 0.0
        %250 = vmatprep.subr.mxu0 0.0
        %251 = vmatpush2.msra.mxu0 0.0
        %252 = vmatprep.subr.mxu0 0.0
        %253 = vmatpush2.msra.mxu0 0.0
        %254 = vmatprep.subr.mxu0 0.0
        %255 = vmatpush2.msra.mxu0 0.0
        %256 = vmatprep.subr.mxu0 0.0
        %257 = vmatpush2.msra.mxu0 0.0
        %258 = vmatprep.subr.mxu0 0.0
        %259 = vmatpush2.msra.mxu0 0.0
        %260 = vmatprep.subr.mxu0 0.0
        %261 = vmatpush2.msra.mxu0 0.0
        %262 = vmatprep.subr.mxu0 0.0
        %263 = vmatpush2.msra.mxu0 0.0
        %264 = vmatprep.subr.mxu0 0.0
        %265 = vmatpush2.msra.mxu0 0.0
        %266 = vmatprep.subr.mxu0 0.0
        %267 = vmatpush2.msra.mxu0 0.0
        %268 = vmatprep.mubr.f32.mxu0 0.0
        %v269 = vand.u32 %v201, 4294901760
        %v270 = vsub.f32 %v201, %v269
        %v271 = vand.u32 %v270, 4294901760
        %v272 = vsub.f32 %v270, %v271
        %v273 = vand.u32 %v272, 4294901760
        %274 = vmatmul.mubr.f32.gmra.mxu0 %v273
        %v275 = vpop.f32.mrf.mxu0
        %v276 = vadd.f32 %v197, %v275
        %v277 = vpop.f32.mrf.mxu0
        %278 = vdwg.mxu0
        %279 = vmatprep.subr.mxu0 0.0
        %280 = vmatpush1.msra.mxu0 0.0
        %281 = vmatprep.subr.mxu0 0.0
        %282 = vmatpush1.msra.mxu0 0.0
        %283 = vmatprep.subr.mxu0 0.0
        %284 = vmatpush1.msra.mxu0 0.0
        %285 = vmatprep.subr.mxu0 0.0
        %286 = vmatpush1.msra.mxu0 0.0
        %287 = vmatprep.subr.mxu0 0.0
        %288 = vmatpush1.msra.mxu0 0.0
        %289 = vmatprep.subr.mxu0 0.0
        %290 = vmatpush1.msra.mxu0 0.0
        %291 = vmatprep.subr.mxu0 0.0
        %292 = vmatpush1.msra.mxu0 0.0
        %293 = vmatprep.subr.mxu0 0.0
        %294 = vmatpush1.msra.mxu0 0.0
        %295 = vmatprep.subr.mxu0 0.0
        %296 = vmatpush1.msra.mxu0 0.0
        %297 = vmatprep.subr.mxu0 0.0
        %298 = vmatpush1.msra.mxu0 0.0
        %299 = vmatprep.subr.mxu0 0.0
        %300 = vmatpush1.msra.mxu0 0.0
        %301 = vmatprep.subr.mxu0 0.0
        %302 = vmatpush1.msra.mxu0 0.0
        %303 = vmatprep.subr.mxu0 0.0
        %304 = vmatpush1.msra.mxu0 0.0
        %305 = vmatprep.subr.mxu0 0.0
        %306 = vmatpush1.msra.mxu0 0.0
        %307 = vmatprep.subr.mxu0 0.0
        %308 = vmatpush1.msra.mxu0 0.0
        %309 = vmatprep.subr.mxu0 0.0
        %v310 = vand.u32 %v192, 4294901760
        %v311 = vsub.f32 %v192, %v310
        %v312 = vand.u32 %v311, 4294901760
        %v313 = vsub.f32 %v311, %v312
        %v314 = vand.u32 %v313, 4294901760
        %315 = vmatpush1.msra.mxu0 %v314
        %316 = vmatprep.subr.mxu0 0.0
        %317 = vmatpush2.msra.mxu0 0.0
        %318 = vmatprep.subr.mxu0 0.0
        %319 = vmatpush2.msra.mxu0 0.0
        %320 = vmatprep.subr.mxu0 0.0
        %321 = vmatpush2.msra.mxu0 0.0
        %322 = vmatprep.subr.mxu0 0.0
        %323 = vmatpush2.msra.mxu0 0.0
        %324 = vmatprep.subr.mxu0 0.0
        %325 = vmatpush2.msra.mxu0 0.0
        %326 = vmatprep.subr.mxu0 0.0
        %327 = vmatpush2.msra.mxu0 0.0
        %328 = vmatprep.subr.mxu0 0.0
        %329 = vmatpush2.msra.mxu0 0.0
        %330 = vmatprep.subr.mxu0 0.0
        %331 = vmatpush2.msra.mxu0 0.0
        %332 = vmatprep.subr.mxu0 0.0
        %333 = vmatpush2.msra.mxu0 0.0
        %334 = vmatprep.subr.mxu0 0.0
        %335 = vmatpush2.msra.mxu0 0.0
        %336 = vmatprep.subr.mxu0 0.0
        %337 = vmatpush2.msra.mxu0 0.0
        %338 = vmatprep.subr.mxu0 0.0
        %339 = vmatpush2.msra.mxu0 0.0
        %340 = vmatprep.subr.mxu0 0.0
        %341 = vmatpush2.msra.mxu0 0.0
        %342 = vmatprep.subr.mxu0 0.0
        %343 = vmatpush2.msra.mxu0 0.0
        %344 = vmatprep.subr.mxu0 0.0
        %345 = vmatpush2.msra.mxu0 0.0
        %346 = vmatprep.subr.mxu0 0.0
        %347 = vmatpush2.msra.mxu0 0.0
        %348 = vmatprep.mubr.f32.mxu0 0.0
        %v349 = vand.u32 %v201, 4294901760
        %350 = vmatmul.mubr.f32.gmra.mxu0 %v349
        %v351 = vpop.f32.mrf.mxu0
        %v352 = vadd.f32 %v276, %v351
        %v353 = vpop.f32.mrf.mxu0
        %354 = vdwg.mxu0
        %355 = vmatprep.subr.mxu0 0.0
        %356 = vmatpush1.msra.mxu0 0.0
        %357 = vmatprep.subr.mxu0 0.0
        %358 = vmatpush1.msra.mxu0 0.0
        %359 = vmatprep.subr.mxu0 0.0
        %360 = vmatpush1.msra.mxu0 0.0
        %361 = vmatprep.subr.mxu0 0.0
        %362 = vmatpush1.msra.mxu0 0.0
        %363 = vmatprep.subr.mxu0 0.0
        %364 = vmatpush1.msra.mxu0 0.0
        %365 = vmatprep.subr.mxu0 0.0
        %366 = vmatpush1.msra.mxu0 0.0
        %367 = vmatprep.subr.mxu0 0.0
        %368 = vmatpush1.msra.mxu0 0.0
        %369 = vmatprep.subr.mxu0 0.0
        %370 = vmatpush1.msra.mxu0 0.0
        %371 = vmatprep.subr.mxu0 0.0
        %372 = vmatpush1.msra.mxu0 0.0
        %373 = vmatprep.subr.mxu0 0.0
        %374 = vmatpush1.msra.mxu0 0.0
        %375 = vmatprep.subr.mxu0 0.0
        %376 = vmatpush1.msra.mxu0 0.0
        %377 = vmatprep.subr.mxu0 0.0
        %378 = vmatpush1.msra.mxu0 0.0
        %379 = vmatprep.subr.mxu0 0.0
        %380 = vmatpush1.msra.mxu0 0.0
        %381 = vmatprep.subr.mxu0 0.0
        %382 = vmatpush1.msra.mxu0 0.0
        %383 = vmatprep.subr.mxu0 0.0
        %384 = vmatpush1.msra.mxu0 0.0
        %385 = vmatprep.subr.mxu0 0.0
        %v386 = vand.u32 %v192, 4294901760
        %v387 = vsub.f32 %v192, %v386
        %388 = vmatpush1.msra.mxu0 %v387
        %389 = vmatprep.subr.mxu0 0.0
        %390 = vmatpush2.msra.mxu0 0.0
        %391 = vmatprep.subr.mxu0 0.0
        %392 = vmatpush2.msra.mxu0 0.0
        %393 = vmatprep.subr.mxu0 0.0
        %394 = vmatpush2.msra.mxu0 0.0
        %395 = vmatprep.subr.mxu0 0.0
        %396 = vmatpush2.msra.mxu0 0.0
        %397 = vmatprep.subr.mxu0 0.0
        %398 = vmatpush2.msra.mxu0 0.0
        %399 = vmatprep.subr.mxu0 0.0
        %400 = vmatpush2.msra.mxu0 0.0
        %401 = vmatprep.subr.mxu0 0.0
        %402 = vmatpush2.msra.mxu0 0.0
        %403 = vmatprep.subr.mxu0 0.0
        %404 = vmatpush2.msra.mxu0 0.0
        %405 = vmatprep.subr.mxu0 0.0
        %406 = vmatpush2.msra.mxu0 0.0
        %407 = vmatprep.subr.mxu0 0.0
        %408 = vmatpush2.msra.mxu0 0.0
        %409 = vmatprep.subr.mxu0 0.0
        %410 = vmatpush2.msra.mxu0 0.0
        %411 = vmatprep.subr.mxu0 0.0
        %412 = vmatpush2.msra.mxu0 0.0
        %413 = vmatprep.subr.mxu0 0.0
        %414 = vmatpush2.msra.mxu0 0.0
        %415 = vmatprep.subr.mxu0 0.0
        %416 = vmatpush2.msra.mxu0 0.0
        %417 = vmatprep.subr.mxu0 0.0
        %418 = vmatpush2.msra.mxu0 0.0
        %419 = vmatprep.subr.mxu0 0.0
        %420 = vmatpush2.msra.mxu0 0.0
        %421 = vmatprep.mubr.f32.mxu0 0.0
        %v422 = vand.u32 %v201, 4294901760
        %v423 = vsub.f32 %v201, %v422
        %424 = vmatmul.mubr.f32.gmra.mxu0 %v423
        %v425 = vpop.f32.mrf.mxu0
        %v426 = vadd.f32 %v352, %v425
        %v427 = vpop.f32.mrf.mxu0
        %428 = vdwg.mxu0
        %429 = vmatprep.subr.mxu0 0.0
        %430 = vmatpush1.msra.mxu0 0.0
        %431 = vmatprep.subr.mxu0 0.0
        %432 = vmatpush1.msra.mxu0 0.0
        %433 = vmatprep.subr.mxu0 0.0
        %434 = vmatpush1.msra.mxu0 0.0
        %435 = vmatprep.subr.mxu0 0.0
        %436 = vmatpush1.msra.mxu0 0.0
        %437 = vmatprep.subr.mxu0 0.0
        %438 = vmatpush1.msra.mxu0 0.0
        %439 = vmatprep.subr.mxu0 0.0
        %440 = vmatpush1.msra.mxu0 0.0
        %441 = vmatprep.subr.mxu0 0.0
        %442 = vmatpush1.msra.mxu0 0.0
        %443 = vmatprep.subr.mxu0 0.0
        %444 = vmatpush1.msra.mxu0 0.0
        %445 = vmatprep.subr.mxu0 0.0
        %446 = vmatpush1.msra.mxu0 0.0
        %447 = vmatprep.subr.mxu0 0.0
        %448 = vmatpush1.msra.mxu0 0.0
        %449 = vmatprep.subr.mxu0 0.0
        %450 = vmatpush1.msra.mxu0 0.0
        %451 = vmatprep.subr.mxu0 0.0
        %452 = vmatpush1.msra.mxu0 0.0
        %453 = vmatprep.subr.mxu0 0.0
        %454 = vmatpush1.msra.mxu0 0.0
        %455 = vmatprep.subr.mxu0 0.0
        %456 = vmatpush1.msra.mxu0 0.0
        %457 = vmatprep.subr.mxu0 0.0
        %458 = vmatpush1.msra.mxu0 0.0
        %459 = vmatprep.subr.mxu0 0.0
        %v460 = vand.u32 %v192, 4294901760
        %461 = vmatpush1.msra.mxu0 %v460
        %462 = vmatprep.subr.mxu0 0.0
        %463 = vmatpush2.msra.mxu0 0.0
        %464 = vmatprep.subr.mxu0 0.0
        %465 = vmatpush2.msra.mxu0 0.0
        %466 = vmatprep.subr.mxu0 0.0
        %467 = vmatpush2.msra.mxu0 0.0
        %468 = vmatprep.subr.mxu0 0.0
        %469 = vmatpush2.msra.mxu0 0.0
        %470 = vmatprep.subr.mxu0 0.0
        %471 = vmatpush2.msra.mxu0 0.0
        %472 = vmatprep.subr.mxu0 0.0
        %473 = vmatpush2.msra.mxu0 0.0
        %474 = vmatprep.subr.mxu0 0.0
        %475 = vmatpush2.msra.mxu0 0.0
        %476 = vmatprep.subr.mxu0 0.0
        %477 = vmatpush2.msra.mxu0 0.0
        %478 = vmatprep.subr.mxu0 0.0
        %479 = vmatpush2.msra.mxu0 0.0
        %480 = vmatprep.subr.mxu0 0.0
        %481 = vmatpush2.msra.mxu0 0.0
        %482 = vmatprep.subr.mxu0 0.0
        %483 = vmatpush2.msra.mxu0 0.0
        %484 = vmatprep.subr.mxu0 0.0
        %485 = vmatpush2.msra.mxu0 0.0
        %486 = vmatprep.subr.mxu0 0.0
        %487 = vmatpush2.msra.mxu0 0.0
        %488 = vmatprep.subr.mxu0 0.0
        %489 = vmatpush2.msra.mxu0 0.0
        %490 = vmatprep.subr.mxu0 0.0
        %491 = vmatpush2.msra.mxu0 0.0
        %492 = vmatprep.subr.mxu0 0.0
        %493 = vmatpush2.msra.mxu0 0.0
        %494 = vmatprep.mubr.f32.mxu0 0.0
        %v495 = vand.u32 %v201, 4294901760
        %v496 = vsub.f32 %v201, %v495
        %v497 = vand.u32 %v496, 4294901760
        %498 = vmatmul.mubr.f32.gmra.mxu0 %v497
        %v499 = vpop.f32.mrf.mxu0
        %v500 = vadd.f32 %v426, %v499
        %v501 = vpop.f32.mrf.mxu0
        %502 = vdwg.mxu0
        %503 = vmatprep.subr.mxu0 0.0
        %504 = vmatpush1.msra.mxu0 0.0
        %505 = vmatprep.subr.mxu0 0.0
        %506 = vmatpush1.msra.mxu0 0.0
        %507 = vmatprep.subr.mxu0 0.0
        %508 = vmatpush1.msra.mxu0 0.0
        %509 = vmatprep.subr.mxu0 0.0
        %510 = vmatpush1.msra.mxu0 0.0
        %511 = vmatprep.subr.mxu0 0.0
        %512 = vmatpush1.msra.mxu0 0.0
        %513 = vmatprep.subr.mxu0 0.0
        %514 = vmatpush1.msra.mxu0 0.0
        %515 = vmatprep.subr.mxu0 0.0
        %516 = vmatpush1.msra.mxu0 0.0
        %517 = vmatprep.subr.mxu0 0.0
        %518 = vmatpush1.msra.mxu0 0.0
        %519 = vmatprep.subr.mxu0 0.0
        %520 = vmatpush1.msra.mxu0 0.0
        %521 = vmatprep.subr.mxu0 0.0
        %522 = vmatpush1.msra.mxu0 0.0
        %523 = vmatprep.subr.mxu0 0.0
        %524 = vmatpush1.msra.mxu0 0.0
        %525 = vmatprep.subr.mxu0 0.0
        %526 = vmatpush1.msra.mxu0 0.0
        %527 = vmatprep.subr.mxu0 0.0
        %528 = vmatpush1.msra.mxu0 0.0
        %529 = vmatprep.subr.mxu0 0.0
        %530 = vmatpush1.msra.mxu0 0.0
        %531 = vmatprep.subr.mxu0 0.0
        %532 = vmatpush1.msra.mxu0 0.0
        %533 = vmatprep.subr.mxu0 0.0
        %v534 = vand.u32 %v192, 4294901760
        %v535 = vsub.f32 %v192, %v534
        %v536 = vand.u32 %v535, 4294901760
        %537 = vmatpush1.msra.mxu0 %v536
        %538 = vmatprep.subr.mxu0 0.0
        %539 = vmatpush2.msra.mxu0 0.0
        %540 = vmatprep.subr.mxu0 0.0
        %541 = vmatpush2.msra.mxu0 0.0
        %542 = vmatprep.subr.mxu0 0.0
        %543 = vmatpush2.msra.mxu0 0.0
        %544 = vmatprep.subr.mxu0 0.0
        %545 = vmatpush2.msra.mxu0 0.0
        %546 = vmatprep.subr.mxu0 0.0
        %547 = vmatpush2.msra.mxu0 0.0
        %548 = vmatprep.subr.mxu0 0.0
        %549 = vmatpush2.msra.mxu0 0.0
        %550 = vmatprep.subr.mxu0 0.0
        %551 = vmatpush2.msra.mxu0 0.0
        %552 = vmatprep.subr.mxu0 0.0
        %553 = vmatpush2.msra.mxu0 0.0
        %554 = vmatprep.subr.mxu0 0.0
        %555 = vmatpush2.msra.mxu0 0.0
        %556 = vmatprep.subr.mxu0 0.0
        %557 = vmatpush2.msra.mxu0 0.0
        %558 = vmatprep.subr.mxu0 0.0
        %559 = vmatpush2.msra.mxu0 0.0
        %560 = vmatprep.subr.mxu0 0.0
        %561 = vmatpush2.msra.mxu0 0.0
        %562 = vmatprep.subr.mxu0 0.0
        %563 = vmatpush2.msra.mxu0 0.0
        %564 = vmatprep.subr.mxu0 0.0
        %565 = vmatpush2.msra.mxu0 0.0
        %566 = vmatprep.subr.mxu0 0.0
        %567 = vmatpush2.msra.mxu0 0.0
        %568 = vmatprep.subr.mxu0 0.0
        %569 = vmatpush2.msra.mxu0 0.0
        %570 = vmatprep.mubr.f32.mxu0 0.0
        %v571 = vand.u32 %v201, 4294901760
        %572 = vmatmul.mubr.f32.gmra.mxu0 %v571
        %v573 = vpop.f32.mrf.mxu0
        %v574 = vadd.f32 %v500, %v573
        %v575 = vpop.f32.mrf.mxu0
        %576 = vdwg.mxu0
        %577 = vmatprep.subr.mxu0 0.0
        %578 = vmatpush1.msra.mxu0 0.0
        %579 = vmatprep.subr.mxu0 0.0
        %580 = vmatpush1.msra.mxu0 0.0
        %581 = vmatprep.subr.mxu0 0.0
        %582 = vmatpush1.msra.mxu0 0.0
        %583 = vmatprep.subr.mxu0 0.0
        %584 = vmatpush1.msra.mxu0 0.0
        %585 = vmatprep.subr.mxu0 0.0
        %586 = vmatpush1.msra.mxu0 0.0
        %587 = vmatprep.subr.mxu0 0.0
        %588 = vmatpush1.msra.mxu0 0.0
        %589 = vmatprep.subr.mxu0 0.0
        %590 = vmatpush1.msra.mxu0 0.0
        %591 = vmatprep.subr.mxu0 0.0
        %592 = vmatpush1.msra.mxu0 0.0
        %593 = vmatprep.subr.mxu0 0.0
        %594 = vmatpush1.msra.mxu0 0.0
        %595 = vmatprep.subr.mxu0 0.0
        %596 = vmatpush1.msra.mxu0 0.0
        %597 = vmatprep.subr.mxu0 0.0
        %598 = vmatpush1.msra.mxu0 0.0
        %599 = vmatprep.subr.mxu0 0.0
        %600 = vmatpush1.msra.mxu0 0.0
        %601 = vmatprep.subr.mxu0 0.0
        %602 = vmatpush1.msra.mxu0 0.0
        %603 = vmatprep.subr.mxu0 0.0
        %604 = vmatpush1.msra.mxu0 0.0
        %605 = vmatprep.subr.mxu0 0.0
        %606 = vmatpush1.msra.mxu0 0.0
        %607 = vmatprep.subr.mxu0 0.0
        %v608 = vand.u32 %v192, 4294901760
        %609 = vmatpush1.msra.mxu0 %v608
        %610 = vmatprep.subr.mxu0 0.0
        %611 = vmatpush2.msra.mxu0 0.0
        %612 = vmatprep.subr.mxu0 0.0
        %613 = vmatpush2.msra.mxu0 0.0
        %614 = vmatprep.subr.mxu0 0.0
        %615 = vmatpush2.msra.mxu0 0.0
        %616 = vmatprep.subr.mxu0 0.0
        %617 = vmatpush2.msra.mxu0 0.0
        %618 = vmatprep.subr.mxu0 0.0
        %619 = vmatpush2.msra.mxu0 0.0
        %620 = vmatprep.subr.mxu0 0.0
        %621 = vmatpush2.msra.mxu0 0.0
        %622 = vmatprep.subr.mxu0 0.0
        %623 = vmatpush2.msra.mxu0 0.0
        %624 = vmatprep.subr.mxu0 0.0
        %625 = vmatpush2.msra.mxu0 0.0
        %626 = vmatprep.subr.mxu0 0.0
        %627 = vmatpush2.msra.mxu0 0.0
        %628 = vmatprep.subr.mxu0 0.0
        %629 = vmatpush2.msra.mxu0 0.0
        %630 = vmatprep.subr.mxu0 0.0
        %631 = vmatpush2.msra.mxu0 0.0
        %632 = vmatprep.subr.mxu0 0.0
        %633 = vmatpush2.msra.mxu0 0.0
        %634 = vmatprep.subr.mxu0 0.0
        %635 = vmatpush2.msra.mxu0 0.0
        %636 = vmatprep.subr.mxu0 0.0
        %637 = vmatpush2.msra.mxu0 0.0
        %638 = vmatprep.subr.mxu0 0.0
        %639 = vmatpush2.msra.mxu0 0.0
        %640 = vmatprep.subr.mxu0 0.0
        %641 = vmatpush2.msra.mxu0 0.0
        %642 = vmatprep.mubr.f32.mxu0 0.0
        %v643 = vand.u32 %v201, 4294901760
        %644 = vmatmul.mubr.f32.gmra.mxu0 %v643
        %v645 = vpop.f32.mrf.mxu0
        %v646 = vadd.f32 %v574, %v645
        %v647 = vpop.f32.mrf.mxu0
        %648 = vdwg.mxu0
        %vm649 = vcmask 125952
        %650 = vst.msk [vmem:[%s183] sm:$0xf] %vm649, %v646
        %s651 = sand.u32 %s109, 1
        %s652 = scalar_lea.sflag [#allocation3], %s651
        %s653 = sand.u32 %s109, 1
        %s654 = smul.addr %s653, 4
        %s655 = scalar_lea.vmem [#allocation2], %s654
        // Predicated region
        $region33: #{refine_block_fwd.13} parent=31 // pred_check
          %p656 = pneg %p119
        $region34: #{refine_block_fwd.13} parent=31 // pred_check_branch
          %658 = sbr.rel (%p656) target = $region36
        $region35: #{refine_block_fwd.13} parent=31 // pred_region
          %s660 = ssub.s32 64, 64
          %661 = vsyncadd %s652, %s660
          %s662 = sadd.s32 %s22, %s21
          %s663 = smul.addr %s662, 64
          %s664 = scalar_lea.hbm %s3, %s663
          %s666 = sshll.u32 %s655, 4
          %s667 = int_to_ptr.vmem [resolvable:$true] %s666
          %669 = dma.vmem_to_hbm [thread:$0]  %s667, 64, %s664, %s652
        $region36: #{refine_block_fwd.13} parent=31 // pred_fallthru
          _
      $region32: #{refine_block_fwd.13} parent=5 // pred_fallthru
        _
      %p670 = scmp.le.s32.totalorder 2, %s12
      // Predicated region
      $region37: #{refine_block_fwd.13} parent=5 // pred_check
        %p671 = pneg %p670
      $region38: #{refine_block_fwd.13} parent=5 // pred_check_branch
        %673 = sbr.rel (%p671) target = $region40
      $region39: #{refine_block_fwd.13} parent=5 // pred_region
        %s674 = ssub.s32 %s12, 2
        // Predicated region
        $region41: #{refine_block_fwd.13} parent=39 // pred_check
          %p675 = pneg %p125
        $region42: #{refine_block_fwd.13} parent=39 // pred_check_branch
          %677 = sbr.rel (%p675) target = $region44
        $region43: #{refine_block_fwd.13} parent=39 // pred_region
          %s678 = sand.u32 %s110, 1
          %s679 = scalar_lea.sflag [#allocation3], %s678
          %s680 = sand.u32 %s110, 1
          %s681 = smul.addr %s680, 4
          %s682 = scalar_lea.vmem [#allocation2], %s681
          %683 = dma.done %s679, 64
        $region44: #{refine_block_fwd.13} parent=39 // pred_fallthru
          _
      $region40: #{refine_block_fwd.13} parent=5 // pred_fallthru
        _
    $region6: #{refine_block_fwd.13} parent=1 // loop_footer
      %s16 = sadd.s32 1, %s12
    $region7: #{refine_block_fwd.13} parent=1 // loop_footer_branch
      %11 = sbr.rel target = $region3
    $region8: #{refine_block_fwd.13} parent=1 // loop_exit
      _
    %684 = vsyncpa [#allocation3], 1
    %s685 = scalar_lea.sflag [#allocation3], 1
    %686 = vsyncpa %s685, 1

// kernel: refine_block_fwd.7
$region0: #{refine_block_fwd.7}
  #allocation0 [shape = 'u32[]', space=smem, size = 0x4, offset = 0x4, fixed_abs, tag = 'smem constant byte address 0x4 - core index']
  #allocation1 [shape = 'u32[144,128]{1,0:T(1,128)}', space=vmem, size = 0x12000, scoped, tag = 'internal scratch']
  %s0 = inlined_call_operand.vmem [shape: f32[2,8,16], index: 0, kind: input, shape index: {}]
  %s1 = inlined_call_operand.vmem [shape: f32[2,4,16], index: 1, kind: input, shape index: {}]
  %s2 = inlined_call_operand.vmem [shape: f32[2,4,16], index: 2, kind: input, shape index: {}]
  %s3 = inlined_call_operand.vmem [shape: f32[8,8], index: 3, kind: input, shape index: {}]
  %s4 = inlined_call_operand.vmem [shape: f32[8,4], index: 4, kind: input, shape index: {}]
  %s5 = inlined_call_operand.vmem [shape: f32[8,4], index: 5, kind: input, shape index: {}]
  %s6 = inlined_call_operand.vmem [shape: f32[8,1], index: 6, kind: input, shape index: {}]
  %s7 = inlined_call_operand.vmem [shape: f32[2,8,16], index: 7, kind: output, shape index: {}]
  %s8 = sld [smem:[#allocation0]]
  $region61: #{refine_block_fwd.7} parent=0
    _
  %s10 = ssub.s32 1, %s8
  %s11 = scalar_select 0, %s10, %s8
  loop: start=0, step=1, limit=4
  $region2: #{refine_block_fwd.7} parent=0 // loop_pre_header
    _
  $region3: #{refine_block_fwd.7} parent=0 // loop_header
    %s13 = sphi 0, %s17
    %p14 = scmp.ge.s32.totalorder %s13, 4
    %s20 = sphi 0, %s32
    %s21 = sphi 0, %s28
    %s22 = sphi 0, %s20
    %s23 = sphi 0, %s21
    %s24 = sphi 0, %s22
    %s25 = sphi 0, %s23
    %s37 = sphi 0, %s39
    %s40 = sphi 0, %s37
    %s41 = sphi 0, %s40
    %s57 = sphi 0, %s41
    %s65 = sphi 0, %s67
    %s68 = sphi 0, %s65
    %s69 = sphi 0, %s68
    %s85 = sphi 0, %s69
    %s93 = sphi 0, %s95
    %s96 = sphi 0, %s93
    %s97 = sphi 0, %s96
    %s113 = sphi 0, %s97
    %s117 = sphi 0, %s117
    %s119 = sphi 0, %s117
    %s120 = sphi 0, %s119
    %s134 = sphi 0, %s120
    %s138 = sphi 0, %s138
    %s140 = sphi 0, %s138
    %s141 = sphi 0, %s140
    %s155 = sphi 0, %s141
    %s159 = sphi 0, %s159
    %s161 = sphi 0, %s159
    %s162 = sphi 0, %s161
    %s176 = sphi 0, %s162
    %s180 = sphi 0, %s180
    %s182 = sphi 0, %s180
    %s183 = sphi 0, %s182
    %s197 = sphi 0, %s183
    %s205 = sphi 0, %s207
    %s208 = sphi 0, %s205
    %s209 = sphi 0, %s208
    %s225 = sphi 0, %s209
  $region4: #{refine_block_fwd.7} parent=0 // loop_header_branch
    %16 = sbr.rel (%p14) target = $region8
  $region5: #{refine_block_fwd.7} parent=0 // loop_body
    %s18 = ssub.s32 %s13, 1
    %s19 = ssub.s32 %s13, 2
    %s26 = sadd.s32 1, %s21
    %p27 = scmp.ge.s32.totalorder %s26, 1
    %s28 = scalar_select %p27, 0, %s26
    %s29 = sadd.s32 1, %s20
    %s30 = scalar_select %p27, %s29, %s20
    %p31 = scmp.ge.s32.totalorder %s30, 2
    %s32 = scalar_select %p31, 0, %s30
    %s33 = ssub.s32 %s20, %s32
    %s34 = ssub.s32 %s21, %s28
    %s35 = sor.u32 %s33, %s34
    %p36 = scmp.eq.s32.totalorder %s35, 0
    %s38 = sadd.s32 %s37, 1
    %s39 = scalar_select %p36, %s37, %s38
    %p42 = pneg %p36
    %p43 = scmp.eq.s32.totalorder %s13, 1
    %p44 = por %p42, %p43
    %p45 = scmp.ne.s32.totalorder %s37, %s40
    %p46 = scmp.eq.s32.totalorder %s13, 0
    %p47 = por %p45, %p46
    %p48 = scmp.ne.s32.totalorder %s37, %s40
    %p49 = scmp.eq.s32.totalorder %s18, 1
    %p50 = por %p48, %p49
    %p51 = scmp.ne.s32.totalorder %s40, %s41
    %p52 = scmp.eq.s32.totalorder %s18, 0
    %p53 = por %p51, %p52
    %p54 = scmp.ne.s32.totalorder %s40, %s41
    %p55 = scmp.eq.s32.totalorder %s19, 1
    %p56 = por %p54, %p55
    %p58 = scmp.ne.s32.totalorder %s41, %s57
    %p59 = scmp.eq.s32.totalorder %s19, 0
    %p60 = por %p58, %p59
    %s61 = ssub.s32 %s20, %s32
    %s62 = ssub.s32 %s21, %s28
    %s63 = sor.u32 %s61, %s62
    %p64 = scmp.eq.s32.totalorder %s63, 0
    %s66 = sadd.s32 %s65, 1
    %s67 = scalar_select %p64, %s65, %s66
    %p70 = pneg %p64
    %p71 = scmp.eq.s32.totalorder %s13, 1
    %p72 = por %p70, %p71
    %p73 = scmp.ne.s32.totalorder %s65, %s68
    %p74 = scmp.eq.s32.totalorder %s13, 0
    %p75 = por %p73, %p74
    %p76 = scmp.ne.s32.totalorder %s65, %s68
    %p77 = scmp.eq.s32.totalorder %s18, 1
    %p78 = por %p76, %p77
    %p79 = scmp.ne.s32.totalorder %s68, %s69
    %p80 = scmp.eq.s32.totalorder %s18, 0
    %p81 = por %p79, %p80
    %p82 = scmp.ne.s32.totalorder %s68, %s69
    %p83 = scmp.eq.s32.totalorder %s19, 1
    %p84 = por %p82, %p83
    %p86 = scmp.ne.s32.totalorder %s69, %s85
    %p87 = scmp.eq.s32.totalorder %s19, 0
    %p88 = por %p86, %p87
    %s89 = ssub.s32 %s20, %s32
    %s90 = ssub.s32 %s21, %s28
    %s91 = sor.u32 %s89, %s90
    %p92 = scmp.eq.s32.totalorder %s91, 0
    %s94 = sadd.s32 %s93, 1
    %s95 = scalar_select %p92, %s93, %s94
    %p98 = pneg %p92
    %p99 = scmp.eq.s32.totalorder %s13, 1
    %p100 = por %p98, %p99
    %p101 = scmp.ne.s32.totalorder %s93, %s96
    %p102 = scmp.eq.s32.totalorder %s13, 0
    %p103 = por %p101, %p102
    %p104 = scmp.ne.s32.totalorder %s93, %s96
    %p105 = scmp.eq.s32.totalorder %s18, 1
    %p106 = por %p104, %p105
    %p107 = scmp.ne.s32.totalorder %s96, %s97
    %p108 = scmp.eq.s32.totalorder %s18, 0
    %p109 = por %p107, %p108
    %p110 = scmp.ne.s32.totalorder %s96, %s97
    %p111 = scmp.eq.s32.totalorder %s19, 1
    %p112 = por %p110, %p111
    %p114 = scmp.ne.s32.totalorder %s97, %s113
    %p115 = scmp.eq.s32.totalorder %s19, 0
    %p116 = por %p114, %p115
    %s118 = sadd.s32 %s117, 1
    %p121 = scmp.eq.s32.totalorder %s13, 1
    %p122 = scmp.ne.s32.totalorder %s117, %s119
    %p123 = scmp.eq.s32.totalorder %s13, 0
    %p124 = por %p122, %p123
    %p125 = scmp.ne.s32.totalorder %s117, %s119
    %p126 = scmp.eq.s32.totalorder %s18, 1
    %p127 = por %p125, %p126
    %p128 = scmp.ne.s32.totalorder %s119, %s120
    %p129 = scmp.eq.s32.totalorder %s18, 0
    %p130 = por %p128, %p129
    %p131 = scmp.ne.s32.totalorder %s119, %s120
    %p132 = scmp.eq.s32.totalorder %s19, 1
    %p133 = por %p131, %p132
    %p135 = scmp.ne.s32.totalorder %s120, %s134
    %p136 = scmp.eq.s32.totalorder %s19, 0
    %p137 = por %p135, %p136
    %s139 = sadd.s32 %s138, 1
    %p142 = scmp.eq.s32.totalorder %s13, 1
    %p143 = scmp.ne.s32.totalorder %s138, %s140
    %p144 = scmp.eq.s32.totalorder %s13, 0
    %p145 = por %p143, %p144
    %p146 = scmp.ne.s32.totalorder %s138, %s140
    %p147 = scmp.eq.s32.totalorder %s18, 1
    %p148 = por %p146, %p147
    %p149 = scmp.ne.s32.totalorder %s140, %s141
    %p150 = scmp.eq.s32.totalorder %s18, 0
    %p151 = por %p149, %p150
    %p152 = scmp.ne.s32.totalorder %s140, %s141
    %p153 = scmp.eq.s32.totalorder %s19, 1
    %p154 = por %p152, %p153
    %p156 = scmp.ne.s32.totalorder %s141, %s155
    %p157 = scmp.eq.s32.totalorder %s19, 0
    %p158 = por %p156, %p157
    %s160 = sadd.s32 %s159, 1
    %p163 = scmp.eq.s32.totalorder %s13, 1
    %p164 = scmp.ne.s32.totalorder %s159, %s161
    %p165 = scmp.eq.s32.totalorder %s13, 0
    %p166 = por %p164, %p165
    %p167 = scmp.ne.s32.totalorder %s159, %s161
    %p168 = scmp.eq.s32.totalorder %s18, 1
    %p169 = por %p167, %p168
    %p170 = scmp.ne.s32.totalorder %s161, %s162
    %p171 = scmp.eq.s32.totalorder %s18, 0
    %p172 = por %p170, %p171
    %p173 = scmp.ne.s32.totalorder %s161, %s162
    %p174 = scmp.eq.s32.totalorder %s19, 1
    %p175 = por %p173, %p174
    %p177 = scmp.ne.s32.totalorder %s162, %s176
    %p178 = scmp.eq.s32.totalorder %s19, 0
    %p179 = por %p177, %p178
    %s181 = sadd.s32 %s180, 1
    %p184 = scmp.eq.s32.totalorder %s13, 1
    %p185 = scmp.ne.s32.totalorder %s180, %s182
    %p186 = scmp.eq.s32.totalorder %s13, 0
    %p187 = por %p185, %p186
    %p188 = scmp.ne.s32.totalorder %s180, %s182
    %p189 = scmp.eq.s32.totalorder %s18, 1
    %p190 = por %p188, %p189
    %p191 = scmp.ne.s32.totalorder %s182, %s183
    %p192 = scmp.eq.s32.totalorder %s18, 0
    %p193 = por %p191, %p192
    %p194 = scmp.ne.s32.totalorder %s182, %s183
    %p195 = scmp.eq.s32.totalorder %s19, 1
    %p196 = por %p194, %p195
    %p198 = scmp.ne.s32.totalorder %s183, %s197
    %p199 = scmp.eq.s32.totalorder %s19, 0
    %p200 = por %p198, %p199
    %s201 = ssub.s32 %s20, %s32
    %s202 = ssub.s32 %s21, %s28
    %s203 = sor.u32 %s201, %s202
    %p204 = scmp.eq.s32.totalorder %s203, 0
    %s206 = sadd.s32 %s205, 1
    %s207 = scalar_select %p204, %s205, %s206
    %p210 = pneg %p204
    %p211 = scmp.eq.s32.totalorder %s13, 1
    %p212 = por %p210, %p211
    %p213 = scmp.ne.s32.totalorder %s205, %s208
    %p214 = scmp.eq.s32.totalorder %s13, 0
    %p215 = por %p213, %p214
    %p216 = scmp.ne.s32.totalorder %s205, %s208
    %p217 = scmp.eq.s32.totalorder %s18, 1
    %p218 = por %p216, %p217
    %p219 = scmp.ne.s32.totalorder %s208, %s209
    %p220 = scmp.eq.s32.totalorder %s18, 0
    %p221 = por %p219, %p220
    %p222 = scmp.ne.s32.totalorder %s208, %s209
    %p223 = scmp.eq.s32.totalorder %s19, 1
    %p224 = por %p222, %p223
    %p226 = scmp.ne.s32.totalorder %s209, %s225
    %p227 = scmp.eq.s32.totalorder %s19, 0
    %p228 = por %p226, %p227
    %p229 = scmp.le.s32.totalorder 1, %s13
    %p230 = scmp.lt.s32.totalorder %s13, 3
    %p231 = pnand %p229, %p230
    %p232 = pneg %p231
    // Predicated region
    $region9: #{refine_block_fwd.7} parent=5 // pred_check
      _
    $region10: #{refine_block_fwd.7} parent=5 // pred_check_branch
      %234 = sbr.rel (%p231) target = $region12
    $region11: #{refine_block_fwd.7} parent=5 // pred_region
      %s235 = ssub.s32 %s13, 1
      // Predicated region
      $region13: #{refine_block_fwd.7} parent=11 // pred_check
        %p236 = pneg %p130
      $region14: #{refine_block_fwd.7} parent=11 // pred_check_branch
        %238 = sbr.rel (%p236) target = $region16
      $region15: #{refine_block_fwd.7} parent=11 // pred_region
        _
      $region16: #{refine_block_fwd.7} parent=11 // pred_fallthru
        _
      // Predicated region
      $region17: #{refine_block_fwd.7} parent=11 // pred_check
        %p239 = pneg %p151
      $region18: #{refine_block_fwd.7} parent=11 // pred_check_branch
        %241 = sbr.rel (%p239) target = $region20
      $region19: #{refine_block_fwd.7} parent=11 // pred_region
        _
      $region20: #{refine_block_fwd.7} parent=11 // pred_fallthru
        _
      // Predicated region
      $region21: #{refine_block_fwd.7} parent=11 // pred_check
        %p242 = pneg %p172
      $region22: #{refine_block_fwd.7} parent=11 // pred_check_branch
        %244 = sbr.rel (%p242) target = $region24
      $region23: #{refine_block_fwd.7} parent=11 // pred_region
        _
      $region24: #{refine_block_fwd.7} parent=11 // pred_fallthru
        _
      // Predicated region
      $region25: #{refine_block_fwd.7} parent=11 // pred_check
        %p245 = pneg %p193
      $region26: #{refine_block_fwd.7} parent=11 // pred_check_branch
        %247 = sbr.rel (%p245) target = $region28
      $region27: #{refine_block_fwd.7} parent=11 // pred_region
        _
      $region28: #{refine_block_fwd.7} parent=11 // pred_fallthru
        _
    $region12: #{refine_block_fwd.7} parent=5 // pred_fallthru
      _
    %p248 = scmp.lt.s32.totalorder %s13, 2
    // Predicated region
    $region29: #{refine_block_fwd.7} parent=5 // pred_check
      %p249 = pneg %p248
    $region30: #{refine_block_fwd.7} parent=5 // pred_check_branch
      %251 = sbr.rel (%p249) target = $region32
    $region31: #{refine_block_fwd.7} parent=5 // pred_region
      // Predicated region
      $region33: #{refine_block_fwd.7} parent=31 // pred_check
        %p252 = pneg %p47
      $region34: #{refine_block_fwd.7} parent=31 // pred_check_branch
        %254 = sbr.rel (%p252) target = $region36
      $region35: #{refine_block_fwd.7} parent=31 // pred_region
        %p255 = scmp.lt.s32.totalorder %s20, 1
        %s256 = scalar_select %p255, %s20, 1
        %p257 = scmp.lt.s32.totalorder %s21, 0
        %s258 = scalar_select %p257, %s21, 0
        %s259 = sadd.s32 %s258, %s256
        %s260 = smul.addr %s259, 8
        %s261 = scalar_lea.vmem %s0, %s260
      $region36: #{refine_block_fwd.7} parent=31 // pred_fallthru
        _
      // Predicated region
      $region37: #{refine_block_fwd.7} parent=31 // pred_check
        %p262 = pneg %p75
      $region38: #{refine_block_fwd.7} parent=31 // pred_check_branch
        %264 = sbr.rel (%p262) target = $region40
      $region39: #{refine_block_fwd.7} parent=31 // pred_region
        %p265 = scmp.lt.s32.totalorder %s20, 1
        %s266 = scalar_select %p265, %s20, 1
        %p267 = scmp.lt.s32.totalorder %s21, 0
        %s268 = scalar_select %p267, %s21, 0
        %s269 = sadd.s32 %s268, %s266
        %s270 = smul.addr %s269, 4
        %s271 = scalar_lea.vmem %s1, %s270
      $region40: #{refine_block_fwd.7} parent=31 // pred_fallthru
        _
      // Predicated region
      $region41: #{refine_block_fwd.7} parent=31 // pred_check
        %p272 = pneg %p103
      $region42: #{refine_block_fwd.7} parent=31 // pred_check_branch
        %274 = sbr.rel (%p272) target = $region44
      $region43: #{refine_block_fwd.7} parent=31 // pred_region
        %p275 = scmp.lt.s32.totalorder %s20, 1
        %s276 = scalar_select %p275, %s20, 1
        %p277 = scmp.lt.s32.totalorder %s21, 0
        %s278 = scalar_select %p277, %s21, 0
        %s279 = sadd.s32 %s278, %s276
        %s280 = smul.addr %s279, 4
        %s281 = scalar_lea.vmem %s2, %s280
      $region44: #{refine_block_fwd.7} parent=31 // pred_fallthru
        _
    $region32: #{refine_block_fwd.7} parent=5 // pred_fallthru
      _
    %p282 = scmp.le.s32.totalorder 1, %s13
    %p283 = scmp.lt.s32.totalorder %s13, 3
    %p284 = pnand %p282, %p283
    %p285 = pneg %p284
    // Predicated region
    $region45: #{refine_block_fwd.7} parent=5 // pred_check
      _
    $region46: #{refine_block_fwd.7} parent=5 // pred_check_branch
      %287 = sbr.rel (%p284) target = $region48
    $region47: #{refine_block_fwd.7} parent=5 // pred_region
      %s288 = ssub.s32 %s13, 1
      %p289 = scmp.lt.s32.totalorder %s22, 1
      %s290 = scalar_select %p289, %s22, 1
      %p291 = scmp.lt.s32.totalorder %s23, 0
      %s292 = scalar_select %p291, %s23, 0
      %s293 = sadd.s32 %s292, %s290
      %s294 = smul.addr %s293, 8
      %s295 = scalar_lea.vmem %s0, %s294
      %p296 = pneg %p53
      %p297 = pneg %p50
      %p298 = scmp.lt.s32.totalorder %s22, 1
      %s299 = scalar_select %p298, %s22, 1
      %p300 = scmp.lt.s32.totalorder %s23, 0
      %s301 = scalar_select %p300, %s23, 0
      %s302 = sadd.s32 %s301, %s299
      %s303 = smul.addr %s302, 4
      %s304 = scalar_lea.vmem %s1, %s303
      %p305 = pneg %p81
      %p306 = pneg %p78
      %p307 = scmp.lt.s32.totalorder %s22, 1
      %s308 = scalar_select %p307, %s22, 1
      %p309 = scmp.lt.s32.totalorder %s23, 0
      %s310 = scalar_select %p309, %s23, 0
      %s311 = sadd.s32 %s310, %s308
      %s312 = smul.addr %s311, 4
      %s313 = scalar_lea.vmem %s2, %s312
      %p314 = pneg %p109
      %p315 = pneg %p106
      %p316 = pneg %p130
      %p317 = pneg %p127
      %p318 = pneg %p151
      %p319 = pneg %p148
      %p320 = pneg %p172
      %p321 = pneg %p169
      %p322 = pneg %p193
      %p323 = pneg %p190
      %p324 = pneg %p221
      %p325 = pneg %p218
      %p326 = scmp.lt.s32.totalorder %s22, 1
      %s327 = scalar_select %p326, %s22, 1
      %p328 = scmp.lt.s32.totalorder %s23, 0
      %s329 = scalar_select %p328, %s23, 0
      %s330 = sadd.s32 %s329, %s327
      %s331 = smul.addr %s330, 8
      %s332 = scalar_lea.vmem %s7, %s331
      %p333 = scmp.lt.s32.totalorder %s22, 1
      %s334 = scalar_select %p333, %s22, 1
      %p335 = scmp.lt.s32.totalorder %s23, 0
      %s336 = scalar_select %p335, %s23, 0
      %s337 = sadd.s32 %s336, %s334
      %s338 = smul.addr %s337, 8
      %s339 = scalar_lea.vmem %s0, %s338
      %p340 = scmp.lt.s32.totalorder %s22, 1
      %s341 = scalar_select %p340, %s22, 1
      %p342 = scmp.lt.s32.totalorder %s23, 0
      %s343 = scalar_select %p342, %s23, 0
      %s344 = sadd.s32 %s343, %s341
      %s345 = smul.addr %s344, 4
      %s346 = scalar_lea.vmem %s1, %s345
      %p347 = scmp.lt.s32.totalorder %s22, 1
      %s348 = scalar_select %p347, %s22, 1
      %p349 = scmp.lt.s32.totalorder %s23, 0
      %s350 = scalar_select %p349, %s23, 0
      %s351 = sadd.s32 %s350, %s348
      %s352 = smul.addr %s351, 4
      %s353 = scalar_lea.vmem %s2, %s352
      %p354 = scmp.lt.s32.totalorder %s22, 1
      %s355 = scalar_select %p354, %s22, 1
      %p356 = scmp.lt.s32.totalorder %s23, 0
      %s357 = scalar_select %p356, %s23, 0
      %s358 = sadd.s32 %s357, %s355
      %s359 = smul.addr %s358, 8
      %s360 = scalar_lea.vmem %s7, %s359
      %v361 = vld [vmem:[%s3] sm:$0xff]
      %v362 = vld [vmem:[%s339] sm:$0xff]
      %v363 = vld [vmem:[%s4] sm:$0xff]
      %v364 = vld [vmem:[%s346] sm:$0xf]
      %vm365 = vcmask 31744
      %v367 = vsel %vm365, %v363, 0
      %vm369 = vcmask 1043456
      %v371 = vsel %vm369, %v364, 0
      %373 = vmatprep.subr.mxu0 0.0
      %374 = vmatpush1.msra.mxu0 0.0
      %375 = vmatprep.subr.mxu0 0.0
      %376 = vmatpush1.msra.mxu0 0.0
      %377 = vmatprep.subr.mxu0 0.0
      %378 = vmatpush1.msra.mxu0 0.0
      %379 = vmatprep.subr.mxu0 0.0
      %380 = vmatpush1.msra.mxu0 0.0
      %381 = vmatprep.subr.mxu0 0.0
      %382 = vmatpush1.msra.mxu0 0.0
      %383 = vmatprep.subr.mxu0 0.0
      %384 = vmatpush1.msra.mxu0 0.0
      %385 = vmatprep.subr.mxu0 0.0
      %386 = vmatpush1.msra.mxu0 0.0
      %387 = vmatprep.subr.mxu0 0.0
      %388 = vmatpush1.msra.mxu0 0.0
      %389 = vmatprep.subr.mxu0 0.0
      %390 = vmatpush1.msra.mxu0 0.0
      %391 = vmatprep.subr.mxu0 0.0
      %392 = vmatpush1.msra.mxu0 0.0
      %393 = vmatprep.subr.mxu0 0.0
      %394 = vmatpush1.msra.mxu0 0.0
      %395 = vmatprep.subr.mxu0 0.0
      %396 = vmatpush1.msra.mxu0 0.0
      %397 = vmatprep.subr.mxu0 0.0
      %398 = vmatpush1.msra.mxu0 0.0
      %399 = vmatprep.subr.mxu0 0.0
      %400 = vmatpush1.msra.mxu0 0.0
      %401 = vmatprep.subr.mxu0 0.0
      %402 = vmatpush1.msra.mxu0 0.0
      %403 = vmatprep.subr.mxu0 0.0
      %v404 = vand.u32 %v371, 4294901760
      %405 = vmatpush1.msra.mxu0 %v404
      %406 = vmatprep.subr.mxu0 0.0
      %407 = vmatpush2.msra.mxu0 0.0
      %408 = vmatprep.subr.mxu0 0.0
      %409 = vmatpush2.msra.mxu0 0.0
      %410 = vmatprep.subr.mxu0 0.0
      %411 = vmatpush2.msra.mxu0 0.0
      %412 = vmatprep.subr.mxu0 0.0
      %413 = vmatpush2.msra.mxu0 0.0
      %414 = vmatprep.subr.mxu0 0.0
      %415 = vmatpush2.msra.mxu0 0.0
      %416 = vmatprep.subr.mxu0 0.0
      %417 = vmatpush2.msra.mxu0 0.0
      %418 = vmatprep.subr.mxu0 0.0
      %419 = vmatpush2.msra.mxu0 0.0
      %420 = vmatprep.subr.mxu0 0.0
      %421 = vmatpush2.msra.mxu0 0.0
      %422 = vmatprep.subr.mxu0 0.0
      %423 = vmatpush2.msra.mxu0 0.0
      %424 = vmatprep.subr.mxu0 0.0
      %425 = vmatpush2.msra.mxu0 0.0
      %426 = vmatprep.subr.mxu0 0.0
      %427 = vmatpush2.msra.mxu0 0.0
      %428 = vmatprep.subr.mxu0 0.0
      %429 = vmatpush2.msra.mxu0 0.0
      %430 = vmatprep.subr.mxu0 0.0
      %431 = vmatpush2.msra.mxu0 0.0
      %432 = vmatprep.subr.mxu0 0.0
      %433 = vmatpush2.msra.mxu0 0.0
      %434 = vmatprep.subr.mxu0 0.0
      %435 = vmatpush2.msra.mxu0 0.0
      %436 = vmatprep.subr.mxu0 0.0
      %437 = vmatpush2.msra.mxu0 0.0
      %438 = vmatprep.mubr.f32.mxu0 0.0
      %v439 = vand.u32 %v367, 4294901760
      %v440 = vsub.f32 %v367, %v439
      %v441 = vand.u32 %v440, 4294901760
      %v442 = vsub.f32 %v440, %v441
      %v443 = vand.u32 %v442, 4294901760
      %444 = vmatmul.mubr.f32.gmra.mxu0 %v443
      %v445 = vpop.f32.mrf.mxu0
      %v446 = vadd.f32 0.0, %v445
      %v447 = vpop.f32.mrf.mxu0
      %448 = vdwg.mxu0
      %449 = vmatprep.subr.mxu0 0.0
      %450 = vmatpush1.msra.mxu0 0.0
      %451 = vmatprep.subr.mxu0 0.0
      %452 = vmatpush1.msra.mxu0 0.0
      %453 = vmatprep.subr.mxu0 0.0
      %454 = vmatpush1.msra.mxu0 0.0
      %455 = vmatprep.subr.mxu0 0.0
      %456 = vmatpush1.msra.mxu0 0.0
      %457 = vmatprep.subr.mxu0 0.0
      %458 = vmatpush1.msra.mxu0 0.0
      %459 = vmatprep.subr.mxu0 0.0
      %460 = vmatpush1.msra.mxu0 0.0
      %461 = vmatprep.subr.mxu0 0.0
      %462 = vmatpush1.msra.mxu0 0.0
      %463 = vmatprep.subr.mxu0 0.0
      %464 = vmatpush1.msra.mxu0 0.0
      %465 = vmatprep.subr.mxu0 0.0
      %466 = vmatpush1.msra.mxu0 0.0
      %467 = vmatprep.subr.mxu0 0.0
      %468 = vmatpush1.msra.mxu0 0.0
      %469 = vmatprep.subr.mxu0 0.0
      %470 = vmatpush1.msra.mxu0 0.0
      %471 = vmatprep.subr.mxu0 0.0
      %472 = vmatpush1.msra.mxu0 0.0
      %473 = vmatprep.subr.mxu0 0.0
      %474 = vmatpush1.msra.mxu0 0.0
      %475 = vmatprep.subr.mxu0 0.0
      %476 = vmatpush1.msra.mxu0 0.0
      %477 = vmatprep.subr.mxu0 0.0
      %478 = vmatpush1.msra.mxu0 0.0
      %479 = vmatprep.subr.mxu0 0.0
      %v480 = vand.u32 %v371, 4294901760
      %v481 = vsub.f32 %v371, %v480
      %v482 = vand.u32 %v481, 4294901760
      %v483 = vsub.f32 %v481, %v482
      %v484 = vand.u32 %v483, 4294901760
      %485 = vmatpush1.msra.mxu0 %v484
      %486 = vmatprep.subr.mxu0 0.0
      %487 = vmatpush2.msra.mxu0 0.0
      %488 = vmatprep.subr.mxu0 0.0
      %489 = vmatpush2.msra.mxu0 0.0
      %490 = vmatprep.subr.mxu0 0.0
      %491 = vmatpush2.msra.mxu0 0.0
      %492 = vmatprep.subr.mxu0 0.0
      %493 = vmatpush2.msra.mxu0 0.0
      %494 = vmatprep.subr.mxu0 0.0
      %495 = vmatpush2.msra.mxu0 0.0
      %496 = vmatprep.subr.mxu0 0.0
      %497 = vmatpush2.msra.mxu0 0.0
      %498 = vmatprep.subr.mxu0 0.0
      %499 = vmatpush2.msra.mxu0 0.0
      %500 = vmatprep.subr.mxu0 0.0
      %501 = vmatpush2.msra.mxu0 0.0
      %502 = vmatprep.subr.mxu0 0.0
      %503 = vmatpush2.msra.mxu0 0.0
      %504 = vmatprep.subr.mxu0 0.0
      %505 = vmatpush2.msra.mxu0 0.0
      %506 = vmatprep.subr.mxu0 0.0
      %507 = vmatpush2.msra.mxu0 0.0
      %508 = vmatprep.subr.mxu0 0.0
      %509 = vmatpush2.msra.mxu0 0.0
      %510 = vmatprep.subr.mxu0 0.0
      %511 = vmatpush2.msra.mxu0 0.0
      %512 = vmatprep.subr.mxu0 0.0
      %513 = vmatpush2.msra.mxu0 0.0
      %514 = vmatprep.subr.mxu0 0.0
      %515 = vmatpush2.msra.mxu0 0.0
      %516 = vmatprep.subr.mxu0 0.0
      %517 = vmatpush2.msra.mxu0 0.0
      %518 = vmatprep.mubr.f32.mxu0 0.0
      %v519 = vand.u32 %v367, 4294901760
      %520 = vmatmul.mubr.f32.gmra.mxu0 %v519
      %v521 = vpop.f32.mrf.mxu0
      %v522 = vadd.f32 %v446, %v521
      %v523 = vpop.f32.mrf.mxu0
      %524 = vdwg.mxu0
      %525 = vmatprep.subr.mxu0 0.0
      %526 = vmatpush1.msra.mxu0 0.0
      %527 = vmatprep.subr.mxu0 0.0
      %528 = vmatpush1.msra.mxu0 0.0
      %529 = vmatprep.subr.mxu0 0.0
      %530 = vmatpush1.msra.mxu0 0.0
      %531 = vmatprep.subr.mxu0 0.0
      %532 = vmatpush1.msra.mxu0 0.0
      %533 = vmatprep.subr.mxu0 0.0
      %534 = vmatpush1.msra.mxu0 0.0
      %535 = vmatprep.subr.mxu0 0.0
      %536 = vmatpush1.msra.mxu0 0.0
      %537 = vmatprep.subr.mxu0 0.0
      %538 = vmatpush1.msra.mxu0 0.0
      %539 = vmatprep.subr.mxu0 0.0
      %540 = vmatpush1.msra.mxu0 0.0
      %541 = vmatprep.subr.mxu0 0.0
      %542 = vmatpush1.msra.mxu0 0.0
      %543 = vmatprep.subr.mxu0 0.0
      %544 = vmatpush1.msra.mxu0 0.0
      %545 = vmatprep.subr.mxu0 0.0
      %546 = vmatpush1.msra.mxu0 0.0
      %547 = vmatprep.subr.mxu0 0.0
      %548 = vmatpush1.msra.mxu0 0.0
      %549 = vmatprep.subr.mxu0 0.0
      %550 = vmatpush1.msra.mxu0 0.0
      %551 = vmatprep.subr.mxu0 0.0
      %552 = vmatpush1.msra.mxu0 0.0
      %553 = vmatprep.subr.mxu0 0.0
      %554 = vmatpush1.msra.mxu0 0.0
      %555 = vmatprep.subr.mxu0 0.0
      %v556 = vand.u32 %v371, 4294901760
      %v557 = vsub.f32 %v371, %v556
      %558 = vmatpush1.msra.mxu0 %v557
      %559 = vmatprep.subr.mxu0 0.0
      %560 = vmatpush2.msra.mxu0 0.0
      %561 = vmatprep.subr.mxu0 0.0
      %562 = vmatpush2.msra.mxu0 0.0
      %563 = vmatprep.subr.mxu0 0.0
      %564 = vmatpush2.msra.mxu0 0.0
      %565 = vmatprep.subr.mxu0 0.0
      %566 = vmatpush2.msra.mxu0 0.0
      %567 = vmatprep.subr.mxu0 0.0
      %568 = vmatpush2.msra.mxu0 0.0
      %569 = vmatprep.subr.mxu0 0.0
      %570 = vmatpush2.msra.mxu0 0.0
      %571 = vmatprep.subr.mxu0 0.0
      %572 = vmatpush2.msra.mxu0 0.0
      %573 = vmatprep.subr.mxu0 0.0
      %574 = vmatpush2.msra.mxu0 0.0
      %575 = vmatprep.subr.mxu0 0.0
      %576 = vmatpush2.msra.mxu0 0.0
      %577 = vmatprep.subr.mxu0 0.0
      %578 = vmatpush2.msra.mxu0 0.0
      %579 = vmatprep.subr.mxu0 0.0
      %580 = vmatpush2.msra.mxu0 0.0
      %581 = vmatprep.subr.mxu0 0.0
      %582 = vmatpush2.msra.mxu0 0.0
      %583 = vmatprep.subr.mxu0 0.0
      %584 = vmatpush2.msra.mxu0 0.0
      %585 = vmatprep.subr.mxu0 0.0
      %586 = vmatpush2.msra.mxu0 0.0
      %587 = vmatprep.subr.mxu0 0.0
      %588 = vmatpush2.msra.mxu0 0.0
      %589 = vmatprep.subr.mxu0 0.0
      %590 = vmatpush2.msra.mxu0 0.0
      %591 = vmatprep.mubr.f32.mxu0 0.0
      %v592 = vand.u32 %v367, 4294901760
      %v593 = vsub.f32 %v367, %v592
      %594 = vmatmul.mubr.f32.gmra.mxu0 %v593
      %v595 = vpop.f32.mrf.mxu0
      %v596 = vadd.f32 %v522, %v595
      %v597 = vpop.f32.mrf.mxu0
      %598 = vdwg.mxu0
      %599 = vmatprep.subr.mxu0 0.0
      %600 = vmatpush1.msra.mxu0 0.0
      %601 = vmatprep.subr.mxu0 0.0
      %602 = vmatpush1.msra.mxu0 0.0
      %603 = vmatprep.subr.mxu0 0.0
      %604 = vmatpush1.msra.mxu0 0.0
      %605 = vmatprep.subr.mxu0 0.0
      %606 = vmatpush1.msra.mxu0 0.0
      %607 = vmatprep.subr.mxu0 0.0
      %608 = vmatpush1.msra.mxu0 0.0
      %609 = vmatprep.subr.mxu0 0.0
      %610 = vmatpush1.msra.mxu0 0.0
      %611 = vmatprep.subr.mxu0 0.0
      %612 = vmatpush1.msra.mxu0 0.0
      %613 = vmatprep.subr.mxu0 0.0
      %614 = vmatpush1.msra.mxu0 0.0
      %615 = vmatprep.subr.mxu0 0.0
      %616 = vmatpush1.msra.mxu0 0.0
      %617 = vmatprep.subr.mxu0 0.0
      %618 = vmatpush1.msra.mxu0 0.0
      %619 = vmatprep.subr.mxu0 0.0
      %620 = vmatpush1.msra.mxu0 0.0
      %621 = vmatprep.subr.mxu0 0.0
      %622 = vmatpush1.msra.mxu0 0.0
      %623 = vmatprep.subr.mxu0 0.0
      %624 = vmatpush1.msra.mxu0 0.0
      %625 = vmatprep.subr.mxu0 0.0
      %626 = vmatpush1.msra.mxu0 0.0
      %627 = vmatprep.subr.mxu0 0.0
      %628 = vmatpush1.msra.mxu0 0.0
      %629 = vmatprep.subr.mxu0 0.0
      %v630 = vand.u32 %v371, 4294901760
      %631 = vmatpush1.msra.mxu0 %v630
      %632 = vmatprep.subr.mxu0 0.0
      %633 = vmatpush2.msra.mxu0 0.0
      %634 = vmatprep.subr.mxu0 0.0
      %635 = vmatpush2.msra.mxu0 0.0
      %636 = vmatprep.subr.mxu0 0.0
      %637 = vmatpush2.msra.mxu0 0.0
      %638 = vmatprep.subr.mxu0 0.0
      %639 = vmatpush2.msra.mxu0 0.0
      %640 = vmatprep.subr.mxu0 0.0
      %641 = vmatpush2.msra.mxu0 0.0
      %642 = vmatprep.subr.mxu0 0.0
      %643 = vmatpush2.msra.mxu0 0.0
      %644 = vmatprep.subr.mxu0 0.0
      %645 = vmatpush2.msra.mxu0 0.0
      %646 = vmatprep.subr.mxu0 0.0
      %647 = vmatpush2.msra.mxu0 0.0
      %648 = vmatprep.subr.mxu0 0.0
      %649 = vmatpush2.msra.mxu0 0.0
      %650 = vmatprep.subr.mxu0 0.0
      %651 = vmatpush2.msra.mxu0 0.0
      %652 = vmatprep.subr.mxu0 0.0
      %653 = vmatpush2.msra.mxu0 0.0
      %654 = vmatprep.subr.mxu0 0.0
      %655 = vmatpush2.msra.mxu0 0.0
      %656 = vmatprep.subr.mxu0 0.0
      %657 = vmatpush2.msra.mxu0 0.0
      %658 = vmatprep.subr.mxu0 0.0
      %659 = vmatpush2.msra.mxu0 0.0
      %660 = vmatprep.subr.mxu0 0.0
      %661 = vmatpush2.msra.mxu0 0.0
      %662 = vmatprep.subr.mxu0 0.0
      %663 = vmatpush2.msra.mxu0 0.0
      %664 = vmatprep.mubr.f32.mxu0 0.0
      %v665 = vand.u32 %v367, 4294901760
      %v666 = vsub.f32 %v367, %v665
      %v667 = vand.u32 %v666, 4294901760
      %668 = vmatmul.mubr.f32.gmra.mxu0 %v667
      %v669 = vpop.f32.mrf.mxu0
      %v670 = vadd.f32 %v596, %v669
      %v671 = vpop.f32.mrf.mxu0
      %672 = vdwg.mxu0
      %673 = vmatprep.subr.mxu0 0.0
      %674 = vmatpush1.msra.mxu0 0.0
      %675 = vmatprep.subr.mxu0 0.0
      %676 = vmatpush1.msra.mxu0 0.0
      %677 = vmatprep.subr.mxu0 0.0
      %678 = vmatpush1.msra.mxu0 0.0
      %679 = vmatprep.subr.mxu0 0.0
      %680 = vmatpush1.msra.mxu0 0.0
      %681 = vmatprep.subr.mxu0 0.0
      %682 = vmatpush1.msra.mxu0 0.0
      %683 = vmatprep.subr.mxu0 0.0
      %684 = vmatpush1.msra.mxu0 0.0
      %685 = vmatprep.subr.mxu0 0.0
      %686 = vmatpush1.msra.mxu0 0.0
      %687 = vmatprep.subr.mxu0 0.0
      %688 = vmatpush1.msra.mxu0 0.0
      %689 = vmatprep.subr.mxu0 0.0
      %690 = vmatpush1.msra.mxu0 0.0
      %691 = vmatprep.subr.mxu0 0.0
      %692 = vmatpush1.msra.mxu0 0.0
      %693 = vmatprep.subr.mxu0 0.0
      %694 = vmatpush1.msra.mxu0 0.0
      %695 = vmatprep.subr.mxu0 0.0
      %696 = vmatpush1.msra.mxu0 0.0
      %697 = vmatprep.subr.mxu0 0.0
      %698 = vmatpush1.msra.mxu0 0.0
      %699 = vmatprep.subr.mxu0 0.0
      %700 = vmatpush1.msra.mxu0 0.0
      %701 = vmatprep.subr.mxu0 0.0
      %702 = vmatpush1.msra.mxu0 0.0
      %703 = vmatprep.subr.mxu0 0.0
      %v704 = vand.u32 %v371, 4294901760
      %v705 = vsub.f32 %v371, %v704
      %v706 = vand.u32 %v705, 4294901760
      %707 = vmatpush1.msra.mxu0 %v706
      %708 = vmatprep.subr.mxu0 0.0
      %709 = vmatpush2.msra.mxu0 0.0
      %710 = vmatprep.subr.mxu0 0.0
      %711 = vmatpush2.msra.mxu0 0.0
      %712 = vmatprep.subr.mxu0 0.0
      %713 = vmatpush2.msra.mxu0 0.0
      %714 = vmatprep.subr.mxu0 0.0
      %715 = vmatpush2.msra.mxu0 0.0
      %716 = vmatprep.subr.mxu0 0.0
      %717 = vmatpush2.msra.mxu0 0.0
      %718 = vmatprep.subr.mxu0 0.0
      %719 = vmatpush2.msra.mxu0 0.0
      %720 = vmatprep.subr.mxu0 0.0
      %721 = vmatpush2.msra.mxu0 0.0
      %722 = vmatprep.subr.mxu0 0.0
      %723 = vmatpush2.msra.mxu0 0.0
      %724 = vmatprep.subr.mxu0 0.0
      %725 = vmatpush2.msra.mxu0 0.0
      %726 = vmatprep.subr.mxu0 0.0
      %727 = vmatpush2.msra.mxu0 0.0
      %728 = vmatprep.subr.mxu0 0.0
      %729 = vmatpush2.msra.mxu0 0.0
      %730 = vmatprep.subr.mxu0 0.0
      %731 = vmatpush2.msra.mxu0 0.0
      %732 = vmatprep.subr.mxu0 0.0
      %733 = vmatpush2.msra.mxu0 0.0
      %734 = vmatprep.subr.mxu0 0.0
      %735 = vmatpush2.msra.mxu0 0.0
      %736 = vmatprep.subr.mxu0 0.0
      %737 = vmatpush2.msra.mxu0 0.0
      %738 = vmatprep.subr.mxu0 0.0
      %739 = vmatpush2.msra.mxu0 0.0
      %740 = vmatprep.mubr.f32.mxu0 0.0
      %v741 = vand.u32 %v367, 4294901760
      %742 = vmatmul.mubr.f32.gmra.mxu0 %v741
      %v743 = vpop.f32.mrf.mxu0
      %v744 = vadd.f32 %v670, %v743
      %v745 = vpop.f32.mrf.mxu0
      %746 = vdwg.mxu0
      %747 = vmatprep.subr.mxu0 0.0
      %748 = vmatpush1.msra.mxu0 0.0
      %749 = vmatprep.subr.mxu0 0.0
      %750 = vmatpush1.msra.mxu0 0.0
      %751 = vmatprep.subr.mxu0 0.0
      %752 = vmatpush1.msra.mxu0 0.0
      %753 = vmatprep.subr.mxu0 0.0
      %754 = vmatpush1.msra.mxu0 0.0
      %755 = vmatprep.subr.mxu0 0.0
      %756 = vmatpush1.msra.mxu0 0.0
      %757 = vmatprep.subr.mxu0 0.0
      %758 = vmatpush1.msra.mxu0 0.0
      %759 = vmatprep.subr.mxu0 0.0
      %760 = vmatpush1.msra.mxu0 0.0
      %761 = vmatprep.subr.mxu0 0.0
      %762 = vmatpush1.msra.mxu0 0.0
      %763 = vmatprep.subr.mxu0 0.0
      %764 = vmatpush1.msra.mxu0 0.0
      %765 = vmatprep.subr.mxu0 0.0
      %766 = vmatpush1.msra.mxu0 0.0
      %767 = vmatprep.subr.mxu0 0.0
      %768 = vmatpush1.msra.mxu0 0.0
      %769 = vmatprep.subr.mxu0 0.0
      %770 = vmatpush1.msra.mxu0 0.0
      %771 = vmatprep.subr.mxu0 0.0
      %772 = vmatpush1.msra.mxu0 0.0
      %773 = vmatprep.subr.mxu0 0.0
      %774 = vmatpush1.msra.mxu0 0.0
      %775 = vmatprep.subr.mxu0 0.0
      %776 = vmatpush1.msra.mxu0 0.0
      %777 = vmatprep.subr.mxu0 0.0
      %v778 = vand.u32 %v371, 4294901760
      %779 = vmatpush1.msra.mxu0 %v778
      %780 = vmatprep.subr.mxu0 0.0
      %781 = vmatpush2.msra.mxu0 0.0
      %782 = vmatprep.subr.mxu0 0.0
      %783 = vmatpush2.msra.mxu0 0.0
      %784 = vmatprep.subr.mxu0 0.0
      %785 = vmatpush2.msra.mxu0 0.0
      %786 = vmatprep.subr.mxu0 0.0
      %787 = vmatpush2.msra.mxu0 0.0
      %788 = vmatprep.subr.mxu0 0.0
      %789 = vmatpush2.msra.mxu0 0.0
      %790 = vmatprep.subr.mxu0 0.0
      %791 = vmatpush2.msra.mxu0 0.0
      %792 = vmatprep.subr.mxu0 0.0
      %793 = vmatpush2.msra.mxu0 0.0
      %794 = vmatprep.subr.mxu0 0.0
      %795 = vmatpush2.msra.mxu0 0.0
      %796 = vmatprep.subr.mxu0 0.0
      %797 = vmatpush2.msra.mxu0 0.0
      %798 = vmatprep.subr.mxu0 0.0
      %799 = vmatpush2.msra.mxu0 0.0
      %800 = vmatprep.subr.mxu0 0.0
      %801 = vmatpush2.msra.mxu0 0.0
      %802 = vmatprep.subr.mxu0 0.0
      %803 = vmatpush2.msra.mxu0 0.0
      %804 = vmatprep.subr.mxu0 0.0
      %805 = vmatpush2.msra.mxu0 0.0
      %806 = vmatprep.subr.mxu0 0.0
      %807 = vmatpush2.msra.mxu0 0.0
      %808 = vmatprep.subr.mxu0 0.0
      %809 = vmatpush2.msra.mxu0 0.0
      %810 = vmatprep.subr.mxu0 0.0
      %811 = vmatpush2.msra.mxu0 0.0
      %812 = vmatprep.mubr.f32.mxu0 0.0
      %v813 = vand.u32 %v367, 4294901760
      %814 = vmatmul.mubr.f32.gmra.mxu0 %v813
      %v815 = vpop.f32.mrf.mxu0
      %v816 = vadd.f32 %v744, %v815
      %v817 = vpop.f32.mrf.mxu0
      %818 = vdwg.mxu0
      %vm819 = vcmask 64512
      %v821 = vsel %vm819, %v361, 0
      %823 = vmatprep.subr.mxu0 0.0
      %824 = vmatpush1.msra.mxu0 0.0
      %825 = vmatprep.subr.mxu0 0.0
      %826 = vmatpush1.msra.mxu0 0.0
      %827 = vmatprep.subr.mxu0 0.0
      %828 = vmatpush1.msra.mxu0 0.0
      %829 = vmatprep.subr.mxu0 0.0
      %830 = vmatpush1.msra.mxu0 0.0
      %831 = vmatprep.subr.mxu0 0.0
      %832 = vmatpush1.msra.mxu0 0.0
      %833 = vmatprep.subr.mxu0 0.0
      %834 = vmatpush1.msra.mxu0 0.0
      %835 = vmatprep.subr.mxu0 0.0
      %836 = vmatpush1.msra.mxu0 0.0
      %837 = vmatprep.subr.mxu0 0.0
      %838 = vmatpush1.msra.mxu0 0.0
      %839 = vmatprep.subr.mxu0 0.0
      %840 = vmatpush1.msra.mxu0 0.0
      %841 = vmatprep.subr.mxu0 0.0
      %842 = vmatpush1.msra.mxu0 0.0
      %843 = vmatprep.subr.mxu0 0.0
      %844 = vmatpush1.msra.mxu0 0.0
      %845 = vmatprep.subr.mxu0 0.0
      %846 = vmatpush1.msra.mxu0 0.0
      %847 = vmatprep.subr.mxu0 0.0
      %848 = vmatpush1.msra.mxu0 0.0
      %849 = vmatprep.subr.mxu0 0.0
      %850 = vmatpush1.msra.mxu0 0.0
      %851 = vmatprep.subr.mxu0 0.0
      %852 = vmatpush1.msra.mxu0 0.0
      %853 = vmatprep.subr.mxu0 0.0
      %v854 = vand.u32 %v362, 4294901760
      %855 = vmatpush1.msra.mxu0 %v854
      %856 = vmatprep.subr.mxu0 0.0
      %857 = vmatpush2.msra.mxu0 0.0
      %858 = vmatprep.subr.mxu0 0.0
      %859 = vmatpush2.msra.mxu0 0.0
      %860 = vmatprep.subr.mxu0 0.0
      %861 = vmatpush2.msra.mxu0 0.0
      %862 = vmatprep.subr.mxu0 0.0
      %863 = vmatpush2.msra.mxu0 0.0
      %864 = vmatprep.subr.mxu0 0.0
      %865 = vmatpush2.msra.mxu0 0.0
      %866 = vmatprep.subr.mxu0 0.0
      %867 = vmatpush2.msra.mxu0 0.0
      %868 = vmatprep.subr.mxu0 0.0
      %869 = vmatpush2.msra.mxu0 0.0
      %870 = vmatprep.subr.mxu0 0.0
      %871 = vmatpush2.msra.mxu0 0.0
      %872 = vmatprep.subr.mxu0 0.0
      %873 = vmatpush2.msra.mxu0 0.0
      %874 = vmatprep.subr.mxu0 0.0
      %875 = vmatpush2.msra.mxu0 0.0
      %876 = vmatprep.subr.mxu0 0.0
      %877 = vmatpush2.msra.mxu0 0.0
      %878 = vmatprep.subr.mxu0 0.0
      %879 = vmatpush2.msra.mxu0 0.0
      %880 = vmatprep.subr.mxu0 0.0
      %881 = vmatpush2.msra.mxu0 0.0
      %882 = vmatprep.subr.mxu0 0.0
      %883 = vmatpush2.msra.mxu0 0.0
      %884 = vmatprep.subr.mxu0 0.0
      %885 = vmatpush2.msra.mxu0 0.0
      %886 = vmatprep.subr.mxu0 0.0
      %887 = vmatpush2.msra.mxu0 0.0
      %888 = vmatprep.mubr.f32.mxu0 0.0
      %v889 = vand.u32 %v821, 4294901760
      %v890 = vsub.f32 %v821, %v889
      %v891 = vand.u32 %v890, 4294901760
      %v892 = vsub.f32 %v890, %v891
      %v893 = vand.u32 %v892, 4294901760
      %894 = vmatmul.mubr.f32.gmra.mxu0 %v893
      %v895 = vpop.f32.mrf.mxu0
      %v896 = vadd.f32 %v816, %v895
      %v897 = vpop.f32.mrf.mxu0
      %898 = vdwg.mxu0
      %899 = vmatprep.subr.mxu0 0.0
      %900 = vmatpush1.msra.mxu0 0.0
      %901 = vmatprep.subr.mxu0 0.0
      %902 = vmatpush1.msra.mxu0 0.0
      %903 = vmatprep.subr.mxu0 0.0
      %904 = vmatpush1.msra.mxu0 0.0
      %905 = vmatprep.subr.mxu0 0.0
      %906 = vmatpush1.msra.mxu0 0.0
      %907 = vmatprep.subr.mxu0 0.0
      %908 = vmatpush1.msra.mxu0 0.0
      %909 = vmatprep.subr.mxu0 0.0
      %910 = vmatpush1.msra.mxu0 0.0
      %911 = vmatprep.subr.mxu0 0.0
      %912 = vmatpush1.msra.mxu0 0.0
      %913 = vmatprep.subr.mxu0 0.0
      %914 = vmatpush1.msra.mxu0 0.0
      %915 = vmatprep.subr.mxu0 0.0
      %916 = vmatpush1.msra.mxu0 0.0
      %917 = vmatprep.subr.mxu0 0.0
      %918 = vmatpush1.msra.mxu0 0.0
      %919 = vmatprep.subr.mxu0 0.0
      %920 = vmatpush1.msra.mxu0 0.0
      %921 = vmatprep.subr.mxu0 0.0
      %922 = vmatpush1.msra.mxu0 0.0
      %923 = vmatprep.subr.mxu0 0.0
      %924 = vmatpush1.msra.mxu0 0.0
      %925 = vmatprep.subr.mxu0 0.0
      %926 = vmatpush1.msra.mxu0 0.0
      %927 = vmatprep.subr.mxu0 0.0
      %928 = vmatpush1.msra.mxu0 0.0
      %929 = vmatprep.subr.mxu0 0.0
      %v930 = vand.u32 %v362, 4294901760
      %v931 = vsub.f32 %v362, %v930
      %v932 = vand.u32 %v931, 4294901760
      %v933 = vsub.f32 %v931, %v932
      %v934 = vand.u32 %v933, 4294901760
      %935 = vmatpush1.msra.mxu0 %v934
      %936 = vmatprep.subr.mxu0 0.0
      %937 = vmatpush2.msra.mxu0 0.0
      %938 = vmatprep.subr.mxu0 0.0
      %939 = vmatpush2.msra.mxu0 0.0
      %940 = vmatprep.subr.mxu0 0.0
      %941 = vmatpush2.msra.mxu0 0.0
      %942 = vmatprep.subr.mxu0 0.0
      %943 = vmatpush2.msra.mxu0 0.0
      %944 = vmatprep.subr.mxu0 0.0
      %945 = vmatpush2.msra.mxu0 0.0
      %946 = vmatprep.subr.mxu0 0.0
      %947 = vmatpush2.msra.mxu0 0.0
      %948 = vmatprep.subr.mxu0 0.0
      %949 = vmatpush2.msra.mxu0 0.0
      %950 = vmatprep.subr.mxu0 0.0
      %951 = vmatpush2.msra.mxu0 0.0
      %952 = vmatprep.subr.mxu0 0.0
      %953 = vmatpush2.msra.mxu0 0.0
      %954 = vmatprep.subr.mxu0 0.0
      %955 = vmatpush2.msra.mxu0 0.0
      %956 = vmatprep.subr.mxu0 0.0
      %957 = vmatpush2.msra.mxu0 0.0
      %958 = vmatprep.subr.mxu0 0.0
      %959 = vmatpush2.msra.mxu0 0.0
      %960 = vmatprep.subr.mxu0 0.0
      %961 = vmatpush2.msra.mxu0 0.0
      %962 = vmatprep.subr.mxu0 0.0
      %963 = vmatpush2.msra.mxu0 0.0
      %964 = vmatprep.subr.mxu0 0.0
      %965 = vmatpush2.msra.mxu0 0.0
      %966 = vmatprep.subr.mxu0 0.0
      %967 = vmatpush2.msra.mxu0 0.0
      %968 = vmatprep.mubr.f32.mxu0 0.0
      %v969 = vand.u32 %v821, 4294901760
      %970 = vmatmul.mubr.f32.gmra.mxu0 %v969
      %v971 = vpop.f32.mrf.mxu0
      %v972 = vadd.f32 %v896, %v971
      %v973 = vpop.f32.mrf.mxu0
      %974 = vdwg.mxu0
      %975 = vmatprep.subr.mxu0 0.0
      %976 = vmatpush1.msra.mxu0 0.0
      %977 = vmatprep.subr.mxu0 0.0
      %978 = vmatpush1.msra.mxu0 0.0
      %979 = vmatprep.subr.mxu0 0.0
      %980 = vmatpush1.msra.mxu0 0.0
      %981 = vmatprep.subr.mxu0 0.0
      %982 = vmatpush1.msra.mxu0 0.0
      %983 = vmatprep.subr.mxu0 0.0
      %984 = vmatpush1.msra.mxu0 0.0
      %985 = vmatprep.subr.mxu0 0.0
      %986 = vmatpush1.msra.mxu0 0.0
      %987 = vmatprep.subr.mxu0 0.0
      %988 = vmatpush1.msra.mxu0 0.0
      %989 = vmatprep.subr.mxu0 0.0
      %990 = vmatpush1.msra.mxu0 0.0
      %991 = vmatprep.subr.mxu0 0.0
      %992 = vmatpush1.msra.mxu0 0.0
      %993 = vmatprep.subr.mxu0 0.0
      %994 = vmatpush1.msra.mxu0 0.0
      %995 = vmatprep.subr.mxu0 0.0
      %996 = vmatpush1.msra.mxu0 0.0
      %997 = vmatprep.subr.mxu0 0.0
      %998 = vmatpush1.msra.mxu0 0.0
      %999 = vmatprep.subr.mxu0 0.0
      %1000 = vmatpush1.msra.mxu0 0.0
      %1001 = vmatprep.subr.mxu0 0.0
      %1002 = vmatpush1.msra.mxu0 0.0
      %1003 = vmatprep.subr.mxu0 0.0
      %1004 = vmatpush1.msra.mxu0 0.0
      %1005 = vmatprep.subr.mxu0 0.0
      %v1006 = vand.u32 %v362, 4294901760
      %v1007 = vsub.f32 %v362, %v1006
      %1008 = vmatpush1.msra.mxu0 %v1007
      %1009 = vmatprep.subr.mxu0 0.0
      %1010 = vmatpush2.msra.mxu0 0.0
      %1011 = vmatprep.subr.mxu0 0.0
      %1012 = vmatpush2.msra.mxu0 0.0
      %1013 = vmatprep.subr.mxu0 0.0
      %1014 = vmatpush2.msra.mxu0 0.0
      %1015 = vmatprep.subr.mxu0 0.0
      %1016 = vmatpush2.msra.mxu0 0.0
      %1017 = vmatprep.subr.mxu0 0.0
      %1018 = vmatpush2.msra.mxu0 0.0
      %1019 = vmatprep.subr.mxu0 0.0
      %1020 = vmatpush2.msra.mxu0 0.0
      %1021 = vmatprep.subr.mxu0 0.0
      %1022 = vmatpush2.msra.mxu0 0.0
      %1023 = vmatprep.subr.mxu0 0.0
      %1024 = vmatpush2.msra.mxu0 0.0
      %1025 = vmatprep.subr.mxu0 0.0
      %1026 = vmatpush2.msra.mxu0 0.0
      %1027 = vmatprep.subr.mxu0 0.0
      %1028 = vmatpush2.msra.mxu0 0.0
      %1029 = vmatprep.subr.mxu0 0.0
      %1030 = vmatpush2.msra.mxu0 0.0
      %1031 = vmatprep.subr.mxu0 0.0
      %1032 = vmatpush2.msra.mxu0 0.0
      %1033 = vmatprep.subr.mxu0 0.0
      %1034 = vmatpush2.msra.mxu0 0.0
      %1035 = vmatprep.subr.mxu0 0.0
      %1036 = vmatpush2.msra.mxu0 0.0
      %1037 = vmatprep.subr.mxu0 0.0
      %1038 = vmatpush2.msra.mxu0 0.0
      %1039 = vmatprep.subr.mxu0 0.0
      %1040 = vmatpush2.msra.mxu0 0.0
      %1041 = vmatprep.mubr.f32.mxu0 0.0
      %v1042 = vand.u32 %v821, 4294901760
      %v1043 = vsub.f32 %v821, %v1042
      %1044 = vmatmul.mubr.f32.gmra.mxu0 %v1043
      %v1045 = vpop.f32.mrf.mxu0
      %v1046 = vadd.f32 %v972, %v1045
      %v1047 = vpop.f32.mrf.mxu0
      %1048 = vdwg.mxu0
      %1049 = vmatprep.subr.mxu0 0.0
      %1050 = vmatpush1.msra.mxu0 0.0
      %1051 = vmatprep.subr.mxu0 0.0
      %1052 = vmatpush1.msra.mxu0 0.0
      %1053 = vmatprep.subr.mxu0 0.0
      %1054 = vmatpush1.msra.mxu0 0.0
      %1055 = vmatprep.subr.mxu0 0.0
      %1056 = vmatpush1.msra.mxu0 0.0
      %1057 = vmatprep.subr.mxu0 0.0
      %1058 = vmatpush1.msra.mxu0 0.0
      %1059 = vmatprep.subr.mxu0 0.0
      %1060 = vmatpush1.msra.mxu0 0.0
      %1061 = vmatprep.subr.mxu0 0.0
      %1062 = vmatpush1.msra.mxu0 0.0
      %1063 = vmatprep.subr.mxu0 0.0
      %1064 = vmatpush1.msra.mxu0 0.0
      %1065 = vmatprep.subr.mxu0 0.0
      %1066 = vmatpush1.msra.mxu0 0.0
      %1067 = vmatprep.subr.mxu0 0.0
      %1068 = vmatpush1.msra.mxu0 0.0
      %1069 = vmatprep.subr.mxu0 0.0
      %1070 = vmatpush1.msra.mxu0 0.0
      %1071 = vmatprep.subr.mxu0 0.0
      %1072 = vmatpush1.msra.mxu0 0.0
      %1073 = vmatprep.subr.mxu0 0.0
      %1074 = vmatpush1.msra.mxu0 0.0
      %1075 = vmatprep.subr.mxu0 0.0
      %1076 = vmatpush1.msra.mxu0 0.0
      %1077 = vmatprep.subr.mxu0 0.0
      %1078 = vmatpush1.msra.mxu0 0.0
      %1079 = vmatprep.subr.mxu0 0.0
      %v1080 = vand.u32 %v362, 4294901760
      %1081 = vmatpush1.msra.mxu0 %v1080
      %1082 = vmatprep.subr.mxu0 0.0
      %1083 = vmatpush2.msra.mxu0 0.0
      %1084 = vmatprep.subr.mxu0 0.0
      %1085 = vmatpush2.msra.mxu0 0.0
      %1086 = vmatprep.subr.mxu0 0.0
      %1087 = vmatpush2.msra.mxu0 0.0
      %1088 = vmatprep.subr.mxu0 0.0
      %1089 = vmatpush2.msra.mxu0 0.0
      %1090 = vmatprep.subr.mxu0 0.0
      %1091 = vmatpush2.msra.mxu0 0.0
      %1092 = vmatprep.subr.mxu0 0.0
      %1093 = vmatpush2.msra.mxu0 0.0
      %1094 = vmatprep.subr.mxu0 0.0
      %1095 = vmatpush2.msra.mxu0 0.0
      %1096 = vmatprep.subr.mxu0 0.0
      %1097 = vmatpush2.msra.mxu0 0.0
      %1098 = vmatprep.subr.mxu0 0.0
      %1099 = vmatpush2.msra.mxu0 0.0
      %1100 = vmatprep.subr.mxu0 0.0
      %1101 = vmatpush2.msra.mxu0 0.0
      %1102 = vmatprep.subr.mxu0 0.0
      %1103 = vmatpush2.msra.mxu0 0.0
      %1104 = vmatprep.subr.mxu0 0.0
      %1105 = vmatpush2.msra.mxu0 0.0
      %1106 = vmatprep.subr.mxu0 0.0
      %1107 = vmatpush2.msra.mxu0 0.0
      %1108 = vmatprep.subr.mxu0 0.0
      %1109 = vmatpush2.msra.mxu0 0.0
      %1110 = vmatprep.subr.mxu0 0.0
      %1111 = vmatpush2.msra.mxu0 0.0
      %1112 = vmatprep.subr.mxu0 0.0
      %1113 = vmatpush2.msra.mxu0 0.0
      %1114 = vmatprep.mubr.f32.mxu0 0.0
      %v1115 = vand.u32 %v821, 4294901760
      %v1116 = vsub.f32 %v821, %v1115
      %v1117 = vand.u32 %v1116, 4294901760
      %1118 = vmatmul.mubr.f32.gmra.mxu0 %v1117
      %v1119 = vpop.f32.mrf.mxu0
      %v1120 = vadd.f32 %v1046, %v1119
      %v1121 = vpop.f32.mrf.mxu0
      %1122 = vdwg.mxu0
      %1123 = vmatprep.subr.mxu0 0.0
      %1124 = vmatpush1.msra.mxu0 0.0
      %1125 = vmatprep.subr.mxu0 0.0
      %1126 = vmatpush1.msra.mxu0 0.0
      %1127 = vmatprep.subr.mxu0 0.0
      %1128 = vmatpush1.msra.mxu0 0.0
      %1129 = vmatprep.subr.mxu0 0.0
      %1130 = vmatpush1.msra.mxu0 0.0
      %1131 = vmatprep.subr.mxu0 0.0
      %1132 = vmatpush1.msra.mxu0 0.0
      %1133 = vmatprep.subr.mxu0 0.0
      %1134 = vmatpush1.msra.mxu0 0.0
      %1135 = vmatprep.subr.mxu0 0.0
      %1136 = vmatpush1.msra.mxu0 0.0
      %1137 = vmatprep.subr.mxu0 0.0
      %1138 = vmatpush1.msra.mxu0 0.0
      %1139 = vmatprep.subr.mxu0 0.0
      %1140 = vmatpush1.msra.mxu0 0.0
      %1141 = vmatprep.subr.mxu0 0.0
      %1142 = vmatpush1.msra.mxu0 0.0
      %1143 = vmatprep.subr.mxu0 0.0
      %1144 = vmatpush1.msra.mxu0 0.0
      %1145 = vmatprep.subr.mxu0 0.0
      %1146 = vmatpush1.msra.mxu0 0.0
      %1147 = vmatprep.subr.mxu0 0.0
      %1148 = vmatpush1.msra.mxu0 0.0
      %1149 = vmatprep.subr.mxu0 0.0
      %1150 = vmatpush1.msra.mxu0 0.0
      %1151 = vmatprep.subr.mxu0 0.0
      %1152 = vmatpush1.msra.mxu0 0.0
      %1153 = vmatprep.subr.mxu0 0.0
      %v1154 = vand.u32 %v362, 4294901760
      %v1155 = vsub.f32 %v362, %v1154
      %v1156 = vand.u32 %v1155, 4294901760
      %1157 = vmatpush1.msra.mxu0 %v1156
      %1158 = vmatprep.subr.mxu0 0.0
      %1159 = vmatpush2.msra.mxu0 0.0
      %1160 = vmatprep.subr.mxu0 0.0
      %1161 = vmatpush2.msra.mxu0 0.0
      %1162 = vmatprep.subr.mxu0 0.0
      %1163 = vmatpush2.msra.mxu0 0.0
      %1164 = vmatprep.subr.mxu0 0.0
      %1165 = vmatpush2.msra.mxu0 0.0
      %1166 = vmatprep.subr.mxu0 0.0
      %1167 = vmatpush2.msra.mxu0 0.0
      %1168 = vmatprep.subr.mxu0 0.0
      %1169 = vmatpush2.msra.mxu0 0.0
      %1170 = vmatprep.subr.mxu0 0.0
      %1171 = vmatpush2.msra.mxu0 0.0
      %1172 = vmatprep.subr.mxu0 0.0
      %1173 = vmatpush2.msra.mxu0 0.0
      %1174 = vmatprep.subr.mxu0 0.0
      %1175 = vmatpush2.msra.mxu0 0.0
      %1176 = vmatprep.subr.mxu0 0.0
      %1177 = vmatpush2.msra.mxu0 0.0
      %1178 = vmatprep.subr.mxu0 0.0
      %1179 = vmatpush2.msra.mxu0 0.0
      %1180 = vmatprep.subr.mxu0 0.0
      %1181 = vmatpush2.msra.mxu0 0.0
      %1182 = vmatprep.subr.mxu0 0.0
      %1183 = vmatpush2.msra.mxu0 0.0
      %1184 = vmatprep.subr.mxu0 0.0
      %1185 = vmatpush2.msra.mxu0 0.0
      %1186 = vmatprep.subr.mxu0 0.0
      %1187 = vmatpush2.msra.mxu0 0.0
      %1188 = vmatprep.subr.mxu0 0.0
      %1189 = vmatpush2.msra.mxu0 0.0
      %1190 = vmatprep.mubr.f32.mxu0 0.0
      %v1191 = vand.u32 %v821, 4294901760
      %1192 = vmatmul.mubr.f32.gmra.mxu0 %v1191
      %v1193 = vpop.f32.mrf.mxu0
      %v1194 = vadd.f32 %v1120, %v1193
      %v1195 = vpop.f32.mrf.mxu0
      %1196 = vdwg.mxu0
      %1197 = vmatprep.subr.mxu0 0.0
      %1198 = vmatpush1.msra.mxu0 0.0
      %1199 = vmatprep.subr.mxu0 0.0
      %1200 = vmatpush1.msra.mxu0 0.0
      %1201 = vmatprep.subr.mxu0 0.0
      %1202 = vmatpush1.msra.mxu0 0.0
      %1203 = vmatprep.subr.mxu0 0.0
      %1204 = vmatpush1.msra.mxu0 0.0
      %1205 = vmatprep.subr.mxu0 0.0
      %1206 = vmatpush1.msra.mxu0 0.0
      %1207 = vmatprep.subr.mxu0 0.0
      %1208 = vmatpush1.msra.mxu0 0.0
      %1209 = vmatprep.subr.mxu0 0.0
      %1210 = vmatpush1.msra.mxu0 0.0
      %1211 = vmatprep.subr.mxu0 0.0
      %1212 = vmatpush1.msra.mxu0 0.0
      %1213 = vmatprep.subr.mxu0 0.0
      %1214 = vmatpush1.msra.mxu0 0.0
      %1215 = vmatprep.subr.mxu0 0.0
      %1216 = vmatpush1.msra.mxu0 0.0
      %1217 = vmatprep.subr.mxu0 0.0
      %1218 = vmatpush1.msra.mxu0 0.0
      %1219 = vmatprep.subr.mxu0 0.0
      %1220 = vmatpush1.msra.mxu0 0.0
      %1221 = vmatprep.subr.mxu0 0.0
      %1222 = vmatpush1.msra.mxu0 0.0
      %1223 = vmatprep.subr.mxu0 0.0
      %1224 = vmatpush1.msra.mxu0 0.0
      %1225 = vmatprep.subr.mxu0 0.0
      %1226 = vmatpush1.msra.mxu0 0.0
      %1227 = vmatprep.subr.mxu0 0.0
      %v1228 = vand.u32 %v362, 4294901760
      %1229 = vmatpush1.msra.mxu0 %v1228
      %1230 = vmatprep.subr.mxu0 0.0
      %1231 = vmatpush2.msra.mxu0 0.0
      %1232 = vmatprep.subr.mxu0 0.0
      %1233 = vmatpush2.msra.mxu0 0.0
      %1234 = vmatprep.subr.mxu0 0.0
      %1235 = vmatpush2.msra.mxu0 0.0
      %1236 = vmatprep.subr.mxu0 0.0
      %1237 = vmatpush2.msra.mxu0 0.0
      %1238 = vmatprep.subr.mxu0 0.0
      %1239 = vmatpush2.msra.mxu0 0.0
      %1240 = vmatprep.subr.mxu0 0.0
      %1241 = vmatpush2.msra.mxu0 0.0
      %1242 = vmatprep.subr.mxu0 0.0
      %1243 = vmatpush2.msra.mxu0 0.0
      %1244 = vmatprep.subr.mxu0 0.0
      %1245 = vmatpush2.msra.mxu0 0.0
      %1246 = vmatprep.subr.mxu0 0.0
      %1247 = vmatpush2.msra.mxu0 0.0
      %1248 = vmatprep.subr.mxu0 0.0
      %1249 = vmatpush2.msra.mxu0 0.0
      %1250 = vmatprep.subr.mxu0 0.0
      %1251 = vmatpush2.msra.mxu0 0.0
      %1252 = vmatprep.subr.mxu0 0.0
      %1253 = vmatpush2.msra.mxu0 0.0
      %1254 = vmatprep.subr.mxu0 0.0
      %1255 = vmatpush2.msra.mxu0 0.0
      %1256 = vmatprep.subr.mxu0 0.0
      %1257 = vmatpush2.msra.mxu0 0.0
      %1258 = vmatprep.subr.mxu0 0.0
      %1259 = vmatpush2.msra.mxu0 0.0
      %1260 = vmatprep.subr.mxu0 0.0
      %1261 = vmatpush2.msra.mxu0 0.0
      %1262 = vmatprep.mubr.f32.mxu0 0.0
      %v1263 = vand.u32 %v821, 4294901760
      %1264 = vmatmul.mubr.f32.gmra.mxu0 %v1263
      %v1265 = vpop.f32.mrf.mxu0
      %v1266 = vadd.f32 %v1194, %v1265
      %v1267 = vpop.f32.mrf.mxu0
      %1268 = vdwg.mxu0
      %v1269 = vld [vmem:[%s5] sm:$0xff]
      %v1270 = vld [vmem:[%s353] sm:$0xf]
      %v1272 = vsel %vm365, %v1269, 0
      %v1275 = vsel %vm369, %v1270, 0
      %1277 = vmatprep.subr.mxu0 0.0
      %1278 = vmatpush1.msra.mxu0 0.0
      %1279 = vmatprep.subr.mxu0 0.0
      %1280 = vmatpush1.msra.mxu0 0.0
      %1281 = vmatprep.subr.mxu0 0.0
      %1282 = vmatpush1.msra.mxu0 0.0
      %1283 = vmatprep.subr.mxu0 0.0
      %1284 = vmatpush1.msra.mxu0 0.0
      %1285 = vmatprep.subr.mxu0 0.0
      %1286 = vmatpush1.msra.mxu0 0.0
      %1287 = vmatprep.subr.mxu0 0.0
      %1288 = vmatpush1.msra.mxu0 0.0
      %1289 = vmatprep.subr.mxu0 0.0
      %1290 = vmatpush1.msra.mxu0 0.0
      %1291 = vmatprep.subr.mxu0 0.0
      %1292 = vmatpush1.msra.mxu0 0.0
      %1293 = vmatprep.subr.mxu0 0.0
      %1294 = vmatpush1.msra.mxu0 0.0
      %1295 = vmatprep.subr.mxu0 0.0
      %1296 = vmatpush1.msra.mxu0 0.0
      %1297 = vmatprep.subr.mxu0 0.0
      %1298 = vmatpush1.msra.mxu0 0.0
      %1299 = vmatprep.subr.mxu0 0.0
      %1300 = vmatpush1.msra.mxu0 0.0
      %1301 = vmatprep.subr.mxu0 0.0
      %1302 = vmatpush1.msra.mxu0 0.0
      %1303 = vmatprep.subr.mxu0 0.0
      %1304 = vmatpush1.msra.mxu0 0.0
      %1305 = vmatprep.subr.mxu0 0.0
      %1306 = vmatpush1.msra.mxu0 0.0
      %1307 = vmatprep.subr.mxu0 0.0
      %v1308 = vand.u32 %v1275, 4294901760
      %1309 = vmatpush1.msra.mxu0 %v1308
      %1310 = vmatprep.subr.mxu0 0.0
      %1311 = vmatpush2.msra.mxu0 0.0
      %1312 = vmatprep.subr.mxu0 0.0
      %1313 = vmatpush2.msra.mxu0 0.0
      %1314 = vmatprep.subr.mxu0 0.0
      %1315 = vmatpush2.msra.mxu0 0.0
      %1316 = vmatprep.subr.mxu0 0.0
      %1317 = vmatpush2.msra.mxu0 0.0
      %1318 = vmatprep.subr.mxu0 0.0
      %1319 = vmatpush2.msra.mxu0 0.0
      %1320 = vmatprep.subr.mxu0 0.0
      %1321 = vmatpush2.msra.mxu0 0.0
      %1322 = vmatprep.subr.mxu0 0.0
      %1323 = vmatpush2.msra.mxu0 0.0
      %1324 = vmatprep.subr.mxu0 0.0
      %1325 = vmatpush2.msra.mxu0 0.0
      %1326 = vmatprep.subr.mxu0 0.0
      %1327 = vmatpush2.msra.mxu0 0.0
      %1328 = vmatprep.subr.mxu0 0.0
      %1329 = vmatpush2.msra.mxu0 0.0
      %1330 = vmatprep.subr.mxu0 0.0
      %1331 = vmatpush2.msra.mxu0 0.0
      %1332 = vmatprep.subr.mxu0 0.0
      %1333 = vmatpush2.msra.mxu0 0.0
      %1334 = vmatprep.subr.mxu0 0.0
      %1335 = vmatpush2.msra.mxu0 0.0
      %1336 = vmatprep.subr.mxu0 0.0
      %1337 = vmatpush2.msra.mxu0 0.0
      %1338 = vmatprep.subr.mxu0 0.0
      %1339 = vmatpush2.msra.mxu0 0.0
      %1340 = vmatprep.subr.mxu0 0.0
      %1341 = vmatpush2.msra.mxu0 0.0
      %1342 = vmatprep.mubr.f32.mxu0 0.0
      %v1343 = vand.u32 %v1272, 4294901760
      %v1344 = vsub.f32 %v1272, %v1343
      %v1345 = vand.u32 %v1344, 4294901760
      %v1346 = vsub.f32 %v1344, %v1345
      %v1347 = vand.u32 %v1346, 4294901760
      %1348 = vmatmul.mubr.f32.gmra.mxu0 %v1347
      %v1349 = vpop.f32.mrf.mxu0
      %v1350 = vadd.f32 0.0, %v1349
      %v1351 = vpop.f32.mrf.mxu0
      %1352 = vdwg.mxu0
      %1353 = vmatprep.subr.mxu0 0.0
      %1354 = vmatpush1.msra.mxu0 0.0
      %1355 = vmatprep.subr.mxu0 0.0
      %1356 = vmatpush1.msra.mxu0 0.0
      %1357 = vmatprep.subr.mxu0 0.0
      %1358 = vmatpush1.msra.mxu0 0.0
      %1359 = vmatprep.subr.mxu0 0.0
      %1360 = vmatpush1.msra.mxu0 0.0
      %1361 = vmatprep.subr.mxu0 0.0
      %1362 = vmatpush1.msra.mxu0 0.0
      %1363 = vmatprep.subr.mxu0 0.0
      %1364 = vmatpush1.msra.mxu0 0.0
      %1365 = vmatprep.subr.mxu0 0.0
      %1366 = vmatpush1.msra.mxu0 0.0
      %1367 = vmatprep.subr.mxu0 0.0
      %1368 = vmatpush1.msra.mxu0 0.0
      %1369 = vmatprep.subr.mxu0 0.0
      %1370 = vmatpush1.msra.mxu0 0.0
      %1371 = vmatprep.subr.mxu0 0.0
      %1372 = vmatpush1.msra.mxu0 0.0
      %1373 = vmatprep.subr.mxu0 0.0
      %1374 = vmatpush1.msra.mxu0 0.0
      %1375 = vmatprep.subr.mxu0 0.0
      %1376 = vmatpush1.msra.mxu0 0.0
      %1377 = vmatprep.subr.mxu0 0.0
      %1378 = vmatpush1.msra.mxu0 0.0
      %1379 = vmatprep.subr.mxu0 0.0
      %1380 = vmatpush1.msra.mxu0 0.0
      %1381 = vmatprep.subr.mxu0 0.0
      %1382 = vmatpush1.msra.mxu0 0.0
      %1383 = vmatprep.subr.mxu0 0.0
      %v1384 = vand.u32 %v1275, 4294901760
      %v1385 = vsub.f32 %v1275, %v1384
      %v1386 = vand.u32 %v1385, 4294901760
      %v1387 = vsub.f32 %v1385, %v1386
      %v1388 = vand.u32 %v1387, 4294901760
      %1389 = vmatpush1.msra.mxu0 %v1388
      %1390 = vmatprep.subr.mxu0 0.0
      %1391 = vmatpush2.msra.mxu0 0.0
      %1392 = vmatprep.subr.mxu0 0.0
      %1393 = vmatpush2.msra.mxu0 0.0
      %1394 = vmatprep.subr.mxu0 0.0
      %1395 = vmatpush2.msra.mxu0 0.0
      %1396 = vmatprep.subr.mxu0 0.0
      %1397 = vmatpush2.msra.mxu0 0.0
      %1398 = vmatprep.subr.mxu0 0.0
      %1399 = vmatpush2.msra.mxu0 0.0
      %1400 = vmatprep.subr.mxu0 0.0
      %1401 = vmatpush2.msra.mxu0 0.0
      %1402 = vmatprep.subr.mxu0 0.0
      %1403 = vmatpush2.msra.mxu0 0.0
      %1404 = vmatprep.subr.mxu0 0.0
      %1405 = vmatpush2.msra.mxu0 0.0
      %1406 = vmatprep.subr.mxu0 0.0
      %1407 = vmatpush2.msra.mxu0 0.0
      %1408 = vmatprep.subr.mxu0 0.0
      %1409 = vmatpush2.msra.mxu0 0.0
      %1410 = vmatprep.subr.mxu0 0.0
      %1411 = vmatpush2.msra.mxu0 0.0
      %1412 = vmatprep.subr.mxu0 0.0
      %1413 = vmatpush2.msra.mxu0 0.0
      %1414 = vmatprep.subr.mxu0 0.0
      %1415 = vmatpush2.msra.mxu0 0.0
      %1416 = vmatprep.subr.mxu0 0.0
      %1417 = vmatpush2.msra.mxu0 0.0
      %1418 = vmatprep.subr.mxu0 0.0
      %1419 = vmatpush2.msra.mxu0 0.0
      %1420 = vmatprep.subr.mxu0 0.0
      %1421 = vmatpush2.msra.mxu0 0.0
      %1422 = vmatprep.mubr.f32.mxu0 0.0
      %v1423 = vand.u32 %v1272, 4294901760
      %1424 = vmatmul.mubr.f32.gmra.mxu0 %v1423
      %v1425 = vpop.f32.mrf.mxu0
      %v1426 = vadd.f32 %v1350, %v1425
      %v1427 = vpop.f32.mrf.mxu0
      %1428 = vdwg.mxu0
      %1429 = vmatprep.subr.mxu0 0.0
      %1430 = vmatpush1.msra.mxu0 0.0
      %1431 = vmatprep.subr.mxu0 0.0
      %1432 = vmatpush1.msra.mxu0 0.0
      %1433 = vmatprep.subr.mxu0 0.0
      %1434 = vmatpush1.msra.mxu0 0.0
      %1435 = vmatprep.subr.mxu0 0.0
      %1436 = vmatpush1.msra.mxu0 0.0
      %1437 = vmatprep.subr.mxu0 0.0
      %1438 = vmatpush1.msra.mxu0 0.0
      %1439 = vmatprep.subr.mxu0 0.0
      %1440 = vmatpush1.msra.mxu0 0.0
      %1441 = vmatprep.subr.mxu0 0.0
      %1442 = vmatpush1.msra.mxu0 0.0
      %1443 = vmatprep.subr.mxu0 0.0
      %1444 = vmatpush1.msra.mxu0 0.0
      %1445 = vmatprep.subr.mxu0 0.0
      %1446 = vmatpush1.msra.mxu0 0.0
      %1447 = vmatprep.subr.mxu0 0.0
      %1448 = vmatpush1.msra.mxu0 0.0
      %1449 = vmatprep.subr.mxu0 0.0
      %1450 = vmatpush1.msra.mxu0 0.0
      %1451 = vmatprep.subr.mxu0 0.0
      %1452 = vmatpush1.msra.mxu0 0.0
      %1453 = vmatprep.subr.mxu0 0.0
      %1454 = vmatpush1.msra.mxu0 0.0
      %1455 = vmatprep.subr.mxu0 0.0
      %1456 = vmatpush1.msra.mxu0 0.0
      %1457 = vmatprep.subr.mxu0 0.0
      %1458 = vmatpush1.msra.mxu0 0.0
      %1459 = vmatprep.subr.mxu0 0.0
      %v1460 = vand.u32 %v1275, 4294901760
      %v1461 = vsub.f32 %v1275, %v1460
      %1462 = vmatpush1.msra.mxu0 %v1461
      %1463 = vmatprep.subr.mxu0 0.0
      %1464 = vmatpush2.msra.mxu0 0.0
      %1465 = vmatprep.subr.mxu0 0.0
      %1466 = vmatpush2.msra.mxu0 0.0
      %1467 = vmatprep.subr.mxu0 0.0
      %1468 = vmatpush2.msra.mxu0 0.0
      %1469 = vmatprep.subr.mxu0 0.0
      %1470 = vmatpush2.msra.mxu0 0.0
      %1471 = vmatprep.subr.mxu0 0.0
      %1472 = vmatpush2.msra.mxu0 0.0
      %1473 = vmatprep.subr.mxu0 0.0
      %1474 = vmatpush2.msra.mxu0 0.0
      %1475 = vmatprep.subr.mxu0 0.0
      %1476 = vmatpush2.msra.mxu0 0.0
      %1477 = vmatprep.subr.mxu0 0.0
      %1478 = vmatpush2.msra.mxu0 0.0
      %1479 = vmatprep.subr.mxu0 0.0
      %1480 = vmatpush2.msra.mxu0 0.0
      %1481 = vmatprep.subr.mxu0 0.0
      %1482 = vmatpush2.msra.mxu0 0.0
      %1483 = vmatprep.subr.mxu0 0.0
      %1484 = vmatpush2.msra.mxu0 0.0
      %1485 = vmatprep.subr.mxu0 0.0
      %1486 = vmatpush2.msra.mxu0 0.0
      %1487 = vmatprep.subr.mxu0 0.0
      %1488 = vmatpush2.msra.mxu0 0.0
      %1489 = vmatprep.subr.mxu0 0.0
      %1490 = vmatpush2.msra.mxu0 0.0
      %1491 = vmatprep.subr.mxu0 0.0
      %1492 = vmatpush2.msra.mxu0 0.0
      %1493 = vmatprep.subr.mxu0 0.0
      %1494 = vmatpush2.msra.mxu0 0.0
      %1495 = vmatprep.mubr.f32.mxu0 0.0
      %v1496 = vand.u32 %v1272, 4294901760
      %v1497 = vsub.f32 %v1272, %v1496
      %1498 = vmatmul.mubr.f32.gmra.mxu0 %v1497
      %v1499 = vpop.f32.mrf.mxu0
      %v1500 = vadd.f32 %v1426, %v1499
      %v1501 = vpop.f32.mrf.mxu0
      %1502 = vdwg.mxu0
      %1503 = vmatprep.subr.mxu0 0.0
      %1504 = vmatpush1.msra.mxu0 0.0
      %1505 = vmatprep.subr.mxu0 0.0
      %1506 = vmatpush1.msra.mxu0 0.0
      %1507 = vmatprep.subr.mxu0 0.0
      %1508 = vmatpush1.msra.mxu0 0.0
      %1509 = vmatprep.subr.mxu0 0.0
      %1510 = vmatpush1.msra.mxu0 0.0
      %1511 = vmatprep.subr.mxu0 0.0
      %1512 = vmatpush1.msra.mxu0 0.0
      %1513 = vmatprep.subr.mxu0 0.0
      %1514 = vmatpush1.msra.mxu0 0.0
      %1515 = vmatprep.subr.mxu0 0.0
      %1516 = vmatpush1.msra.mxu0 0.0
      %1517 = vmatprep.subr.mxu0 0.0
      %1518 = vmatpush1.msra.mxu0 0.0
      %1519 = vmatprep.subr.mxu0 0.0
      %1520 = vmatpush1.msra.mxu0 0.0
      %1521 = vmatprep.subr.mxu0 0.0
      %1522 = vmatpush1.msra.mxu0 0.0
      %1523 = vmatprep.subr.mxu0 0.0
      %1524 = vmatpush1.msra.mxu0 0.0
      %1525 = vmatprep.subr.mxu0 0.0
      %1526 = vmatpush1.msra.mxu0 0.0
      %1527 = vmatprep.subr.mxu0 0.0
      %1528 = vmatpush1.msra.mxu0 0.0
      %1529 = vmatprep.subr.mxu0 0.0
      %1530 = vmatpush1.msra.mxu0 0.0
      %1531 = vmatprep.subr.mxu0 0.0
      %1532 = vmatpush1.msra.mxu0 0.0
      %1533 = vmatprep.subr.mxu0 0.0
      %v1534 = vand.u32 %v1275, 4294901760
      %1535 = vmatpush1.msra.mxu0 %v1534
      %1536 = vmatprep.subr.mxu0 0.0
      %1537 = vmatpush2.msra.mxu0 0.0
      %1538 = vmatprep.subr.mxu0 0.0
      %1539 = vmatpush2.msra.mxu0 0.0
      %1540 = vmatprep.subr.mxu0 0.0
      %1541 = vmatpush2.msra.mxu0 0.0
      %1542 = vmatprep.subr.mxu0 0.0
      %1543 = vmatpush2.msra.mxu0 0.0
      %1544 = vmatprep.subr.mxu0 0.0
      %1545 = vmatpush2.msra.mxu0 0.0
      %1546 = vmatprep.subr.mxu0 0.0
      %1547 = vmatpush2.msra.mxu0 0.0
      %1548 = vmatprep.subr.mxu0 0.0
      %1549 = vmatpush2.msra.mxu0 0.0
      %1550 = vmatprep.subr.mxu0 0.0
      %1551 = vmatpush2.msra.mxu0 0.0
      %1552 = vmatprep.subr.mxu0 0.0
      %1553 = vmatpush2.msra.mxu0 0.0
      %1554 = vmatprep.subr.mxu0 0.0
      %1555 = vmatpush2.msra.mxu0 0.0
      %1556 = vmatprep.subr.mxu0 0.0
      %1557 = vmatpush2.msra.mxu0 0.0
      %1558 = vmatprep.subr.mxu0 0.0
      %1559 = vmatpush2.msra.mxu0 0.0
      %1560 = vmatprep.subr.mxu0 0.0
      %1561 = vmatpush2.msra.mxu0 0.0
      %1562 = vmatprep.subr.mxu0 0.0
      %1563 = vmatpush2.msra.mxu0 0.0
      %1564 = vmatprep.subr.mxu0 0.0
      %1565 = vmatpush2.msra.mxu0 0.0
      %1566 = vmatprep.subr.mxu0 0.0
      %1567 = vmatpush2.msra.mxu0 0.0
      %1568 = vmatprep.mubr.f32.mxu0 0.0
      %v1569 = vand.u32 %v1272, 4294901760
      %v1570 = vsub.f32 %v1272, %v1569
      %v1571 = vand.u32 %v1570, 4294901760
      %1572 = vmatmul.mubr.f32.gmra.mxu0 %v1571
      %v1573 = vpop.f32.mrf.mxu0
      %v1574 = vadd.f32 %v1500, %v1573
      %v1575 = vpop.f32.mrf.mxu0
      %1576 = vdwg.mxu0
      %1577 = vmatprep.subr.mxu0 0.0
      %1578 = vmatpush1.msra.mxu0 0.0
      %1579 = vmatprep.subr.mxu0 0.0
      %1580 = vmatpush1.msra.mxu0 0.0
      %1581 = vmatprep.subr.mxu0 0.0
      %1582 = vmatpush1.msra.mxu0 0.0
      %1583 = vmatprep.subr.mxu0 0.0
      %1584 = vmatpush1.msra.mxu0 0.0
      %1585 = vmatprep.subr.mxu0 0.0
      %1586 = vmatpush1.msra.mxu0 0.0
      %1587 = vmatprep.subr.mxu0 0.0
      %1588 = vmatpush1.msra.mxu0 0.0
      %1589 = vmatprep.subr.mxu0 0.0
      %1590 = vmatpush1.msra.mxu0 0.0
      %1591 = vmatprep.subr.mxu0 0.0
      %1592 = vmatpush1.msra.mxu0 0.0
      %1593 = vmatprep.subr.mxu0 0.0
      %1594 = vmatpush1.msra.mxu0 0.0
      %1595 = vmatprep.subr.mxu0 0.0
      %1596 = vmatpush1.msra.mxu0 0.0
      %1597 = vmatprep.subr.mxu0 0.0
      %1598 = vmatpush1.msra.mxu0 0.0
      %1599 = vmatprep.subr.mxu0 0.0
      %1600 = vmatpush1.msra.mxu0 0.0
      %1601 = vmatprep.subr.mxu0 0.0
      %1602 = vmatpush1.msra.mxu0 0.0
      %1603 = vmatprep.subr.mxu0 0.0
      %1604 = vmatpush1.msra.mxu0 0.0
      %1605 = vmatprep.subr.mxu0 0.0
      %1606 = vmatpush1.msra.mxu0 0.0
      %1607 = vmatprep.subr.mxu0 0.0
      %v1608 = vand.u32 %v1275, 4294901760
      %v1609 = vsub.f32 %v1275, %v1608
      %v1610 = vand.u32 %v1609, 4294901760
      %1611 = vmatpush1.msra.mxu0 %v1610
      %1612 = vmatprep.subr.mxu0 0.0
      %1613 = vmatpush2.msra.mxu0 0.0
      %1614 = vmatprep.subr.mxu0 0.0
      %1615 = vmatpush2.msra.mxu0 0.0
      %1616 = vmatprep.subr.mxu0 0.0
      %1617 = vmatpush2.msra.mxu0 0.0
      %1618 = vmatprep.subr.mxu0 0.0
      %1619 = vmatpush2.msra.mxu0 0.0
      %1620 = vmatprep.subr.mxu0 0.0
      %1621 = vmatpush2.msra.mxu0 0.0
      %1622 = vmatprep.subr.mxu0 0.0
      %1623 = vmatpush2.msra.mxu0 0.0
      %1624 = vmatprep.subr.mxu0 0.0
      %1625 = vmatpush2.msra.mxu0 0.0
      %1626 = vmatprep.subr.mxu0 0.0
      %1627 = vmatpush2.msra.mxu0 0.0
      %1628 = vmatprep.subr.mxu0 0.0
      %1629 = vmatpush2.msra.mxu0 0.0
      %1630 = vmatprep.subr.mxu0 0.0
      %1631 = vmatpush2.msra.mxu0 0.0
      %1632 = vmatprep.subr.mxu0 0.0
      %1633 = vmatpush2.msra.mxu0 0.0
      %1634 = vmatprep.subr.mxu0 0.0
      %1635 = vmatpush2.msra.mxu0 0.0
      %1636 = vmatprep.subr.mxu0 0.0
      %1637 = vmatpush2.msra.mxu0 0.0
      %1638 = vmatprep.subr.mxu0 0.0
      %1639 = vmatpush2.msra.mxu0 0.0
      %1640 = vmatprep.subr.mxu0 0.0
      %1641 = vmatpush2.msra.mxu0 0.0
      %1642 = vmatprep.subr.mxu0 0.0
      %1643 = vmatpush2.msra.mxu0 0.0
      %1644 = vmatprep.mubr.f32.mxu0 0.0
      %v1645 = vand.u32 %v1272, 4294901760
      %1646 = vmatmul.mubr.f32.gmra.mxu0 %v1645
      %v1647 = vpop.f32.mrf.mxu0
      %v1648 = vadd.f32 %v1574, %v1647
      %v1649 = vpop.f32.mrf.mxu0
      %1650 = vdwg.mxu0
      %1651 = vmatprep.subr.mxu0 0.0
      %1652 = vmatpush1.msra.mxu0 0.0
      %1653 = vmatprep.subr.mxu0 0.0
      %1654 = vmatpush1.msra.mxu0 0.0
      %1655 = vmatprep.subr.mxu0 0.0
      %1656 = vmatpush1.msra.mxu0 0.0
      %1657 = vmatprep.subr.mxu0 0.0
      %1658 = vmatpush1.msra.mxu0 0.0
      %1659 = vmatprep.subr.mxu0 0.0
      %1660 = vmatpush1.msra.mxu0 0.0
      %1661 = vmatprep.subr.mxu0 0.0
      %1662 = vmatpush1.msra.mxu0 0.0
      %1663 = vmatprep.subr.mxu0 0.0
      %1664 = vmatpush1.msra.mxu0 0.0
      %1665 = vmatprep.subr.mxu0 0.0
      %1666 = vmatpush1.msra.mxu0 0.0
      %1667 = vmatprep.subr.mxu0 0.0
      %1668 = vmatpush1.msra.mxu0 0.0
      %1669 = vmatprep.subr.mxu0 0.0
      %1670 = vmatpush1.msra.mxu0 0.0
      %1671 = vmatprep.subr.mxu0 0.0
      %1672 = vmatpush1.msra.mxu0 0.0
      %1673 = vmatprep.subr.mxu0 0.0
      %1674 = vmatpush1.msra.mxu0 0.0
      %1675 = vmatprep.subr.mxu0 0.0
      %1676 = vmatpush1.msra.mxu0 0.0
      %1677 = vmatprep.subr.mxu0 0.0
      %1678 = vmatpush1.msra.mxu0 0.0
      %1679 = vmatprep.subr.mxu0 0.0
      %1680 = vmatpush1.msra.mxu0 0.0
      %1681 = vmatprep.subr.mxu0 0.0
      %v1682 = vand.u32 %v1275, 4294901760
      %1683 = vmatpush1.msra.mxu0 %v1682
      %1684 = vmatprep.subr.mxu0 0.0
      %1685 = vmatpush2.msra.mxu0 0.0
      %1686 = vmatprep.subr.mxu0 0.0
      %1687 = vmatpush2.msra.mxu0 0.0
      %1688 = vmatprep.subr.mxu0 0.0
      %1689 = vmatpush2.msra.mxu0 0.0
      %1690 = vmatprep.subr.mxu0 0.0
      %1691 = vmatpush2.msra.mxu0 0.0
      %1692 = vmatprep.subr.mxu0 0.0
      %1693 = vmatpush2.msra.mxu0 0.0
      %1694 = vmatprep.subr.mxu0 0.0
      %1695 = vmatpush2.msra.mxu0 0.0
      %1696 = vmatprep.subr.mxu0 0.0
      %1697 = vmatpush2.msra.mxu0 0.0
      %1698 = vmatprep.subr.mxu0 0.0
      %1699 = vmatpush2.msra.mxu0 0.0
      %1700 = vmatprep.subr.mxu0 0.0
      %1701 = vmatpush2.msra.mxu0 0.0
      %1702 = vmatprep.subr.mxu0 0.0
      %1703 = vmatpush2.msra.mxu0 0.0
      %1704 = vmatprep.subr.mxu0 0.0
      %1705 = vmatpush2.msra.mxu0 0.0
      %1706 = vmatprep.subr.mxu0 0.0
      %1707 = vmatpush2.msra.mxu0 0.0
      %1708 = vmatprep.subr.mxu0 0.0
      %1709 = vmatpush2.msra.mxu0 0.0
      %1710 = vmatprep.subr.mxu0 0.0
      %1711 = vmatpush2.msra.mxu0 0.0
      %1712 = vmatprep.subr.mxu0 0.0
      %1713 = vmatpush2.msra.mxu0 0.0
      %1714 = vmatprep.subr.mxu0 0.0
      %1715 = vmatpush2.msra.mxu0 0.0
      %1716 = vmatprep.mubr.f32.mxu0 0.0
      %v1717 = vand.u32 %v1272, 4294901760
      %1718 = vmatmul.mubr.f32.gmra.mxu0 %v1717
      %v1719 = vpop.f32.mrf.mxu0
      %v1720 = vadd.f32 %v1648, %v1719
      %v1721 = vpop.f32.mrf.mxu0
      %1722 = vdwg.mxu0
      %v1723 = vadd.f32 %v1266, %v1720
      %v1724 = vld [vmem:[%s6] sm:$0xff]
      %1726 = vset.pattern.permute.xlu0 0
      %1727 = vperm.xlu0 %1726, %v1724
      %v1728 = vpop.permute.xlu0 %1727
      %v1730 = vadd.f32 %v1723, %v1728
      %vm1731 = vcmask 130048
      %1732 = vst.msk [vmem:[%s360] sm:$0xff] %vm1731, %v1730
      %p1733 = scmp.lt.s32.totalorder %s22, 1
      %s1734 = scalar_select %p1733, %s22, 1
      %p1735 = scmp.lt.s32.totalorder %s23, 0
      %s1736 = scalar_select %p1735, %s23, 0
      %s1737 = sadd.s32 %s1736, %s1734
      %s1738 = smul.addr %s1737, 8
      %s1739 = scalar_lea.vmem %s7, %s1738
      // Predicated region
      $region49: #{refine_block_fwd.7} parent=47 // pred_check
        %p1740 = pneg %p218
      $region50: #{refine_block_fwd.7} parent=47 // pred_check_branch
        %1742 = sbr.rel (%p1740) target = $region52
      $region51: #{refine_block_fwd.7} parent=47 // pred_region
        _
      $region52: #{refine_block_fwd.7} parent=47 // pred_fallthru
        _
    $region48: #{refine_block_fwd.7} parent=5 // pred_fallthru
      _
    %p1743 = scmp.le.s32.totalorder 2, %s13
    // Predicated region
    $region53: #{refine_block_fwd.7} parent=5 // pred_check
      %p1744 = pneg %p1743
    $region54: #{refine_block_fwd.7} parent=5 // pred_check_branch
      %1746 = sbr.rel (%p1744) target = $region56
    $region55: #{refine_block_fwd.7} parent=5 // pred_region
      %s1747 = ssub.s32 %s13, 2
      // Predicated region
      $region57: #{refine_block_fwd.7} parent=55 // pred_check
        %p1748 = pneg %p224
      $region58: #{refine_block_fwd.7} parent=55 // pred_check_branch
        %1750 = sbr.rel (%p1748) target = $region60
      $region59: #{refine_block_fwd.7} parent=55 // pred_region
        %p1751 = scmp.lt.s32.totalorder %s24, 1
        %s1752 = scalar_select %p1751, %s24, 1
        %p1753 = scmp.lt.s32.totalorder %s25, 0
        %s1754 = scalar_select %p1753, %s25, 0
        %s1755 = sadd.s32 %s1754, %s1752
        %s1756 = smul.addr %s1755, 8
        %s1757 = scalar_lea.vmem %s7, %s1756
      $region60: #{refine_block_fwd.7} parent=55 // pred_fallthru
        _
    $region56: #{refine_block_fwd.7} parent=5 // pred_fallthru
      _
  $region6: #{refine_block_fwd.7} parent=0 // loop_footer
    %s17 = sadd.s32 1, %s13
  $region7: #{refine_block_fwd.7} parent=0 // loop_footer_branch
    %12 = sbr.rel target = $region3
  $region8: #{refine_block_fwd.7} parent=0 // loop_exit
    _

// kernel: refine_block_fwd.11
$region0: #{refine_block_fwd.11}
  #allocation0 [shape = 'u32[]', space=smem, size = 0x4, offset = 0x4, fixed_abs, tag = 'smem constant byte address 0x4 - core index']
  #allocation1 [shape = 'u32[144,128]{1,0:T(1,128)}', space=vmem, size = 0x12000, scoped, tag = 'internal scratch']
  %s0 = inlined_call_operand.vmem [shape: f32[2,8,16], index: 0, kind: input, shape index: {}]
  %s1 = inlined_call_operand.vmem [shape: f32[8,8], index: 1, kind: input, shape index: {}]
  %s2 = inlined_call_operand.vmem [shape: f32[8,1], index: 2, kind: input, shape index: {}]
  %s3 = inlined_call_operand.vmem [shape: f32[8,24], index: 3, kind: input, shape index: {}]
  %s4 = inlined_call_operand.vmem [shape: f32[8,1], index: 4, kind: input, shape index: {}]
  %s5 = inlined_call_operand.vmem [shape: f32[8,24], index: 5, kind: input, shape index: {}]
  %s6 = inlined_call_operand.vmem [shape: f32[8,1], index: 6, kind: input, shape index: {}]
  %s7 = inlined_call_operand.vmem [shape: f32[8,8], index: 7, kind: input, shape index: {}]
  %s8 = inlined_call_operand.vmem [shape: f32[8,1], index: 8, kind: input, shape index: {}]
  %s9 = inlined_call_operand.vmem [shape: f32[3,8,1], index: 9, kind: input, shape index: {}]
  %s10 = inlined_call_operand.vmem [shape: f32[3,8,1], index: 10, kind: input, shape index: {}]
  %s11 = inlined_call_operand.vmem [shape: f32[3,8,1], index: 11, kind: input, shape index: {}]
  %s12 = inlined_call_operand.vmem [shape: f32[2,8,16], index: 12, kind: output, shape index: {}]
  %s13 = sld [smem:[#allocation0]]
  $region81: #{refine_block_fwd.11} parent=0
    _
  %s15 = ssub.s32 1, %s13
  %s16 = scalar_select 0, %s15, %s13
  loop: start=0, step=1, limit=4
  $region2: #{refine_block_fwd.11} parent=0 // loop_pre_header
    _
  $region3: #{refine_block_fwd.11} parent=0 // loop_header
    %s18 = sphi 0, %s22
    %p19 = scmp.ge.s32.totalorder %s18, 4
    %s28 = sphi 0, %s30
    %s31 = sphi 0, %s28
    %s32 = sphi 0, %s31
    %s48 = sphi 0, %s32
    %s52 = sphi 0, %s52
    %s54 = sphi 0, %s52
    %s55 = sphi 0, %s54
    %s69 = sphi 0, %s55
    %s73 = sphi 0, %s73
    %s75 = sphi 0, %s73
    %s76 = sphi 0, %s75
    %s90 = sphi 0, %s76
    %s94 = sphi 0, %s94
    %s96 = sphi 0, %s94
    %s97 = sphi 0, %s96
    %s111 = sphi 0, %s97
    %s115 = sphi 0, %s115
    %s117 = sphi 0, %s115
    %s118 = sphi 0, %s117
    %s132 = sphi 0, %s118
    %s136 = sphi 0, %s136
    %s138 = sphi 0, %s136
    %s139 = sphi 0, %s138
    %s153 = sphi 0, %s139
    %s157 = sphi 0, %s157
    %s159 = sphi 0, %s157
    %s160 = sphi 0, %s159
    %s174 = sphi 0, %s160
    %s178 = sphi 0, %s178
    %s180 = sphi 0, %s178
    %s181 = sphi 0, %s180
    %s195 = sphi 0, %s181
    %s199 = sphi 0, %s199
    %s201 = sphi 0, %s199
    %s202 = sphi 0, %s201
    %s216 = sphi 0, %s202
    %s220 = sphi 0, %s220
    %s222 = sphi 0, %s220
    %s223 = sphi 0, %s222
    %s237 = sphi 0, %s223
    %s241 = sphi 0, %s241
    %s243 = sphi 0, %s241
    %s244 = sphi 0, %s243
    %s258 = sphi 0, %s244
    %s262 = sphi 0, %s262
    %s264 = sphi 0, %s262
    %s265 = sphi 0, %s264
    %s279 = sphi 0, %s265
    %s285 = sphi 0, %s287
    %s288 = sphi 0, %s285
    %s289 = sphi 0, %s288
    %s305 = sphi 0, %s289
  $region4: #{refine_block_fwd.11} parent=0 // loop_header_branch
    %21 = sbr.rel (%p19) target = $region8
  $region5: #{refine_block_fwd.11} parent=0 // loop_body
    %s23 = ssub.s32 %s18, 1
    %s24 = ssub.s32 %s18, 2
    %s25 = sadd.s32 %s18, 1
    %s26 = ssub.s32 %s18, %s25
    %p27 = scmp.eq.s32.totalorder %s26, 0
    %s29 = sadd.s32 %s28, 1
    %s30 = scalar_select %p27, %s28, %s29
    %p33 = pneg %p27
    %p34 = scmp.eq.s32.totalorder %s18, 1
    %p35 = por %p33, %p34
    %p36 = scmp.ne.s32.totalorder %s28, %s31
    %p37 = scmp.eq.s32.totalorder %s18, 0
    %p38 = por %p36, %p37
    %p39 = scmp.ne.s32.totalorder %s28, %s31
    %p40 = scmp.eq.s32.totalorder %s23, 1
    %p41 = por %p39, %p40
    %p42 = scmp.ne.s32.totalorder %s31, %s32
    %p43 = scmp.eq.s32.totalorder %s23, 0
    %p44 = por %p42, %p43
    %p45 = scmp.ne.s32.totalorder %s31, %s32
    %p46 = scmp.eq.s32.totalorder %s24, 1
    %p47 = por %p45, %p46
    %p49 = scmp.ne.s32.totalorder %s32, %s48
    %p50 = scmp.eq.s32.totalorder %s24, 0
    %p51 = por %p49, %p50
    %s53 = sadd.s32 %s52, 1
    %p56 = scmp.eq.s32.totalorder %s18, 1
    %p57 = scmp.ne.s32.totalorder %s52, %s54
    %p58 = scmp.eq.s32.totalorder %s18, 0
    %p59 = por %p57, %p58
    %p60 = scmp.ne.s32.totalorder %s52, %s54
    %p61 = scmp.eq.s32.totalorder %s23, 1
    %p62 = por %p60, %p61
    %p63 = scmp.ne.s32.totalorder %s54, %s55
    %p64 = scmp.eq.s32.totalorder %s23, 0
    %p65 = por %p63, %p64
    %p66 = scmp.ne.s32.totalorder %s54, %s55
    %p67 = scmp.eq.s32.totalorder %s24, 1
    %p68 = por %p66, %p67
    %p70 = scmp.ne.s32.totalorder %s55, %s69
    %p71 = scmp.eq.s32.totalorder %s24, 0
    %p72 = por %p70, %p71
    %s74 = sadd.s32 %s73, 1
    %p77 = scmp.eq.s32.totalorder %s18, 1
    %p78 = scmp.ne.s32.totalorder %s73, %s75
    %p79 = scmp.eq.s32.totalorder %s18, 0
    %p80 = por %p78, %p79
    %p81 = scmp.ne.s32.totalorder %s73, %s75
    %p82 = scmp.eq.s32.totalorder %s23, 1
    %p83 = por %p81, %p82
    %p84 = scmp.ne.s32.totalorder %s75, %s76
    %p85 = scmp.eq.s32.totalorder %s23, 0
    %p86 = por %p84, %p85
    %p87 = scmp.ne.s32.totalorder %s75, %s76
    %p88 = scmp.eq.s32.totalorder %s24, 1
    %p89 = por %p87, %p88
    %p91 = scmp.ne.s32.totalorder %s76, %s90
    %p92 = scmp.eq.s32.totalorder %s24, 0
    %p93 = por %p91, %p92
    %s95 = sadd.s32 %s94, 1
    %p98 = scmp.eq.s32.totalorder %s18, 1
    %p99 = scmp.ne.s32.totalorder %s94, %s96
    %p100 = scmp.eq.s32.totalorder %s18, 0
    %p101 = por %p99, %p100
    %p102 = scmp.ne.s32.totalorder %s94, %s96
    %p103 = scmp.eq.s32.totalorder %s23, 1
    %p104 = por %p102, %p103
    %p105 = scmp.ne.s32.totalorder %s96, %s97
    %p106 = scmp.eq.s32.totalorder %s23, 0
    %p107 = por %p105, %p106
    %p108 = scmp.ne.s32.totalorder %s96, %s97
    %p109 = scmp.eq.s32.totalorder %s24, 1
    %p110 = por %p108, %p109
    %p112 = scmp.ne.s32.totalorder %s97, %s111
    %p113 = scmp.eq.s32.totalorder %s24, 0
    %p114 = por %p112, %p113
    %s116 = sadd.s32 %s115, 1
    %p119 = scmp.eq.s32.totalorder %s18, 1
    %p120 = scmp.ne.s32.totalorder %s115, %s117
    %p121 = scmp.eq.s32.totalorder %s18, 0
    %p122 = por %p120, %p121
    %p123 = scmp.ne.s32.totalorder %s115, %s117
    %p124 = scmp.eq.s32.totalorder %s23, 1
    %p125 = por %p123, %p124
    %p126 = scmp.ne.s32.totalorder %s117, %s118
    %p127 = scmp.eq.s32.totalorder %s23, 0
    %p128 = por %p126, %p127
    %p129 = scmp.ne.s32.totalorder %s117, %s118
    %p130 = scmp.eq.s32.totalorder %s24, 1
    %p131 = por %p129, %p130
    %p133 = scmp.ne.s32.totalorder %s118, %s132
    %p134 = scmp.eq.s32.totalorder %s24, 0
    %p135 = por %p133, %p134
    %s137 = sadd.s32 %s136, 1
    %p140 = scmp.eq.s32.totalorder %s18, 1
    %p141 = scmp.ne.s32.totalorder %s136, %s138
    %p142 = scmp.eq.s32.totalorder %s18, 0
    %p143 = por %p141, %p142
    %p144 = scmp.ne.s32.totalorder %s136, %s138
    %p145 = scmp.eq.s32.totalorder %s23, 1
    %p146 = por %p144, %p145
    %p147 = scmp.ne.s32.totalorder %s138, %s139
    %p148 = scmp.eq.s32.totalorder %s23, 0
    %p149 = por %p147, %p148
    %p150 = scmp.ne.s32.totalorder %s138, %s139
    %p151 = scmp.eq.s32.totalorder %s24, 1
    %p152 = por %p150, %p151
    %p154 = scmp.ne.s32.totalorder %s139, %s153
    %p155 = scmp.eq.s32.totalorder %s24, 0
    %p156 = por %p154, %p155
    %s158 = sadd.s32 %s157, 1
    %p161 = scmp.eq.s32.totalorder %s18, 1
    %p162 = scmp.ne.s32.totalorder %s157, %s159
    %p163 = scmp.eq.s32.totalorder %s18, 0
    %p164 = por %p162, %p163
    %p165 = scmp.ne.s32.totalorder %s157, %s159
    %p166 = scmp.eq.s32.totalorder %s23, 1
    %p167 = por %p165, %p166
    %p168 = scmp.ne.s32.totalorder %s159, %s160
    %p169 = scmp.eq.s32.totalorder %s23, 0
    %p170 = por %p168, %p169
    %p171 = scmp.ne.s32.totalorder %s159, %s160
    %p172 = scmp.eq.s32.totalorder %s24, 1
    %p173 = por %p171, %p172
    %p175 = scmp.ne.s32.totalorder %s160, %s174
    %p176 = scmp.eq.s32.totalorder %s24, 0
    %p177 = por %p175, %p176
    %s179 = sadd.s32 %s178, 1
    %p182 = scmp.eq.s32.totalorder %s18, 1
    %p183 = scmp.ne.s32.totalorder %s178, %s180
    %p184 = scmp.eq.s32.totalorder %s18, 0
    %p185 = por %p183, %p184
    %p186 = scmp.ne.s32.totalorder %s178, %s180
    %p187 = scmp.eq.s32.totalorder %s23, 1
    %p188 = por %p186, %p187
    %p189 = scmp.ne.s32.totalorder %s180, %s181
    %p190 = scmp.eq.s32.totalorder %s23, 0
    %p191 = por %p189, %p190
    %p192 = scmp.ne.s32.totalorder %s180, %s181
    %p193 = scmp.eq.s32.totalorder %s24, 1
    %p194 = por %p192, %p193
    %p196 = scmp.ne.s32.totalorder %s181, %s195
    %p197 = scmp.eq.s32.totalorder %s24, 0
    %p198 = por %p196, %p197
    %s200 = sadd.s32 %s199, 1
    %p203 = scmp.eq.s32.totalorder %s18, 1
    %p204 = scmp.ne.s32.totalorder %s199, %s201
    %p205 = scmp.eq.s32.totalorder %s18, 0
    %p206 = por %p204, %p205
    %p207 = scmp.ne.s32.totalorder %s199, %s201
    %p208 = scmp.eq.s32.totalorder %s23, 1
    %p209 = por %p207, %p208
    %p210 = scmp.ne.s32.totalorder %s201, %s202
    %p211 = scmp.eq.s32.totalorder %s23, 0
    %p212 = por %p210, %p211
    %p213 = scmp.ne.s32.totalorder %s201, %s202
    %p214 = scmp.eq.s32.totalorder %s24, 1
    %p215 = por %p213, %p214
    %p217 = scmp.ne.s32.totalorder %s202, %s216
    %p218 = scmp.eq.s32.totalorder %s24, 0
    %p219 = por %p217, %p218
    %s221 = sadd.s32 %s220, 1
    %p224 = scmp.eq.s32.totalorder %s18, 1
    %p225 = scmp.ne.s32.totalorder %s220, %s222
    %p226 = scmp.eq.s32.totalorder %s18, 0
    %p227 = por %p225, %p226
    %p228 = scmp.ne.s32.totalorder %s220, %s222
    %p229 = scmp.eq.s32.totalorder %s23, 1
    %p230 = por %p228, %p229
    %p231 = scmp.ne.s32.totalorder %s222, %s223
    %p232 = scmp.eq.s32.totalorder %s23, 0
    %p233 = por %p231, %p232
    %p234 = scmp.ne.s32.totalorder %s222, %s223
    %p235 = scmp.eq.s32.totalorder %s24, 1
    %p236 = por %p234, %p235
    %p238 = scmp.ne.s32.totalorder %s223, %s237
    %p239 = scmp.eq.s32.totalorder %s24, 0
    %p240 = por %p238, %p239
    %s242 = sadd.s32 %s241, 1
    %p245 = scmp.eq.s32.totalorder %s18, 1
    %p246 = scmp.ne.s32.totalorder %s241, %s243
    %p247 = scmp.eq.s32.totalorder %s18, 0
    %p248 = por %p246, %p247
    %p249 = scmp.ne.s32.totalorder %s241, %s243
    %p250 = scmp.eq.s32.totalorder %s23, 1
    %p251 = por %p249, %p250
    %p252 = scmp.ne.s32.totalorder %s243, %s244
    %p253 = scmp.eq.s32.totalorder %s23, 0
    %p254 = por %p252, %p253
    %p255 = scmp.ne.s32.totalorder %s243, %s244
    %p256 = scmp.eq.s32.totalorder %s24, 1
    %p257 = por %p255, %p256
    %p259 = scmp.ne.s32.totalorder %s244, %s258
    %p260 = scmp.eq.s32.totalorder %s24, 0
    %p261 = por %p259, %p260
    %s263 = sadd.s32 %s262, 1
    %p266 = scmp.eq.s32.totalorder %s18, 1
    %p267 = scmp.ne.s32.totalorder %s262, %s264
    %p268 = scmp.eq.s32.totalorder %s18, 0
    %p269 = por %p267, %p268
    %p270 = scmp.ne.s32.totalorder %s262, %s264
    %p271 = scmp.eq.s32.totalorder %s23, 1
    %p272 = por %p270, %p271
    %p273 = scmp.ne.s32.totalorder %s264, %s265
    %p274 = scmp.eq.s32.totalorder %s23, 0
    %p275 = por %p273, %p274
    %p276 = scmp.ne.s32.totalorder %s264, %s265
    %p277 = scmp.eq.s32.totalorder %s24, 1
    %p278 = por %p276, %p277
    %p280 = scmp.ne.s32.totalorder %s265, %s279
    %p281 = scmp.eq.s32.totalorder %s24, 0
    %p282 = por %p280, %p281
    %s283 = ssub.s32 %s18, %s25
    %p284 = scmp.eq.s32.totalorder %s283, 0
    %s286 = sadd.s32 %s285, 1
    %s287 = scalar_select %p284, %s285, %s286
    %p290 = pneg %p284
    %p291 = scmp.eq.s32.totalorder %s18, 1
    %p292 = por %p290, %p291
    %p293 = scmp.ne.s32.totalorder %s285, %s288
    %p294 = scmp.eq.s32.totalorder %s18, 0
    %p295 = por %p293, %p294
    %p296 = scmp.ne.s32.totalorder %s285, %s288
    %p297 = scmp.eq.s32.totalorder %s23, 1
    %p298 = por %p296, %p297
    %p299 = scmp.ne.s32.totalorder %s288, %s289
    %p300 = scmp.eq.s32.totalorder %s23, 0
    %p301 = por %p299, %p300
    %p302 = scmp.ne.s32.totalorder %s288, %s289
    %p303 = scmp.eq.s32.totalorder %s24, 1
    %p304 = por %p302, %p303
    %p306 = scmp.ne.s32.totalorder %s289, %s305
    %p307 = scmp.eq.s32.totalorder %s24, 0
    %p308 = por %p306, %p307
    %p309 = scmp.le.s32.totalorder 1, %s18
    %p310 = scmp.lt.s32.totalorder %s18, 3
    %p311 = pnand %p309, %p310
    %p312 = pneg %p311
    // Predicated region
    $region9: #{refine_block_fwd.11} parent=5 // pred_check
      _
    $region10: #{refine_block_fwd.11} parent=5 // pred_check_branch
      %314 = sbr.rel (%p311) target = $region12
    $region11: #{refine_block_fwd.11} parent=5 // pred_region
      %s315 = ssub.s32 %s18, 1
      // Predicated region
      $region13: #{refine_block_fwd.11} parent=11 // pred_check
        %p316 = pneg %p65
      $region14: #{refine_block_fwd.11} parent=11 // pred_check_branch
        %318 = sbr.rel (%p316) target = $region16
      $region15: #{refine_block_fwd.11} parent=11 // pred_region
        _
      $region16: #{refine_block_fwd.11} parent=11 // pred_fallthru
        _
      // Predicated region
      $region17: #{refine_block_fwd.11} parent=11 // pred_check
        %p319 = pneg %p86
      $region18: #{refine_block_fwd.11} parent=11 // pred_check_branch
        %321 = sbr.rel (%p319) target = $region20
      $region19: #{refine_block_fwd.11} parent=11 // pred_region
        _
      $region20: #{refine_block_fwd.11} parent=11 // pred_fallthru
        _
      // Predicated region
      $region21: #{refine_block_fwd.11} parent=11 // pred_check
        %p322 = pneg %p107
      $region22: #{refine_block_fwd.11} parent=11 // pred_check_branch
        %324 = sbr.rel (%p322) target = $region24
      $region23: #{refine_block_fwd.11} parent=11 // pred_region
        _
      $region24: #{refine_block_fwd.11} parent=11 // pred_fallthru
        _
      // Predicated region
      $region25: #{refine_block_fwd.11} parent=11 // pred_check
        %p325 = pneg %p128
      $region26: #{refine_block_fwd.11} parent=11 // pred_check_branch
        %327 = sbr.rel (%p325) target = $region28
      $region27: #{refine_block_fwd.11} parent=11 // pred_region
        _
      $region28: #{refine_block_fwd.11} parent=11 // pred_fallthru
        _
      // Predicated region
      $region29: #{refine_block_fwd.11} parent=11 // pred_check
        %p328 = pneg %p149
      $region30: #{refine_block_fwd.11} parent=11 // pred_check_branch
        %330 = sbr.rel (%p328) target = $region32
      $region31: #{refine_block_fwd.11} parent=11 // pred_region
        _
      $region32: #{refine_block_fwd.11} parent=11 // pred_fallthru
        _
      // Predicated region
      $region33: #{refine_block_fwd.11} parent=11 // pred_check
        %p331 = pneg %p170
      $region34: #{refine_block_fwd.11} parent=11 // pred_check_branch
        %333 = sbr.rel (%p331) target = $region36
      $region35: #{refine_block_fwd.11} parent=11 // pred_region
        _
      $region36: #{refine_block_fwd.11} parent=11 // pred_fallthru
        _
      // Predicated region
      $region37: #{refine_block_fwd.11} parent=11 // pred_check
        %p334 = pneg %p191
      $region38: #{refine_block_fwd.11} parent=11 // pred_check_branch
        %336 = sbr.rel (%p334) target = $region40
      $region39: #{refine_block_fwd.11} parent=11 // pred_region
        _
      $region40: #{refine_block_fwd.11} parent=11 // pred_fallthru
        _
      // Predicated region
      $region41: #{refine_block_fwd.11} parent=11 // pred_check
        %p337 = pneg %p212
      $region42: #{refine_block_fwd.11} parent=11 // pred_check_branch
        %339 = sbr.rel (%p337) target = $region44
      $region43: #{refine_block_fwd.11} parent=11 // pred_region
        _
      $region44: #{refine_block_fwd.11} parent=11 // pred_fallthru
        _
      // Predicated region
      $region45: #{refine_block_fwd.11} parent=11 // pred_check
        %p340 = pneg %p233
      $region46: #{refine_block_fwd.11} parent=11 // pred_check_branch
        %342 = sbr.rel (%p340) target = $region48
      $region47: #{refine_block_fwd.11} parent=11 // pred_region
        _
      $region48: #{refine_block_fwd.11} parent=11 // pred_fallthru
        _
      // Predicated region
      $region49: #{refine_block_fwd.11} parent=11 // pred_check
        %p343 = pneg %p254
      $region50: #{refine_block_fwd.11} parent=11 // pred_check_branch
        %345 = sbr.rel (%p343) target = $region52
      $region51: #{refine_block_fwd.11} parent=11 // pred_region
        _
      $region52: #{refine_block_fwd.11} parent=11 // pred_fallthru
        _
      // Predicated region
      $region53: #{refine_block_fwd.11} parent=11 // pred_check
        %p346 = pneg %p275
      $region54: #{refine_block_fwd.11} parent=11 // pred_check_branch
        %348 = sbr.rel (%p346) target = $region56
      $region55: #{refine_block_fwd.11} parent=11 // pred_region
        _
      $region56: #{refine_block_fwd.11} parent=11 // pred_fallthru
        _
    $region12: #{refine_block_fwd.11} parent=5 // pred_fallthru
      _
    %p349 = scmp.lt.s32.totalorder %s18, 2
    // Predicated region
    $region57: #{refine_block_fwd.11} parent=5 // pred_check
      %p350 = pneg %p349
    $region58: #{refine_block_fwd.11} parent=5 // pred_check_branch
      %352 = sbr.rel (%p350) target = $region60
    $region59: #{refine_block_fwd.11} parent=5 // pred_region
      // Predicated region
      $region61: #{refine_block_fwd.11} parent=59 // pred_check
        %p353 = pneg %p38
      $region62: #{refine_block_fwd.11} parent=59 // pred_check_branch
        %355 = sbr.rel (%p353) target = $region64
      $region63: #{refine_block_fwd.11} parent=59 // pred_region
        %p356 = scmp.lt.s32.totalorder %s18, 1
        %s357 = scalar_select %p356, %s18, 1
        %s358 = smul.addr %s357, 8
        %s359 = scalar_lea.vmem %s0, %s358
      $region64: #{refine_block_fwd.11} parent=59 // pred_fallthru
        _
    $region60: #{refine_block_fwd.11} parent=5 // pred_fallthru
      _
    %p360 = scmp.le.s32.totalorder 1, %s18
    %p361 = scmp.lt.s32.totalorder %s18, 3
    %p362 = pnand %p360, %p361
    %p363 = pneg %p362
    // Predicated region
    $region65: #{refine_block_fwd.11} parent=5 // pred_check
      _
    $region66: #{refine_block_fwd.11} parent=5 // pred_check_branch
      %365 = sbr.rel (%p362) target = $region68
    $region67: #{refine_block_fwd.11} parent=5 // pred_region
      %s366 = ssub.s32 %s18, 1
      %p367 = scmp.lt.s32.totalorder %s23, 1
      %s368 = scalar_select %p367, %s23, 1
      %s369 = smul.addr %s368, 8
      %s370 = scalar_lea.vmem %s0, %s369
      %p371 = pneg %p44
      %p372 = pneg %p41
      %p373 = pneg %p65
      %p374 = pneg %p62
      %p375 = pneg %p86
      %p376 = pneg %p83
      %p377 = pneg %p107
      %p378 = pneg %p104
      %p379 = pneg %p128
      %p380 = pneg %p125
      %p381 = pneg %p149
      %p382 = pneg %p146
      %p383 = pneg %p170
      %p384 = pneg %p167
      %p385 = pneg %p191
      %p386 = pneg %p188
      %p387 = pneg %p212
      %p388 = pneg %p209
      %p389 = pneg %p233
      %p390 = pneg %p230
      %p391 = pneg %p254
      %p392 = pneg %p251
      %p393 = pneg %p275
      %p394 = pneg %p272
      %p395 = pneg %p301
      %p396 = pneg %p298
      %p397 = scmp.lt.s32.totalorder %s23, 1
      %s398 = scalar_select %p397, %s23, 1
      %s399 = smul.addr %s398, 8
      %s400 = scalar_lea.vmem %s12, %s399
      %p401 = scmp.lt.s32.totalorder %s23, 1
      %s402 = scalar_select %p401, %s23, 1
      %s403 = smul.addr %s402, 8
      %s404 = scalar_lea.vmem %s0, %s403
      %p405 = scmp.lt.s32.totalorder %s23, 1
      %s406 = scalar_select %p405, %s23, 1
      %s407 = smul.addr %s406, 8
      %s408 = scalar_lea.vmem %s12, %s407
      %v409 = vld [vmem:[%s404] sm:$0xff]
      %v410 = vld [vmem:[%s1] sm:$0xff]
      %v411 = vld [vmem:[%s2] sm:$0xff]
      %413 = vset.pattern.permute.xlu0 0
      %414 = vperm.xlu0 %413, %v411
      %v415 = vpop.permute.xlu0 %414
      %vm417 = vcmask 64512
      %v419 = vsel %vm417, %v410, 0
      %421 = vmatprep.subr.mxu0 0.0
      %422 = vmatpush1.msra.mxu0 0.0
      %423 = vmatprep.subr.mxu0 0.0
      %424 = vmatpush1.msra.mxu0 0.0
      %425 = vmatprep.subr.mxu0 0.0
      %426 = vmatpush1.msra.mxu0 0.0
      %427 = vmatprep.subr.mxu0 0.0
      %428 = vmatpush1.msra.mxu0 0.0
      %429 = vmatprep.subr.mxu0 0.0
      %430 = vmatpush1.msra.mxu0 0.0
      %431 = vmatprep.subr.mxu0 0.0
      %432 = vmatpush1.msra.mxu0 0.0
      %433 = vmatprep.subr.mxu0 0.0
      %434 = vmatpush1.msra.mxu0 0.0
      %435 = vmatprep.subr.mxu0 0.0
      %436 = vmatpush1.msra.mxu0 0.0
      %437 = vmatprep.subr.mxu0 0.0
      %438 = vmatpush1.msra.mxu0 0.0
      %439 = vmatprep.subr.mxu0 0.0
      %440 = vmatpush1.msra.mxu0 0.0
      %441 = vmatprep.subr.mxu0 0.0
      %442 = vmatpush1.msra.mxu0 0.0
      %443 = vmatprep.subr.mxu0 0.0
      %444 = vmatpush1.msra.mxu0 0.0
      %445 = vmatprep.subr.mxu0 0.0
      %446 = vmatpush1.msra.mxu0 0.0
      %447 = vmatprep.subr.mxu0 0.0
      %448 = vmatpush1.msra.mxu0 0.0
      %449 = vmatprep.subr.mxu0 0.0
      %450 = vmatpush1.msra.mxu0 0.0
      %451 = vmatprep.subr.mxu0 0.0
      %v452 = vand.u32 %v409, 4294901760
      %453 = vmatpush1.msra.mxu0 %v452
      %454 = vmatprep.subr.mxu0 0.0
      %455 = vmatpush2.msra.mxu0 0.0
      %456 = vmatprep.subr.mxu0 0.0
      %457 = vmatpush2.msra.mxu0 0.0
      %458 = vmatprep.subr.mxu0 0.0
      %459 = vmatpush2.msra.mxu0 0.0
      %460 = vmatprep.subr.mxu0 0.0
      %461 = vmatpush2.msra.mxu0 0.0
      %462 = vmatprep.subr.mxu0 0.0
      %463 = vmatpush2.msra.mxu0 0.0
      %464 = vmatprep.subr.mxu0 0.0
      %465 = vmatpush2.msra.mxu0 0.0
      %466 = vmatprep.subr.mxu0 0.0
      %467 = vmatpush2.msra.mxu0 0.0
      %468 = vmatprep.subr.mxu0 0.0
      %469 = vmatpush2.msra.mxu0 0.0
      %470 = vmatprep.subr.mxu0 0.0
      %471 = vmatpush2.msra.mxu0 0.0
      %472 = vmatprep.subr.mxu0 0.0
      %473 = vmatpush2.msra.mxu0 0.0
      %474 = vmatprep.subr.mxu0 0.0
      %475 = vmatpush2.msra.mxu0 0.0
      %476 = vmatprep.subr.mxu0 0.0
      %477 = vmatpush2.msra.mxu0 0.0
      %478 = vmatprep.subr.mxu0 0.0
      %479 = vmatpush2.msra.mxu0 0.0
      %480 = vmatprep.subr.mxu0 0.0
      %481 = vmatpush2.msra.mxu0 0.0
      %482 = vmatprep.subr.mxu0 0.0
      %483 = vmatpush2.msra.mxu0 0.0
      %484 = vmatprep.subr.mxu0 0.0
      %485 = vmatpush2.msra.mxu0 0.0
      %486 = vmatprep.mubr.f32.mxu0 0.0
      %v487 = vand.u32 %v419, 4294901760
      %v488 = vsub.f32 %v419, %v487
      %v489 = vand.u32 %v488, 4294901760
      %v490 = vsub.f32 %v488, %v489
      %v491 = vand.u32 %v490, 4294901760
      %492 = vmatmul.mubr.f32.gmra.mxu0 %v491
      %v493 = vpop.f32.mrf.mxu0
      %v494 = vadd.f32 %v415, %v493
      %v495 = vpop.f32.mrf.mxu0
      %496 = vdwg.mxu0
      %497 = vmatprep.subr.mxu0 0.0
      %498 = vmatpush1.msra.mxu0 0.0
      %499 = vmatprep.subr.mxu0 0.0
      %500 = vmatpush1.msra.mxu0 0.0
      %501 = vmatprep.subr.mxu0 0.0
      %502 = vmatpush1.msra.mxu0 0.0
      %503 = vmatprep.subr.mxu0 0.0
      %504 = vmatpush1.msra.mxu0 0.0
      %505 = vmatprep.subr.mxu0 0.0
      %506 = vmatpush1.msra.mxu0 0.0
      %507 = vmatprep.subr.mxu0 0.0
      %508 = vmatpush1.msra.mxu0 0.0
      %509 = vmatprep.subr.mxu0 0.0
      %510 = vmatpush1.msra.mxu0 0.0
      %511 = vmatprep.subr.mxu0 0.0
      %512 = vmatpush1.msra.mxu0 0.0
      %513 = vmatprep.subr.mxu0 0.0
      %514 = vmatpush1.msra.mxu0 0.0
      %515 = vmatprep.subr.mxu0 0.0
      %516 = vmatpush1.msra.mxu0 0.0
      %517 = vmatprep.subr.mxu0 0.0
      %518 = vmatpush1.msra.mxu0 0.0
      %519 = vmatprep.subr.mxu0 0.0
      %520 = vmatpush1.msra.mxu0 0.0
      %521 = vmatprep.subr.mxu0 0.0
      %522 = vmatpush1.msra.mxu0 0.0
      %523 = vmatprep.subr.mxu0 0.0
      %524 = vmatpush1.msra.mxu0 0.0
      %525 = vmatprep.subr.mxu0 0.0
      %526 = vmatpush1.msra.mxu0 0.0
      %527 = vmatprep.subr.mxu0 0.0
      %v528 = vand.u32 %v409, 4294901760
      %v529 = vsub.f32 %v409, %v528
      %v530 = vand.u32 %v529, 4294901760
      %v531 = vsub.f32 %v529, %v530
      %v532 = vand.u32 %v531, 4294901760
      %533 = vmatpush1.msra.mxu0 %v532
      %534 = vmatprep.subr.mxu0 0.0
      %535 = vmatpush2.msra.mxu0 0.0
      %536 = vmatprep.subr.mxu0 0.0
      %537 = vmatpush2.msra.mxu0 0.0
      %538 = vmatprep.subr.mxu0 0.0
      %539 = vmatpush2.msra.mxu0 0.0
      %540 = vmatprep.subr.mxu0 0.0
      %541 = vmatpush2.msra.mxu0 0.0
      %542 = vmatprep.subr.mxu0 0.0
      %543 = vmatpush2.msra.mxu0 0.0
      %544 = vmatprep.subr.mxu0 0.0
      %545 = vmatpush2.msra.mxu0 0.0
      %546 = vmatprep.subr.mxu0 0.0
      %547 = vmatpush2.msra.mxu0 0.0
      %548 = vmatprep.subr.mxu0 0.0
      %549 = vmatpush2.msra.mxu0 0.0
      %550 = vmatprep.subr.mxu0 0.0
      %551 = vmatpush2.msra.mxu0 0.0
      %552 = vmatprep.subr.mxu0 0.0
      %553 = vmatpush2.msra.mxu0 0.0
      %554 = vmatprep.subr.mxu0 0.0
      %555 = vmatpush2.msra.mxu0 0.0
      %556 = vmatprep.subr.mxu0 0.0
      %557 = vmatpush2.msra.mxu0 0.0
      %558 = vmatprep.subr.mxu0 0.0
      %559 = vmatpush2.msra.mxu0 0.0
      %560 = vmatprep.subr.mxu0 0.0
      %561 = vmatpush2.msra.mxu0 0.0
      %562 = vmatprep.subr.mxu0 0.0
      %563 = vmatpush2.msra.mxu0 0.0
      %564 = vmatprep.subr.mxu0 0.0
      %565 = vmatpush2.msra.mxu0 0.0
      %566 = vmatprep.mubr.f32.mxu0 0.0
      %v567 = vand.u32 %v419, 4294901760
      %568 = vmatmul.mubr.f32.gmra.mxu0 %v567
      %v569 = vpop.f32.mrf.mxu0
      %v570 = vadd.f32 %v494, %v569
      %v571 = vpop.f32.mrf.mxu0
      %572 = vdwg.mxu0
      %573 = vmatprep.subr.mxu0 0.0
      %574 = vmatpush1.msra.mxu0 0.0
      %575 = vmatprep.subr.mxu0 0.0
      %576 = vmatpush1.msra.mxu0 0.0
      %577 = vmatprep.subr.mxu0 0.0
      %578 = vmatpush1.msra.mxu0 0.0
      %579 = vmatprep.subr.mxu0 0.0
      %580 = vmatpush1.msra.mxu0 0.0
      %581 = vmatprep.subr.mxu0 0.0
      %582 = vmatpush1.msra.mxu0 0.0
      %583 = vmatprep.subr.mxu0 0.0
      %584 = vmatpush1.msra.mxu0 0.0
      %585 = vmatprep.subr.mxu0 0.0
      %586 = vmatpush1.msra.mxu0 0.0
      %587 = vmatprep.subr.mxu0 0.0
      %588 = vmatpush1.msra.mxu0 0.0
      %589 = vmatprep.subr.mxu0 0.0
      %590 = vmatpush1.msra.mxu0 0.0
      %591 = vmatprep.subr.mxu0 0.0
      %592 = vmatpush1.msra.mxu0 0.0
      %593 = vmatprep.subr.mxu0 0.0
      %594 = vmatpush1.msra.mxu0 0.0
      %595 = vmatprep.subr.mxu0 0.0
      %596 = vmatpush1.msra.mxu0 0.0
      %597 = vmatprep.subr.mxu0 0.0
      %598 = vmatpush1.msra.mxu0 0.0
      %599 = vmatprep.subr.mxu0 0.0
      %600 = vmatpush1.msra.mxu0 0.0
      %601 = vmatprep.subr.mxu0 0.0
      %602 = vmatpush1.msra.mxu0 0.0
      %603 = vmatprep.subr.mxu0 0.0
      %v604 = vand.u32 %v409, 4294901760
      %v605 = vsub.f32 %v409, %v604
      %606 = vmatpush1.msra.mxu0 %v605
      %607 = vmatprep.subr.mxu0 0.0
      %608 = vmatpush2.msra.mxu0 0.0
      %609 = vmatprep.subr.mxu0 0.0
      %610 = vmatpush2.msra.mxu0 0.0
      %611 = vmatprep.subr.mxu0 0.0
      %612 = vmatpush2.msra.mxu0 0.0
      %613 = vmatprep.subr.mxu0 0.0
      %614 = vmatpush2.msra.mxu0 0.0
      %615 = vmatprep.subr.mxu0 0.0
      %616 = vmatpush2.msra.mxu0 0.0
      %617 = vmatprep.subr.mxu0 0.0
      %618 = vmatpush2.msra.mxu0 0.0
      %619 = vmatprep.subr.mxu0 0.0
      %620 = vmatpush2.msra.mxu0 0.0
      %621 = vmatprep.subr.mxu0 0.0
      %622 = vmatpush2.msra.mxu0 0.0
      %623 = vmatprep.subr.mxu0 0.0
      %624 = vmatpush2.msra.mxu0 0.0
      %625 = vmatprep.subr.mxu0 0.0
      %626 = vmatpush2.msra.mxu0 0.0
      %627 = vmatprep.subr.mxu0 0.0
      %628 = vmatpush2.msra.mxu0 0.0
      %629 = vmatprep.subr.mxu0 0.0
      %630 = vmatpush2.msra.mxu0 0.0
      %631 = vmatprep.subr.mxu0 0.0
      %632 = vmatpush2.msra.mxu0 0.0
      %633 = vmatprep.subr.mxu0 0.0
      %634 = vmatpush2.msra.mxu0 0.0
      %635 = vmatprep.subr.mxu0 0.0
      %636 = vmatpush2.msra.mxu0 0.0
      %637 = vmatprep.subr.mxu0 0.0
      %638 = vmatpush2.msra.mxu0 0.0
      %639 = vmatprep.mubr.f32.mxu0 0.0
      %v640 = vand.u32 %v419, 4294901760
      %v641 = vsub.f32 %v419, %v640
      %642 = vmatmul.mubr.f32.gmra.mxu0 %v641
      %v643 = vpop.f32.mrf.mxu0
      %v644 = vadd.f32 %v570, %v643
      %v645 = vpop.f32.mrf.mxu0
      %646 = vdwg.mxu0
      %647 = vmatprep.subr.mxu0 0.0
      %648 = vmatpush1.msra.mxu0 0.0
      %649 = vmatprep.subr.mxu0 0.0
      %650 = vmatpush1.msra.mxu0 0.0
      %651 = vmatprep.subr.mxu0 0.0
      %652 = vmatpush1.msra.mxu0 0.0
      %653 = vmatprep.subr.mxu0 0.0
      %654 = vmatpush1.msra.mxu0 0.0
      %655 = vmatprep.subr.mxu0 0.0
      %656 = vmatpush1.msra.mxu0 0.0
      %657 = vmatprep.subr.mxu0 0.0
      %658 = vmatpush1.msra.mxu0 0.0
      %659 = vmatprep.subr.mxu0 0.0
      %660 = vmatpush1.msra.mxu0 0.0
      %661 = vmatprep.subr.mxu0 0.0
      %662 = vmatpush1.msra.mxu0 0.0
      %663 = vmatprep.subr.mxu0 0.0
      %664 = vmatpush1.msra.mxu0 0.0
      %665 = vmatprep.subr.mxu0 0.0
      %666 = vmatpush1.msra.mxu0 0.0
      %667 = vmatprep.subr.mxu0 0.0
      %668 = vmatpush1.msra.mxu0 0.0
      %669 = vmatprep.subr.mxu0 0.0
      %670 = vmatpush1.msra.mxu0 0.0
      %671 = vmatprep.subr.mxu0 0.0
      %672 = vmatpush1.msra.mxu0 0.0
      %673 = vmatprep.subr.mxu0 0.0
      %674 = vmatpush1.msra.mxu0 0.0
      %675 = vmatprep.subr.mxu0 0.0
      %676 = vmatpush1.msra.mxu0 0.0
      %677 = vmatprep.subr.mxu0 0.0
      %v678 = vand.u32 %v409, 4294901760
      %679 = vmatpush1.msra.mxu0 %v678
      %680 = vmatprep.subr.mxu0 0.0
      %681 = vmatpush2.msra.mxu0 0.0
      %682 = vmatprep.subr.mxu0 0.0
      %683 = vmatpush2.msra.mxu0 0.0
      %684 = vmatprep.subr.mxu0 0.0
      %685 = vmatpush2.msra.mxu0 0.0
      %686 = vmatprep.subr.mxu0 0.0
      %687 = vmatpush2.msra.mxu0 0.0
      %688 = vmatprep.subr.mxu0 0.0
      %689 = vmatpush2.msra.mxu0 0.0
      %690 = vmatprep.subr.mxu0 0.0
      %691 = vmatpush2.msra.mxu0 0.0
      %692 = vmatprep.subr.mxu0 0.0
      %693 = vmatpush2.msra.mxu0 0.0
      %694 = vmatprep.subr.mxu0 0.0
      %695 = vmatpush2.msra.mxu0 0.0
      %696 = vmatprep.subr.mxu0 0.0
      %697 = vmatpush2.msra.mxu0 0.0
      %698 = vmatprep.subr.mxu0 0.0
      %699 = vmatpush2.msra.mxu0 0.0
      %700 = vmatprep.subr.mxu0 0.0
      %701 = vmatpush2.msra.mxu0 0.0
      %702 = vmatprep.subr.mxu0 0.0
      %703 = vmatpush2.msra.mxu0 0.0
      %704 = vmatprep.subr.mxu0 0.0
      %705 = vmatpush2.msra.mxu0 0.0
      %706 = vmatprep.subr.mxu0 0.0
      %707 = vmatpush2.msra.mxu0 0.0
      %708 = vmatprep.subr.mxu0 0.0
      %709 = vmatpush2.msra.mxu0 0.0
      %710 = vmatprep.subr.mxu0 0.0
      %711 = vmatpush2.msra.mxu0 0.0
      %712 = vmatprep.mubr.f32.mxu0 0.0
      %v713 = vand.u32 %v419, 4294901760
      %v714 = vsub.f32 %v419, %v713
      %v715 = vand.u32 %v714, 4294901760
      %716 = vmatmul.mubr.f32.gmra.mxu0 %v715
      %v717 = vpop.f32.mrf.mxu0
      %v718 = vadd.f32 %v644, %v717
      %v719 = vpop.f32.mrf.mxu0
      %720 = vdwg.mxu0
      %721 = vmatprep.subr.mxu0 0.0
      %722 = vmatpush1.msra.mxu0 0.0
      %723 = vmatprep.subr.mxu0 0.0
      %724 = vmatpush1.msra.mxu0 0.0
      %725 = vmatprep.subr.mxu0 0.0
      %726 = vmatpush1.msra.mxu0 0.0
      %727 = vmatprep.subr.mxu0 0.0
      %728 = vmatpush1.msra.mxu0 0.0
      %729 = vmatprep.subr.mxu0 0.0
      %730 = vmatpush1.msra.mxu0 0.0
      %731 = vmatprep.subr.mxu0 0.0
      %732 = vmatpush1.msra.mxu0 0.0
      %733 = vmatprep.subr.mxu0 0.0
      %734 = vmatpush1.msra.mxu0 0.0
      %735 = vmatprep.subr.mxu0 0.0
      %736 = vmatpush1.msra.mxu0 0.0
      %737 = vmatprep.subr.mxu0 0.0
      %738 = vmatpush1.msra.mxu0 0.0
      %739 = vmatprep.subr.mxu0 0.0
      %740 = vmatpush1.msra.mxu0 0.0
      %741 = vmatprep.subr.mxu0 0.0
      %742 = vmatpush1.msra.mxu0 0.0
      %743 = vmatprep.subr.mxu0 0.0
      %744 = vmatpush1.msra.mxu0 0.0
      %745 = vmatprep.subr.mxu0 0.0
      %746 = vmatpush1.msra.mxu0 0.0
      %747 = vmatprep.subr.mxu0 0.0
      %748 = vmatpush1.msra.mxu0 0.0
      %749 = vmatprep.subr.mxu0 0.0
      %750 = vmatpush1.msra.mxu0 0.0
      %751 = vmatprep.subr.mxu0 0.0
      %v752 = vand.u32 %v409, 4294901760
      %v753 = vsub.f32 %v409, %v752
      %v754 = vand.u32 %v753, 4294901760
      %755 = vmatpush1.msra.mxu0 %v754
      %756 = vmatprep.subr.mxu0 0.0
      %757 = vmatpush2.msra.mxu0 0.0
      %758 = vmatprep.subr.mxu0 0.0
      %759 = vmatpush2.msra.mxu0 0.0
      %760 = vmatprep.subr.mxu0 0.0
      %761 = vmatpush2.msra.mxu0 0.0
      %762 = vmatprep.subr.mxu0 0.0
      %763 = vmatpush2.msra.mxu0 0.0
      %764 = vmatprep.subr.mxu0 0.0
      %765 = vmatpush2.msra.mxu0 0.0
      %766 = vmatprep.subr.mxu0 0.0
      %767 = vmatpush2.msra.mxu0 0.0
      %768 = vmatprep.subr.mxu0 0.0
      %769 = vmatpush2.msra.mxu0 0.0
      %770 = vmatprep.subr.mxu0 0.0
      %771 = vmatpush2.msra.mxu0 0.0
      %772 = vmatprep.subr.mxu0 0.0
      %773 = vmatpush2.msra.mxu0 0.0
      %774 = vmatprep.subr.mxu0 0.0
      %775 = vmatpush2.msra.mxu0 0.0
      %776 = vmatprep.subr.mxu0 0.0
      %777 = vmatpush2.msra.mxu0 0.0
      %778 = vmatprep.subr.mxu0 0.0
      %779 = vmatpush2.msra.mxu0 0.0
      %780 = vmatprep.subr.mxu0 0.0
      %781 = vmatpush2.msra.mxu0 0.0
      %782 = vmatprep.subr.mxu0 0.0
      %783 = vmatpush2.msra.mxu0 0.0
      %784 = vmatprep.subr.mxu0 0.0
      %785 = vmatpush2.msra.mxu0 0.0
      %786 = vmatprep.subr.mxu0 0.0
      %787 = vmatpush2.msra.mxu0 0.0
      %788 = vmatprep.mubr.f32.mxu0 0.0
      %v789 = vand.u32 %v419, 4294901760
      %790 = vmatmul.mubr.f32.gmra.mxu0 %v789
      %v791 = vpop.f32.mrf.mxu0
      %v792 = vadd.f32 %v718, %v791
      %v793 = vpop.f32.mrf.mxu0
      %794 = vdwg.mxu0
      %795 = vmatprep.subr.mxu0 0.0
      %796 = vmatpush1.msra.mxu0 0.0
      %797 = vmatprep.subr.mxu0 0.0
      %798 = vmatpush1.msra.mxu0 0.0
      %799 = vmatprep.subr.mxu0 0.0
      %800 = vmatpush1.msra.mxu0 0.0
      %801 = vmatprep.subr.mxu0 0.0
      %802 = vmatpush1.msra.mxu0 0.0
      %803 = vmatprep.subr.mxu0 0.0
      %804 = vmatpush1.msra.mxu0 0.0
      %805 = vmatprep.subr.mxu0 0.0
      %806 = vmatpush1.msra.mxu0 0.0
      %807 = vmatprep.subr.mxu0 0.0
      %808 = vmatpush1.msra.mxu0 0.0
      %809 = vmatprep.subr.mxu0 0.0
      %810 = vmatpush1.msra.mxu0 0.0
      %811 = vmatprep.subr.mxu0 0.0
      %812 = vmatpush1.msra.mxu0 0.0
      %813 = vmatprep.subr.mxu0 0.0
      %814 = vmatpush1.msra.mxu0 0.0
      %815 = vmatprep.subr.mxu0 0.0
      %816 = vmatpush1.msra.mxu0 0.0
      %817 = vmatprep.subr.mxu0 0.0
      %818 = vmatpush1.msra.mxu0 0.0
      %819 = vmatprep.subr.mxu0 0.0
      %820 = vmatpush1.msra.mxu0 0.0
      %821 = vmatprep.subr.mxu0 0.0
      %822 = vmatpush1.msra.mxu0 0.0
      %823 = vmatprep.subr.mxu0 0.0
      %824 = vmatpush1.msra.mxu0 0.0
      %825 = vmatprep.subr.mxu0 0.0
      %v826 = vand.u32 %v409, 4294901760
      %827 = vmatpush1.msra.mxu0 %v826
      %828 = vmatprep.subr.mxu0 0.0
      %829 = vmatpush2.msra.mxu0 0.0
      %830 = vmatprep.subr.mxu0 0.0
      %831 = vmatpush2.msra.mxu0 0.0
      %832 = vmatprep.subr.mxu0 0.0
      %833 = vmatpush2.msra.mxu0 0.0
      %834 = vmatprep.subr.mxu0 0.0
      %835 = vmatpush2.msra.mxu0 0.0
      %836 = vmatprep.subr.mxu0 0.0
      %837 = vmatpush2.msra.mxu0 0.0
      %838 = vmatprep.subr.mxu0 0.0
      %839 = vmatpush2.msra.mxu0 0.0
      %840 = vmatprep.subr.mxu0 0.0
      %841 = vmatpush2.msra.mxu0 0.0
      %842 = vmatprep.subr.mxu0 0.0
      %843 = vmatpush2.msra.mxu0 0.0
      %844 = vmatprep.subr.mxu0 0.0
      %845 = vmatpush2.msra.mxu0 0.0
      %846 = vmatprep.subr.mxu0 0.0
      %847 = vmatpush2.msra.mxu0 0.0
      %848 = vmatprep.subr.mxu0 0.0
      %849 = vmatpush2.msra.mxu0 0.0
      %850 = vmatprep.subr.mxu0 0.0
      %851 = vmatpush2.msra.mxu0 0.0
      %852 = vmatprep.subr.mxu0 0.0
      %853 = vmatpush2.msra.mxu0 0.0
      %854 = vmatprep.subr.mxu0 0.0
      %855 = vmatpush2.msra.mxu0 0.0
      %856 = vmatprep.subr.mxu0 0.0
      %857 = vmatpush2.msra.mxu0 0.0
      %858 = vmatprep.subr.mxu0 0.0
      %859 = vmatpush2.msra.mxu0 0.0
      %860 = vmatprep.mubr.f32.mxu0 0.0
      %v861 = vand.u32 %v419, 4294901760
      %862 = vmatmul.mubr.f32.gmra.mxu0 %v861
      %v863 = vpop.f32.mrf.mxu0
      %v864 = vadd.f32 %v792, %v863
      %v865 = vpop.f32.mrf.mxu0
      %866 = vdwg.mxu0
      %v867 = vld [vmem:[%s9] sm:$0xff]
      %v868 = vld [vmem:[%s10] sm:$0xff]
      %v869 = vld [vmem:[%s11] sm:$0xff]
      %v870 = vmax.f32 %v864, 0.0
      %v871 = vmin.f32 %v864, 0.0
      %873 = vset.pattern.permute.xlu0 0
      %874 = vperm.xlu0 %873, %v867
      %v875 = vpop.permute.xlu0 %874
      %v877 = vmul.f32 %v875, %v871
      %v878 = vadd.f32 %v870, %v877
      %vm879 = vcmask 130048
      %v880 = vsel %vm879, %v878, 0.0
      %v881 = vrot.slane %v880, 4
      %v882 = vadd.f32 %v880, %v881
      %v883 = vrot.slane %v882, 2
      %v884 = vadd.f32 %v882, %v883
      %v885 = vrot.slane %v884, 1
      %v886 = vadd.f32 %v884, %v885
      %v887 = vmul.f32 %v878, %v878
      %v888 = vsel %vm879, %v887, 0.0
      %v889 = vrot.slane %v888, 4
      %v890 = vadd.f32 %v888, %v889
      %v891 = vrot.slane %v890, 2
      %v892 = vadd.f32 %v890, %v891
      %v893 = vrot.slane %v892, 1
      %v894 = vadd.f32 %v892, %v893
      %vm895 = vcmask 1040384
      %v896 = vsel %vm895, %v886, %v894
      %v897 = vlaneseq
      %v898 = vshrl.u32 %v897, 7
      %v899 = vadd.s32 %v898, 8
      %v900 = vlaneseq
      %v901 = vand.u32 %v900, 127
      %vm902 = vcmp.le.s32.totalorder %v898, %v901
      %vm903 = vcmp.le.s32.totalorder %v899, %v901
      %v904 = vsel %vm902, 1, 0
      %v905 = vsel %vm903, 1, 0
      %v906 = vcvt.s32.f32 %v904
      %v907 = vcvt.s32.f32 %v905
      %v909 = vsel %vm879, %v896, 0
      %911 = vmatprep.subr.mxu0 0.0
      %912 = vmatpush1.msra.mxu0 0.0
      %913 = vmatprep.subr.mxu0 0.0
      %914 = vmatpush1.msra.mxu0 0.0
      %915 = vmatprep.subr.mxu0 0.0
      %916 = vmatpush1.msra.mxu0 0.0
      %917 = vmatprep.subr.mxu0 0.0
      %918 = vmatpush1.msra.mxu0 0.0
      %919 = vmatprep.subr.mxu0 0.0
      %920 = vmatpush1.msra.mxu0 0.0
      %921 = vmatprep.subr.mxu0 0.0
      %922 = vmatpush1.msra.mxu0 0.0
      %923 = vmatprep.subr.mxu0 0.0
      %924 = vmatpush1.msra.mxu0 0.0
      %925 = vmatprep.subr.mxu0 0.0
      %926 = vmatpush1.msra.mxu0 0.0
      %927 = vmatprep.subr.mxu0 0.0
      %928 = vmatpush1.msra.mxu0 0.0
      %929 = vmatprep.subr.mxu0 0.0
      %930 = vmatpush1.msra.mxu0 0.0
      %931 = vmatprep.subr.mxu0 0.0
      %932 = vmatpush1.msra.mxu0 0.0
      %933 = vmatprep.subr.mxu0 0.0
      %934 = vmatpush1.msra.mxu0 0.0
      %935 = vmatprep.subr.mxu0 0.0
      %936 = vmatpush1.msra.mxu0 0.0
      %937 = vmatprep.subr.mxu0 0.0
      %938 = vmatpush1.msra.mxu0 0.0
      %939 = vmatprep.subr.mxu0 0.0
      %v940 = vand.u32 %v907, 4294901760
      %941 = vmatpush1.msra.mxu0 %v940
      %942 = vmatprep.subr.mxu0 0.0
      %v943 = vand.u32 %v906, 4294901760
      %944 = vmatpush1.msra.mxu0 %v943
      %945 = vmatprep.subr.mxu0 0.0
      %946 = vmatpush2.msra.mxu0 0.0
      %947 = vmatprep.subr.mxu0 0.0
      %948 = vmatpush2.msra.mxu0 0.0
      %949 = vmatprep.subr.mxu0 0.0
      %950 = vmatpush2.msra.mxu0 0.0
      %951 = vmatprep.subr.mxu0 0.0
      %952 = vmatpush2.msra.mxu0 0.0
      %953 = vmatprep.subr.mxu0 0.0
      %954 = vmatpush2.msra.mxu0 0.0
      %955 = vmatprep.subr.mxu0 0.0
      %956 = vmatpush2.msra.mxu0 0.0
      %957 = vmatprep.subr.mxu0 0.0
      %958 = vmatpush2.msra.mxu0 0.0
      %959 = vmatprep.subr.mxu0 0.0
      %960 = vmatpush2.msra.mxu0 0.0
      %961 = vmatprep.subr.mxu0 0.0
      %962 = vmatpush2.msra.mxu0 0.0
      %963 = vmatprep.subr.mxu0 0.0
      %964 = vmatpush2.msra.mxu0 0.0
      %965 = vmatprep.subr.mxu0 0.0
      %966 = vmatpush2.msra.mxu0 0.0
      %967 = vmatprep.subr.mxu0 0.0
      %968 = vmatpush2.msra.mxu0 0.0
      %969 = vmatprep.subr.mxu0 0.0
      %970 = vmatpush2.msra.mxu0 0.0
      %971 = vmatprep.subr.mxu0 0.0
      %972 = vmatpush2.msra.mxu0 0.0
      %973 = vmatprep.subr.mxu0 0.0
      %974 = vmatpush2.msra.mxu0 0.0
      %975 = vmatprep.subr.mxu0 0.0
      %976 = vmatpush2.msra.mxu0 0.0
      %977 = vmatprep.mubr.f32.mxu0 0.0
      %v978 = vand.u32 %v909, 4294901760
      %v979 = vsub.f32 %v909, %v978
      %v980 = vand.u32 %v979, 4294901760
      %v981 = vsub.f32 %v979, %v980
      %v982 = vand.u32 %v981, 4294901760
      %983 = vmatmul.mubr.f32.gmra.mxu0 %v982
      %v984 = vpop.f32.mrf.mxu0
      %v985 = vadd.f32 0.0, %v984
      %v986 = vpop.f32.mrf.mxu0
      %987 = vdwg.mxu0
      %988 = vmatprep.subr.mxu0 0.0
      %989 = vmatpush1.msra.mxu0 0.0
      %990 = vmatprep.subr.mxu0 0.0
      %991 = vmatpush1.msra.mxu0 0.0
      %992 = vmatprep.subr.mxu0 0.0
      %993 = vmatpush1.msra.mxu0 0.0
      %994 = vmatprep.subr.mxu0 0.0
      %995 = vmatpush1.msra.mxu0 0.0
      %996 = vmatprep.subr.mxu0 0.0
      %997 = vmatpush1.msra.mxu0 0.0
      %998 = vmatprep.subr.mxu0 0.0
      %999 = vmatpush1.msra.mxu0 0.0
      %1000 = vmatprep.subr.mxu0 0.0
      %1001 = vmatpush1.msra.mxu0 0.0
      %1002 = vmatprep.subr.mxu0 0.0
      %1003 = vmatpush1.msra.mxu0 0.0
      %1004 = vmatprep.subr.mxu0 0.0
      %1005 = vmatpush1.msra.mxu0 0.0
      %1006 = vmatprep.subr.mxu0 0.0
      %1007 = vmatpush1.msra.mxu0 0.0
      %1008 = vmatprep.subr.mxu0 0.0
      %1009 = vmatpush1.msra.mxu0 0.0
      %1010 = vmatprep.subr.mxu0 0.0
      %1011 = vmatpush1.msra.mxu0 0.0
      %1012 = vmatprep.subr.mxu0 0.0
      %1013 = vmatpush1.msra.mxu0 0.0
      %1014 = vmatprep.subr.mxu0 0.0
      %1015 = vmatpush1.msra.mxu0 0.0
      %1016 = vmatprep.subr.mxu0 0.0
      %v1017 = vand.u32 %v907, 4294901760
      %v1018 = vsub.f32 %v907, %v1017
      %v1019 = vand.u32 %v1018, 4294901760
      %v1020 = vsub.f32 %v1018, %v1019
      %v1021 = vand.u32 %v1020, 4294901760
      %1022 = vmatpush1.msra.mxu0 %v1021
      %1023 = vmatprep.subr.mxu0 0.0
      %v1024 = vand.u32 %v906, 4294901760
      %v1025 = vsub.f32 %v906, %v1024
      %v1026 = vand.u32 %v1025, 4294901760
      %v1027 = vsub.f32 %v1025, %v1026
      %v1028 = vand.u32 %v1027, 4294901760
      %1029 = vmatpush1.msra.mxu0 %v1028
      %1030 = vmatprep.subr.mxu0 0.0
      %1031 = vmatpush2.msra.mxu0 0.0
      %1032 = vmatprep.subr.mxu0 0.0
      %1033 = vmatpush2.msra.mxu0 0.0
      %1034 = vmatprep.subr.mxu0 0.0
      %1035 = vmatpush2.msra.mxu0 0.0
      %1036 = vmatprep.subr.mxu0 0.0
      %1037 = vmatpush2.msra.mxu0 0.0
      %1038 = vmatprep.subr.mxu0 0.0
      %1039 = vmatpush2.msra.mxu0 0.0
      %1040 = vmatprep.subr.mxu0 0.0
      %1041 = vmatpush2.msra.mxu0 0.0
      %1042 = vmatprep.subr.mxu0 0.0
      %1043 = vmatpush2.msra.mxu0 0.0
      %1044 = vmatprep.subr.mxu0 0.0
      %1045 = vmatpush2.msra.mxu0 0.0
      %1046 = vmatprep.subr.mxu0 0.0
      %1047 = vmatpush2.msra.mxu0 0.0
      %1048 = vmatprep.subr.mxu0 0.0
      %1049 = vmatpush2.msra.mxu0 0.0
      %1050 = vmatprep.subr.mxu0 0.0
      %1051 = vmatpush2.msra.mxu0 0.0
      %1052 = vmatprep.subr.mxu0 0.0
      %1053 = vmatpush2.msra.mxu0 0.0
      %1054 = vmatprep.subr.mxu0 0.0
      %1055 = vmatpush2.msra.mxu0 0.0
      %1056 = vmatprep.subr.mxu0 0.0
      %1057 = vmatpush2.msra.mxu0 0.0
      %1058 = vmatprep.subr.mxu0 0.0
      %1059 = vmatpush2.msra.mxu0 0.0
      %1060 = vmatprep.subr.mxu0 0.0
      %1061 = vmatpush2.msra.mxu0 0.0
      %1062 = vmatprep.mubr.f32.mxu0 0.0
      %v1063 = vand.u32 %v909, 4294901760
      %1064 = vmatmul.mubr.f32.gmra.mxu0 %v1063
      %v1065 = vpop.f32.mrf.mxu0
      %v1066 = vadd.f32 %v985, %v1065
      %v1067 = vpop.f32.mrf.mxu0
      %1068 = vdwg.mxu0
      %1069 = vmatprep.subr.mxu0 0.0
      %1070 = vmatpush1.msra.mxu0 0.0
      %1071 = vmatprep.subr.mxu0 0.0
      %1072 = vmatpush1.msra.mxu0 0.0
      %1073 = vmatprep.subr.mxu0 0.0
      %1074 = vmatpush1.msra.mxu0 0.0
      %1075 = vmatprep.subr.mxu0 0.0
      %1076 = vmatpush1.msra.mxu0 0.0
      %1077 = vmatprep.subr.mxu0 0.0
      %1078 = vmatpush1.msra.mxu0 0.0
      %1079 = vmatprep.subr.mxu0 0.0
      %1080 = vmatpush1.msra.mxu0 0.0
      %1081 = vmatprep.subr.mxu0 0.0
      %1082 = vmatpush1.msra.mxu0 0.0
      %1083 = vmatprep.subr.mxu0 0.0
      %1084 = vmatpush1.msra.mxu0 0.0
      %1085 = vmatprep.subr.mxu0 0.0
      %1086 = vmatpush1.msra.mxu0 0.0
      %1087 = vmatprep.subr.mxu0 0.0
      %1088 = vmatpush1.msra.mxu0 0.0
      %1089 = vmatprep.subr.mxu0 0.0
      %1090 = vmatpush1.msra.mxu0 0.0
      %1091 = vmatprep.subr.mxu0 0.0
      %1092 = vmatpush1.msra.mxu0 0.0
      %1093 = vmatprep.subr.mxu0 0.0
      %1094 = vmatpush1.msra.mxu0 0.0
      %1095 = vmatprep.subr.mxu0 0.0
      %1096 = vmatpush1.msra.mxu0 0.0
      %1097 = vmatprep.subr.mxu0 0.0
      %v1098 = vand.u32 %v907, 4294901760
      %v1099 = vsub.f32 %v907, %v1098
      %1100 = vmatpush1.msra.mxu0 %v1099
      %1101 = vmatprep.subr.mxu0 0.0
      %v1102 = vand.u32 %v906, 4294901760
      %v1103 = vsub.f32 %v906, %v1102
      %1104 = vmatpush1.msra.mxu0 %v1103
      %1105 = vmatprep.subr.mxu0 0.0
      %1106 = vmatpush2.msra.mxu0 0.0
      %1107 = vmatprep.subr.mxu0 0.0
      %1108 = vmatpush2.msra.mxu0 0.0
      %1109 = vmatprep.subr.mxu0 0.0
      %1110 = vmatpush2.msra.mxu0 0.0
      %1111 = vmatprep.subr.mxu0 0.0
      %1112 = vmatpush2.msra.mxu0 0.0
      %1113 = vmatprep.subr.mxu0 0.0
      %1114 = vmatpush2.msra.mxu0 0.0
      %1115 = vmatprep.subr.mxu0 0.0
      %1116 = vmatpush2.msra.mxu0 0.0
      %1117 = vmatprep.subr.mxu0 0.0
      %1118 = vmatpush2.msra.mxu0 0.0
      %1119 = vmatprep.subr.mxu0 0.0
      %1120 = vmatpush2.msra.mxu0 0.0
      %1121 = vmatprep.subr.mxu0 0.0
      %1122 = vmatpush2.msra.mxu0 0.0
      %1123 = vmatprep.subr.mxu0 0.0
      %1124 = vmatpush2.msra.mxu0 0.0
      %1125 = vmatprep.subr.mxu0 0.0
      %1126 = vmatpush2.msra.mxu0 0.0
      %1127 = vmatprep.subr.mxu0 0.0
      %1128 = vmatpush2.msra.mxu0 0.0
      %1129 = vmatprep.subr.mxu0 0.0
      %1130 = vmatpush2.msra.mxu0 0.0
      %1131 = vmatprep.subr.mxu0 0.0
      %1132 = vmatpush2.msra.mxu0 0.0
      %1133 = vmatprep.subr.mxu0 0.0
      %1134 = vmatpush2.msra.mxu0 0.0
      %1135 = vmatprep.subr.mxu0 0.0
      %1136 = vmatpush2.msra.mxu0 0.0
      %1137 = vmatprep.mubr.f32.mxu0 0.0
      %v1138 = vand.u32 %v909, 4294901760
      %v1139 = vsub.f32 %v909, %v1138
      %1140 = vmatmul.mubr.f32.gmra.mxu0 %v1139
      %v1141 = vpop.f32.mrf.mxu0
      %v1142 = vadd.f32 %v1066, %v1141
      %v1143 = vpop.f32.mrf.mxu0
      %1144 = vdwg.mxu0
      %1145 = vmatprep.subr.mxu0 0.0
      %1146 = vmatpush1.msra.mxu0 0.0
      %1147 = vmatprep.subr.mxu0 0.0
      %1148 = vmatpush1.msra.mxu0 0.0
      %1149 = vmatprep.subr.mxu0 0.0
      %1150 = vmatpush1.msra.mxu0 0.0
      %1151 = vmatprep.subr.mxu0 0.0
      %1152 = vmatpush1.msra.mxu0 0.0
      %1153 = vmatprep.subr.mxu0 0.0
      %1154 = vmatpush1.msra.mxu0 0.0
      %1155 = vmatprep.subr.mxu0 0.0
      %1156 = vmatpush1.msra.mxu0 0.0
      %1157 = vmatprep.subr.mxu0 0.0
      %1158 = vmatpush1.msra.mxu0 0.0
      %1159 = vmatprep.subr.mxu0 0.0
      %1160 = vmatpush1.msra.mxu0 0.0
      %1161 = vmatprep.subr.mxu0 0.0
      %1162 = vmatpush1.msra.mxu0 0.0
      %1163 = vmatprep.subr.mxu0 0.0
      %1164 = vmatpush1.msra.mxu0 0.0
      %1165 = vmatprep.subr.mxu0 0.0
      %1166 = vmatpush1.msra.mxu0 0.0
      %1167 = vmatprep.subr.mxu0 0.0
      %1168 = vmatpush1.msra.mxu0 0.0
      %1169 = vmatprep.subr.mxu0 0.0
      %1170 = vmatpush1.msra.mxu0 0.0
      %1171 = vmatprep.subr.mxu0 0.0
      %1172 = vmatpush1.msra.mxu0 0.0
      %1173 = vmatprep.subr.mxu0 0.0
      %v1174 = vand.u32 %v907, 4294901760
      %1175 = vmatpush1.msra.mxu0 %v1174
      %1176 = vmatprep.subr.mxu0 0.0
      %v1177 = vand.u32 %v906, 4294901760
      %1178 = vmatpush1.msra.mxu0 %v1177
      %1179 = vmatprep.subr.mxu0 0.0
      %1180 = vmatpush2.msra.mxu0 0.0
      %1181 = vmatprep.subr.mxu0 0.0
      %1182 = vmatpush2.msra.mxu0 0.0
      %1183 = vmatprep.subr.mxu0 0.0
      %1184 = vmatpush2.msra.mxu0 0.0
      %1185 = vmatprep.subr.mxu0 0.0
      %1186 = vmatpush2.msra.mxu0 0.0
      %1187 = vmatprep.subr.mxu0 0.0
      %1188 = vmatpush2.msra.mxu0 0.0
      %1189 = vmatprep.subr.mxu0 0.0
      %1190 = vmatpush2.msra.mxu0 0.0
      %1191 = vmatprep.subr.mxu0 0.0
      %1192 = vmatpush2.msra.mxu0 0.0
      %1193 = vmatprep.subr.mxu0 0.0
      %1194 = vmatpush2.msra.mxu0 0.0
      %1195 = vmatprep.subr.mxu0 0.0
      %1196 = vmatpush2.msra.mxu0 0.0
      %1197 = vmatprep.subr.mxu0 0.0
      %1198 = vmatpush2.msra.mxu0 0.0
      %1199 = vmatprep.subr.mxu0 0.0
      %1200 = vmatpush2.msra.mxu0 0.0
      %1201 = vmatprep.subr.mxu0 0.0
      %1202 = vmatpush2.msra.mxu0 0.0
      %1203 = vmatprep.subr.mxu0 0.0
      %1204 = vmatpush2.msra.mxu0 0.0
      %1205 = vmatprep.subr.mxu0 0.0
      %1206 = vmatpush2.msra.mxu0 0.0
      %1207 = vmatprep.subr.mxu0 0.0
      %1208 = vmatpush2.msra.mxu0 0.0
      %1209 = vmatprep.subr.mxu0 0.0
      %1210 = vmatpush2.msra.mxu0 0.0
      %1211 = vmatprep.mubr.f32.mxu0 0.0
      %v1212 = vand.u32 %v909, 4294901760
      %v1213 = vsub.f32 %v909, %v1212
      %v1214 = vand.u32 %v1213, 4294901760
      %1215 = vmatmul.mubr.f32.gmra.mxu0 %v1214
      %v1216 = vpop.f32.mrf.mxu0
      %v1217 = vadd.f32 %v1142, %v1216
      %v1218 = vpop.f32.mrf.mxu0
      %1219 = vdwg.mxu0
      %1220 = vmatprep.subr.mxu0 0.0
      %1221 = vmatpush1.msra.mxu0 0.0
      %1222 = vmatprep.subr.mxu0 0.0
      %1223 = vmatpush1.msra.mxu0 0.0
      %1224 = vmatprep.subr.mxu0 0.0
      %1225 = vmatpush1.msra.mxu0 0.0
      %1226 = vmatprep.subr.mxu0 0.0
      %1227 = vmatpush1.msra.mxu0 0.0
      %1228 = vmatprep.subr.mxu0 0.0
      %1229 = vmatpush1.msra.mxu0 0.0
      %1230 = vmatprep.subr.mxu0 0.0
      %1231 = vmatpush1.msra.mxu0 0.0
      %1232 = vmatprep.subr.mxu0 0.0
      %1233 = vmatpush1.msra.mxu0 0.0
      %1234 = vmatprep.subr.mxu0 0.0
      %1235 = vmatpush1.msra.mxu0 0.0
      %1236 = vmatprep.subr.mxu0 0.0
      %1237 = vmatpush1.msra.mxu0 0.0
      %1238 = vmatprep.subr.mxu0 0.0
      %1239 = vmatpush1.msra.mxu0 0.0
      %1240 = vmatprep.subr.mxu0 0.0
      %1241 = vmatpush1.msra.mxu0 0.0
      %1242 = vmatprep.subr.mxu0 0.0
      %1243 = vmatpush1.msra.mxu0 0.0
      %1244 = vmatprep.subr.mxu0 0.0
      %1245 = vmatpush1.msra.mxu0 0.0
      %1246 = vmatprep.subr.mxu0 0.0
      %1247 = vmatpush1.msra.mxu0 0.0
      %1248 = vmatprep.subr.mxu0 0.0
      %v1249 = vand.u32 %v907, 4294901760
      %v1250 = vsub.f32 %v907, %v1249
      %v1251 = vand.u32 %v1250, 4294901760
      %1252 = vmatpush1.msra.mxu0 %v1251
      %1253 = vmatprep.subr.mxu0 0.0
      %v1254 = vand.u32 %v906, 4294901760
      %v1255 = vsub.f32 %v906, %v1254
      %v1256 = vand.u32 %v1255, 4294901760
      %1257 = vmatpush1.msra.mxu0 %v1256
      %1258 = vmatprep.subr.mxu0 0.0
      %1259 = vmatpush2.msra.mxu0 0.0
      %1260 = vmatprep.subr.mxu0 0.0
      %1261 = vmatpush2.msra.mxu0 0.0
      %1262 = vmatprep.subr.mxu0 0.0
      %1263 = vmatpush2.msra.mxu0 0.0
      %1264 = vmatprep.subr.mxu0 0.0
      %1265 = vmatpush2.msra.mxu0 0.0
      %1266 = vmatprep.subr.mxu0 0.0
      %1267 = vmatpush2.msra.mxu0 0.0
      %1268 = vmatprep.subr.mxu0 0.0
      %1269 = vmatpush2.msra.mxu0 0.0
      %1270 = vmatprep.subr.mxu0 0.0
      %1271 = vmatpush2.msra.mxu0 0.0
      %1272 = vmatprep.subr.mxu0 0.0
      %1273 = vmatpush2.msra.mxu0 0.0
      %1274 = vmatprep.subr.mxu0 0.0
      %1275 = vmatpush2.msra.mxu0 0.0
      %1276 = vmatprep.subr.mxu0 0.0
      %1277 = vmatpush2.msra.mxu0 0.0
      %1278 = vmatprep.subr.mxu0 0.0
      %1279 = vmatpush2.msra.mxu0 0.0
      %1280 = vmatprep.subr.mxu0 0.0
      %1281 = vmatpush2.msra.mxu0 0.0
      %1282 = vmatprep.subr.mxu0 0.0
      %1283 = vmatpush2.msra.mxu0 0.0
      %1284 = vmatprep.subr.mxu0 0.0
      %1285 = vmatpush2.msra.mxu0 0.0
      %1286 = vmatprep.subr.mxu0 0.0
      %1287 = vmatpush2.msra.mxu0 0.0
      %1288 = vmatprep.subr.mxu0 0.0
      %1289 = vmatpush2.msra.mxu0 0.0
      %1290 = vmatprep.mubr.f32.mxu0 0.0
      %v1291 = vand.u32 %v909, 4294901760
      %1292 = vmatmul.mubr.f32.gmra.mxu0 %v1291
      %v1293 = vpop.f32.mrf.mxu0
      %v1294 = vadd.f32 %v1217, %v1293
      %v1295 = vpop.f32.mrf.mxu0
      %1296 = vdwg.mxu0
      %1297 = vmatprep.subr.mxu0 0.0
      %1298 = vmatpush1.msra.mxu0 0.0
      %1299 = vmatprep.subr.mxu0 0.0
      %1300 = vmatpush1.msra.mxu0 0.0
      %1301 = vmatprep.subr.mxu0 0.0
      %1302 = vmatpush1.msra.mxu0 0.0
      %1303 = vmatprep.subr.mxu0 0.0
      %1304 = vmatpush1.msra.mxu0 0.0
      %1305 = vmatprep.subr.mxu0 0.0
      %1306 = vmatpush1.msra.mxu0 0.0
      %1307 = vmatprep.subr.mxu0 0.0
      %1308 = vmatpush1.msra.mxu0 0.0
      %1309 = vmatprep.subr.mxu0 0.0
      %1310 = vmatpush1.msra.mxu0 0.0
      %1311 = vmatprep.subr.mxu0 0.0
      %1312 = vmatpush1.msra.mxu0 0.0
      %1313 = vmatprep.subr.mxu0 0.0
      %1314 = vmatpush1.msra.mxu0 0.0
      %1315 = vmatprep.subr.mxu0 0.0
      %1316 = vmatpush1.msra.mxu0 0.0
      %1317 = vmatprep.subr.mxu0 0.0
      %1318 = vmatpush1.msra.mxu0 0.0
      %1319 = vmatprep.subr.mxu0 0.0
      %1320 = vmatpush1.msra.mxu0 0.0
      %1321 = vmatprep.subr.mxu0 0.0
      %1322 = vmatpush1.msra.mxu0 0.0
      %1323 = vmatprep.subr.mxu0 0.0
      %1324 = vmatpush1.msra.mxu0 0.0
      %1325 = vmatprep.subr.mxu0 0.0
      %v1326 = vand.u32 %v907, 4294901760
      %1327 = vmatpush1.msra.mxu0 %v1326
      %1328 = vmatprep.subr.mxu0 0.0
      %v1329 = vand.u32 %v906, 4294901760
      %1330 = vmatpush1.msra.mxu0 %v1329
      %1331 = vmatprep.subr.mxu0 0.0
      %1332 = vmatpush2.msra.mxu0 0.0
      %1333 = vmatprep.subr.mxu0 0.0
      %1334 = vmatpush2.msra.mxu0 0.0
      %1335 = vmatprep.subr.mxu0 0.0
      %1336 = vmatpush2.msra.mxu0 0.0
      %1337 = vmatprep.subr.mxu0 0.0
      %1338 = vmatpush2.msra.mxu0 0.0
      %1339 = vmatprep.subr.mxu0 0.0
      %1340 = vmatpush2.msra.mxu0 0.0
      %1341 = vmatprep.subr.mxu0 0.0
      %1342 = vmatpush2.msra.mxu0 0.0
      %1343 = vmatprep.subr.mxu0 0.0
      %1344 = vmatpush2.msra.mxu0 0.0
      %1345 = vmatprep.subr.mxu0 0.0
      %1346 = vmatpush2.msra.mxu0 0.0
      %1347 = vmatprep.subr.mxu0 0.0
      %1348 = vmatpush2.msra.mxu0 0.0
      %1349 = vmatprep.subr.mxu0 0.0
      %1350 = vmatpush2.msra.mxu0 0.0
      %1351 = vmatprep.subr.mxu0 0.0
      %1352 = vmatpush2.msra.mxu0 0.0
      %1353 = vmatprep.subr.mxu0 0.0
      %1354 = vmatpush2.msra.mxu0 0.0
      %1355 = vmatprep.subr.mxu0 0.0
      %1356 = vmatpush2.msra.mxu0 0.0
      %1357 = vmatprep.subr.mxu0 0.0
      %1358 = vmatpush2.msra.mxu0 0.0
      %1359 = vmatprep.subr.mxu0 0.0
      %1360 = vmatpush2.msra.mxu0 0.0
      %1361 = vmatprep.subr.mxu0 0.0
      %1362 = vmatpush2.msra.mxu0 0.0
      %1363 = vmatprep.mubr.f32.mxu0 0.0
      %v1364 = vand.u32 %v909, 4294901760
      %1365 = vmatmul.mubr.f32.gmra.mxu0 %v1364
      %v1366 = vpop.f32.mrf.mxu0
      %v1367 = vadd.f32 %v1294, %v1366
      %v1368 = vpop.f32.mrf.mxu0
      %1369 = vdwg.mxu0
      %v1370 = vcvt.s32.f32 %v901
      %v1371 = vadd.f32 %v1370, 1.0
      %v1372 = vmul.f32 %v1371, 8.0
      %v1373 = vrcp.pop %v1372
      %v1374 = vmul.f32 %v1367, %v1373
      %v1375 = vmul.f32 %v1374, 2.0
      %v1376 = vmul.f32 %v1375, %v1367
      %v1378 = vrot.slane %v1376, 7
      %v1380 = vsub.f32 %v1367, %v1378
      %v1381 = vmul.f32 %v1380, %v1373
      %v1382 = vmul.f32 %v1374, %v1374
      %v1384 = vrot.slane %v1382, 7
      %v1386 = vadd.f32 %v1381, %v1384
      %v1387 = vadd.f32 %v1386, 1e-05
      %v1388 = vrsqrt.pop %v1387
      %v1389 = vlaneseq
      %v1390 = vshrl.u32 %v1389, 7
      %v1391 = vsub.s32 0, %v1390
      %v1392 = vrot.slane %v1374, %v1391
      %v1393 = vsub.f32 %v878, %v1392
      %v1394 = vlaneseq
      %v1395 = vshrl.u32 %v1394, 7
      %v1396 = vsub.s32 1, %v1395
      %v1397 = vrot.slane %v1388, %v1396
      %v1398 = vmul.f32 %v1393, %v1397
      %1400 = vset.pattern.permute.xlu0 0
      %1401 = vperm.xlu0 %1400, %v868
      %v1402 = vpop.permute.xlu0 %1401
      %v1404 = vmul.f32 %v1398, %v1402
      %1406 = vset.pattern.permute.xlu0 0
      %1407 = vperm.xlu0 %1406, %v869
      %v1408 = vpop.permute.xlu0 %1407
      %v1410 = vadd.f32 %v1404, %v1408
      %v1411 = vld [vmem:[%s3] sm:$0xff]
      %v1412 = vld [vmem:[%s4] sm:$0xff]
      %1414 = vrot.lane.b32.xlu0 %v1410, 2
      %v1415 = vpop.permute.xlu0 %1414
      %vm1417 = vcmask 15360
      %v1418 = vsel %vm1417, 0.0, %v1415
      %1420 = vrot.lane.b32.xlu0 %v1418, 127
      %v1421 = vpop.permute.xlu0 %1420
      %1423 = vrot.lane.b32.xlu0 %v1418, 126
      %v1424 = vpop.permute.xlu0 %1423
      %1427 = vset.pattern.permute.xlu0 0
      %1428 = vperm.xlu0 %1427, %v1412
      %v1429 = vpop.permute.xlu0 %1428
      %vm1431 = vcmask 195584
      %v1433 = vsel %vm1431, %v1411, 0
      %1435 = vmatprep.subr.mxu0 0.0
      %1436 = vmatpush1.msra.mxu0 0.0
      %1437 = vmatprep.subr.mxu0 0.0
      %1438 = vmatpush1.msra.mxu0 0.0
      %1439 = vmatprep.subr.mxu0 0.0
      %1440 = vmatpush1.msra.mxu0 0.0
      %1441 = vmatprep.subr.mxu0 0.0
      %1442 = vmatpush1.msra.mxu0 0.0
      %1443 = vmatprep.subr.mxu0 0.0
      %1444 = vmatpush1.msra.mxu0 0.0
      %1445 = vmatprep.subr.mxu0 0.0
      %1446 = vmatpush1.msra.mxu0 0.0
      %1447 = vmatprep.subr.mxu0 0.0
      %1448 = vmatpush1.msra.mxu0 0.0
      %1449 = vmatprep.subr.mxu0 0.0
      %1450 = vmatpush1.msra.mxu0 0.0
      %1451 = vmatprep.subr.mxu0 0.0
      %1452 = vmatpush1.msra.mxu0 0.0
      %1453 = vmatprep.subr.mxu0 0.0
      %1454 = vmatpush1.msra.mxu0 0.0
      %1455 = vmatprep.subr.mxu0 0.0
      %1456 = vmatpush1.msra.mxu0 0.0
      %1457 = vmatprep.subr.mxu0 0.0
      %1458 = vmatpush1.msra.mxu0 0.0
      %1459 = vmatprep.subr.mxu0 0.0
      %1460 = vmatpush1.msra.mxu0 0.0
      %1461 = vmatprep.subr.mxu0 0.0
      %v1462 = vand.u32 %v1424, 4294901760
      %1463 = vmatpush1.msra.mxu0 %v1462
      %1464 = vmatprep.subr.mxu0 0.0
      %v1465 = vand.u32 %v1421, 4294901760
      %1466 = vmatpush1.msra.mxu0 %v1465
      %1467 = vmatprep.subr.mxu0 0.0
      %v1468 = vand.u32 %v1418, 4294901760
      %1469 = vmatpush1.msra.mxu0 %v1468
      %1470 = vmatprep.subr.mxu0 0.0
      %1471 = vmatpush2.msra.mxu0 0.0
      %1472 = vmatprep.subr.mxu0 0.0
      %1473 = vmatpush2.msra.mxu0 0.0
      %1474 = vmatprep.subr.mxu0 0.0
      %1475 = vmatpush2.msra.mxu0 0.0
      %1476 = vmatprep.subr.mxu0 0.0
      %1477 = vmatpush2.msra.mxu0 0.0
      %1478 = vmatprep.subr.mxu0 0.0
      %1479 = vmatpush2.msra.mxu0 0.0
      %1480 = vmatprep.subr.mxu0 0.0
      %1481 = vmatpush2.msra.mxu0 0.0
      %1482 = vmatprep.subr.mxu0 0.0
      %1483 = vmatpush2.msra.mxu0 0.0
      %1484 = vmatprep.subr.mxu0 0.0
      %1485 = vmatpush2.msra.mxu0 0.0
      %1486 = vmatprep.subr.mxu0 0.0
      %1487 = vmatpush2.msra.mxu0 0.0
      %1488 = vmatprep.subr.mxu0 0.0
      %1489 = vmatpush2.msra.mxu0 0.0
      %1490 = vmatprep.subr.mxu0 0.0
      %1491 = vmatpush2.msra.mxu0 0.0
      %1492 = vmatprep.subr.mxu0 0.0
      %1493 = vmatpush2.msra.mxu0 0.0
      %1494 = vmatprep.subr.mxu0 0.0
      %1495 = vmatpush2.msra.mxu0 0.0
      %1496 = vmatprep.subr.mxu0 0.0
      %1497 = vmatpush2.msra.mxu0 0.0
      %1498 = vmatprep.subr.mxu0 0.0
      %1499 = vmatpush2.msra.mxu0 0.0
      %1500 = vmatprep.subr.mxu0 0.0
      %1501 = vmatpush2.msra.mxu0 0.0
      %1502 = vmatprep.mubr.f32.mxu0 0.0
      %v1503 = vand.u32 %v1433, 4294901760
      %v1504 = vsub.f32 %v1433, %v1503
      %v1505 = vand.u32 %v1504, 4294901760
      %v1506 = vsub.f32 %v1504, %v1505
      %v1507 = vand.u32 %v1506, 4294901760
      %1508 = vmatmul.mubr.f32.gmra.mxu0 %v1507
      %v1509 = vpop.f32.mrf.mxu0
      %v1510 = vadd.f32 %v1429, %v1509
      %v1511 = vpop.f32.mrf.mxu0
      %1512 = vdwg.mxu0
      %1513 = vmatprep.subr.mxu0 0.0
      %1514 = vmatpush1.msra.mxu0 0.0
      %1515 = vmatprep.subr.mxu0 0.0
      %1516 = vmatpush1.msra.mxu0 0.0
      %1517 = vmatprep.subr.mxu0 0.0
      %1518 = vmatpush1.msra.mxu0 0.0
      %1519 = vmatprep.subr.mxu0 0.0
      %1520 = vmatpush1.msra.mxu0 0.0
      %1521 = vmatprep.subr.mxu0 0.0
      %1522 = vmatpush1.msra.mxu0 0.0
      %1523 = vmatprep.subr.mxu0 0.0
      %1524 = vmatpush1.msra.mxu0 0.0
      %1525 = vmatprep.subr.mxu0 0.0
      %1526 = vmatpush1.msra.mxu0 0.0
      %1527 = vmatprep.subr.mxu0 0.0
      %1528 = vmatpush1.msra.mxu0 0.0
      %1529 = vmatprep.subr.mxu0 0.0
      %1530 = vmatpush1.msra.mxu0 0.0
      %1531 = vmatprep.subr.mxu0 0.0
      %1532 = vmatpush1.msra.mxu0 0.0
      %1533 = vmatprep.subr.mxu0 0.0
      %1534 = vmatpush1.msra.mxu0 0.0
      %1535 = vmatprep.subr.mxu0 0.0
      %1536 = vmatpush1.msra.mxu0 0.0
      %1537 = vmatprep.subr.mxu0 0.0
      %1538 = vmatpush1.msra.mxu0 0.0
      %1539 = vmatprep.subr.mxu0 0.0
      %v1540 = vand.u32 %v1424, 4294901760
      %v1541 = vsub.f32 %v1424, %v1540
      %v1542 = vand.u32 %v1541, 4294901760
      %v1543 = vsub.f32 %v1541, %v1542
      %v1544 = vand.u32 %v1543, 4294901760
      %1545 = vmatpush1.msra.mxu0 %v1544
      %1546 = vmatprep.subr.mxu0 0.0
      %v1547 = vand.u32 %v1421, 4294901760
      %v1548 = vsub.f32 %v1421, %v1547
      %v1549 = vand.u32 %v1548, 4294901760
      %v1550 = vsub.f32 %v1548, %v1549
      %v1551 = vand.u32 %v1550, 4294901760
      %1552 = vmatpush1.msra.mxu0 %v1551
      %1553 = vmatprep.subr.mxu0 0.0
      %v1554 = vand.u32 %v1418, 4294901760
      %v1555 = vsub.f32 %v1418, %v1554
      %v1556 = vand.u32 %v1555, 4294901760
      %v1557 = vsub.f32 %v1555, %v1556
      %v1558 = vand.u32 %v1557, 4294901760
      %1559 = vmatpush1.msra.mxu0 %v1558
      %1560 = vmatprep.subr.mxu0 0.0
      %1561 = vmatpush2.msra.mxu0 0.0
      %1562 = vmatprep.subr.mxu0 0.0
      %1563 = vmatpush2.msra.mxu0 0.0
      %1564 = vmatprep.subr.mxu0 0.0
      %1565 = vmatpush2.msra.mxu0 0.0
      %1566 = vmatprep.subr.mxu0 0.0
      %1567 = vmatpush2.msra.mxu0 0.0
      %1568 = vmatprep.subr.mxu0 0.0
      %1569 = vmatpush2.msra.mxu0 0.0
      %1570 = vmatprep.subr.mxu0 0.0
      %1571 = vmatpush2.msra.mxu0 0.0
      %1572 = vmatprep.subr.mxu0 0.0
      %1573 = vmatpush2.msra.mxu0 0.0
      %1574 = vmatprep.subr.mxu0 0.0
      %1575 = vmatpush2.msra.mxu0 0.0
      %1576 = vmatprep.subr.mxu0 0.0
      %1577 = vmatpush2.msra.mxu0 0.0
      %1578 = vmatprep.subr.mxu0 0.0
      %1579 = vmatpush2.msra.mxu0 0.0
      %1580 = vmatprep.subr.mxu0 0.0
      %1581 = vmatpush2.msra.mxu0 0.0
      %1582 = vmatprep.subr.mxu0 0.0
      %1583 = vmatpush2.msra.mxu0 0.0
      %1584 = vmatprep.subr.mxu0 0.0
      %1585 = vmatpush2.msra.mxu0 0.0
      %1586 = vmatprep.subr.mxu0 0.0
      %1587 = vmatpush2.msra.mxu0 0.0
      %1588 = vmatprep.subr.mxu0 0.0
      %1589 = vmatpush2.msra.mxu0 0.0
      %1590 = vmatprep.subr.mxu0 0.0
      %1591 = vmatpush2.msra.mxu0 0.0
      %1592 = vmatprep.mubr.f32.mxu0 0.0
      %v1593 = vand.u32 %v1433, 4294901760
      %1594 = vmatmul.mubr.f32.gmra.mxu0 %v1593
      %v1595 = vpop.f32.mrf.mxu0
      %v1596 = vadd.f32 %v1510, %v1595
      %v1597 = vpop.f32.mrf.mxu0
      %1598 = vdwg.mxu0
      %1599 = vmatprep.subr.mxu0 0.0
      %1600 = vmatpush1.msra.mxu0 0.0
      %1601 = vmatprep.subr.mxu0 0.0
      %1602 = vmatpush1.msra.mxu0 0.0
      %1603 = vmatprep.subr.mxu0 0.0
      %1604 = vmatpush1.msra.mxu0 0.0
      %1605 = vmatprep.subr.mxu0 0.0
      %1606 = vmatpush1.msra.mxu0 0.0
      %1607 = vmatprep.subr.mxu0 0.0
      %1608 = vmatpush1.msra.mxu0 0.0
      %1609 = vmatprep.subr.mxu0 0.0
      %1610 = vmatpush1.msra.mxu0 0.0
      %1611 = vmatprep.subr.mxu0 0.0
      %1612 = vmatpush1.msra.mxu0 0.0
      %1613 = vmatprep.subr.mxu0 0.0
      %1614 = vmatpush1.msra.mxu0 0.0
      %1615 = vmatprep.subr.mxu0 0.0
      %1616 = vmatpush1.msra.mxu0 0.0
      %1617 = vmatprep.subr.mxu0 0.0
      %1618 = vmatpush1.msra.mxu0 0.0
      %1619 = vmatprep.subr.mxu0 0.0
      %1620 = vmatpush1.msra.mxu0 0.0
      %1621 = vmatprep.subr.mxu0 0.0
      %1622 = vmatpush1.msra.mxu0 0.0
      %1623 = vmatprep.subr.mxu0 0.0
      %1624 = vmatpush1.msra.mxu0 0.0
      %1625 = vmatprep.subr.mxu0 0.0
      %v1626 = vand.u32 %v1424, 4294901760
      %v1627 = vsub.f32 %v1424, %v1626
      %1628 = vmatpush1.msra.mxu0 %v1627
      %1629 = vmatprep.subr.mxu0 0.0
      %v1630 = vand.u32 %v1421, 4294901760
      %v1631 = vsub.f32 %v1421, %v1630
      %1632 = vmatpush1.msra.mxu0 %v1631
      %1633 = vmatprep.subr.mxu0 0.0
      %v1634 = vand.u32 %v1418, 4294901760
      %v1635 = vsub.f32 %v1418, %v1634
      %1636 = vmatpush1.msra.mxu0 %v1635
      %1637 = vmatprep.subr.mxu0 0.0
      %1638 = vmatpush2.msra.mxu0 0.0
      %1639 = vmatprep.subr.mxu0 0.0
      %1640 = vmatpush2.msra.mxu0 0.0
      %1641 = vmatprep.subr.mxu0 0.0
      %1642 = vmatpush2.msra.mxu0 0.0
      %1643 = vmatprep.subr.mxu0 0.0
      %1644 = vmatpush2.msra.mxu0 0.0
      %1645 = vmatprep.subr.mxu0 0.0
      %1646 = vmatpush2.msra.mxu0 0.0
      %1647 = vmatprep.subr.mxu0 0.0
      %1648 = vmatpush2.msra.mxu0 0.0
      %1649 = vmatprep.subr.mxu0 0.0
      %1650 = vmatpush2.msra.mxu0 0.0
      %1651 = vmatprep.subr.mxu0 0.0
      %1652 = vmatpush2.msra.mxu0 0.0
      %1653 = vmatprep.subr.mxu0 0.0
      %1654 = vmatpush2.msra.mxu0 0.0
      %1655 = vmatprep.subr.mxu0 0.0
      %1656 = vmatpush2.msra.mxu0 0.0
      %1657 = vmatprep.subr.mxu0 0.0
      %1658 = vmatpush2.msra.mxu0 0.0
      %1659 = vmatprep.subr.mxu0 0.0
      %1660 = vmatpush2.msra.mxu0 0.0
      %1661 = vmatprep.subr.mxu0 0.0
      %1662 = vmatpush2.msra.mxu0 0.0
      %1663 = vmatprep.subr.mxu0 0.0
      %1664 = vmatpush2.msra.mxu0 0.0
      %1665 = vmatprep.subr.mxu0 0.0
      %1666 = vmatpush2.msra.mxu0 0.0
      %1667 = vmatprep.subr.mxu0 0.0
      %1668 = vmatpush2.msra.mxu0 0.0
      %1669 = vmatprep.mubr.f32.mxu0 0.0
      %v1670 = vand.u32 %v1433, 4294901760
      %v1671 = vsub.f32 %v1433, %v1670
      %1672 = vmatmul.mubr.f32.gmra.mxu0 %v1671
      %v1673 = vpop.f32.mrf.mxu0
      %v1674 = vadd.f32 %v1596, %v1673
      %v1675 = vpop.f32.mrf.mxu0
      %1676 = vdwg.mxu0
      %1677 = vmatprep.subr.mxu0 0.0
      %1678 = vmatpush1.msra.mxu0 0.0
      %1679 = vmatprep.subr.mxu0 0.0
      %1680 = vmatpush1.msra.mxu0 0.0
      %1681 = vmatprep.subr.mxu0 0.0
      %1682 = vmatpush1.msra.mxu0 0.0
      %1683 = vmatprep.subr.mxu0 0.0
      %1684 = vmatpush1.msra.mxu0 0.0
      %1685 = vmatprep.subr.mxu0 0.0
      %1686 = vmatpush1.msra.mxu0 0.0
      %1687 = vmatprep.subr.mxu0 0.0
      %1688 = vmatpush1.msra.mxu0 0.0
      %1689 = vmatprep.subr.mxu0 0.0
      %1690 = vmatpush1.msra.mxu0 0.0
      %1691 = vmatprep.subr.mxu0 0.0
      %1692 = vmatpush1.msra.mxu0 0.0
      %1693 = vmatprep.subr.mxu0 0.0
      %1694 = vmatpush1.msra.mxu0 0.0
      %1695 = vmatprep.subr.mxu0 0.0
      %1696 = vmatpush1.msra.mxu0 0.0
      %1697 = vmatprep.subr.mxu0 0.0
      %1698 = vmatpush1.msra.mxu0 0.0
      %1699 = vmatprep.subr.mxu0 0.0
      %1700 = vmatpush1.msra.mxu0 0.0
      %1701 = vmatprep.subr.mxu0 0.0
      %1702 = vmatpush1.msra.mxu0 0.0
      %1703 = vmatprep.subr.mxu0 0.0
      %v1704 = vand.u32 %v1424, 4294901760
      %1705 = vmatpush1.msra.mxu0 %v1704
      %1706 = vmatprep.subr.mxu0 0.0
      %v1707 = vand.u32 %v1421, 4294901760
      %1708 = vmatpush1.msra.mxu0 %v1707
      %1709 = vmatprep.subr.mxu0 0.0
      %v1710 = vand.u32 %v1418, 4294901760
      %1711 = vmatpush1.msra.mxu0 %v1710
      %1712 = vmatprep.subr.mxu0 0.0
      %1713 = vmatpush2.msra.mxu0 0.0
      %1714 = vmatprep.subr.mxu0 0.0
      %1715 = vmatpush2.msra.mxu0 0.0
      %1716 = vmatprep.subr.mxu0 0.0
      %1717 = vmatpush2.msra.mxu0 0.0
      %1718 = vmatprep.subr.mxu0 0.0
      %1719 = vmatpush2.msra.mxu0 0.0
      %1720 = vmatprep.subr.mxu0 0.0
      %1721 = vmatpush2.msra.mxu0 0.0
      %1722 = vmatprep.subr.mxu0 0.0
      %1723 = vmatpush2.msra.mxu0 0.0
      %1724 = vmatprep.subr.mxu0 0.0
      %1725 = vmatpush2.msra.mxu0 0.0
      %1726 = vmatprep.subr.mxu0 0.0
      %1727 = vmatpush2.msra.mxu0 0.0
      %1728 = vmatprep.subr.mxu0 0.0
      %1729 = vmatpush2.msra.mxu0 0.0
      %1730 = vmatprep.subr.mxu0 0.0
      %1731 = vmatpush2.msra.mxu0 0.0
      %1732 = vmatprep.subr.mxu0 0.0
      %1733 = vmatpush2.msra.mxu0 0.0
      %1734 = vmatprep.subr.mxu0 0.0
      %1735 = vmatpush2.msra.mxu0 0.0
      %1736 = vmatprep.subr.mxu0 0.0
      %1737 = vmatpush2.msra.mxu0 0.0
      %1738 = vmatprep.subr.mxu0 0.0
      %1739 = vmatpush2.msra.mxu0 0.0
      %1740 = vmatprep.subr.mxu0 0.0
      %1741 = vmatpush2.msra.mxu0 0.0
      %1742 = vmatprep.subr.mxu0 0.0
      %1743 = vmatpush2.msra.mxu0 0.0
      %1744 = vmatprep.mubr.f32.mxu0 0.0
      %v1745 = vand.u32 %v1433, 4294901760
      %v1746 = vsub.f32 %v1433, %v1745
      %v1747 = vand.u32 %v1746, 4294901760
      %1748 = vmatmul.mubr.f32.gmra.mxu0 %v1747
      %v1749 = vpop.f32.mrf.mxu0
      %v1750 = vadd.f32 %v1674, %v1749
      %v1751 = vpop.f32.mrf.mxu0
      %1752 = vdwg.mxu0
      %1753 = vmatprep.subr.mxu0 0.0
      %1754 = vmatpush1.msra.mxu0 0.0
      %1755 = vmatprep.subr.mxu0 0.0
      %1756 = vmatpush1.msra.mxu0 0.0
      %1757 = vmatprep.subr.mxu0 0.0
      %1758 = vmatpush1.msra.mxu0 0.0
      %1759 = vmatprep.subr.mxu0 0.0
      %1760 = vmatpush1.msra.mxu0 0.0
      %1761 = vmatprep.subr.mxu0 0.0
      %1762 = vmatpush1.msra.mxu0 0.0
      %1763 = vmatprep.subr.mxu0 0.0
      %1764 = vmatpush1.msra.mxu0 0.0
      %1765 = vmatprep.subr.mxu0 0.0
      %1766 = vmatpush1.msra.mxu0 0.0
      %1767 = vmatprep.subr.mxu0 0.0
      %1768 = vmatpush1.msra.mxu0 0.0
      %1769 = vmatprep.subr.mxu0 0.0
      %1770 = vmatpush1.msra.mxu0 0.0
      %1771 = vmatprep.subr.mxu0 0.0
      %1772 = vmatpush1.msra.mxu0 0.0
      %1773 = vmatprep.subr.mxu0 0.0
      %1774 = vmatpush1.msra.mxu0 0.0
      %1775 = vmatprep.subr.mxu0 0.0
      %1776 = vmatpush1.msra.mxu0 0.0
      %1777 = vmatprep.subr.mxu0 0.0
      %1778 = vmatpush1.msra.mxu0 0.0
      %1779 = vmatprep.subr.mxu0 0.0
      %v1780 = vand.u32 %v1424, 4294901760
      %v1781 = vsub.f32 %v1424, %v1780
      %v1782 = vand.u32 %v1781, 4294901760
      %1783 = vmatpush1.msra.mxu0 %v1782
      %1784 = vmatprep.subr.mxu0 0.0
      %v1785 = vand.u32 %v1421, 4294901760
      %v1786 = vsub.f32 %v1421, %v1785
      %v1787 = vand.u32 %v1786, 4294901760
      %1788 = vmatpush1.msra.mxu0 %v1787
      %1789 = vmatprep.subr.mxu0 0.0
      %v1790 = vand.u32 %v1418, 4294901760
      %v1791 = vsub.f32 %v1418, %v1790
      %v1792 = vand.u32 %v1791, 4294901760
      %1793 = vmatpush1.msra.mxu0 %v1792
      %1794 = vmatprep.subr.mxu0 0.0
      %1795 = vmatpush2.msra.mxu0 0.0
      %1796 = vmatprep.subr.mxu0 0.0
      %1797 = vmatpush2.msra.mxu0 0.0
      %1798 = vmatprep.subr.mxu0 0.0
      %1799 = vmatpush2.msra.mxu0 0.0
      %1800 = vmatprep.subr.mxu0 0.0
      %1801 = vmatpush2.msra.mxu0 0.0
      %1802 = vmatprep.subr.mxu0 0.0
      %1803 = vmatpush2.msra.mxu0 0.0
      %1804 = vmatprep.subr.mxu0 0.0
      %1805 = vmatpush2.msra.mxu0 0.0
      %1806 = vmatprep.subr.mxu0 0.0
      %1807 = vmatpush2.msra.mxu0 0.0
      %1808 = vmatprep.subr.mxu0 0.0
      %1809 = vmatpush2.msra.mxu0 0.0
      %1810 = vmatprep.subr.mxu0 0.0
      %1811 = vmatpush2.msra.mxu0 0.0
      %1812 = vmatprep.subr.mxu0 0.0
      %1813 = vmatpush2.msra.mxu0 0.0
      %1814 = vmatprep.subr.mxu0 0.0
      %1815 = vmatpush2.msra.mxu0 0.0
      %1816 = vmatprep.subr.mxu0 0.0
      %1817 = vmatpush2.msra.mxu0 0.0
      %1818 = vmatprep.subr.mxu0 0.0
      %1819 = vmatpush2.msra.mxu0 0.0
      %1820 = vmatprep.subr.mxu0 0.0
      %1821 = vmatpush2.msra.mxu0 0.0
      %1822 = vmatprep.subr.mxu0 0.0
      %1823 = vmatpush2.msra.mxu0 0.0
      %1824 = vmatprep.subr.mxu0 0.0
      %1825 = vmatpush2.msra.mxu0 0.0
      %1826 = vmatprep.mubr.f32.mxu0 0.0
      %v1827 = vand.u32 %v1433, 4294901760
      %1828 = vmatmul.mubr.f32.gmra.mxu0 %v1827
      %v1829 = vpop.f32.mrf.mxu0
      %v1830 = vadd.f32 %v1750, %v1829
      %v1831 = vpop.f32.mrf.mxu0
      %1832 = vdwg.mxu0
      %1833 = vmatprep.subr.mxu0 0.0
      %1834 = vmatpush1.msra.mxu0 0.0
      %1835 = vmatprep.subr.mxu0 0.0
      %1836 = vmatpush1.msra.mxu0 0.0
      %1837 = vmatprep.subr.mxu0 0.0
      %1838 = vmatpush1.msra.mxu0 0.0
      %1839 = vmatprep.subr.mxu0 0.0
      %1840 = vmatpush1.msra.mxu0 0.0
      %1841 = vmatprep.subr.mxu0 0.0
      %1842 = vmatpush1.msra.mxu0 0.0
      %1843 = vmatprep.subr.mxu0 0.0
      %1844 = vmatpush1.msra.mxu0 0.0
      %1845 = vmatprep.subr.mxu0 0.0
      %1846 = vmatpush1.msra.mxu0 0.0
      %1847 = vmatprep.subr.mxu0 0.0
      %1848 = vmatpush1.msra.mxu0 0.0
      %1849 = vmatprep.subr.mxu0 0.0
      %1850 = vmatpush1.msra.mxu0 0.0
      %1851 = vmatprep.subr.mxu0 0.0
      %1852 = vmatpush1.msra.mxu0 0.0
      %1853 = vmatprep.subr.mxu0 0.0
      %1854 = vmatpush1.msra.mxu0 0.0
      %1855 = vmatprep.subr.mxu0 0.0
      %1856 = vmatpush1.msra.mxu0 0.0
      %1857 = vmatprep.subr.mxu0 0.0
      %1858 = vmatpush1.msra.mxu0 0.0
      %1859 = vmatprep.subr.mxu0 0.0
      %v1860 = vand.u32 %v1424, 4294901760
      %1861 = vmatpush1.msra.mxu0 %v1860
      %1862 = vmatprep.subr.mxu0 0.0
      %v1863 = vand.u32 %v1421, 4294901760
      %1864 = vmatpush1.msra.mxu0 %v1863
      %1865 = vmatprep.subr.mxu0 0.0
      %v1866 = vand.u32 %v1418, 4294901760
      %1867 = vmatpush1.msra.mxu0 %v1866
      %1868 = vmatprep.subr.mxu0 0.0
      %1869 = vmatpush2.msra.mxu0 0.0
      %1870 = vmatprep.subr.mxu0 0.0
      %1871 = vmatpush2.msra.mxu0 0.0
      %1872 = vmatprep.subr.mxu0 0.0
      %1873 = vmatpush2.msra.mxu0 0.0
      %1874 = vmatprep.subr.mxu0 0.0
      %1875 = vmatpush2.msra.mxu0 0.0
      %1876 = vmatprep.subr.mxu0 0.0
      %1877 = vmatpush2.msra.mxu0 0.0
      %1878 = vmatprep.subr.mxu0 0.0
      %1879 = vmatpush2.msra.mxu0 0.0
      %1880 = vmatprep.subr.mxu0 0.0
      %1881 = vmatpush2.msra.mxu0 0.0
      %1882 = vmatprep.subr.mxu0 0.0
      %1883 = vmatpush2.msra.mxu0 0.0
      %1884 = vmatprep.subr.mxu0 0.0
      %1885 = vmatpush2.msra.mxu0 0.0
      %1886 = vmatprep.subr.mxu0 0.0
      %1887 = vmatpush2.msra.mxu0 0.0
      %1888 = vmatprep.subr.mxu0 0.0
      %1889 = vmatpush2.msra.mxu0 0.0
      %1890 = vmatprep.subr.mxu0 0.0
      %1891 = vmatpush2.msra.mxu0 0.0
      %1892 = vmatprep.subr.mxu0 0.0
      %1893 = vmatpush2.msra.mxu0 0.0
      %1894 = vmatprep.subr.mxu0 0.0
      %1895 = vmatpush2.msra.mxu0 0.0
      %1896 = vmatprep.subr.mxu0 0.0
      %1897 = vmatpush2.msra.mxu0 0.0
      %1898 = vmatprep.subr.mxu0 0.0
      %1899 = vmatpush2.msra.mxu0 0.0
      %1900 = vmatprep.mubr.f32.mxu0 0.0
      %v1901 = vand.u32 %v1433, 4294901760
      %1902 = vmatmul.mubr.f32.gmra.mxu0 %v1901
      %v1903 = vpop.f32.mrf.mxu0
      %v1904 = vadd.f32 %v1830, %v1903
      %v1905 = vpop.f32.mrf.mxu0
      %1906 = vdwg.mxu0
      %s1907 = scalar_lea.vmem %s9, 8
      %v1908 = vld [vmem:[%s1907] sm:$0xff]
      %s1909 = scalar_lea.vmem %s10, 8
      %v1910 = vld [vmem:[%s1909] sm:$0xff]
      %s1911 = scalar_lea.vmem %s11, 8
      %v1912 = vld [vmem:[%s1911] sm:$0xff]
      %1914 = vset.pattern.permute.xlu0 0
      %1915 = vperm.xlu0 %1914, %v1908
      %v1916 = vpop.permute.xlu0 %1915
      %v1918 = vmul.f32 %v1916, %v871
      %v1919 = vadd.f32 %v870, %v1918
      %v1920 = vsel %vm879, %v1919, 0.0
      %v1921 = vrot.slane %v1920, 4
      %v1922 = vadd.f32 %v1920, %v1921
      %v1923 = vrot.slane %v1922, 2
      %v1924 = vadd.f32 %v1922, %v1923
      %v1925 = vrot.slane %v1924, 1
      %v1926 = vadd.f32 %v1924, %v1925
      %v1927 = vmul.f32 %v1919, %v1919
      %v1928 = vsel %vm879, %v1927, 0.0
      %v1929 = vrot.slane %v1928, 4
      %v1930 = vadd.f32 %v1928, %v1929
      %v1931 = vrot.slane %v1930, 2
      %v1932 = vadd.f32 %v1930, %v1931
      %v1933 = vrot.slane %v1932, 1
      %v1934 = vadd.f32 %v1932, %v1933
      %v1935 = vsel %vm895, %v1926, %v1934
      %v1937 = vsel %vm879, %v1935, 0
      %1939 = vmatprep.subr.mxu0 0.0
      %1940 = vmatpush1.msra.mxu0 0.0
      %1941 = vmatprep.subr.mxu0 0.0
      %1942 = vmatpush1.msra.mxu0 0.0
      %1943 = vmatprep.subr.mxu0 0.0
      %1944 = vmatpush1.msra.mxu0 0.0
      %1945 = vmatprep.subr.mxu0 0.0
      %1946 = vmatpush1.msra.mxu0 0.0
      %1947 = vmatprep.subr.mxu0 0.0
      %1948 = vmatpush1.msra.mxu0 0.0
      %1949 = vmatprep.subr.mxu0 0.0
      %1950 = vmatpush1.msra.mxu0 0.0
      %1951 = vmatprep.subr.mxu0 0.0
      %1952 = vmatpush1.msra.mxu0 0.0
      %1953 = vmatprep.subr.mxu0 0.0
      %1954 = vmatpush1.msra.mxu0 0.0
      %1955 = vmatprep.subr.mxu0 0.0
      %1956 = vmatpush1.msra.mxu0 0.0
      %1957 = vmatprep.subr.mxu0 0.0
      %1958 = vmatpush1.msra.mxu0 0.0
      %1959 = vmatprep.subr.mxu0 0.0
      %1960 = vmatpush1.msra.mxu0 0.0
      %1961 = vmatprep.subr.mxu0 0.0
      %1962 = vmatpush1.msra.mxu0 0.0
      %1963 = vmatprep.subr.mxu0 0.0
      %1964 = vmatpush1.msra.mxu0 0.0
      %1965 = vmatprep.subr.mxu0 0.0
      %1966 = vmatpush1.msra.mxu0 0.0
      %1967 = vmatprep.subr.mxu0 0.0
      %v1968 = vand.u32 %v907, 4294901760
      %1969 = vmatpush1.msra.mxu0 %v1968
      %1970 = vmatprep.subr.mxu0 0.0
      %v1971 = vand.u32 %v906, 4294901760
      %1972 = vmatpush1.msra.mxu0 %v1971
      %1973 = vmatprep.subr.mxu0 0.0
      %1974 = vmatpush2.msra.mxu0 0.0
      %1975 = vmatprep.subr.mxu0 0.0
      %1976 = vmatpush2.msra.mxu0 0.0
      %1977 = vmatprep.subr.mxu0 0.0
      %1978 = vmatpush2.msra.mxu0 0.0
      %1979 = vmatprep.subr.mxu0 0.0
      %1980 = vmatpush2.msra.mxu0 0.0
      %1981 = vmatprep.subr.mxu0 0.0
      %1982 = vmatpush2.msra.mxu0 0.0
      %1983 = vmatprep.subr.mxu0 0.0
      %1984 = vmatpush2.msra.mxu0 0.0
      %1985 = vmatprep.subr.mxu0 0.0
      %1986 = vmatpush2.msra.mxu0 0.0
      %1987 = vmatprep.subr.mxu0 0.0
      %1988 = vmatpush2.msra.mxu0 0.0
      %1989 = vmatprep.subr.mxu0 0.0
      %1990 = vmatpush2.msra.mxu0 0.0
      %1991 = vmatprep.subr.mxu0 0.0
      %1992 = vmatpush2.msra.mxu0 0.0
      %1993 = vmatprep.subr.mxu0 0.0
      %1994 = vmatpush2.msra.mxu0 0.0
      %1995 = vmatprep.subr.mxu0 0.0
      %1996 = vmatpush2.msra.mxu0 0.0
      %1997 = vmatprep.subr.mxu0 0.0
      %1998 = vmatpush2.msra.mxu0 0.0
      %1999 = vmatprep.subr.mxu0 0.0
      %2000 = vmatpush2.msra.mxu0 0.0
      %2001 = vmatprep.subr.mxu0 0.0
      %2002 = vmatpush2.msra.mxu0 0.0
      %2003 = vmatprep.subr.mxu0 0.0
      %2004 = vmatpush2.msra.mxu0 0.0
      %2005 = vmatprep.mubr.f32.mxu0 0.0
      %v2006 = vand.u32 %v1937, 4294901760
      %v2007 = vsub.f32 %v1937, %v2006
      %v2008 = vand.u32 %v2007, 4294901760
      %v2009 = vsub.f32 %v2007, %v2008
      %v2010 = vand.u32 %v2009, 4294901760
      %2011 = vmatmul.mubr.f32.gmra.mxu0 %v2010
      %v2012 = vpop.f32.mrf.mxu0
      %v2013 = vadd.f32 0.0, %v2012
      %v2014 = vpop.f32.mrf.mxu0
      %2015 = vdwg.mxu0
      %2016 = vmatprep.subr.mxu0 0.0
      %2017 = vmatpush1.msra.mxu0 0.0
      %2018 = vmatprep.subr.mxu0 0.0
      %2019 = vmatpush1.msra.mxu0 0.0
      %2020 = vmatprep.subr.mxu0 0.0
      %2021 = vmatpush1.msra.mxu0 0.0
      %2022 = vmatprep.subr.mxu0 0.0
      %2023 = vmatpush1.msra.mxu0 0.0
      %2024 = vmatprep.subr.mxu0 0.0
      %2025 = vmatpush1.msra.mxu0 0.0
      %2026 = vmatprep.subr.mxu0 0.0
      %2027 = vmatpush1.msra.mxu0 0.0
      %2028 = vmatprep.subr.mxu0 0.0
      %2029 = vmatpush1.msra.mxu0 0.0
      %2030 = vmatprep.subr.mxu0 0.0
      %2031 = vmatpush1.msra.mxu0 0.0
      %2032 = vmatprep.subr.mxu0 0.0
      %2033 = vmatpush1.msra.mxu0 0.0
      %2034 = vmatprep.subr.mxu0 0.0
      %2035 = vmatpush1.msra.mxu0 0.0
      %2036 = vmatprep.subr.mxu0 0.0
      %2037 = vmatpush1.msra.mxu0 0.0
      %2038 = vmatprep.subr.mxu0 0.0
      %2039 = vmatpush1.msra.mxu0 0.0
      %2040 = vmatprep.subr.mxu0 0.0
      %2041 = vmatpush1.msra.mxu0 0.0
      %2042 = vmatprep.subr.mxu0 0.0
      %2043 = vmatpush1.msra.mxu0 0.0
      %2044 = vmatprep.subr.mxu0 0.0
      %v2045 = vand.u32 %v907, 4294901760
      %v2046 = vsub.f32 %v907, %v2045
      %v2047 = vand.u32 %v2046, 4294901760
      %v2048 = vsub.f32 %v2046, %v2047
      %v2049 = vand.u32 %v2048, 4294901760
      %2050 = vmatpush1.msra.mxu0 %v2049
      %2051 = vmatprep.subr.mxu0 0.0
      %v2052 = vand.u32 %v906, 4294901760
      %v2053 = vsub.f32 %v906, %v2052
      %v2054 = vand.u32 %v2053, 4294901760
      %v2055 = vsub.f32 %v2053, %v2054
      %v2056 = vand.u32 %v2055, 4294901760
      %2057 = vmatpush1.msra.mxu0 %v2056
      %2058 = vmatprep.subr.mxu0 0.0
      %2059 = vmatpush2.msra.mxu0 0.0
      %2060 = vmatprep.subr.mxu0 0.0
      %2061 = vmatpush2.msra.mxu0 0.0
      %2062 = vmatprep.subr.mxu0 0.0
      %2063 = vmatpush2.msra.mxu0 0.0
      %2064 = vmatprep.subr.mxu0 0.0
      %2065 = vmatpush2.msra.mxu0 0.0
      %2066 = vmatprep.subr.mxu0 0.0
      %2067 = vmatpush2.msra.mxu0 0.0
      %2068 = vmatprep.subr.mxu0 0.0
      %2069 = vmatpush2.msra.mxu0 0.0
      %2070 = vmatprep.subr.mxu0 0.0
      %2071 = vmatpush2.msra.mxu0 0.0
      %2072 = vmatprep.subr.mxu0 0.0
      %2073 = vmatpush2.msra.mxu0 0.0
      %2074 = vmatprep.subr.mxu0 0.0
      %2075 = vmatpush2.msra.mxu0 0.0
      %2076 = vmatprep.subr.mxu0 0.0
      %2077 = vmatpush2.msra.mxu0 0.0
      %2078 = vmatprep.subr.mxu0 0.0
      %2079 = vmatpush2.msra.mxu0 0.0
      %2080 = vmatprep.subr.mxu0 0.0
      %2081 = vmatpush2.msra.mxu0 0.0
      %2082 = vmatprep.subr.mxu0 0.0
      %2083 = vmatpush2.msra.mxu0 0.0
      %2084 = vmatprep.subr.mxu0 0.0
      %2085 = vmatpush2.msra.mxu0 0.0
      %2086 = vmatprep.subr.mxu0 0.0
      %2087 = vmatpush2.msra.mxu0 0.0
      %2088 = vmatprep.subr.mxu0 0.0
      %2089 = vmatpush2.msra.mxu0 0.0
      %2090 = vmatprep.mubr.f32.mxu0 0.0
      %v2091 = vand.u32 %v1937, 4294901760
      %2092 = vmatmul.mubr.f32.gmra.mxu0 %v2091
      %v2093 = vpop.f32.mrf.mxu0
      %v2094 = vadd.f32 %v2013, %v2093
      %v2095 = vpop.f32.mrf.mxu0
      %2096 = vdwg.mxu0
      %2097 = vmatprep.subr.mxu0 0.0
      %2098 = vmatpush1.msra.mxu0 0.0
      %2099 = vmatprep.subr.mxu0 0.0
      %2100 = vmatpush1.msra.mxu0 0.0
      %2101 = vmatprep.subr.mxu0 0.0
      %2102 = vmatpush1.msra.mxu0 0.0
      %2103 = vmatprep.subr.mxu0 0.0
      %2104 = vmatpush1.msra.mxu0 0.0
      %2105 = vmatprep.subr.mxu0 0.0
      %2106 = vmatpush1.msra.mxu0 0.0
      %2107 = vmatprep.subr.mxu0 0.0
      %2108 = vmatpush1.msra.mxu0 0.0
      %2109 = vmatprep.subr.mxu0 0.0
      %2110 = vmatpush1.msra.mxu0 0.0
      %2111 = vmatprep.subr.mxu0 0.0
      %2112 = vmatpush1.msra.mxu0 0.0
      %2113 = vmatprep.subr.mxu0 0.0
      %2114 = vmatpush1.msra.mxu0 0.0
      %2115 = vmatprep.subr.mxu0 0.0
      %2116 = vmatpush1.msra.mxu0 0.0
      %2117 = vmatprep.subr.mxu0 0.0
      %2118 = vmatpush1.msra.mxu0 0.0
      %2119 = vmatprep.subr.mxu0 0.0
      %2120 = vmatpush1.msra.mxu0 0.0
      %2121 = vmatprep.subr.mxu0 0.0
      %2122 = vmatpush1.msra.mxu0 0.0
      %2123 = vmatprep.subr.mxu0 0.0
      %2124 = vmatpush1.msra.mxu0 0.0
      %2125 = vmatprep.subr.mxu0 0.0
      %v2126 = vand.u32 %v907, 4294901760
      %v2127 = vsub.f32 %v907, %v2126
      %2128 = vmatpush1.msra.mxu0 %v2127
      %2129 = vmatprep.subr.mxu0 0.0
      %v2130 = vand.u32 %v906, 4294901760
      %v2131 = vsub.f32 %v906, %v2130
      %2132 = vmatpush1.msra.mxu0 %v2131
      %2133 = vmatprep.subr.mxu0 0.0
      %2134 = vmatpush2.msra.mxu0 0.0
      %2135 = vmatprep.subr.mxu0 0.0
      %2136 = vmatpush2.msra.mxu0 0.0
      %2137 = vmatprep.subr.mxu0 0.0
      %2138 = vmatpush2.msra.mxu0 0.0
      %2139 = vmatprep.subr.mxu0 0.0
      %2140 = vmatpush2.msra.mxu0 0.0
      %2141 = vmatprep.subr.mxu0 0.0
      %2142 = vmatpush2.msra.mxu0 0.0
      %2143 = vmatprep.subr.mxu0 0.0
      %2144 = vmatpush2.msra.mxu0 0.0
      %2145 = vmatprep.subr.mxu0 0.0
      %2146 = vmatpush2.msra.mxu0 0.0
      %2147 = vmatprep.subr.mxu0 0.0
      %2148 = vmatpush2.msra.mxu0 0.0
      %2149 = vmatprep.subr.mxu0 0.0
      %2150 = vmatpush2.msra.mxu0 0.0
      %2151 = vmatprep.subr.mxu0 0.0
      %2152 = vmatpush2.msra.mxu0 0.0
      %2153 = vmatprep.subr.mxu0 0.0
      %2154 = vmatpush2.msra.mxu0 0.0
      %2155 = vmatprep.subr.mxu0 0.0
      %2156 = vmatpush2.msra.mxu0 0.0
      %2157 = vmatprep.subr.mxu0 0.0
      %2158 = vmatpush2.msra.mxu0 0.0
      %2159 = vmatprep.subr.mxu0 0.0
      %2160 = vmatpush2.msra.mxu0 0.0
      %2161 = vmatprep.subr.mxu0 0.0
      %2162 = vmatpush2.msra.mxu0 0.0
      %2163 = vmatprep.subr.mxu0 0.0
      %2164 = vmatpush2.msra.mxu0 0.0
      %2165 = vmatprep.mubr.f32.mxu0 0.0
      %v2166 = vand.u32 %v1937, 4294901760
      %v2167 = vsub.f32 %v1937, %v2166
      %2168 = vmatmul.mubr.f32.gmra.mxu0 %v2167
      %v2169 = vpop.f32.mrf.mxu0
      %v2170 = vadd.f32 %v2094, %v2169
      %v2171 = vpop.f32.mrf.mxu0
      %2172 = vdwg.mxu0
      %2173 = vmatprep.subr.mxu0 0.0
      %2174 = vmatpush1.msra.mxu0 0.0
      %2175 = vmatprep.subr.mxu0 0.0
      %2176 = vmatpush1.msra.mxu0 0.0
      %2177 = vmatprep.subr.mxu0 0.0
      %2178 = vmatpush1.msra.mxu0 0.0
      %2179 = vmatprep.subr.mxu0 0.0
      %2180 = vmatpush1.msra.mxu0 0.0
      %2181 = vmatprep.subr.mxu0 0.0
      %2182 = vmatpush1.msra.mxu0 0.0
      %2183 = vmatprep.subr.mxu0 0.0
      %2184 = vmatpush1.msra.mxu0 0.0
      %2185 = vmatprep.subr.mxu0 0.0
      %2186 = vmatpush1.msra.mxu0 0.0
      %2187 = vmatprep.subr.mxu0 0.0
      %2188 = vmatpush1.msra.mxu0 0.0
      %2189 = vmatprep.subr.mxu0 0.0
      %2190 = vmatpush1.msra.mxu0 0.0
      %2191 = vmatprep.subr.mxu0 0.0
      %2192 = vmatpush1.msra.mxu0 0.0
      %2193 = vmatprep.subr.mxu0 0.0
      %2194 = vmatpush1.msra.mxu0 0.0
      %2195 = vmatprep.subr.mxu0 0.0
      %2196 = vmatpush1.msra.mxu0 0.0
      %2197 = vmatprep.subr.mxu0 0.0
      %2198 = vmatpush1.msra.mxu0 0.0
      %2199 = vmatprep.subr.mxu0 0.0
      %2200 = vmatpush1.msra.mxu0 0.0
      %2201 = vmatprep.subr.mxu0 0.0
      %v2202 = vand.u32 %v907, 4294901760
      %2203 = vmatpush1.msra.mxu0 %v2202
      %2204 = vmatprep.subr.mxu0 0.0
      %v2205 = vand.u32 %v906, 4294901760
      %2206 = vmatpush1.msra.mxu0 %v2205
      %2207 = vmatprep.subr.mxu0 0.0
      %2208 = vmatpush2.msra.mxu0 0.0
      %2209 = vmatprep.subr.mxu0 0.0
      %2210 = vmatpush2.msra.mxu0 0.0
      %2211 = vmatprep.subr.mxu0 0.0
      %2212 = vmatpush2.msra.mxu0 0.0
      %2213 = vmatprep.subr.mxu0 0.0
      %2214 = vmatpush2.msra.mxu0 0.0
      %2215 = vmatprep.subr.mxu0 0.0
      %2216 = vmatpush2.msra.mxu0 0.0
      %2217 = vmatprep.subr.mxu0 0.0
      %2218 = vmatpush2.msra.mxu0 0.0
      %2219 = vmatprep.subr.mxu0 0.0
      %2220 = vmatpush2.msra.mxu0 0.0
      %2221 = vmatprep.subr.mxu0 0.0
      %2222 = vmatpush2.msra.mxu0 0.0
      %2223 = vmatprep.subr.mxu0 0.0
      %2224 = vmatpush2.msra.mxu0 0.0
      %2225 = vmatprep.subr.mxu0 0.0
      %2226 = vmatpush2.msra.mxu0 0.0
      %2227 = vmatprep.subr.mxu0 0.0
      %2228 = vmatpush2.msra.mxu0 0.0
      %2229 = vmatprep.subr.mxu0 0.0
      %2230 = vmatpush2.msra.mxu0 0.0
      %2231 = vmatprep.subr.mxu0 0.0
      %2232 = vmatpush2.msra.mxu0 0.0
      %2233 = vmatprep.subr.mxu0 0.0
      %2234 = vmatpush2.msra.mxu0 0.0
      %2235 = vmatprep.subr.mxu0 0.0
      %2236 = vmatpush2.msra.mxu0 0.0
      %2237 = vmatprep.subr.mxu0 0.0
      %2238 = vmatpush2.msra.mxu0 0.0
      %2239 = vmatprep.mubr.f32.mxu0 0.0
      %v2240 = vand.u32 %v1937, 4294901760
      %v2241 = vsub.f32 %v1937, %v2240
      %v2242 = vand.u32 %v2241, 4294901760
      %2243 = vmatmul.mubr.f32.gmra.mxu0 %v2242
      %v2244 = vpop.f32.mrf.mxu0
      %v2245 = vadd.f32 %v2170, %v2244
      %v2246 = vpop.f32.mrf.mxu0
      %2247 = vdwg.mxu0
      %2248 = vmatprep.subr.mxu0 0.0
      %2249 = vmatpush1.msra.mxu0 0.0
      %2250 = vmatprep.subr.mxu0 0.0
      %2251 = vmatpush1.msra.mxu0 0.0
      %2252 = vmatprep.subr.mxu0 0.0
      %2253 = vmatpush1.msra.mxu0 0.0
      %2254 = vmatprep.subr.mxu0 0.0
      %2255 = vmatpush1.msra.mxu0 0.0
      %2256 = vmatprep.subr.mxu0 0.0
      %2257 = vmatpush1.msra.mxu0 0.0
      %2258 = vmatprep.subr.mxu0 0.0
      %2259 = vmatpush1.msra.mxu0 0.0
      %2260 = vmatprep.subr.mxu0 0.0
      %2261 = vmatpush1.msra.mxu0 0.0
      %2262 = vmatprep.subr.mxu0 0.0
      %2263 = vmatpush1.msra.mxu0 0.0
      %2264 = vmatprep.subr.mxu0 0.0
      %2265 = vmatpush1.msra.mxu0 0.0
      %2266 = vmatprep.subr.mxu0 0.0
      %2267 = vmatpush1.msra.mxu0 0.0
      %2268 = vmatprep.subr.mxu0 0.0
      %2269 = vmatpush1.msra.mxu0 0.0
      %2270 = vmatprep.subr.mxu0 0.0
      %2271 = vmatpush1.msra.mxu0 0.0
      %2272 = vmatprep.subr.mxu0 0.0
      %2273 = vmatpush1.msra.mxu0 0.0
      %2274 = vmatprep.subr.mxu0 0.0
      %2275 = vmatpush1.msra.mxu0 0.0
      %2276 = vmatprep.subr.mxu0 0.0
      %v2277 = vand.u32 %v907, 4294901760
      %v2278 = vsub.f32 %v907, %v2277
      %v2279 = vand.u32 %v2278, 4294901760
      %2280 = vmatpush1.msra.mxu0 %v2279
      %2281 = vmatprep.subr.mxu0 0.0
      %v2282 = vand.u32 %v906, 4294901760
      %v2283 = vsub.f32 %v906, %v2282
      %v2284 = vand.u32 %v2283, 4294901760
      %2285 = vmatpush1.msra.mxu0 %v2284
      %2286 = vmatprep.subr.mxu0 0.0
      %2287 = vmatpush2.msra.mxu0 0.0
      %2288 = vmatprep.subr.mxu0 0.0
      %2289 = vmatpush2.msra.mxu0 0.0
      %2290 = vmatprep.subr.mxu0 0.0
      %2291 = vmatpush2.msra.mxu0 0.0
      %2292 = vmatprep.subr.mxu0 0.0
      %2293 = vmatpush2.msra.mxu0 0.0
      %2294 = vmatprep.subr.mxu0 0.0
      %2295 = vmatpush2.msra.mxu0 0.0
      %2296 = vmatprep.subr.mxu0 0.0
      %2297 = vmatpush2.msra.mxu0 0.0
      %2298 = vmatprep.subr.mxu0 0.0
      %2299 = vmatpush2.msra.mxu0 0.0
      %2300 = vmatprep.subr.mxu0 0.0
      %2301 = vmatpush2.msra.mxu0 0.0
      %2302 = vmatprep.subr.mxu0 0.0
      %2303 = vmatpush2.msra.mxu0 0.0
      %2304 = vmatprep.subr.mxu0 0.0
      %2305 = vmatpush2.msra.mxu0 0.0
      %2306 = vmatprep.subr.mxu0 0.0
      %2307 = vmatpush2.msra.mxu0 0.0
      %2308 = vmatprep.subr.mxu0 0.0
      %2309 = vmatpush2.msra.mxu0 0.0
      %2310 = vmatprep.subr.mxu0 0.0
      %2311 = vmatpush2.msra.mxu0 0.0
      %2312 = vmatprep.subr.mxu0 0.0
      %2313 = vmatpush2.msra.mxu0 0.0
      %2314 = vmatprep.subr.mxu0 0.0
      %2315 = vmatpush2.msra.mxu0 0.0
      %2316 = vmatprep.subr.mxu0 0.0
      %2317 = vmatpush2.msra.mxu0 0.0
      %2318 = vmatprep.mubr.f32.mxu0 0.0
      %v2319 = vand.u32 %v1937, 4294901760
      %2320 = vmatmul.mubr.f32.gmra.mxu0 %v2319
      %v2321 = vpop.f32.mrf.mxu0
      %v2322 = vadd.f32 %v2245, %v2321
      %v2323 = vpop.f32.mrf.mxu0
      %2324 = vdwg.mxu0
      %2325 = vmatprep.subr.mxu0 0.0
      %2326 = vmatpush1.msra.mxu0 0.0
      %2327 = vmatprep.subr.mxu0 0.0
      %2328 = vmatpush1.msra.mxu0 0.0
      %2329 = vmatprep.subr.mxu0 0.0
      %2330 = vmatpush1.msra.mxu0 0.0
      %2331 = vmatprep.subr.mxu0 0.0
      %2332 = vmatpush1.msra.mxu0 0.0
      %2333 = vmatprep.subr.mxu0 0.0
      %2334 = vmatpush1.msra.mxu0 0.0
      %2335 = vmatprep.subr.mxu0 0.0
      %2336 = vmatpush1.msra.mxu0 0.0
      %2337 = vmatprep.subr.mxu0 0.0
      %2338 = vmatpush1.msra.mxu0 0.0
      %2339 = vmatprep.subr.mxu0 0.0
      %2340 = vmatpush1.msra.mxu0 0.0
      %2341 = vmatprep.subr.mxu0 0.0
      %2342 = vmatpush1.msra.mxu0 0.0
      %2343 = vmatprep.subr.mxu0 0.0
      %2344 = vmatpush1.msra.mxu0 0.0
      %2345 = vmatprep.subr.mxu0 0.0
      %2346 = vmatpush1.msra.mxu0 0.0
      %2347 = vmatprep.subr.mxu0 0.0
      %2348 = vmatpush1.msra.mxu0 0.0
      %2349 = vmatprep.subr.mxu0 0.0
      %2350 = vmatpush1.msra.mxu0 0.0
      %2351 = vmatprep.subr.mxu0 0.0
      %2352 = vmatpush1.msra.mxu0 0.0
      %2353 = vmatprep.subr.mxu0 0.0
      %v2354 = vand.u32 %v907, 4294901760
      %2355 = vmatpush1.msra.mxu0 %v2354
      %2356 = vmatprep.subr.mxu0 0.0
      %v2357 = vand.u32 %v906, 4294901760
      %2358 = vmatpush1.msra.mxu0 %v2357
      %2359 = vmatprep.subr.mxu0 0.0
      %2360 = vmatpush2.msra.mxu0 0.0
      %2361 = vmatprep.subr.mxu0 0.0
      %2362 = vmatpush2.msra.mxu0 0.0
      %2363 = vmatprep.subr.mxu0 0.0
      %2364 = vmatpush2.msra.mxu0 0.0
      %2365 = vmatprep.subr.mxu0 0.0
      %2366 = vmatpush2.msra.mxu0 0.0
      %2367 = vmatprep.subr.mxu0 0.0
      %2368 = vmatpush2.msra.mxu0 0.0
      %2369 = vmatprep.subr.mxu0 0.0
      %2370 = vmatpush2.msra.mxu0 0.0
      %2371 = vmatprep.subr.mxu0 0.0
      %2372 = vmatpush2.msra.mxu0 0.0
      %2373 = vmatprep.subr.mxu0 0.0
      %2374 = vmatpush2.msra.mxu0 0.0
      %2375 = vmatprep.subr.mxu0 0.0
      %2376 = vmatpush2.msra.mxu0 0.0
      %2377 = vmatprep.subr.mxu0 0.0
      %2378 = vmatpush2.msra.mxu0 0.0
      %2379 = vmatprep.subr.mxu0 0.0
      %2380 = vmatpush2.msra.mxu0 0.0
      %2381 = vmatprep.subr.mxu0 0.0
      %2382 = vmatpush2.msra.mxu0 0.0
      %2383 = vmatprep.subr.mxu0 0.0
      %2384 = vmatpush2.msra.mxu0 0.0
      %2385 = vmatprep.subr.mxu0 0.0
      %2386 = vmatpush2.msra.mxu0 0.0
      %2387 = vmatprep.subr.mxu0 0.0
      %2388 = vmatpush2.msra.mxu0 0.0
      %2389 = vmatprep.subr.mxu0 0.0
      %2390 = vmatpush2.msra.mxu0 0.0
      %2391 = vmatprep.mubr.f32.mxu0 0.0
      %v2392 = vand.u32 %v1937, 4294901760
      %2393 = vmatmul.mubr.f32.gmra.mxu0 %v2392
      %v2394 = vpop.f32.mrf.mxu0
      %v2395 = vadd.f32 %v2322, %v2394
      %v2396 = vpop.f32.mrf.mxu0
      %2397 = vdwg.mxu0
      %v2398 = vmul.f32 %v2395, %v1373
      %v2399 = vmul.f32 %v2398, 2.0
      %v2400 = vmul.f32 %v2399, %v2395
      %v2402 = vrot.slane %v2400, 7
      %v2404 = vsub.f32 %v2395, %v2402
      %v2405 = vmul.f32 %v2404, %v1373
      %v2406 = vmul.f32 %v2398, %v2398
      %v2408 = vrot.slane %v2406, 7
      %v2410 = vadd.f32 %v2405, %v2408
      %v2411 = vadd.f32 %v2410, 1e-05
      %v2412 = vrsqrt.pop %v2411
      %v2413 = vlaneseq
      %v2414 = vshrl.u32 %v2413, 7
      %v2415 = vsub.s32 0, %v2414
      %v2416 = vrot.slane %v2398, %v2415
      %v2417 = vsub.f32 %v1919, %v2416
      %v2418 = vlaneseq
      %v2419 = vshrl.u32 %v2418, 7
      %v2420 = vsub.s32 1, %v2419
      %v2421 = vrot.slane %v2412, %v2420
      %v2422 = vmul.f32 %v2417, %v2421
      %2424 = vset.pattern.permute.xlu0 0
      %2425 = vperm.xlu0 %2424, %v1910
      %v2426 = vpop.permute.xlu0 %2425
      %v2428 = vmul.f32 %v2422, %v2426
      %2430 = vset.pattern.permute.xlu0 0
      %2431 = vperm.xlu0 %2430, %v1912
      %v2432 = vpop.permute.xlu0 %2431
      %v2434 = vadd.f32 %v2428, %v2432
      %v2435 = vld [vmem:[%s5] sm:$0xff]
      %v2436 = vld [vmem:[%s6] sm:$0xff]
      %2438 = vrot.lane.b32.xlu0 %v2434, 2
      %v2439 = vpop.permute.xlu0 %2438
      %v2441 = vsel %vm1417, 0.0, %v2439
      %2443 = vrot.lane.b32.xlu0 %v2441, 127
      %v2444 = vpop.permute.xlu0 %2443
      %2446 = vrot.lane.b32.xlu0 %v2441, 126
      %v2447 = vpop.permute.xlu0 %2446
      %2450 = vset.pattern.permute.xlu0 0
      %2451 = vperm.xlu0 %2450, %v2436
      %v2452 = vpop.permute.xlu0 %2451
      %v2455 = vsel %vm1431, %v2435, 0
      %2457 = vmatprep.subr.mxu0 0.0
      %2458 = vmatpush1.msra.mxu0 0.0
      %2459 = vmatprep.subr.mxu0 0.0
      %2460 = vmatpush1.msra.mxu0 0.0
      %2461 = vmatprep.subr.mxu0 0.0
      %2462 = vmatpush1.msra.mxu0 0.0
      %2463 = vmatprep.subr.mxu0 0.0
      %2464 = vmatpush1.msra.mxu0 0.0
      %2465 = vmatprep.subr.mxu0 0.0
      %2466 = vmatpush1.msra.mxu0 0.0
      %2467 = vmatprep.subr.mxu0 0.0
      %2468 = vmatpush1.msra.mxu0 0.0
      %2469 = vmatprep.subr.mxu0 0.0
      %2470 = vmatpush1.msra.mxu0 0.0
      %2471 = vmatprep.subr.mxu0 0.0
      %2472 = vmatpush1.msra.mxu0 0.0
      %2473 = vmatprep.subr.mxu0 0.0
      %2474 = vmatpush1.msra.mxu0 0.0
      %2475 = vmatprep.subr.mxu0 0.0
      %2476 = vmatpush1.msra.mxu0 0.0
      %2477 = vmatprep.subr.mxu0 0.0
      %2478 = vmatpush1.msra.mxu0 0.0
      %2479 = vmatprep.subr.mxu0 0.0
      %2480 = vmatpush1.msra.mxu0 0.0
      %2481 = vmatprep.subr.mxu0 0.0
      %2482 = vmatpush1.msra.mxu0 0.0
      %2483 = vmatprep.subr.mxu0 0.0
      %v2484 = vand.u32 %v2447, 4294901760
      %2485 = vmatpush1.msra.mxu0 %v2484
      %2486 = vmatprep.subr.mxu0 0.0
      %v2487 = vand.u32 %v2444, 4294901760
      %2488 = vmatpush1.msra.mxu0 %v2487
      %2489 = vmatprep.subr.mxu0 0.0
      %v2490 = vand.u32 %v2441, 4294901760
      %2491 = vmatpush1.msra.mxu0 %v2490
      %2492 = vmatprep.subr.mxu0 0.0
      %2493 = vmatpush2.msra.mxu0 0.0
      %2494 = vmatprep.subr.mxu0 0.0
      %2495 = vmatpush2.msra.mxu0 0.0
      %2496 = vmatprep.subr.mxu0 0.0
      %2497 = vmatpush2.msra.mxu0 0.0
      %2498 = vmatprep.subr.mxu0 0.0
      %2499 = vmatpush2.msra.mxu0 0.0
      %2500 = vmatprep.subr.mxu0 0.0
      %2501 = vmatpush2.msra.mxu0 0.0
      %2502 = vmatprep.subr.mxu0 0.0
      %2503 = vmatpush2.msra.mxu0 0.0
      %2504 = vmatprep.subr.mxu0 0.0
      %2505 = vmatpush2.msra.mxu0 0.0
      %2506 = vmatprep.subr.mxu0 0.0
      %2507 = vmatpush2.msra.mxu0 0.0
      %2508 = vmatprep.subr.mxu0 0.0
      %2509 = vmatpush2.msra.mxu0 0.0
      %2510 = vmatprep.subr.mxu0 0.0
      %2511 = vmatpush2.msra.mxu0 0.0
      %2512 = vmatprep.subr.mxu0 0.0
      %2513 = vmatpush2.msra.mxu0 0.0
      %2514 = vmatprep.subr.mxu0 0.0
      %2515 = vmatpush2.msra.mxu0 0.0
      %2516 = vmatprep.subr.mxu0 0.0
      %2517 = vmatpush2.msra.mxu0 0.0
      %2518 = vmatprep.subr.mxu0 0.0
      %2519 = vmatpush2.msra.mxu0 0.0
      %2520 = vmatprep.subr.mxu0 0.0
      %2521 = vmatpush2.msra.mxu0 0.0
      %2522 = vmatprep.subr.mxu0 0.0
      %2523 = vmatpush2.msra.mxu0 0.0
      %2524 = vmatprep.mubr.f32.mxu0 0.0
      %v2525 = vand.u32 %v2455, 4294901760
      %v2526 = vsub.f32 %v2455, %v2525
      %v2527 = vand.u32 %v2526, 4294901760
      %v2528 = vsub.f32 %v2526, %v2527
      %v2529 = vand.u32 %v2528, 4294901760
      %2530 = vmatmul.mubr.f32.gmra.mxu0 %v2529
      %v2531 = vpop.f32.mrf.mxu0
      %v2532 = vadd.f32 %v2452, %v2531
      %v2533 = vpop.f32.mrf.mxu0
      %2534 = vdwg.mxu0
      %2535 = vmatprep.subr.mxu0 0.0
      %2536 = vmatpush1.msra.mxu0 0.0
      %2537 = vmatprep.subr.mxu0 0.0
      %2538 = vmatpush1.msra.mxu0 0.0
      %2539 = vmatprep.subr.mxu0 0.0
      %2540 = vmatpush1.msra.mxu0 0.0
      %2541 = vmatprep.subr.mxu0 0.0
      %2542 = vmatpush1.msra.mxu0 0.0
      %2543 = vmatprep.subr.mxu0 0.0
      %2544 = vmatpush1.msra.mxu0 0.0
      %2545 = vmatprep.subr.mxu0 0.0
      %2546 = vmatpush1.msra.mxu0 0.0
      %2547 = vmatprep.subr.mxu0 0.0
      %2548 = vmatpush1.msra.mxu0 0.0
      %2549 = vmatprep.subr.mxu0 0.0
      %2550 = vmatpush1.msra.mxu0 0.0
      %2551 = vmatprep.subr.mxu0 0.0
      %2552 = vmatpush1.msra.mxu0 0.0
      %2553 = vmatprep.subr.mxu0 0.0
      %2554 = vmatpush1.msra.mxu0 0.0
      %2555 = vmatprep.subr.mxu0 0.0
      %2556 = vmatpush1.msra.mxu0 0.0
      %2557 = vmatprep.subr.mxu0 0.0
      %2558 = vmatpush1.msra.mxu0 0.0
      %2559 = vmatprep.subr.mxu0 0.0
      %2560 = vmatpush1.msra.mxu0 0.0
      %2561 = vmatprep.subr.mxu0 0.0
      %v2562 = vand.u32 %v2447, 4294901760
      %v2563 = vsub.f32 %v2447, %v2562
      %v2564 = vand.u32 %v2563, 4294901760
      %v2565 = vsub.f32 %v2563, %v2564
      %v2566 = vand.u32 %v2565, 4294901760
      %2567 = vmatpush1.msra.mxu0 %v2566
      %2568 = vmatprep.subr.mxu0 0.0
      %v2569 = vand.u32 %v2444, 4294901760
      %v2570 = vsub.f32 %v2444, %v2569
      %v2571 = vand.u32 %v2570, 4294901760
      %v2572 = vsub.f32 %v2570, %v2571
      %v2573 = vand.u32 %v2572, 4294901760
      %2574 = vmatpush1.msra.mxu0 %v2573
      %2575 = vmatprep.subr.mxu0 0.0
      %v2576 = vand.u32 %v2441, 4294901760
      %v2577 = vsub.f32 %v2441, %v2576
      %v2578 = vand.u32 %v2577, 4294901760
      %v2579 = vsub.f32 %v2577, %v2578
      %v2580 = vand.u32 %v2579, 4294901760
      %2581 = vmatpush1.msra.mxu0 %v2580
      %2582 = vmatprep.subr.mxu0 0.0
      %2583 = vmatpush2.msra.mxu0 0.0
      %2584 = vmatprep.subr.mxu0 0.0
      %2585 = vmatpush2.msra.mxu0 0.0
      %2586 = vmatprep.subr.mxu0 0.0
      %2587 = vmatpush2.msra.mxu0 0.0
      %2588 = vmatprep.subr.mxu0 0.0
      %2589 = vmatpush2.msra.mxu0 0.0
      %2590 = vmatprep.subr.mxu0 0.0
      %2591 = vmatpush2.msra.mxu0 0.0
      %2592 = vmatprep.subr.mxu0 0.0
      %2593 = vmatpush2.msra.mxu0 0.0
      %2594 = vmatprep.subr.mxu0 0.0
      %2595 = vmatpush2.msra.mxu0 0.0
      %2596 = vmatprep.subr.mxu0 0.0
      %2597 = vmatpush2.msra.mxu0 0.0
      %2598 = vmatprep.subr.mxu0 0.0
      %2599 = vmatpush2.msra.mxu0 0.0
      %2600 = vmatprep.subr.mxu0 0.0
      %2601 = vmatpush2.msra.mxu0 0.0
      %2602 = vmatprep.subr.mxu0 0.0
      %2603 = vmatpush2.msra.mxu0 0.0
      %2604 = vmatprep.subr.mxu0 0.0
      %2605 = vmatpush2.msra.mxu0 0.0
      %2606 = vmatprep.subr.mxu0 0.0
      %2607 = vmatpush2.msra.mxu0 0.0
      %2608 = vmatprep.subr.mxu0 0.0
      %2609 = vmatpush2.msra.mxu0 0.0
      %2610 = vmatprep.subr.mxu0 0.0
      %2611 = vmatpush2.msra.mxu0 0.0
      %2612 = vmatprep.subr.mxu0 0.0
      %2613 = vmatpush2.msra.mxu0 0.0
      %2614 = vmatprep.mubr.f32.mxu0 0.0
      %v2615 = vand.u32 %v2455, 4294901760
      %2616 = vmatmul.mubr.f32.gmra.mxu0 %v2615
      %v2617 = vpop.f32.mrf.mxu0
      %v2618 = vadd.f32 %v2532, %v2617
      %v2619 = vpop.f32.mrf.mxu0
      %2620 = vdwg.mxu0
      %2621 = vmatprep.subr.mxu0 0.0
      %2622 = vmatpush1.msra.mxu0 0.0
      %2623 = vmatprep.subr.mxu0 0.0
      %2624 = vmatpush1.msra.mxu0 0.0
      %2625 = vmatprep.subr.mxu0 0.0
      %2626 = vmatpush1.msra.mxu0 0.0
      %2627 = vmatprep.subr.mxu0 0.0
      %2628 = vmatpush1.msra.mxu0 0.0
      %2629 = vmatprep.subr.mxu0 0.0
      %2630 = vmatpush1.msra.mxu0 0.0
      %2631 = vmatprep.subr.mxu0 0.0
      %2632 = vmatpush1.msra.mxu0 0.0
      %2633 = vmatprep.subr.mxu0 0.0
      %2634 = vmatpush1.msra.mxu0 0.0
      %2635 = vmatprep.subr.mxu0 0.0
      %2636 = vmatpush1.msra.mxu0 0.0
      %2637 = vmatprep.subr.mxu0 0.0
      %2638 = vmatpush1.msra.mxu0 0.0
      %2639 = vmatprep.subr.mxu0 0.0
      %2640 = vmatpush1.msra.mxu0 0.0
      %2641 = vmatprep.subr.mxu0 0.0
      %2642 = vmatpush1.msra.mxu0 0.0
      %2643 = vmatprep.subr.mxu0 0.0
      %2644 = vmatpush1.msra.mxu0 0.0
      %2645 = vmatprep.subr.mxu0 0.0
      %2646 = vmatpush1.msra.mxu0 0.0
      %2647 = vmatprep.subr.mxu0 0.0
      %v2648 = vand.u32 %v2447, 4294901760
      %v2649 = vsub.f32 %v2447, %v2648
      %2650 = vmatpush1.msra.mxu0 %v2649
      %2651 = vmatprep.subr.mxu0 0.0
      %v2652 = vand.u32 %v2444, 4294901760
      %v2653 = vsub.f32 %v2444, %v2652
      %2654 = vmatpush1.msra.mxu0 %v2653
      %2655 = vmatprep.subr.mxu0 0.0
      %v2656 = vand.u32 %v2441, 4294901760
      %v2657 = vsub.f32 %v2441, %v2656
      %2658 = vmatpush1.msra.mxu0 %v2657
      %2659 = vmatprep.subr.mxu0 0.0
      %2660 = vmatpush2.msra.mxu0 0.0
      %2661 = vmatprep.subr.mxu0 0.0
      %2662 = vmatpush2.msra.mxu0 0.0
      %2663 = vmatprep.subr.mxu0 0.0
      %2664 = vmatpush2.msra.mxu0 0.0
      %2665 = vmatprep.subr.mxu0 0.0
      %2666 = vmatpush2.msra.mxu0 0.0
      %2667 = vmatprep.subr.mxu0 0.0
      %2668 = vmatpush2.msra.mxu0 0.0
      %2669 = vmatprep.subr.mxu0 0.0
      %2670 = vmatpush2.msra.mxu0 0.0
      %2671 = vmatprep.subr.mxu0 0.0
      %2672 = vmatpush2.msra.mxu0 0.0
      %2673 = vmatprep.subr.mxu0 0.0
      %2674 = vmatpush2.msra.mxu0 0.0
      %2675 = vmatprep.subr.mxu0 0.0
      %2676 = vmatpush2.msra.mxu0 0.0
      %2677 = vmatprep.subr.mxu0 0.0
      %2678 = vmatpush2.msra.mxu0 0.0
      %2679 = vmatprep.subr.mxu0 0.0
      %2680 = vmatpush2.msra.mxu0 0.0
      %2681 = vmatprep.subr.mxu0 0.0
      %2682 = vmatpush2.msra.mxu0 0.0
      %2683 = vmatprep.subr.mxu0 0.0
      %2684 = vmatpush2.msra.mxu0 0.0
      %2685 = vmatprep.subr.mxu0 0.0
      %2686 = vmatpush2.msra.mxu0 0.0
      %2687 = vmatprep.subr.mxu0 0.0
      %2688 = vmatpush2.msra.mxu0 0.0
      %2689 = vmatprep.subr.mxu0 0.0
      %2690 = vmatpush2.msra.mxu0 0.0
      %2691 = vmatprep.mubr.f32.mxu0 0.0
      %v2692 = vand.u32 %v2455, 4294901760
      %v2693 = vsub.f32 %v2455, %v2692
      %2694 = vmatmul.mubr.f32.gmra.mxu0 %v2693
      %v2695 = vpop.f32.mrf.mxu0
      %v2696 = vadd.f32 %v2618, %v2695
      %v2697 = vpop.f32.mrf.mxu0
      %2698 = vdwg.mxu0
      %2699 = vmatprep.subr.mxu0 0.0
      %2700 = vmatpush1.msra.mxu0 0.0
      %2701 = vmatprep.subr.mxu0 0.0
      %2702 = vmatpush1.msra.mxu0 0.0
      %2703 = vmatprep.subr.mxu0 0.0
      %2704 = vmatpush1.msra.mxu0 0.0
      %2705 = vmatprep.subr.mxu0 0.0
      %2706 = vmatpush1.msra.mxu0 0.0
      %2707 = vmatprep.subr.mxu0 0.0
      %2708 = vmatpush1.msra.mxu0 0.0
      %2709 = vmatprep.subr.mxu0 0.0
      %2710 = vmatpush1.msra.mxu0 0.0
      %2711 = vmatprep.subr.mxu0 0.0
      %2712 = vmatpush1.msra.mxu0 0.0
      %2713 = vmatprep.subr.mxu0 0.0
      %2714 = vmatpush1.msra.mxu0 0.0
      %2715 = vmatprep.subr.mxu0 0.0
      %2716 = vmatpush1.msra.mxu0 0.0
      %2717 = vmatprep.subr.mxu0 0.0
      %2718 = vmatpush1.msra.mxu0 0.0
      %2719 = vmatprep.subr.mxu0 0.0
      %2720 = vmatpush1.msra.mxu0 0.0
      %2721 = vmatprep.subr.mxu0 0.0
      %2722 = vmatpush1.msra.mxu0 0.0
      %2723 = vmatprep.subr.mxu0 0.0
      %2724 = vmatpush1.msra.mxu0 0.0
      %2725 = vmatprep.subr.mxu0 0.0
      %v2726 = vand.u32 %v2447, 4294901760
      %2727 = vmatpush1.msra.mxu0 %v2726
      %2728 = vmatprep.subr.mxu0 0.0
      %v2729 = vand.u32 %v2444, 4294901760
      %2730 = vmatpush1.msra.mxu0 %v2729
      %2731 = vmatprep.subr.mxu0 0.0
      %v2732 = vand.u32 %v2441, 4294901760
      %2733 = vmatpush1.msra.mxu0 %v2732
      %2734 = vmatprep.subr.mxu0 0.0
      %2735 = vmatpush2.msra.mxu0 0.0
      %2736 = vmatprep.subr.mxu0 0.0
      %2737 = vmatpush2.msra.mxu0 0.0
      %2738 = vmatprep.subr.mxu0 0.0
      %2739 = vmatpush2.msra.mxu0 0.0
      %2740 = vmatprep.subr.mxu0 0.0
      %2741 = vmatpush2.msra.mxu0 0.0
      %2742 = vmatprep.subr.mxu0 0.0
      %2743 = vmatpush2.msra.mxu0 0.0
      %2744 = vmatprep.subr.mxu0 0.0
      %2745 = vmatpush2.msra.mxu0 0.0
      %2746 = vmatprep.subr.mxu0 0.0
      %2747 = vmatpush2.msra.mxu0 0.0
      %2748 = vmatprep.subr.mxu0 0.0
      %2749 = vmatpush2.msra.mxu0 0.0
      %2750 = vmatprep.subr.mxu0 0.0
      %2751 = vmatpush2.msra.mxu0 0.0
      %2752 = vmatprep.subr.mxu0 0.0
      %2753 = vmatpush2.msra.mxu0 0.0
      %2754 = vmatprep.subr.mxu0 0.0
      %2755 = vmatpush2.msra.mxu0 0.0
      %2756 = vmatprep.subr.mxu0 0.0
      %2757 = vmatpush2.msra.mxu0 0.0
      %2758 = vmatprep.subr.mxu0 0.0
      %2759 = vmatpush2.msra.mxu0 0.0
      %2760 = vmatprep.subr.mxu0 0.0
      %2761 = vmatpush2.msra.mxu0 0.0
      %2762 = vmatprep.subr.mxu0 0.0
      %2763 = vmatpush2.msra.mxu0 0.0
      %2764 = vmatprep.subr.mxu0 0.0
      %2765 = vmatpush2.msra.mxu0 0.0
      %2766 = vmatprep.mubr.f32.mxu0 0.0
      %v2767 = vand.u32 %v2455, 4294901760
      %v2768 = vsub.f32 %v2455, %v2767
      %v2769 = vand.u32 %v2768, 4294901760
      %2770 = vmatmul.mubr.f32.gmra.mxu0 %v2769
      %v2771 = vpop.f32.mrf.mxu0
      %v2772 = vadd.f32 %v2696, %v2771
      %v2773 = vpop.f32.mrf.mxu0
      %2774 = vdwg.mxu0
      %2775 = vmatprep.subr.mxu0 0.0
      %2776 = vmatpush1.msra.mxu0 0.0
      %2777 = vmatprep.subr.mxu0 0.0
      %2778 = vmatpush1.msra.mxu0 0.0
      %2779 = vmatprep.subr.mxu0 0.0
      %2780 = vmatpush1.msra.mxu0 0.0
      %2781 = vmatprep.subr.mxu0 0.0
      %2782 = vmatpush1.msra.mxu0 0.0
      %2783 = vmatprep.subr.mxu0 0.0
      %2784 = vmatpush1.msra.mxu0 0.0
      %2785 = vmatprep.subr.mxu0 0.0
      %2786 = vmatpush1.msra.mxu0 0.0
      %2787 = vmatprep.subr.mxu0 0.0
      %2788 = vmatpush1.msra.mxu0 0.0
      %2789 = vmatprep.subr.mxu0 0.0
      %2790 = vmatpush1.msra.mxu0 0.0
      %2791 = vmatprep.subr.mxu0 0.0
      %2792 = vmatpush1.msra.mxu0 0.0
      %2793 = vmatprep.subr.mxu0 0.0
      %2794 = vmatpush1.msra.mxu0 0.0
      %2795 = vmatprep.subr.mxu0 0.0
      %2796 = vmatpush1.msra.mxu0 0.0
      %2797 = vmatprep.subr.mxu0 0.0
      %2798 = vmatpush1.msra.mxu0 0.0
      %2799 = vmatprep.subr.mxu0 0.0
      %2800 = vmatpush1.msra.mxu0 0.0
      %2801 = vmatprep.subr.mxu0 0.0
      %v2802 = vand.u32 %v2447, 4294901760
      %v2803 = vsub.f32 %v2447, %v2802
      %v2804 = vand.u32 %v2803, 4294901760
      %2805 = vmatpush1.msra.mxu0 %v2804
      %2806 = vmatprep.subr.mxu0 0.0
      %v2807 = vand.u32 %v2444, 4294901760
      %v2808 = vsub.f32 %v2444, %v2807
      %v2809 = vand.u32 %v2808, 4294901760
      %2810 = vmatpush1.msra.mxu0 %v2809
      %2811 = vmatprep.subr.mxu0 0.0
      %v2812 = vand.u32 %v2441, 4294901760
      %v2813 = vsub.f32 %v2441, %v2812
      %v2814 = vand.u32 %v2813, 4294901760
      %2815 = vmatpush1.msra.mxu0 %v2814
      %2816 = vmatprep.subr.mxu0 0.0
      %2817 = vmatpush2.msra.mxu0 0.0
      %2818 = vmatprep.subr.mxu0 0.0
      %2819 = vmatpush2.msra.mxu0 0.0
      %2820 = vmatprep.subr.mxu0 0.0
      %2821 = vmatpush2.msra.mxu0 0.0
      %2822 = vmatprep.subr.mxu0 0.0
      %2823 = vmatpush2.msra.mxu0 0.0
      %2824 = vmatprep.subr.mxu0 0.0
      %2825 = vmatpush2.msra.mxu0 0.0
      %2826 = vmatprep.subr.mxu0 0.0
      %2827 = vmatpush2.msra.mxu0 0.0
      %2828 = vmatprep.subr.mxu0 0.0
      %2829 = vmatpush2.msra.mxu0 0.0
      %2830 = vmatprep.subr.mxu0 0.0
      %2831 = vmatpush2.msra.mxu0 0.0
      %2832 = vmatprep.subr.mxu0 0.0
      %2833 = vmatpush2.msra.mxu0 0.0
      %2834 = vmatprep.subr.mxu0 0.0
      %2835 = vmatpush2.msra.mxu0 0.0
      %2836 = vmatprep.subr.mxu0 0.0
      %2837 = vmatpush2.msra.mxu0 0.0
      %2838 = vmatprep.subr.mxu0 0.0
      %2839 = vmatpush2.msra.mxu0 0.0
      %2840 = vmatprep.subr.mxu0 0.0
      %2841 = vmatpush2.msra.mxu0 0.0
      %2842 = vmatprep.subr.mxu0 0.0
      %2843 = vmatpush2.msra.mxu0 0.0
      %2844 = vmatprep.subr.mxu0 0.0
      %2845 = vmatpush2.msra.mxu0 0.0
      %2846 = vmatprep.subr.mxu0 0.0
      %2847 = vmatpush2.msra.mxu0 0.0
      %2848 = vmatprep.mubr.f32.mxu0 0.0
      %v2849 = vand.u32 %v2455, 4294901760
      %2850 = vmatmul.mubr.f32.gmra.mxu0 %v2849
      %v2851 = vpop.f32.mrf.mxu0
      %v2852 = vadd.f32 %v2772, %v2851
      %v2853 = vpop.f32.mrf.mxu0
      %2854 = vdwg.mxu0
      %2855 = vmatprep.subr.mxu0 0.0
      %2856 = vmatpush1.msra.mxu0 0.0
      %2857 = vmatprep.subr.mxu0 0.0
      %2858 = vmatpush1.msra.mxu0 0.0
      %2859 = vmatprep.subr.mxu0 0.0
      %2860 = vmatpush1.msra.mxu0 0.0
      %2861 = vmatprep.subr.mxu0 0.0
      %2862 = vmatpush1.msra.mxu0 0.0
      %2863 = vmatprep.subr.mxu0 0.0
      %2864 = vmatpush1.msra.mxu0 0.0
      %2865 = vmatprep.subr.mxu0 0.0
      %2866 = vmatpush1.msra.mxu0 0.0
      %2867 = vmatprep.subr.mxu0 0.0
      %2868 = vmatpush1.msra.mxu0 0.0
      %2869 = vmatprep.subr.mxu0 0.0
      %2870 = vmatpush1.msra.mxu0 0.0
      %2871 = vmatprep.subr.mxu0 0.0
      %2872 = vmatpush1.msra.mxu0 0.0
      %2873 = vmatprep.subr.mxu0 0.0
      %2874 = vmatpush1.msra.mxu0 0.0
      %2875 = vmatprep.subr.mxu0 0.0
      %2876 = vmatpush1.msra.mxu0 0.0
      %2877 = vmatprep.subr.mxu0 0.0
      %2878 = vmatpush1.msra.mxu0 0.0
      %2879 = vmatprep.subr.mxu0 0.0
      %2880 = vmatpush1.msra.mxu0 0.0
      %2881 = vmatprep.subr.mxu0 0.0
      %v2882 = vand.u32 %v2447, 4294901760
      %2883 = vmatpush1.msra.mxu0 %v2882
      %2884 = vmatprep.subr.mxu0 0.0
      %v2885 = vand.u32 %v2444, 4294901760
      %2886 = vmatpush1.msra.mxu0 %v2885
      %2887 = vmatprep.subr.mxu0 0.0
      %v2888 = vand.u32 %v2441, 4294901760
      %2889 = vmatpush1.msra.mxu0 %v2888
      %2890 = vmatprep.subr.mxu0 0.0
      %2891 = vmatpush2.msra.mxu0 0.0
      %2892 = vmatprep.subr.mxu0 0.0
      %2893 = vmatpush2.msra.mxu0 0.0
      %2894 = vmatprep.subr.mxu0 0.0
      %2895 = vmatpush2.msra.mxu0 0.0
      %2896 = vmatprep.subr.mxu0 0.0
      %2897 = vmatpush2.msra.mxu0 0.0
      %2898 = vmatprep.subr.mxu0 0.0
      %2899 = vmatpush2.msra.mxu0 0.0
      %2900 = vmatprep.subr.mxu0 0.0
      %2901 = vmatpush2.msra.mxu0 0.0
      %2902 = vmatprep.subr.mxu0 0.0
      %2903 = vmatpush2.msra.mxu0 0.0
      %2904 = vmatprep.subr.mxu0 0.0
      %2905 = vmatpush2.msra.mxu0 0.0
      %2906 = vmatprep.subr.mxu0 0.0
      %2907 = vmatpush2.msra.mxu0 0.0
      %2908 = vmatprep.subr.mxu0 0.0
      %2909 = vmatpush2.msra.mxu0 0.0
      %2910 = vmatprep.subr.mxu0 0.0
      %2911 = vmatpush2.msra.mxu0 0.0
      %2912 = vmatprep.subr.mxu0 0.0
      %2913 = vmatpush2.msra.mxu0 0.0
      %2914 = vmatprep.subr.mxu0 0.0
      %2915 = vmatpush2.msra.mxu0 0.0
      %2916 = vmatprep.subr.mxu0 0.0
      %2917 = vmatpush2.msra.mxu0 0.0
      %2918 = vmatprep.subr.mxu0 0.0
      %2919 = vmatpush2.msra.mxu0 0.0
      %2920 = vmatprep.subr.mxu0 0.0
      %2921 = vmatpush2.msra.mxu0 0.0
      %2922 = vmatprep.mubr.f32.mxu0 0.0
      %v2923 = vand.u32 %v2455, 4294901760
      %2924 = vmatmul.mubr.f32.gmra.mxu0 %v2923
      %v2925 = vpop.f32.mrf.mxu0
      %v2926 = vadd.f32 %v2852, %v2925
      %v2927 = vpop.f32.mrf.mxu0
      %2928 = vdwg.mxu0
      %v2929 = vxor.u32 %v2926, 2147483648
      %v2930 = vmul.f32 %v2929, 1.442695
      %v2931 = vpow.pop %v2930
      %v2932 = vadd.f32 %v2931, 1.0
      %v2933 = vrcp.pop %v2932
      %v2934 = vmul.f32 1.0, %v2933
      %v2935 = vmul.f32 %v1904, %v2934
      %s2936 = scalar_lea.vmem %s9, 16
      %v2937 = vld [vmem:[%s2936] sm:$0xff]
      %s2938 = scalar_lea.vmem %s10, 16
      %v2939 = vld [vmem:[%s2938] sm:$0xff]
      %s2940 = scalar_lea.vmem %s11, 16
      %v2941 = vld [vmem:[%s2940] sm:$0xff]
      %v2942 = vmax.f32 %v2935, 0.0
      %v2943 = vmin.f32 %v2935, 0.0
      %2945 = vset.pattern.permute.xlu0 0
      %2946 = vperm.xlu0 %2945, %v2937
      %v2947 = vpop.permute.xlu0 %2946
      %v2949 = vmul.f32 %v2947, %v2943
      %v2950 = vadd.f32 %v2942, %v2949
      %v2951 = vsel %vm879, %v2950, 0.0
      %v2952 = vrot.slane %v2951, 4
      %v2953 = vadd.f32 %v2951, %v2952
      %v2954 = vrot.slane %v2953, 2
      %v2955 = vadd.f32 %v2953, %v2954
      %v2956 = vrot.slane %v2955, 1
      %v2957 = vadd.f32 %v2955, %v2956
      %v2958 = vmul.f32 %v2950, %v2950
      %v2959 = vsel %vm879, %v2958, 0.0
      %v2960 = vrot.slane %v2959, 4
      %v2961 = vadd.f32 %v2959, %v2960
      %v2962 = vrot.slane %v2961, 2
      %v2963 = vadd.f32 %v2961, %v2962
      %v2964 = vrot.slane %v2963, 1
      %v2965 = vadd.f32 %v2963, %v2964
      %v2966 = vsel %vm895, %v2957, %v2965
      %v2968 = vsel %vm879, %v2966, 0
      %2970 = vmatprep.subr.mxu0 0.0
      %2971 = vmatpush1.msra.mxu0 0.0
      %2972 = vmatprep.subr.mxu0 0.0
      %2973 = vmatpush1.msra.mxu0 0.0
      %2974 = vmatprep.subr.mxu0 0.0
      %2975 = vmatpush1.msra.mxu0 0.0
      %2976 = vmatprep.subr.mxu0 0.0
      %2977 = vmatpush1.msra.mxu0 0.0
      %2978 = vmatprep.subr.mxu0 0.0
      %2979 = vmatpush1.msra.mxu0 0.0
      %2980 = vmatprep.subr.mxu0 0.0
      %2981 = vmatpush1.msra.mxu0 0.0
      %2982 = vmatprep.subr.mxu0 0.0
      %2983 = vmatpush1.msra.mxu0 0.0
      %2984 = vmatprep.subr.mxu0 0.0
      %2985 = vmatpush1.msra.mxu0 0.0
      %2986 = vmatprep.subr.mxu0 0.0
      %2987 = vmatpush1.msra.mxu0 0.0
      %2988 = vmatprep.subr.mxu0 0.0
      %2989 = vmatpush1.msra.mxu0 0.0
      %2990 = vmatprep.subr.mxu0 0.0
      %2991 = vmatpush1.msra.mxu0 0.0
      %2992 = vmatprep.subr.mxu0 0.0
      %2993 = vmatpush1.msra.mxu0 0.0
      %2994 = vmatprep.subr.mxu0 0.0
      %2995 = vmatpush1.msra.mxu0 0.0
      %2996 = vmatprep.subr.mxu0 0.0
      %2997 = vmatpush1.msra.mxu0 0.0
      %2998 = vmatprep.subr.mxu0 0.0
      %v2999 = vand.u32 %v907, 4294901760
      %3000 = vmatpush1.msra.mxu0 %v2999
      %3001 = vmatprep.subr.mxu0 0.0
      %v3002 = vand.u32 %v906, 4294901760
      %3003 = vmatpush1.msra.mxu0 %v3002
      %3004 = vmatprep.subr.mxu0 0.0
      %3005 = vmatpush2.msra.mxu0 0.0
      %3006 = vmatprep.subr.mxu0 0.0
      %3007 = vmatpush2.msra.mxu0 0.0
      %3008 = vmatprep.subr.mxu0 0.0
      %3009 = vmatpush2.msra.mxu0 0.0
      %3010 = vmatprep.subr.mxu0 0.0
      %3011 = vmatpush2.msra.mxu0 0.0
      %3012 = vmatprep.subr.mxu0 0.0
      %3013 = vmatpush2.msra.mxu0 0.0
      %3014 = vmatprep.subr.mxu0 0.0
      %3015 = vmatpush2.msra.mxu0 0.0
      %3016 = vmatprep.subr.mxu0 0.0
      %3017 = vmatpush2.msra.mxu0 0.0
      %3018 = vmatprep.subr.mxu0 0.0
      %3019 = vmatpush2.msra.mxu0 0.0
      %3020 = vmatprep.subr.mxu0 0.0
      %3021 = vmatpush2.msra.mxu0 0.0
      %3022 = vmatprep.subr.mxu0 0.0
      %3023 = vmatpush2.msra.mxu0 0.0
      %3024 = vmatprep.subr.mxu0 0.0
      %3025 = vmatpush2.msra.mxu0 0.0
      %3026 = vmatprep.subr.mxu0 0.0
      %3027 = vmatpush2.msra.mxu0 0.0
      %3028 = vmatprep.subr.mxu0 0.0
      %3029 = vmatpush2.msra.mxu0 0.0
      %3030 = vmatprep.subr.mxu0 0.0
      %3031 = vmatpush2.msra.mxu0 0.0
      %3032 = vmatprep.subr.mxu0 0.0
      %3033 = vmatpush2.msra.mxu0 0.0
      %3034 = vmatprep.subr.mxu0 0.0
      %3035 = vmatpush2.msra.mxu0 0.0
      %3036 = vmatprep.mubr.f32.mxu0 0.0
      %v3037 = vand.u32 %v2968, 4294901760
      %v3038 = vsub.f32 %v2968, %v3037
      %v3039 = vand.u32 %v3038, 4294901760
      %v3040 = vsub.f32 %v3038, %v3039
      %v3041 = vand.u32 %v3040, 4294901760
      %3042 = vmatmul.mubr.f32.gmra.mxu0 %v3041
      %v3043 = vpop.f32.mrf.mxu0
      %v3044 = vadd.f32 0.0, %v3043
      %v3045 = vpop.f32.mrf.mxu0
      %3046 = vdwg.mxu0
      %3047 = vmatprep.subr.mxu0 0.0
      %3048 = vmatpush1.msra.mxu0 0.0
      %3049 = vmatprep.subr.mxu0 0.0
      %3050 = vmatpush1.msra.mxu0 0.0
      %3051 = vmatprep.subr.mxu0 0.0
      %3052 = vmatpush1.msra.mxu0 0.0
      %3053 = vmatprep.subr.mxu0 0.0
      %3054 = vmatpush1.msra.mxu0 0.0
      %3055 = vmatprep.subr.mxu0 0.0
      %3056 = vmatpush1.msra.mxu0 0.0
      %3057 = vmatprep.subr.mxu0 0.0
      %3058 = vmatpush1.msra.mxu0 0.0
      %3059 = vmatprep.subr.mxu0 0.0
      %3060 = vmatpush1.msra.mxu0 0.0
      %3061 = vmatprep.subr.mxu0 0.0
      %3062 = vmatpush1.msra.mxu0 0.0
      %3063 = vmatprep.subr.mxu0 0.0
      %3064 = vmatpush1.msra.mxu0 0.0
      %3065 = vmatprep.subr.mxu0 0.0
      %3066 = vmatpush1.msra.mxu0 0.0
      %3067 = vmatprep.subr.mxu0 0.0
      %3068 = vmatpush1.msra.mxu0 0.0
      %3069 = vmatprep.subr.mxu0 0.0
      %3070 = vmatpush1.msra.mxu0 0.0
      %3071 = vmatprep.subr.mxu0 0.0
      %3072 = vmatpush1.msra.mxu0 0.0
      %3073 = vmatprep.subr.mxu0 0.0
      %3074 = vmatpush1.msra.mxu0 0.0
      %3075 = vmatprep.subr.mxu0 0.0
      %v3076 = vand.u32 %v907, 4294901760
      %v3077 = vsub.f32 %v907, %v3076
      %v3078 = vand.u32 %v3077, 4294901760
      %v3079 = vsub.f32 %v3077, %v3078
      %v3080 = vand.u32 %v3079, 4294901760
      %3081 = vmatpush1.msra.mxu0 %v3080
      %3082 = vmatprep.subr.mxu0 0.0
      %v3083 = vand.u32 %v906, 4294901760
      %v3084 = vsub.f32 %v906, %v3083
      %v3085 = vand.u32 %v3084, 4294901760
      %v3086 = vsub.f32 %v3084, %v3085
      %v3087 = vand.u32 %v3086, 4294901760
      %3088 = vmatpush1.msra.mxu0 %v3087
      %3089 = vmatprep.subr.mxu0 0.0
      %3090 = vmatpush2.msra.mxu0 0.0
      %3091 = vmatprep.subr.mxu0 0.0
      %3092 = vmatpush2.msra.mxu0 0.0
      %3093 = vmatprep.subr.mxu0 0.0
      %3094 = vmatpush2.msra.mxu0 0.0
      %3095 = vmatprep.subr.mxu0 0.0
      %3096 = vmatpush2.msra.mxu0 0.0
      %3097 = vmatprep.subr.mxu0 0.0
      %3098 = vmatpush2.msra.mxu0 0.0
      %3099 = vmatprep.subr.mxu0 0.0
      %3100 = vmatpush2.msra.mxu0 0.0
      %3101 = vmatprep.subr.mxu0 0.0
      %3102 = vmatpush2.msra.mxu0 0.0
      %3103 = vmatprep.subr.mxu0 0.0
      %3104 = vmatpush2.msra.mxu0 0.0
      %3105 = vmatprep.subr.mxu0 0.0
      %3106 = vmatpush2.msra.mxu0 0.0
      %3107 = vmatprep.subr.mxu0 0.0
      %3108 = vmatpush2.msra.mxu0 0.0
      %3109 = vmatprep.subr.mxu0 0.0
      %3110 = vmatpush2.msra.mxu0 0.0
      %3111 = vmatprep.subr.mxu0 0.0
      %3112 = vmatpush2.msra.mxu0 0.0
      %3113 = vmatprep.subr.mxu0 0.0
      %3114 = vmatpush2.msra.mxu0 0.0
      %3115 = vmatprep.subr.mxu0 0.0
      %3116 = vmatpush2.msra.mxu0 0.0
      %3117 = vmatprep.subr.mxu0 0.0
      %3118 = vmatpush2.msra.mxu0 0.0
      %3119 = vmatprep.subr.mxu0 0.0
      %3120 = vmatpush2.msra.mxu0 0.0
      %3121 = vmatprep.mubr.f32.mxu0 0.0
      %v3122 = vand.u32 %v2968, 4294901760
      %3123 = vmatmul.mubr.f32.gmra.mxu0 %v3122
      %v3124 = vpop.f32.mrf.mxu0
      %v3125 = vadd.f32 %v3044, %v3124
      %v3126 = vpop.f32.mrf.mxu0
      %3127 = vdwg.mxu0
      %3128 = vmatprep.subr.mxu0 0.0
      %3129 = vmatpush1.msra.mxu0 0.0
      %3130 = vmatprep.subr.mxu0 0.0
      %3131 = vmatpush1.msra.mxu0 0.0
      %3132 = vmatprep.subr.mxu0 0.0
      %3133 = vmatpush1.msra.mxu0 0.0
      %3134 = vmatprep.subr.mxu0 0.0
      %3135 = vmatpush1.msra.mxu0 0.0
      %3136 = vmatprep.subr.mxu0 0.0
      %3137 = vmatpush1.msra.mxu0 0.0
      %3138 = vmatprep.subr.mxu0 0.0
      %3139 = vmatpush1.msra.mxu0 0.0
      %3140 = vmatprep.subr.mxu0 0.0
      %3141 = vmatpush1.msra.mxu0 0.0
      %3142 = vmatprep.subr.mxu0 0.0
      %3143 = vmatpush1.msra.mxu0 0.0
      %3144 = vmatprep.subr.mxu0 0.0
      %3145 = vmatpush1.msra.mxu0 0.0
      %3146 = vmatprep.subr.mxu0 0.0
      %3147 = vmatpush1.msra.mxu0 0.0
      %3148 = vmatprep.subr.mxu0 0.0
      %3149 = vmatpush1.msra.mxu0 0.0
      %3150 = vmatprep.subr.mxu0 0.0
      %3151 = vmatpush1.msra.mxu0 0.0
      %3152 = vmatprep.subr.mxu0 0.0
      %3153 = vmatpush1.msra.mxu0 0.0
      %3154 = vmatprep.subr.mxu0 0.0
      %3155 = vmatpush1.msra.mxu0 0.0
      %3156 = vmatprep.subr.mxu0 0.0
      %v3157 = vand.u32 %v907, 4294901760
      %v3158 = vsub.f32 %v907, %v3157
      %3159 = vmatpush1.msra.mxu0 %v3158
      %3160 = vmatprep.subr.mxu0 0.0
      %v3161 = vand.u32 %v906, 4294901760
      %v3162 = vsub.f32 %v906, %v3161
      %3163 = vmatpush1.msra.mxu0 %v3162
      %3164 = vmatprep.subr.mxu0 0.0
      %3165 = vmatpush2.msra.mxu0 0.0
      %3166 = vmatprep.subr.mxu0 0.0
      %3167 = vmatpush2.msra.mxu0 0.0
      %3168 = vmatprep.subr.mxu0 0.0
      %3169 = vmatpush2.msra.mxu0 0.0
      %3170 = vmatprep.subr.mxu0 0.0
      %3171 = vmatpush2.msra.mxu0 0.0
      %3172 = vmatprep.subr.mxu0 0.0
      %3173 = vmatpush2.msra.mxu0 0.0
      %3174 = vmatprep.subr.mxu0 0.0
      %3175 = vmatpush2.msra.mxu0 0.0
      %3176 = vmatprep.subr.mxu0 0.0
      %3177 = vmatpush2.msra.mxu0 0.0
      %3178 = vmatprep.subr.mxu0 0.0
      %3179 = vmatpush2.msra.mxu0 0.0
      %3180 = vmatprep.subr.mxu0 0.0
      %3181 = vmatpush2.msra.mxu0 0.0
      %3182 = vmatprep.subr.mxu0 0.0
      %3183 = vmatpush2.msra.mxu0 0.0
      %3184 = vmatprep.subr.mxu0 0.0
      %3185 = vmatpush2.msra.mxu0 0.0
      %3186 = vmatprep.subr.mxu0 0.0
      %3187 = vmatpush2.msra.mxu0 0.0
      %3188 = vmatprep.subr.mxu0 0.0
      %3189 = vmatpush2.msra.mxu0 0.0
      %3190 = vmatprep.subr.mxu0 0.0
      %3191 = vmatpush2.msra.mxu0 0.0
      %3192 = vmatprep.subr.mxu0 0.0
      %3193 = vmatpush2.msra.mxu0 0.0
      %3194 = vmatprep.subr.mxu0 0.0
      %3195 = vmatpush2.msra.mxu0 0.0
      %3196 = vmatprep.mubr.f32.mxu0 0.0
      %v3197 = vand.u32 %v2968, 4294901760
      %v3198 = vsub.f32 %v2968, %v3197
      %3199 = vmatmul.mubr.f32.gmra.mxu0 %v3198
      %v3200 = vpop.f32.mrf.mxu0
      %v3201 = vadd.f32 %v3125, %v3200
      %v3202 = vpop.f32.mrf.mxu0
      %3203 = vdwg.mxu0
      %3204 = vmatprep.subr.mxu0 0.0
      %3205 = vmatpush1.msra.mxu0 0.0
      %3206 = vmatprep.subr.mxu0 0.0
      %3207 = vmatpush1.msra.mxu0 0.0
      %3208 = vmatprep.subr.mxu0 0.0
      %3209 = vmatpush1.msra.mxu0 0.0
      %3210 = vmatprep.subr.mxu0 0.0
      %3211 = vmatpush1.msra.mxu0 0.0
      %3212 = vmatprep.subr.mxu0 0.0
      %3213 = vmatpush1.msra.mxu0 0.0
      %3214 = vmatprep.subr.mxu0 0.0
      %3215 = vmatpush1.msra.mxu0 0.0
      %3216 = vmatprep.subr.mxu0 0.0
      %3217 = vmatpush1.msra.mxu0 0.0
      %3218 = vmatprep.subr.mxu0 0.0
      %3219 = vmatpush1.msra.mxu0 0.0
      %3220 = vmatprep.subr.mxu0 0.0
      %3221 = vmatpush1.msra.mxu0 0.0
      %3222 = vmatprep.subr.mxu0 0.0
      %3223 = vmatpush1.msra.mxu0 0.0
      %3224 = vmatprep.subr.mxu0 0.0
      %3225 = vmatpush1.msra.mxu0 0.0
      %3226 = vmatprep.subr.mxu0 0.0
      %3227 = vmatpush1.msra.mxu0 0.0
      %3228 = vmatprep.subr.mxu0 0.0
      %3229 = vmatpush1.msra.mxu0 0.0
      %3230 = vmatprep.subr.mxu0 0.0
      %3231 = vmatpush1.msra.mxu0 0.0
      %3232 = vmatprep.subr.mxu0 0.0
      %v3233 = vand.u32 %v907, 4294901760
      %3234 = vmatpush1.msra.mxu0 %v3233
      %3235 = vmatprep.subr.mxu0 0.0
      %v3236 = vand.u32 %v906, 4294901760
      %3237 = vmatpush1.msra.mxu0 %v3236
      %3238 = vmatprep.subr.mxu0 0.0
      %3239 = vmatpush2.msra.mxu0 0.0
      %3240 = vmatprep.subr.mxu0 0.0
      %3241 = vmatpush2.msra.mxu0 0.0
      %3242 = vmatprep.subr.mxu0 0.0
      %3243 = vmatpush2.msra.mxu0 0.0
      %3244 = vmatprep.subr.mxu0 0.0
      %3245 = vmatpush2.msra.mxu0 0.0
      %3246 = vmatprep.subr.mxu0 0.0
      %3247 = vmatpush2.msra.mxu0 0.0
      %3248 = vmatprep.subr.mxu0 0.0
      %3249 = vmatpush2.msra.mxu0 0.0
      %3250 = vmatprep.subr.mxu0 0.0
      %3251 = vmatpush2.msra.mxu0 0.0
      %3252 = vmatprep.subr.mxu0 0.0
      %3253 = vmatpush2.msra.mxu0 0.0
      %3254 = vmatprep.subr.mxu0 0.0
      %3255 = vmatpush2.msra.mxu0 0.0
      %3256 = vmatprep.subr.mxu0 0.0
      %3257 = vmatpush2.msra.mxu0 0.0
      %3258 = vmatprep.subr.mxu0 0.0
      %3259 = vmatpush2.msra.mxu0 0.0
      %3260 = vmatprep.subr.mxu0 0.0
      %3261 = vmatpush2.msra.mxu0 0.0
      %3262 = vmatprep.subr.mxu0 0.0
      %3263 = vmatpush2.msra.mxu0 0.0
      %3264 = vmatprep.subr.mxu0 0.0
      %3265 = vmatpush2.msra.mxu0 0.0
      %3266 = vmatprep.subr.mxu0 0.0
      %3267 = vmatpush2.msra.mxu0 0.0
      %3268 = vmatprep.subr.mxu0 0.0
      %3269 = vmatpush2.msra.mxu0 0.0
      %3270 = vmatprep.mubr.f32.mxu0 0.0
      %v3271 = vand.u32 %v2968, 4294901760
      %v3272 = vsub.f32 %v2968, %v3271
      %v3273 = vand.u32 %v3272, 4294901760
      %3274 = vmatmul.mubr.f32.gmra.mxu0 %v3273
      %v3275 = vpop.f32.mrf.mxu0
      %v3276 = vadd.f32 %v3201, %v3275
      %v3277 = vpop.f32.mrf.mxu0
      %3278 = vdwg.mxu0
      %3279 = vmatprep.subr.mxu0 0.0
      %3280 = vmatpush1.msra.mxu0 0.0
      %3281 = vmatprep.subr.mxu0 0.0
      %3282 = vmatpush1.msra.mxu0 0.0
      %3283 = vmatprep.subr.mxu0 0.0
      %3284 = vmatpush1.msra.mxu0 0.0
      %3285 = vmatprep.subr.mxu0 0.0
      %3286 = vmatpush1.msra.mxu0 0.0
      %3287 = vmatprep.subr.mxu0 0.0
      %3288 = vmatpush1.msra.mxu0 0.0
      %3289 = vmatprep.subr.mxu0 0.0
      %3290 = vmatpush1.msra.mxu0 0.0
      %3291 = vmatprep.subr.mxu0 0.0
      %3292 = vmatpush1.msra.mxu0 0.0
      %3293 = vmatprep.subr.mxu0 0.0
      %3294 = vmatpush1.msra.mxu0 0.0
      %3295 = vmatprep.subr.mxu0 0.0
      %3296 = vmatpush1.msra.mxu0 0.0
      %3297 = vmatprep.subr.mxu0 0.0
      %3298 = vmatpush1.msra.mxu0 0.0
      %3299 = vmatprep.subr.mxu0 0.0
      %3300 = vmatpush1.msra.mxu0 0.0
      %3301 = vmatprep.subr.mxu0 0.0
      %3302 = vmatpush1.msra.mxu0 0.0
      %3303 = vmatprep.subr.mxu0 0.0
      %3304 = vmatpush1.msra.mxu0 0.0
      %3305 = vmatprep.subr.mxu0 0.0
      %3306 = vmatpush1.msra.mxu0 0.0
      %3307 = vmatprep.subr.mxu0 0.0
      %v3308 = vand.u32 %v907, 4294901760
      %v3309 = vsub.f32 %v907, %v3308
      %v3310 = vand.u32 %v3309, 4294901760
      %3311 = vmatpush1.msra.mxu0 %v3310
      %3312 = vmatprep.subr.mxu0 0.0
      %v3313 = vand.u32 %v906, 4294901760
      %v3314 = vsub.f32 %v906, %v3313
      %v3315 = vand.u32 %v3314, 4294901760
      %3316 = vmatpush1.msra.mxu0 %v3315
      %3317 = vmatprep.subr.mxu0 0.0
      %3318 = vmatpush2.msra.mxu0 0.0
      %3319 = vmatprep.subr.mxu0 0.0
      %3320 = vmatpush2.msra.mxu0 0.0
      %3321 = vmatprep.subr.mxu0 0.0
      %3322 = vmatpush2.msra.mxu0 0.0
      %3323 = vmatprep.subr.mxu0 0.0
      %3324 = vmatpush2.msra.mxu0 0.0
      %3325 = vmatprep.subr.mxu0 0.0
      %3326 = vmatpush2.msra.mxu0 0.0
      %3327 = vmatprep.subr.mxu0 0.0
      %3328 = vmatpush2.msra.mxu0 0.0
      %3329 = vmatprep.subr.mxu0 0.0
      %3330 = vmatpush2.msra.mxu0 0.0
      %3331 = vmatprep.subr.mxu0 0.0
      %3332 = vmatpush2.msra.mxu0 0.0
      %3333 = vmatprep.subr.mxu0 0.0
      %3334 = vmatpush2.msra.mxu0 0.0
      %3335 = vmatprep.subr.mxu0 0.0
      %3336 = vmatpush2.msra.mxu0 0.0
      %3337 = vmatprep.subr.mxu0 0.0
      %3338 = vmatpush2.msra.mxu0 0.0
      %3339 = vmatprep.subr.mxu0 0.0
      %3340 = vmatpush2.msra.mxu0 0.0
      %3341 = vmatprep.subr.mxu0 0.0
      %3342 = vmatpush2.msra.mxu0 0.0
      %3343 = vmatprep.subr.mxu0 0.0
      %3344 = vmatpush2.msra.mxu0 0.0
      %3345 = vmatprep.subr.mxu0 0.0
      %3346 = vmatpush2.msra.mxu0 0.0
      %3347 = vmatprep.subr.mxu0 0.0
      %3348 = vmatpush2.msra.mxu0 0.0
      %3349 = vmatprep.mubr.f32.mxu0 0.0
      %v3350 = vand.u32 %v2968, 4294901760
      %3351 = vmatmul.mubr.f32.gmra.mxu0 %v3350
      %v3352 = vpop.f32.mrf.mxu0
      %v3353 = vadd.f32 %v3276, %v3352
      %v3354 = vpop.f32.mrf.mxu0
      %3355 = vdwg.mxu0
      %3356 = vmatprep.subr.mxu0 0.0
      %3357 = vmatpush1.msra.mxu0 0.0
      %3358 = vmatprep.subr.mxu0 0.0
      %3359 = vmatpush1.msra.mxu0 0.0
      %3360 = vmatprep.subr.mxu0 0.0
      %3361 = vmatpush1.msra.mxu0 0.0
      %3362 = vmatprep.subr.mxu0 0.0
      %3363 = vmatpush1.msra.mxu0 0.0
      %3364 = vmatprep.subr.mxu0 0.0
      %3365 = vmatpush1.msra.mxu0 0.0
      %3366 = vmatprep.subr.mxu0 0.0
      %3367 = vmatpush1.msra.mxu0 0.0
      %3368 = vmatprep.subr.mxu0 0.0
      %3369 = vmatpush1.msra.mxu0 0.0
      %3370 = vmatprep.subr.mxu0 0.0
      %3371 = vmatpush1.msra.mxu0 0.0
      %3372 = vmatprep.subr.mxu0 0.0
      %3373 = vmatpush1.msra.mxu0 0.0
      %3374 = vmatprep.subr.mxu0 0.0
      %3375 = vmatpush1.msra.mxu0 0.0
      %3376 = vmatprep.subr.mxu0 0.0
      %3377 = vmatpush1.msra.mxu0 0.0
      %3378 = vmatprep.subr.mxu0 0.0
      %3379 = vmatpush1.msra.mxu0 0.0
      %3380 = vmatprep.subr.mxu0 0.0
      %3381 = vmatpush1.msra.mxu0 0.0
      %3382 = vmatprep.subr.mxu0 0.0
      %3383 = vmatpush1.msra.mxu0 0.0
      %3384 = vmatprep.subr.mxu0 0.0
      %v3385 = vand.u32 %v907, 4294901760
      %3386 = vmatpush1.msra.mxu0 %v3385
      %3387 = vmatprep.subr.mxu0 0.0
      %v3388 = vand.u32 %v906, 4294901760
      %3389 = vmatpush1.msra.mxu0 %v3388
      %3390 = vmatprep.subr.mxu0 0.0
      %3391 = vmatpush2.msra.mxu0 0.0
      %3392 = vmatprep.subr.mxu0 0.0
      %3393 = vmatpush2.msra.mxu0 0.0
      %3394 = vmatprep.subr.mxu0 0.0
      %3395 = vmatpush2.msra.mxu0 0.0
      %3396 = vmatprep.subr.mxu0 0.0
      %3397 = vmatpush2.msra.mxu0 0.0
      %3398 = vmatprep.subr.mxu0 0.0
      %3399 = vmatpush2.msra.mxu0 0.0
      %3400 = vmatprep.subr.mxu0 0.0
      %3401 = vmatpush2.msra.mxu0 0.0
      %3402 = vmatprep.subr.mxu0 0.0
      %3403 = vmatpush2.msra.mxu0 0.0
      %3404 = vmatprep.subr.mxu0 0.0
      %3405 = vmatpush2.msra.mxu0 0.0
      %3406 = vmatprep.subr.mxu0 0.0
      %3407 = vmatpush2.msra.mxu0 0.0
      %3408 = vmatprep.subr.mxu0 0.0
      %3409 = vmatpush2.msra.mxu0 0.0
      %3410 = vmatprep.subr.mxu0 0.0
      %3411 = vmatpush2.msra.mxu0 0.0
      %3412 = vmatprep.subr.mxu0 0.0
      %3413 = vmatpush2.msra.mxu0 0.0
      %3414 = vmatprep.subr.mxu0 0.0
      %3415 = vmatpush2.msra.mxu0 0.0
      %3416 = vmatprep.subr.mxu0 0.0
      %3417 = vmatpush2.msra.mxu0 0.0
      %3418 = vmatprep.subr.mxu0 0.0
      %3419 = vmatpush2.msra.mxu0 0.0
      %3420 = vmatprep.subr.mxu0 0.0
      %3421 = vmatpush2.msra.mxu0 0.0
      %3422 = vmatprep.mubr.f32.mxu0 0.0
      %v3423 = vand.u32 %v2968, 4294901760
      %3424 = vmatmul.mubr.f32.gmra.mxu0 %v3423
      %v3425 = vpop.f32.mrf.mxu0
      %v3426 = vadd.f32 %v3353, %v3425
      %v3427 = vpop.f32.mrf.mxu0
      %3428 = vdwg.mxu0
      %v3429 = vmul.f32 %v3426, %v1373
      %v3430 = vmul.f32 %v3429, 2.0
      %v3431 = vmul.f32 %v3430, %v3426
      %v3433 = vrot.slane %v3431, 7
      %v3435 = vsub.f32 %v3426, %v3433
      %v3436 = vmul.f32 %v3435, %v1373
      %v3437 = vmul.f32 %v3429, %v3429
      %v3439 = vrot.slane %v3437, 7
      %v3441 = vadd.f32 %v3436, %v3439
      %v3442 = vadd.f32 %v3441, 1e-05
      %v3443 = vrsqrt.pop %v3442
      %v3444 = vlaneseq
      %v3445 = vshrl.u32 %v3444, 7
      %v3446 = vsub.s32 0, %v3445
      %v3447 = vrot.slane %v3429, %v3446
      %v3448 = vsub.f32 %v2950, %v3447
      %v3449 = vlaneseq
      %v3450 = vshrl.u32 %v3449, 7
      %v3451 = vsub.s32 1, %v3450
      %v3452 = vrot.slane %v3443, %v3451
      %v3453 = vmul.f32 %v3448, %v3452
      %3455 = vset.pattern.permute.xlu0 0
      %3456 = vperm.xlu0 %3455, %v2939
      %v3457 = vpop.permute.xlu0 %3456
      %v3459 = vmul.f32 %v3453, %v3457
      %3461 = vset.pattern.permute.xlu0 0
      %3462 = vperm.xlu0 %3461, %v2941
      %v3463 = vpop.permute.xlu0 %3462
      %v3465 = vadd.f32 %v3459, %v3463
      %v3466 = vld [vmem:[%s7] sm:$0xff]
      %v3467 = vld [vmem:[%s8] sm:$0xff]
      %3469 = vset.pattern.permute.xlu0 0
      %3470 = vperm.xlu0 %3469, %v3467
      %v3471 = vpop.permute.xlu0 %3470
      %v3474 = vsel %vm417, %v3466, 0
      %3476 = vmatprep.subr.mxu0 0.0
      %3477 = vmatpush1.msra.mxu0 0.0
      %3478 = vmatprep.subr.mxu0 0.0
      %3479 = vmatpush1.msra.mxu0 0.0
      %3480 = vmatprep.subr.mxu0 0.0
      %3481 = vmatpush1.msra.mxu0 0.0
      %3482 = vmatprep.subr.mxu0 0.0
      %3483 = vmatpush1.msra.mxu0 0.0
      %3484 = vmatprep.subr.mxu0 0.0
      %3485 = vmatpush1.msra.mxu0 0.0
      %3486 = vmatprep.subr.mxu0 0.0
      %3487 = vmatpush1.msra.mxu0 0.0
      %3488 = vmatprep.subr.mxu0 0.0
      %3489 = vmatpush1.msra.mxu0 0.0
      %3490 = vmatprep.subr.mxu0 0.0
      %3491 = vmatpush1.msra.mxu0 0.0
      %3492 = vmatprep.subr.mxu0 0.0
      %3493 = vmatpush1.msra.mxu0 0.0
      %3494 = vmatprep.subr.mxu0 0.0
      %3495 = vmatpush1.msra.mxu0 0.0
      %3496 = vmatprep.subr.mxu0 0.0
      %3497 = vmatpush1.msra.mxu0 0.0
      %3498 = vmatprep.subr.mxu0 0.0
      %3499 = vmatpush1.msra.mxu0 0.0
      %3500 = vmatprep.subr.mxu0 0.0
      %3501 = vmatpush1.msra.mxu0 0.0
      %3502 = vmatprep.subr.mxu0 0.0
      %3503 = vmatpush1.msra.mxu0 0.0
      %3504 = vmatprep.subr.mxu0 0.0
      %3505 = vmatpush1.msra.mxu0 0.0
      %3506 = vmatprep.subr.mxu0 0.0
      %v3507 = vand.u32 %v3465, 4294901760
      %3508 = vmatpush1.msra.mxu0 %v3507
      %3509 = vmatprep.subr.mxu0 0.0
      %3510 = vmatpush2.msra.mxu0 0.0
      %3511 = vmatprep.subr.mxu0 0.0
      %3512 = vmatpush2.msra.mxu0 0.0
      %3513 = vmatprep.subr.mxu0 0.0
      %3514 = vmatpush2.msra.mxu0 0.0
      %3515 = vmatprep.subr.mxu0 0.0
      %3516 = vmatpush2.msra.mxu0 0.0
      %3517 = vmatprep.subr.mxu0 0.0
      %3518 = vmatpush2.msra.mxu0 0.0
      %3519 = vmatprep.subr.mxu0 0.0
      %3520 = vmatpush2.msra.mxu0 0.0
      %3521 = vmatprep.subr.mxu0 0.0
      %3522 = vmatpush2.msra.mxu0 0.0
      %3523 = vmatprep.subr.mxu0 0.0
      %3524 = vmatpush2.msra.mxu0 0.0
      %3525 = vmatprep.subr.mxu0 0.0
      %3526 = vmatpush2.msra.mxu0 0.0
      %3527 = vmatprep.subr.mxu0 0.0
      %3528 = vmatpush2.msra.mxu0 0.0
      %3529 = vmatprep.subr.mxu0 0.0
      %3530 = vmatpush2.msra.mxu0 0.0
      %3531 = vmatprep.subr.mxu0 0.0
      %3532 = vmatpush2.msra.mxu0 0.0
      %3533 = vmatprep.subr.mxu0 0.0
      %3534 = vmatpush2.msra.mxu0 0.0
      %3535 = vmatprep.subr.mxu0 0.0
      %3536 = vmatpush2.msra.mxu0 0.0
      %3537 = vmatprep.subr.mxu0 0.0
      %3538 = vmatpush2.msra.mxu0 0.0
      %3539 = vmatprep.subr.mxu0 0.0
      %3540 = vmatpush2.msra.mxu0 0.0
      %3541 = vmatprep.mubr.f32.mxu0 0.0
      %v3542 = vand.u32 %v3474, 4294901760
      %v3543 = vsub.f32 %v3474, %v3542
      %v3544 = vand.u32 %v3543, 4294901760
      %v3545 = vsub.f32 %v3543, %v3544
      %v3546 = vand.u32 %v3545, 4294901760
      %3547 = vmatmul.mubr.f32.gmra.mxu0 %v3546
      %v3548 = vpop.f32.mrf.mxu0
      %v3549 = vadd.f32 %v3471, %v3548
      %v3550 = vpop.f32.mrf.mxu0
      %3551 = vdwg.mxu0
      %3552 = vmatprep.subr.mxu0 0.0
      %3553 = vmatpush1.msra.mxu0 0.0
      %3554 = vmatprep.subr.mxu0 0.0
      %3555 = vmatpush1.msra.mxu0 0.0
      %3556 = vmatprep.subr.mxu0 0.0
      %3557 = vmatpush1.msra.mxu0 0.0
      %3558 = vmatprep.subr.mxu0 0.0
      %3559 = vmatpush1.msra.mxu0 0.0
      %3560 = vmatprep.subr.mxu0 0.0
      %3561 = vmatpush1.msra.mxu0 0.0
      %3562 = vmatprep.subr.mxu0 0.0
      %3563 = vmatpush1.msra.mxu0 0.0
      %3564 = vmatprep.subr.mxu0 0.0
      %3565 = vmatpush1.msra.mxu0 0.0
      %3566 = vmatprep.subr.mxu0 0.0
      %3567 = vmatpush1.msra.mxu0 0.0
      %3568 = vmatprep.subr.mxu0 0.0
      %3569 = vmatpush1.msra.mxu0 0.0
      %3570 = vmatprep.subr.mxu0 0.0
      %3571 = vmatpush1.msra.mxu0 0.0
      %3572 = vmatprep.subr.mxu0 0.0
      %3573 = vmatpush1.msra.mxu0 0.0
      %3574 = vmatprep.subr.mxu0 0.0
      %3575 = vmatpush1.msra.mxu0 0.0
      %3576 = vmatprep.subr.mxu0 0.0
      %3577 = vmatpush1.msra.mxu0 0.0
      %3578 = vmatprep.subr.mxu0 0.0
      %3579 = vmatpush1.msra.mxu0 0.0
      %3580 = vmatprep.subr.mxu0 0.0
      %3581 = vmatpush1.msra.mxu0 0.0
      %3582 = vmatprep.subr.mxu0 0.0
      %v3583 = vand.u32 %v3465, 4294901760
      %v3584 = vsub.f32 %v3465, %v3583
      %v3585 = vand.u32 %v3584, 4294901760
      %v3586 = vsub.f32 %v3584, %v3585
      %v3587 = vand.u32 %v3586, 4294901760
      %3588 = vmatpush1.msra.mxu0 %v3587
      %3589 = vmatprep.subr.mxu0 0.0
      %3590 = vmatpush2.msra.mxu0 0.0
      %3591 = vmatprep.subr.mxu0 0.0
      %3592 = vmatpush2.msra.mxu0 0.0
      %3593 = vmatprep.subr.mxu0 0.0
      %3594 = vmatpush2.msra.mxu0 0.0
      %3595 = vmatprep.subr.mxu0 0.0
      %3596 = vmatpush2.msra.mxu0 0.0
      %3597 = vmatprep.subr.mxu0 0.0
      %3598 = vmatpush2.msra.mxu0 0.0
      %3599 = vmatprep.subr.mxu0 0.0
      %3600 = vmatpush2.msra.mxu0 0.0
      %3601 = vmatprep.subr.mxu0 0.0
      %3602 = vmatpush2.msra.mxu0 0.0
      %3603 = vmatprep.subr.mxu0 0.0
      %3604 = vmatpush2.msra.mxu0 0.0
      %3605 = vmatprep.subr.mxu0 0.0
      %3606 = vmatpush2.msra.mxu0 0.0
      %3607 = vmatprep.subr.mxu0 0.0
      %3608 = vmatpush2.msra.mxu0 0.0
      %3609 = vmatprep.subr.mxu0 0.0
      %3610 = vmatpush2.msra.mxu0 0.0
      %3611 = vmatprep.subr.mxu0 0.0
      %3612 = vmatpush2.msra.mxu0 0.0
      %3613 = vmatprep.subr.mxu0 0.0
      %3614 = vmatpush2.msra.mxu0 0.0
      %3615 = vmatprep.subr.mxu0 0.0
      %3616 = vmatpush2.msra.mxu0 0.0
      %3617 = vmatprep.subr.mxu0 0.0
      %3618 = vmatpush2.msra.mxu0 0.0
      %3619 = vmatprep.subr.mxu0 0.0
      %3620 = vmatpush2.msra.mxu0 0.0
      %3621 = vmatprep.mubr.f32.mxu0 0.0
      %v3622 = vand.u32 %v3474, 4294901760
      %3623 = vmatmul.mubr.f32.gmra.mxu0 %v3622
      %v3624 = vpop.f32.mrf.mxu0
      %v3625 = vadd.f32 %v3549, %v3624
      %v3626 = vpop.f32.mrf.mxu0
      %3627 = vdwg.mxu0
      %3628 = vmatprep.subr.mxu0 0.0
      %3629 = vmatpush1.msra.mxu0 0.0
      %3630 = vmatprep.subr.mxu0 0.0
      %3631 = vmatpush1.msra.mxu0 0.0
      %3632 = vmatprep.subr.mxu0 0.0
      %3633 = vmatpush1.msra.mxu0 0.0
      %3634 = vmatprep.subr.mxu0 0.0
      %3635 = vmatpush1.msra.mxu0 0.0
      %3636 = vmatprep.subr.mxu0 0.0
      %3637 = vmatpush1.msra.mxu0 0.0
      %3638 = vmatprep.subr.mxu0 0.0
      %3639 = vmatpush1.msra.mxu0 0.0
      %3640 = vmatprep.subr.mxu0 0.0
      %3641 = vmatpush1.msra.mxu0 0.0
      %3642 = vmatprep.subr.mxu0 0.0
      %3643 = vmatpush1.msra.mxu0 0.0
      %3644 = vmatprep.subr.mxu0 0.0
      %3645 = vmatpush1.msra.mxu0 0.0
      %3646 = vmatprep.subr.mxu0 0.0
      %3647 = vmatpush1.msra.mxu0 0.0
      %3648 = vmatprep.subr.mxu0 0.0
      %3649 = vmatpush1.msra.mxu0 0.0
      %3650 = vmatprep.subr.mxu0 0.0
      %3651 = vmatpush1.msra.mxu0 0.0
      %3652 = vmatprep.subr.mxu0 0.0
      %3653 = vmatpush1.msra.mxu0 0.0
      %3654 = vmatprep.subr.mxu0 0.0
      %3655 = vmatpush1.msra.mxu0 0.0
      %3656 = vmatprep.subr.mxu0 0.0
      %3657 = vmatpush1.msra.mxu0 0.0
      %3658 = vmatprep.subr.mxu0 0.0
      %v3659 = vand.u32 %v3465, 4294901760
      %v3660 = vsub.f32 %v3465, %v3659
      %3661 = vmatpush1.msra.mxu0 %v3660
      %3662 = vmatprep.subr.mxu0 0.0
      %3663 = vmatpush2.msra.mxu0 0.0
      %3664 = vmatprep.subr.mxu0 0.0
      %3665 = vmatpush2.msra.mxu0 0.0
      %3666 = vmatprep.subr.mxu0 0.0
      %3667 = vmatpush2.msra.mxu0 0.0
      %3668 = vmatprep.subr.mxu0 0.0
      %3669 = vmatpush2.msra.mxu0 0.0
      %3670 = vmatprep.subr.mxu0 0.0
      %3671 = vmatpush2.msra.mxu0 0.0
      %3672 = vmatprep.subr.mxu0 0.0
      %3673 = vmatpush2.msra.mxu0 0.0
      %3674 = vmatprep.subr.mxu0 0.0
      %3675 = vmatpush2.msra.mxu0 0.0
      %3676 = vmatprep.subr.mxu0 0.0
      %3677 = vmatpush2.msra.mxu0 0.0
      %3678 = vmatprep.subr.mxu0 0.0
      %3679 = vmatpush2.msra.mxu0 0.0
      %3680 = vmatprep.subr.mxu0 0.0
      %3681 = vmatpush2.msra.mxu0 0.0
      %3682 = vmatprep.subr.mxu0 0.0
      %3683 = vmatpush2.msra.mxu0 0.0
      %3684 = vmatprep.subr.mxu0 0.0
      %3685 = vmatpush2.msra.mxu0 0.0
      %3686 = vmatprep.subr.mxu0 0.0
      %3687 = vmatpush2.msra.mxu0 0.0
      %3688 = vmatprep.subr.mxu0 0.0
      %3689 = vmatpush2.msra.mxu0 0.0
      %3690 = vmatprep.subr.mxu0 0.0
      %3691 = vmatpush2.msra.mxu0 0.0
      %3692 = vmatprep.subr.mxu0 0.0
      %3693 = vmatpush2.msra.mxu0 0.0
      %3694 = vmatprep.mubr.f32.mxu0 0.0
      %v3695 = vand.u32 %v3474, 4294901760
      %v3696 = vsub.f32 %v3474, %v3695
      %3697 = vmatmul.mubr.f32.gmra.mxu0 %v3696
      %v3698 = vpop.f32.mrf.mxu0
      %v3699 = vadd.f32 %v3625, %v3698
      %v3700 = vpop.f32.mrf.mxu0
      %3701 = vdwg.mxu0
      %3702 = vmatprep.subr.mxu0 0.0
      %3703 = vmatpush1.msra.mxu0 0.0
      %3704 = vmatprep.subr.mxu0 0.0
      %3705 = vmatpush1.msra.mxu0 0.0
      %3706 = vmatprep.subr.mxu0 0.0
      %3707 = vmatpush1.msra.mxu0 0.0
      %3708 = vmatprep.subr.mxu0 0.0
      %3709 = vmatpush1.msra.mxu0 0.0
      %3710 = vmatprep.subr.mxu0 0.0
      %3711 = vmatpush1.msra.mxu0 0.0
      %3712 = vmatprep.subr.mxu0 0.0
      %3713 = vmatpush1.msra.mxu0 0.0
      %3714 = vmatprep.subr.mxu0 0.0
      %3715 = vmatpush1.msra.mxu0 0.0
      %3716 = vmatprep.subr.mxu0 0.0
      %3717 = vmatpush1.msra.mxu0 0.0
      %3718 = vmatprep.subr.mxu0 0.0
      %3719 = vmatpush1.msra.mxu0 0.0
      %3720 = vmatprep.subr.mxu0 0.0
      %3721 = vmatpush1.msra.mxu0 0.0
      %3722 = vmatprep.subr.mxu0 0.0
      %3723 = vmatpush1.msra.mxu0 0.0
      %3724 = vmatprep.subr.mxu0 0.0
      %3725 = vmatpush1.msra.mxu0 0.0
      %3726 = vmatprep.subr.mxu0 0.0
      %3727 = vmatpush1.msra.mxu0 0.0
      %3728 = vmatprep.subr.mxu0 0.0
      %3729 = vmatpush1.msra.mxu0 0.0
      %3730 = vmatprep.subr.mxu0 0.0
      %3731 = vmatpush1.msra.mxu0 0.0
      %3732 = vmatprep.subr.mxu0 0.0
      %v3733 = vand.u32 %v3465, 4294901760
      %3734 = vmatpush1.msra.mxu0 %v3733
      %3735 = vmatprep.subr.mxu0 0.0
      %3736 = vmatpush2.msra.mxu0 0.0
      %3737 = vmatprep.subr.mxu0 0.0
      %3738 = vmatpush2.msra.mxu0 0.0
      %3739 = vmatprep.subr.mxu0 0.0
      %3740 = vmatpush2.msra.mxu0 0.0
      %3741 = vmatprep.subr.mxu0 0.0
      %3742 = vmatpush2.msra.mxu0 0.0
      %3743 = vmatprep.subr.mxu0 0.0
      %3744 = vmatpush2.msra.mxu0 0.0
      %3745 = vmatprep.subr.mxu0 0.0
      %3746 = vmatpush2.msra.mxu0 0.0
      %3747 = vmatprep.subr.mxu0 0.0
      %3748 = vmatpush2.msra.mxu0 0.0
      %3749 = vmatprep.subr.mxu0 0.0
      %3750 = vmatpush2.msra.mxu0 0.0
      %3751 = vmatprep.subr.mxu0 0.0
      %3752 = vmatpush2.msra.mxu0 0.0
      %3753 = vmatprep.subr.mxu0 0.0
      %3754 = vmatpush2.msra.mxu0 0.0
      %3755 = vmatprep.subr.mxu0 0.0
      %3756 = vmatpush2.msra.mxu0 0.0
      %3757 = vmatprep.subr.mxu0 0.0
      %3758 = vmatpush2.msra.mxu0 0.0
      %3759 = vmatprep.subr.mxu0 0.0
      %3760 = vmatpush2.msra.mxu0 0.0
      %3761 = vmatprep.subr.mxu0 0.0
      %3762 = vmatpush2.msra.mxu0 0.0
      %3763 = vmatprep.subr.mxu0 0.0
      %3764 = vmatpush2.msra.mxu0 0.0
      %3765 = vmatprep.subr.mxu0 0.0
      %3766 = vmatpush2.msra.mxu0 0.0
      %3767 = vmatprep.mubr.f32.mxu0 0.0
      %v3768 = vand.u32 %v3474, 4294901760
      %v3769 = vsub.f32 %v3474, %v3768
      %v3770 = vand.u32 %v3769, 4294901760
      %3771 = vmatmul.mubr.f32.gmra.mxu0 %v3770
      %v3772 = vpop.f32.mrf.mxu0
      %v3773 = vadd.f32 %v3699, %v3772
      %v3774 = vpop.f32.mrf.mxu0
      %3775 = vdwg.mxu0
      %3776 = vmatprep.subr.mxu0 0.0
      %3777 = vmatpush1.msra.mxu0 0.0
      %3778 = vmatprep.subr.mxu0 0.0
      %3779 = vmatpush1.msra.mxu0 0.0
      %3780 = vmatprep.subr.mxu0 0.0
      %3781 = vmatpush1.msra.mxu0 0.0
      %3782 = vmatprep.subr.mxu0 0.0
      %3783 = vmatpush1.msra.mxu0 0.0
      %3784 = vmatprep.subr.mxu0 0.0
      %3785 = vmatpush1.msra.mxu0 0.0
      %3786 = vmatprep.subr.mxu0 0.0
      %3787 = vmatpush1.msra.mxu0 0.0
      %3788 = vmatprep.subr.mxu0 0.0
      %3789 = vmatpush1.msra.mxu0 0.0
      %3790 = vmatprep.subr.mxu0 0.0
      %3791 = vmatpush1.msra.mxu0 0.0
      %3792 = vmatprep.subr.mxu0 0.0
      %3793 = vmatpush1.msra.mxu0 0.0
      %3794 = vmatprep.subr.mxu0 0.0
      %3795 = vmatpush1.msra.mxu0 0.0
      %3796 = vmatprep.subr.mxu0 0.0
      %3797 = vmatpush1.msra.mxu0 0.0
      %3798 = vmatprep.subr.mxu0 0.0
      %3799 = vmatpush1.msra.mxu0 0.0
      %3800 = vmatprep.subr.mxu0 0.0
      %3801 = vmatpush1.msra.mxu0 0.0
      %3802 = vmatprep.subr.mxu0 0.0
      %3803 = vmatpush1.msra.mxu0 0.0
      %3804 = vmatprep.subr.mxu0 0.0
      %3805 = vmatpush1.msra.mxu0 0.0
      %3806 = vmatprep.subr.mxu0 0.0
      %v3807 = vand.u32 %v3465, 4294901760
      %v3808 = vsub.f32 %v3465, %v3807
      %v3809 = vand.u32 %v3808, 4294901760
      %3810 = vmatpush1.msra.mxu0 %v3809
      %3811 = vmatprep.subr.mxu0 0.0
      %3812 = vmatpush2.msra.mxu0 0.0
      %3813 = vmatprep.subr.mxu0 0.0
      %3814 = vmatpush2.msra.mxu0 0.0
      %3815 = vmatprep.subr.mxu0 0.0
      %3816 = vmatpush2.msra.mxu0 0.0
      %3817 = vmatprep.subr.mxu0 0.0
      %3818 = vmatpush2.msra.mxu0 0.0
      %3819 = vmatprep.subr.mxu0 0.0
      %3820 = vmatpush2.msra.mxu0 0.0
      %3821 = vmatprep.subr.mxu0 0.0
      %3822 = vmatpush2.msra.mxu0 0.0
      %3823 = vmatprep.subr.mxu0 0.0
      %3824 = vmatpush2.msra.mxu0 0.0
      %3825 = vmatprep.subr.mxu0 0.0
      %3826 = vmatpush2.msra.mxu0 0.0
      %3827 = vmatprep.subr.mxu0 0.0
      %3828 = vmatpush2.msra.mxu0 0.0
      %3829 = vmatprep.subr.mxu0 0.0
      %3830 = vmatpush2.msra.mxu0 0.0
      %3831 = vmatprep.subr.mxu0 0.0
      %3832 = vmatpush2.msra.mxu0 0.0
      %3833 = vmatprep.subr.mxu0 0.0
      %3834 = vmatpush2.msra.mxu0 0.0
      %3835 = vmatprep.subr.mxu0 0.0
      %3836 = vmatpush2.msra.mxu0 0.0
      %3837 = vmatprep.subr.mxu0 0.0
      %3838 = vmatpush2.msra.mxu0 0.0
      %3839 = vmatprep.subr.mxu0 0.0
      %3840 = vmatpush2.msra.mxu0 0.0
      %3841 = vmatprep.subr.mxu0 0.0
      %3842 = vmatpush2.msra.mxu0 0.0
      %3843 = vmatprep.mubr.f32.mxu0 0.0
      %v3844 = vand.u32 %v3474, 4294901760
      %3845 = vmatmul.mubr.f32.gmra.mxu0 %v3844
      %v3846 = vpop.f32.mrf.mxu0
      %v3847 = vadd.f32 %v3773, %v3846
      %v3848 = vpop.f32.mrf.mxu0
      %3849 = vdwg.mxu0
      %3850 = vmatprep.subr.mxu0 0.0
      %3851 = vmatpush1.msra.mxu0 0.0
      %3852 = vmatprep.subr.mxu0 0.0
      %3853 = vmatpush1.msra.mxu0 0.0
      %3854 = vmatprep.subr.mxu0 0.0
      %3855 = vmatpush1.msra.mxu0 0.0
      %3856 = vmatprep.subr.mxu0 0.0
      %3857 = vmatpush1.msra.mxu0 0.0
      %3858 = vmatprep.subr.mxu0 0.0
      %3859 = vmatpush1.msra.mxu0 0.0
      %3860 = vmatprep.subr.mxu0 0.0
      %3861 = vmatpush1.msra.mxu0 0.0
      %3862 = vmatprep.subr.mxu0 0.0
      %3863 = vmatpush1.msra.mxu0 0.0
      %3864 = vmatprep.subr.mxu0 0.0
      %3865 = vmatpush1.msra.mxu0 0.0
      %3866 = vmatprep.subr.mxu0 0.0
      %3867 = vmatpush1.msra.mxu0 0.0
      %3868 = vmatprep.subr.mxu0 0.0
      %3869 = vmatpush1.msra.mxu0 0.0
      %3870 = vmatprep.subr.mxu0 0.0
      %3871 = vmatpush1.msra.mxu0 0.0
      %3872 = vmatprep.subr.mxu0 0.0
      %3873 = vmatpush1.msra.mxu0 0.0
      %3874 = vmatprep.subr.mxu0 0.0
      %3875 = vmatpush1.msra.mxu0 0.0
      %3876 = vmatprep.subr.mxu0 0.0
      %3877 = vmatpush1.msra.mxu0 0.0
      %3878 = vmatprep.subr.mxu0 0.0
      %3879 = vmatpush1.msra.mxu0 0.0
      %3880 = vmatprep.subr.mxu0 0.0
      %v3881 = vand.u32 %v3465, 4294901760
      %3882 = vmatpush1.msra.mxu0 %v3881
      %3883 = vmatprep.subr.mxu0 0.0
      %3884 = vmatpush2.msra.mxu0 0.0
      %3885 = vmatprep.subr.mxu0 0.0
      %3886 = vmatpush2.msra.mxu0 0.0
      %3887 = vmatprep.subr.mxu0 0.0
      %3888 = vmatpush2.msra.mxu0 0.0
      %3889 = vmatprep.subr.mxu0 0.0
      %3890 = vmatpush2.msra.mxu0 0.0
      %3891 = vmatprep.subr.mxu0 0.0
      %3892 = vmatpush2.msra.mxu0 0.0
      %3893 = vmatprep.subr.mxu0 0.0
      %3894 = vmatpush2.msra.mxu0 0.0
      %3895 = vmatprep.subr.mxu0 0.0
      %3896 = vmatpush2.msra.mxu0 0.0
      %3897 = vmatprep.subr.mxu0 0.0
      %3898 = vmatpush2.msra.mxu0 0.0
      %3899 = vmatprep.subr.mxu0 0.0
      %3900 = vmatpush2.msra.mxu0 0.0
      %3901 = vmatprep.subr.mxu0 0.0
      %3902 = vmatpush2.msra.mxu0 0.0
      %3903 = vmatprep.subr.mxu0 0.0
      %3904 = vmatpush2.msra.mxu0 0.0
      %3905 = vmatprep.subr.mxu0 0.0
      %3906 = vmatpush2.msra.mxu0 0.0
      %3907 = vmatprep.subr.mxu0 0.0
      %3908 = vmatpush2.msra.mxu0 0.0
      %3909 = vmatprep.subr.mxu0 0.0
      %3910 = vmatpush2.msra.mxu0 0.0
      %3911 = vmatprep.subr.mxu0 0.0
      %3912 = vmatpush2.msra.mxu0 0.0
      %3913 = vmatprep.subr.mxu0 0.0
      %3914 = vmatpush2.msra.mxu0 0.0
      %3915 = vmatprep.mubr.f32.mxu0 0.0
      %v3916 = vand.u32 %v3474, 4294901760
      %3917 = vmatmul.mubr.f32.gmra.mxu0 %v3916
      %v3918 = vpop.f32.mrf.mxu0
      %v3919 = vadd.f32 %v3847, %v3918
      %v3920 = vpop.f32.mrf.mxu0
      %3921 = vdwg.mxu0
      %v3922 = vadd.f32 %v3919, %v409
      %3923 = vst.msk [vmem:[%s408] sm:$0xff] %vm879, %v3922
      %p3924 = scmp.lt.s32.totalorder %s23, 1
      %s3925 = scalar_select %p3924, %s23, 1
      %s3926 = smul.addr %s3925, 8
      %s3927 = scalar_lea.vmem %s12, %s3926
      // Predicated region
      $region69: #{refine_block_fwd.11} parent=67 // pred_check
        %p3928 = pneg %p298
      $region70: #{refine_block_fwd.11} parent=67 // pred_check_branch
        %3930 = sbr.rel (%p3928) target = $region72
      $region71: #{refine_block_fwd.11} parent=67 // pred_region
        _
      $region72: #{refine_block_fwd.11} parent=67 // pred_fallthru
        _
    $region68: #{refine_block_fwd.11} parent=5 // pred_fallthru
      _
    %p3931 = scmp.le.s32.totalorder 2, %s18
    // Predicated region
    $region73: #{refine_block_fwd.11} parent=5 // pred_check
      %p3932 = pneg %p3931
    $region74: #{refine_block_fwd.11} parent=5 // pred_check_branch
      %3934 = sbr.rel (%p3932) target = $region76
    $region75: #{refine_block_fwd.11} parent=5 // pred_region
      %s3935 = ssub.s32 %s18, 2
      // Predicated region
      $region77: #{refine_block_fwd.11} parent=75 // pred_check
        %p3936 = pneg %p304
      $region78: #{refine_block_fwd.11} parent=75 // pred_check_branch
        %3938 = sbr.rel (%p3936) target = $region80
      $region79: #{refine_block_fwd.11} parent=75 // pred_region
        %p3939 = scmp.lt.s32.totalorder %s24, 1
        %s3940 = scalar_select %p3939, %s24, 1
        %s3941 = smul.addr %s3940, 8
        %s3942 = scalar_lea.vmem %s12, %s3941
      $region80: #{refine_block_fwd.11} parent=75 // pred_fallthru
        _
    $region76: #{refine_block_fwd.11} parent=5 // pred_fallthru
      _
  $region6: #{refine_block_fwd.11} parent=0 // loop_footer
    %s22 = sadd.s32 1, %s18
  $region7: #{refine_block_fwd.11} parent=0 // loop_footer_branch
    %17 = sbr.rel target = $region3
  $region8: #{refine_block_fwd.11} parent=0 // loop_exit
    _

// kernel: refine_block_fwd.12
$region0: #{refine_block_fwd.12}
  #allocation0 [shape = 'u32[]', space=smem, size = 0x4, offset = 0x4, fixed_abs, tag = 'smem constant byte address 0x4 - core index']
  #allocation1 [shape = 'u32[144,128]{1,0:T(1,128)}', space=vmem, size = 0x12000, scoped, tag = 'internal scratch']
  %s0 = inlined_call_operand.vmem [shape: f32[2,8,16], index: 0, kind: input, shape index: {}]
  %s1 = inlined_call_operand.vmem [shape: f32[8,8], index: 1, kind: input, shape index: {}]
  %s2 = inlined_call_operand.vmem [shape: f32[8,1], index: 2, kind: input, shape index: {}]
  %s3 = inlined_call_operand.vmem [shape: f32[8,24], index: 3, kind: input, shape index: {}]
  %s4 = inlined_call_operand.vmem [shape: f32[8,1], index: 4, kind: input, shape index: {}]
  %s5 = inlined_call_operand.vmem [shape: f32[8,24], index: 5, kind: input, shape index: {}]
  %s6 = inlined_call_operand.vmem [shape: f32[8,1], index: 6, kind: input, shape index: {}]
  %s7 = inlined_call_operand.vmem [shape: f32[8,8], index: 7, kind: input, shape index: {}]
  %s8 = inlined_call_operand.vmem [shape: f32[8,1], index: 8, kind: input, shape index: {}]
  %s9 = inlined_call_operand.vmem [shape: f32[3,8,1], index: 9, kind: input, shape index: {}]
  %s10 = inlined_call_operand.vmem [shape: f32[3,8,1], index: 10, kind: input, shape index: {}]
  %s11 = inlined_call_operand.vmem [shape: f32[3,8,1], index: 11, kind: input, shape index: {}]
  %s12 = inlined_call_operand.vmem [shape: f32[2,8,16], index: 12, kind: output, shape index: {}]
  %s13 = sld [smem:[#allocation0]]
  $region81: #{refine_block_fwd.12} parent=0
    _
  %s15 = ssub.s32 1, %s13
  %s16 = scalar_select 0, %s15, %s13
  loop: start=0, step=1, limit=4
  $region2: #{refine_block_fwd.12} parent=0 // loop_pre_header
    _
  $region3: #{refine_block_fwd.12} parent=0 // loop_header
    %s18 = sphi 0, %s22
    %p19 = scmp.ge.s32.totalorder %s18, 4
    %s28 = sphi 0, %s30
    %s31 = sphi 0, %s28
    %s32 = sphi 0, %s31
    %s48 = sphi 0, %s32
    %s52 = sphi 0, %s52
    %s54 = sphi 0, %s52
    %s55 = sphi 0, %s54
    %s69 = sphi 0, %s55
    %s73 = sphi 0, %s73
    %s75 = sphi 0, %s73
    %s76 = sphi 0, %s75
    %s90 = sphi 0, %s76
    %s94 = sphi 0, %s94
    %s96 = sphi 0, %s94
    %s97 = sphi 0, %s96
    %s111 = sphi 0, %s97
    %s115 = sphi 0, %s115
    %s117 = sphi 0, %s115
    %s118 = sphi 0, %s117
    %s132 = sphi 0, %s118
    %s136 = sphi 0, %s136
    %s138 = sphi 0, %s136
    %s139 = sphi 0, %s138
    %s153 = sphi 0, %s139
    %s157 = sphi 0, %s157
    %s159 = sphi 0, %s157
    %s160 = sphi 0, %s159
    %s174 = sphi 0, %s160
    %s178 = sphi 0, %s178
    %s180 = sphi 0, %s178
    %s181 = sphi 0, %s180
    %s195 = sphi 0, %s181
    %s199 = sphi 0, %s199
    %s201 = sphi 0, %s199
    %s202 = sphi 0, %s201
    %s216 = sphi 0, %s202
    %s220 = sphi 0, %s220
    %s222 = sphi 0, %s220
    %s223 = sphi 0, %s222
    %s237 = sphi 0, %s223
    %s241 = sphi 0, %s241
    %s243 = sphi 0, %s241
    %s244 = sphi 0, %s243
    %s258 = sphi 0, %s244
    %s262 = sphi 0, %s262
    %s264 = sphi 0, %s262
    %s265 = sphi 0, %s264
    %s279 = sphi 0, %s265
    %s285 = sphi 0, %s287
    %s288 = sphi 0, %s285
    %s289 = sphi 0, %s288
    %s305 = sphi 0, %s289
  $region4: #{refine_block_fwd.12} parent=0 // loop_header_branch
    %21 = sbr.rel (%p19) target = $region8
  $region5: #{refine_block_fwd.12} parent=0 // loop_body
    %s23 = ssub.s32 %s18, 1
    %s24 = ssub.s32 %s18, 2
    %s25 = sadd.s32 %s18, 1
    %s26 = ssub.s32 %s18, %s25
    %p27 = scmp.eq.s32.totalorder %s26, 0
    %s29 = sadd.s32 %s28, 1
    %s30 = scalar_select %p27, %s28, %s29
    %p33 = pneg %p27
    %p34 = scmp.eq.s32.totalorder %s18, 1
    %p35 = por %p33, %p34
    %p36 = scmp.ne.s32.totalorder %s28, %s31
    %p37 = scmp.eq.s32.totalorder %s18, 0
    %p38 = por %p36, %p37
    %p39 = scmp.ne.s32.totalorder %s28, %s31
    %p40 = scmp.eq.s32.totalorder %s23, 1
    %p41 = por %p39, %p40
    %p42 = scmp.ne.s32.totalorder %s31, %s32
    %p43 = scmp.eq.s32.totalorder %s23, 0
    %p44 = por %p42, %p43
    %p45 = scmp.ne.s32.totalorder %s31, %s32
    %p46 = scmp.eq.s32.totalorder %s24, 1
    %p47 = por %p45, %p46
    %p49 = scmp.ne.s32.totalorder %s32, %s48
    %p50 = scmp.eq.s32.totalorder %s24, 0
    %p51 = por %p49, %p50
    %s53 = sadd.s32 %s52, 1
    %p56 = scmp.eq.s32.totalorder %s18, 1
    %p57 = scmp.ne.s32.totalorder %s52, %s54
    %p58 = scmp.eq.s32.totalorder %s18, 0
    %p59 = por %p57, %p58
    %p60 = scmp.ne.s32.totalorder %s52, %s54
    %p61 = scmp.eq.s32.totalorder %s23, 1
    %p62 = por %p60, %p61
    %p63 = scmp.ne.s32.totalorder %s54, %s55
    %p64 = scmp.eq.s32.totalorder %s23, 0
    %p65 = por %p63, %p64
    %p66 = scmp.ne.s32.totalorder %s54, %s55
    %p67 = scmp.eq.s32.totalorder %s24, 1
    %p68 = por %p66, %p67
    %p70 = scmp.ne.s32.totalorder %s55, %s69
    %p71 = scmp.eq.s32.totalorder %s24, 0
    %p72 = por %p70, %p71
    %s74 = sadd.s32 %s73, 1
    %p77 = scmp.eq.s32.totalorder %s18, 1
    %p78 = scmp.ne.s32.totalorder %s73, %s75
    %p79 = scmp.eq.s32.totalorder %s18, 0
    %p80 = por %p78, %p79
    %p81 = scmp.ne.s32.totalorder %s73, %s75
    %p82 = scmp.eq.s32.totalorder %s23, 1
    %p83 = por %p81, %p82
    %p84 = scmp.ne.s32.totalorder %s75, %s76
    %p85 = scmp.eq.s32.totalorder %s23, 0
    %p86 = por %p84, %p85
    %p87 = scmp.ne.s32.totalorder %s75, %s76
    %p88 = scmp.eq.s32.totalorder %s24, 1
    %p89 = por %p87, %p88
    %p91 = scmp.ne.s32.totalorder %s76, %s90
    %p92 = scmp.eq.s32.totalorder %s24, 0
    %p93 = por %p91, %p92
    %s95 = sadd.s32 %s94, 1
    %p98 = scmp.eq.s32.totalorder %s18, 1
    %p99 = scmp.ne.s32.totalorder %s94, %s96
    %p100 = scmp.eq.s32.totalorder %s18, 0
    %p101 = por %p99, %p100
    %p102 = scmp.ne.s32.totalorder %s94, %s96
    %p103 = scmp.eq.s32.totalorder %s23, 1
    %p104 = por %p102, %p103
    %p105 = scmp.ne.s32.totalorder %s96, %s97
    %p106 = scmp.eq.s32.totalorder %s23, 0
    %p107 = por %p105, %p106
    %p108 = scmp.ne.s32.totalorder %s96, %s97
    %p109 = scmp.eq.s32.totalorder %s24, 1
    %p110 = por %p108, %p109
    %p112 = scmp.ne.s32.totalorder %s97, %s111
    %p113 = scmp.eq.s32.totalorder %s24, 0
    %p114 = por %p112, %p113
    %s116 = sadd.s32 %s115, 1
    %p119 = scmp.eq.s32.totalorder %s18, 1
    %p120 = scmp.ne.s32.totalorder %s115, %s117
    %p121 = scmp.eq.s32.totalorder %s18, 0
    %p122 = por %p120, %p121
    %p123 = scmp.ne.s32.totalorder %s115, %s117
    %p124 = scmp.eq.s32.totalorder %s23, 1
    %p125 = por %p123, %p124
    %p126 = scmp.ne.s32.totalorder %s117, %s118
    %p127 = scmp.eq.s32.totalorder %s23, 0
    %p128 = por %p126, %p127
    %p129 = scmp.ne.s32.totalorder %s117, %s118
    %p130 = scmp.eq.s32.totalorder %s24, 1
    %p131 = por %p129, %p130
    %p133 = scmp.ne.s32.totalorder %s118, %s132
    %p134 = scmp.eq.s32.totalorder %s24, 0
    %p135 = por %p133, %p134
    %s137 = sadd.s32 %s136, 1
    %p140 = scmp.eq.s32.totalorder %s18, 1
    %p141 = scmp.ne.s32.totalorder %s136, %s138
    %p142 = scmp.eq.s32.totalorder %s18, 0
    %p143 = por %p141, %p142
    %p144 = scmp.ne.s32.totalorder %s136, %s138
    %p145 = scmp.eq.s32.totalorder %s23, 1
    %p146 = por %p144, %p145
    %p147 = scmp.ne.s32.totalorder %s138, %s139
    %p148 = scmp.eq.s32.totalorder %s23, 0
    %p149 = por %p147, %p148
    %p150 = scmp.ne.s32.totalorder %s138, %s139
    %p151 = scmp.eq.s32.totalorder %s24, 1
    %p152 = por %p150, %p151
    %p154 = scmp.ne.s32.totalorder %s139, %s153
    %p155 = scmp.eq.s32.totalorder %s24, 0
    %p156 = por %p154, %p155
    %s158 = sadd.s32 %s157, 1
    %p161 = scmp.eq.s32.totalorder %s18, 1
    %p162 = scmp.ne.s32.totalorder %s157, %s159
    %p163 = scmp.eq.s32.totalorder %s18, 0
    %p164 = por %p162, %p163
    %p165 = scmp.ne.s32.totalorder %s157, %s159
    %p166 = scmp.eq.s32.totalorder %s23, 1
    %p167 = por %p165, %p166
    %p168 = scmp.ne.s32.totalorder %s159, %s160
    %p169 = scmp.eq.s32.totalorder %s23, 0
    %p170 = por %p168, %p169
    %p171 = scmp.ne.s32.totalorder %s159, %s160
    %p172 = scmp.eq.s32.totalorder %s24, 1
    %p173 = por %p171, %p172
    %p175 = scmp.ne.s32.totalorder %s160, %s174
    %p176 = scmp.eq.s32.totalorder %s24, 0
    %p177 = por %p175, %p176
    %s179 = sadd.s32 %s178, 1
    %p182 = scmp.eq.s32.totalorder %s18, 1
    %p183 = scmp.ne.s32.totalorder %s178, %s180
    %p184 = scmp.eq.s32.totalorder %s18, 0
    %p185 = por %p183, %p184
    %p186 = scmp.ne.s32.totalorder %s178, %s180
    %p187 = scmp.eq.s32.totalorder %s23, 1
    %p188 = por %p186, %p187
    %p189 = scmp.ne.s32.totalorder %s180, %s181
    %p190 = scmp.eq.s32.totalorder %s23, 0
    %p191 = por %p189, %p190
    %p192 = scmp.ne.s32.totalorder %s180, %s181
    %p193 = scmp.eq.s32.totalorder %s24, 1
    %p194 = por %p192, %p193
    %p196 = scmp.ne.s32.totalorder %s181, %s195
    %p197 = scmp.eq.s32.totalorder %s24, 0
    %p198 = por %p196, %p197
    %s200 = sadd.s32 %s199, 1
    %p203 = scmp.eq.s32.totalorder %s18, 1
    %p204 = scmp.ne.s32.totalorder %s199, %s201
    %p205 = scmp.eq.s32.totalorder %s18, 0
    %p206 = por %p204, %p205
    %p207 = scmp.ne.s32.totalorder %s199, %s201
    %p208 = scmp.eq.s32.totalorder %s23, 1
    %p209 = por %p207, %p208
    %p210 = scmp.ne.s32.totalorder %s201, %s202
    %p211 = scmp.eq.s32.totalorder %s23, 0
    %p212 = por %p210, %p211
    %p213 = scmp.ne.s32.totalorder %s201, %s202
    %p214 = scmp.eq.s32.totalorder %s24, 1
    %p215 = por %p213, %p214
    %p217 = scmp.ne.s32.totalorder %s202, %s216
    %p218 = scmp.eq.s32.totalorder %s24, 0
    %p219 = por %p217, %p218
    %s221 = sadd.s32 %s220, 1
    %p224 = scmp.eq.s32.totalorder %s18, 1
    %p225 = scmp.ne.s32.totalorder %s220, %s222
    %p226 = scmp.eq.s32.totalorder %s18, 0
    %p227 = por %p225, %p226
    %p228 = scmp.ne.s32.totalorder %s220, %s222
    %p229 = scmp.eq.s32.totalorder %s23, 1
    %p230 = por %p228, %p229
    %p231 = scmp.ne.s32.totalorder %s222, %s223
    %p232 = scmp.eq.s32.totalorder %s23, 0
    %p233 = por %p231, %p232
    %p234 = scmp.ne.s32.totalorder %s222, %s223
    %p235 = scmp.eq.s32.totalorder %s24, 1
    %p236 = por %p234, %p235
    %p238 = scmp.ne.s32.totalorder %s223, %s237
    %p239 = scmp.eq.s32.totalorder %s24, 0
    %p240 = por %p238, %p239
    %s242 = sadd.s32 %s241, 1
    %p245 = scmp.eq.s32.totalorder %s18, 1
    %p246 = scmp.ne.s32.totalorder %s241, %s243
    %p247 = scmp.eq.s32.totalorder %s18, 0
    %p248 = por %p246, %p247
    %p249 = scmp.ne.s32.totalorder %s241, %s243
    %p250 = scmp.eq.s32.totalorder %s23, 1
    %p251 = por %p249, %p250
    %p252 = scmp.ne.s32.totalorder %s243, %s244
    %p253 = scmp.eq.s32.totalorder %s23, 0
    %p254 = por %p252, %p253
    %p255 = scmp.ne.s32.totalorder %s243, %s244
    %p256 = scmp.eq.s32.totalorder %s24, 1
    %p257 = por %p255, %p256
    %p259 = scmp.ne.s32.totalorder %s244, %s258
    %p260 = scmp.eq.s32.totalorder %s24, 0
    %p261 = por %p259, %p260
    %s263 = sadd.s32 %s262, 1
    %p266 = scmp.eq.s32.totalorder %s18, 1
    %p267 = scmp.ne.s32.totalorder %s262, %s264
    %p268 = scmp.eq.s32.totalorder %s18, 0
    %p269 = por %p267, %p268
    %p270 = scmp.ne.s32.totalorder %s262, %s264
    %p271 = scmp.eq.s32.totalorder %s23, 1
    %p272 = por %p270, %p271
    %p273 = scmp.ne.s32.totalorder %s264, %s265
    %p274 = scmp.eq.s32.totalorder %s23, 0
    %p275 = por %p273, %p274
    %p276 = scmp.ne.s32.totalorder %s264, %s265
    %p277 = scmp.eq.s32.totalorder %s24, 1
    %p278 = por %p276, %p277
    %p280 = scmp.ne.s32.totalorder %s265, %s279
    %p281 = scmp.eq.s32.totalorder %s24, 0
    %p282 = por %p280, %p281
    %s283 = ssub.s32 %s18, %s25
    %p284 = scmp.eq.s32.totalorder %s283, 0
    %s286 = sadd.s32 %s285, 1
    %s287 = scalar_select %p284, %s285, %s286
    %p290 = pneg %p284
    %p291 = scmp.eq.s32.totalorder %s18, 1
    %p292 = por %p290, %p291
    %p293 = scmp.ne.s32.totalorder %s285, %s288
    %p294 = scmp.eq.s32.totalorder %s18, 0
    %p295 = por %p293, %p294
    %p296 = scmp.ne.s32.totalorder %s285, %s288
    %p297 = scmp.eq.s32.totalorder %s23, 1
    %p298 = por %p296, %p297
    %p299 = scmp.ne.s32.totalorder %s288, %s289
    %p300 = scmp.eq.s32.totalorder %s23, 0
    %p301 = por %p299, %p300
    %p302 = scmp.ne.s32.totalorder %s288, %s289
    %p303 = scmp.eq.s32.totalorder %s24, 1
    %p304 = por %p302, %p303
    %p306 = scmp.ne.s32.totalorder %s289, %s305
    %p307 = scmp.eq.s32.totalorder %s24, 0
    %p308 = por %p306, %p307
    %p309 = scmp.le.s32.totalorder 1, %s18
    %p310 = scmp.lt.s32.totalorder %s18, 3
    %p311 = pnand %p309, %p310
    %p312 = pneg %p311
    // Predicated region
    $region9: #{refine_block_fwd.12} parent=5 // pred_check
      _
    $region10: #{refine_block_fwd.12} parent=5 // pred_check_branch
      %314 = sbr.rel (%p311) target = $region12
    $region11: #{refine_block_fwd.12} parent=5 // pred_region
      %s315 = ssub.s32 %s18, 1
      // Predicated region
      $region13: #{refine_block_fwd.12} parent=11 // pred_check
        %p316 = pneg %p65
      $region14: #{refine_block_fwd.12} parent=11 // pred_check_branch
        %318 = sbr.rel (%p316) target = $region16
      $region15: #{refine_block_fwd.12} parent=11 // pred_region
        _
      $region16: #{refine_block_fwd.12} parent=11 // pred_fallthru
        _
      // Predicated region
      $region17: #{refine_block_fwd.12} parent=11 // pred_check
        %p319 = pneg %p86
      $region18: #{refine_block_fwd.12} parent=11 // pred_check_branch
        %321 = sbr.rel (%p319) target = $region20
      $region19: #{refine_block_fwd.12} parent=11 // pred_region
        _
      $region20: #{refine_block_fwd.12} parent=11 // pred_fallthru
        _
      // Predicated region
      $region21: #{refine_block_fwd.12} parent=11 // pred_check
        %p322 = pneg %p107
      $region22: #{refine_block_fwd.12} parent=11 // pred_check_branch
        %324 = sbr.rel (%p322) target = $region24
      $region23: #{refine_block_fwd.12} parent=11 // pred_region
        _
      $region24: #{refine_block_fwd.12} parent=11 // pred_fallthru
        _
      // Predicated region
      $region25: #{refine_block_fwd.12} parent=11 // pred_check
        %p325 = pneg %p128
      $region26: #{refine_block_fwd.12} parent=11 // pred_check_branch
        %327 = sbr.rel (%p325) target = $region28
      $region27: #{refine_block_fwd.12} parent=11 // pred_region
        _
      $region28: #{refine_block_fwd.12} parent=11 // pred_fallthru
        _
      // Predicated region
      $region29: #{refine_block_fwd.12} parent=11 // pred_check
        %p328 = pneg %p149
      $region30: #{refine_block_fwd.12} parent=11 // pred_check_branch
        %330 = sbr.rel (%p328) target = $region32
      $region31: #{refine_block_fwd.12} parent=11 // pred_region
        _
      $region32: #{refine_block_fwd.12} parent=11 // pred_fallthru
        _
      // Predicated region
      $region33: #{refine_block_fwd.12} parent=11 // pred_check
        %p331 = pneg %p170
      $region34: #{refine_block_fwd.12} parent=11 // pred_check_branch
        %333 = sbr.rel (%p331) target = $region36
      $region35: #{refine_block_fwd.12} parent=11 // pred_region
        _
      $region36: #{refine_block_fwd.12} parent=11 // pred_fallthru
        _
      // Predicated region
      $region37: #{refine_block_fwd.12} parent=11 // pred_check
        %p334 = pneg %p191
      $region38: #{refine_block_fwd.12} parent=11 // pred_check_branch
        %336 = sbr.rel (%p334) target = $region40
      $region39: #{refine_block_fwd.12} parent=11 // pred_region
        _
      $region40: #{refine_block_fwd.12} parent=11 // pred_fallthru
        _
      // Predicated region
      $region41: #{refine_block_fwd.12} parent=11 // pred_check
        %p337 = pneg %p212
      $region42: #{refine_block_fwd.12} parent=11 // pred_check_branch
        %339 = sbr.rel (%p337) target = $region44
      $region43: #{refine_block_fwd.12} parent=11 // pred_region
        _
      $region44: #{refine_block_fwd.12} parent=11 // pred_fallthru
        _
      // Predicated region
      $region45: #{refine_block_fwd.12} parent=11 // pred_check
        %p340 = pneg %p233
      $region46: #{refine_block_fwd.12} parent=11 // pred_check_branch
        %342 = sbr.rel (%p340) target = $region48
      $region47: #{refine_block_fwd.12} parent=11 // pred_region
        _
      $region48: #{refine_block_fwd.12} parent=11 // pred_fallthru
        _
      // Predicated region
      $region49: #{refine_block_fwd.12} parent=11 // pred_check
        %p343 = pneg %p254
      $region50: #{refine_block_fwd.12} parent=11 // pred_check_branch
        %345 = sbr.rel (%p343) target = $region52
      $region51: #{refine_block_fwd.12} parent=11 // pred_region
        _
      $region52: #{refine_block_fwd.12} parent=11 // pred_fallthru
        _
      // Predicated region
      $region53: #{refine_block_fwd.12} parent=11 // pred_check
        %p346 = pneg %p275
      $region54: #{refine_block_fwd.12} parent=11 // pred_check_branch
        %348 = sbr.rel (%p346) target = $region56
      $region55: #{refine_block_fwd.12} parent=11 // pred_region
        _
      $region56: #{refine_block_fwd.12} parent=11 // pred_fallthru
        _
    $region12: #{refine_block_fwd.12} parent=5 // pred_fallthru
      _
    %p349 = scmp.lt.s32.totalorder %s18, 2
    // Predicated region
    $region57: #{refine_block_fwd.12} parent=5 // pred_check
      %p350 = pneg %p349
    $region58: #{refine_block_fwd.12} parent=5 // pred_check_branch
      %352 = sbr.rel (%p350) target = $region60
    $region59: #{refine_block_fwd.12} parent=5 // pred_region
      // Predicated region
      $region61: #{refine_block_fwd.12} parent=59 // pred_check
        %p353 = pneg %p38
      $region62: #{refine_block_fwd.12} parent=59 // pred_check_branch
        %355 = sbr.rel (%p353) target = $region64
      $region63: #{refine_block_fwd.12} parent=59 // pred_region
        %p356 = scmp.lt.s32.totalorder %s18, 1
        %s357 = scalar_select %p356, %s18, 1
        %s358 = smul.addr %s357, 8
        %s359 = scalar_lea.vmem %s0, %s358
      $region64: #{refine_block_fwd.12} parent=59 // pred_fallthru
        _
    $region60: #{refine_block_fwd.12} parent=5 // pred_fallthru
      _
    %p360 = scmp.le.s32.totalorder 1, %s18
    %p361 = scmp.lt.s32.totalorder %s18, 3
    %p362 = pnand %p360, %p361
    %p363 = pneg %p362
    // Predicated region
    $region65: #{refine_block_fwd.12} parent=5 // pred_check
      _
    $region66: #{refine_block_fwd.12} parent=5 // pred_check_branch
      %365 = sbr.rel (%p362) target = $region68
    $region67: #{refine_block_fwd.12} parent=5 // pred_region
      %s366 = ssub.s32 %s18, 1
      %p367 = scmp.lt.s32.totalorder %s23, 1
      %s368 = scalar_select %p367, %s23, 1
      %s369 = smul.addr %s368, 8
      %s370 = scalar_lea.vmem %s0, %s369
      %p371 = pneg %p44
      %p372 = pneg %p41
      %p373 = pneg %p65
      %p374 = pneg %p62
      %p375 = pneg %p86
      %p376 = pneg %p83
      %p377 = pneg %p107
      %p378 = pneg %p104
      %p379 = pneg %p128
      %p380 = pneg %p125
      %p381 = pneg %p149
      %p382 = pneg %p146
      %p383 = pneg %p170
      %p384 = pneg %p167
      %p385 = pneg %p191
      %p386 = pneg %p188
      %p387 = pneg %p212
      %p388 = pneg %p209
      %p389 = pneg %p233
      %p390 = pneg %p230
      %p391 = pneg %p254
      %p392 = pneg %p251
      %p393 = pneg %p275
      %p394 = pneg %p272
      %p395 = pneg %p301
      %p396 = pneg %p298
      %p397 = scmp.lt.s32.totalorder %s23, 1
      %s398 = scalar_select %p397, %s23, 1
      %s399 = smul.addr %s398, 8
      %s400 = scalar_lea.vmem %s12, %s399
      %p401 = scmp.lt.s32.totalorder %s23, 1
      %s402 = scalar_select %p401, %s23, 1
      %s403 = smul.addr %s402, 8
      %s404 = scalar_lea.vmem %s0, %s403
      %p405 = scmp.lt.s32.totalorder %s23, 1
      %s406 = scalar_select %p405, %s23, 1
      %s407 = smul.addr %s406, 8
      %s408 = scalar_lea.vmem %s12, %s407
      %v409 = vld [vmem:[%s404] sm:$0xff]
      %v410 = vld [vmem:[%s1] sm:$0xff]
      %v411 = vld [vmem:[%s2] sm:$0xff]
      %413 = vset.pattern.permute.xlu0 0
      %414 = vperm.xlu0 %413, %v411
      %v415 = vpop.permute.xlu0 %414
      %vm417 = vcmask 64512
      %v419 = vsel %vm417, %v410, 0
      %421 = vmatprep.subr.mxu0 0.0
      %422 = vmatpush1.msra.mxu0 0.0
      %423 = vmatprep.subr.mxu0 0.0
      %424 = vmatpush1.msra.mxu0 0.0
      %425 = vmatprep.subr.mxu0 0.0
      %426 = vmatpush1.msra.mxu0 0.0
      %427 = vmatprep.subr.mxu0 0.0
      %428 = vmatpush1.msra.mxu0 0.0
      %429 = vmatprep.subr.mxu0 0.0
      %430 = vmatpush1.msra.mxu0 0.0
      %431 = vmatprep.subr.mxu0 0.0
      %432 = vmatpush1.msra.mxu0 0.0
      %433 = vmatprep.subr.mxu0 0.0
      %434 = vmatpush1.msra.mxu0 0.0
      %435 = vmatprep.subr.mxu0 0.0
      %436 = vmatpush1.msra.mxu0 0.0
      %437 = vmatprep.subr.mxu0 0.0
      %438 = vmatpush1.msra.mxu0 0.0
      %439 = vmatprep.subr.mxu0 0.0
      %440 = vmatpush1.msra.mxu0 0.0
      %441 = vmatprep.subr.mxu0 0.0
      %442 = vmatpush1.msra.mxu0 0.0
      %443 = vmatprep.subr.mxu0 0.0
      %444 = vmatpush1.msra.mxu0 0.0
      %445 = vmatprep.subr.mxu0 0.0
      %446 = vmatpush1.msra.mxu0 0.0
      %447 = vmatprep.subr.mxu0 0.0
      %448 = vmatpush1.msra.mxu0 0.0
      %449 = vmatprep.subr.mxu0 0.0
      %450 = vmatpush1.msra.mxu0 0.0
      %451 = vmatprep.subr.mxu0 0.0
      %v452 = vand.u32 %v409, 4294901760
      %453 = vmatpush1.msra.mxu0 %v452
      %454 = vmatprep.subr.mxu0 0.0
      %455 = vmatpush2.msra.mxu0 0.0
      %456 = vmatprep.subr.mxu0 0.0
      %457 = vmatpush2.msra.mxu0 0.0
      %458 = vmatprep.subr.mxu0 0.0
      %459 = vmatpush2.msra.mxu0 0.0
      %460 = vmatprep.subr.mxu0 0.0
      %461 = vmatpush2.msra.mxu0 0.0
      %462 = vmatprep.subr.mxu0 0.0
      %463 = vmatpush2.msra.mxu0 0.0
      %464 = vmatprep.subr.mxu0 0.0
      %465 = vmatpush2.msra.mxu0 0.0
      %466 = vmatprep.subr.mxu0 0.0
      %467 = vmatpush2.msra.mxu0 0.0
      %468 = vmatprep.subr.mxu0 0.0
      %469 = vmatpush2.msra.mxu0 0.0
      %470 = vmatprep.subr.mxu0 0.0
      %471 = vmatpush2.msra.mxu0 0.0
      %472 = vmatprep.subr.mxu0 0.0
      %473 = vmatpush2.msra.mxu0 0.0
      %474 = vmatprep.subr.mxu0 0.0
      %475 = vmatpush2.msra.mxu0 0.0
      %476 = vmatprep.subr.mxu0 0.0
      %477 = vmatpush2.msra.mxu0 0.0
      %478 = vmatprep.subr.mxu0 0.0
      %479 = vmatpush2.msra.mxu0 0.0
      %480 = vmatprep.subr.mxu0 0.0
      %481 = vmatpush2.msra.mxu0 0.0
      %482 = vmatprep.subr.mxu0 0.0
      %483 = vmatpush2.msra.mxu0 0.0
      %484 = vmatprep.subr.mxu0 0.0
      %485 = vmatpush2.msra.mxu0 0.0
      %486 = vmatprep.mubr.f32.mxu0 0.0
      %v487 = vand.u32 %v419, 4294901760
      %v488 = vsub.f32 %v419, %v487
      %v489 = vand.u32 %v488, 4294901760
      %v490 = vsub.f32 %v488, %v489
      %v491 = vand.u32 %v490, 4294901760
      %492 = vmatmul.mubr.f32.gmra.mxu0 %v491
      %v493 = vpop.f32.mrf.mxu0
      %v494 = vadd.f32 %v415, %v493
      %v495 = vpop.f32.mrf.mxu0
      %496 = vdwg.mxu0
      %497 = vmatprep.subr.mxu0 0.0
      %498 = vmatpush1.msra.mxu0 0.0
      %499 = vmatprep.subr.mxu0 0.0
      %500 = vmatpush1.msra.mxu0 0.0
      %501 = vmatprep.subr.mxu0 0.0
      %502 = vmatpush1.msra.mxu0 0.0
      %503 = vmatprep.subr.mxu0 0.0
      %504 = vmatpush1.msra.mxu0 0.0
      %505 = vmatprep.subr.mxu0 0.0
      %506 = vmatpush1.msra.mxu0 0.0
      %507 = vmatprep.subr.mxu0 0.0
      %508 = vmatpush1.msra.mxu0 0.0
      %509 = vmatprep.subr.mxu0 0.0
      %510 = vmatpush1.msra.mxu0 0.0
      %511 = vmatprep.subr.mxu0 0.0
      %512 = vmatpush1.msra.mxu0 0.0
      %513 = vmatprep.subr.mxu0 0.0
      %514 = vmatpush1.msra.mxu0 0.0
      %515 = vmatprep.subr.mxu0 0.0
      %516 = vmatpush1.msra.mxu0 0.0
      %517 = vmatprep.subr.mxu0 0.0
      %518 = vmatpush1.msra.mxu0 0.0
      %519 = vmatprep.subr.mxu0 0.0
      %520 = vmatpush1.msra.mxu0 0.0
      %521 = vmatprep.subr.mxu0 0.0
      %522 = vmatpush1.msra.mxu0 0.0
      %523 = vmatprep.subr.mxu0 0.0
      %524 = vmatpush1.msra.mxu0 0.0
      %525 = vmatprep.subr.mxu0 0.0
      %526 = vmatpush1.msra.mxu0 0.0
      %527 = vmatprep.subr.mxu0 0.0
      %v528 = vand.u32 %v409, 4294901760
      %v529 = vsub.f32 %v409, %v528
      %v530 = vand.u32 %v529, 4294901760
      %v531 = vsub.f32 %v529, %v530
      %v532 = vand.u32 %v531, 4294901760
      %533 = vmatpush1.msra.mxu0 %v532
      %534 = vmatprep.subr.mxu0 0.0
      %535 = vmatpush2.msra.mxu0 0.0
      %536 = vmatprep.subr.mxu0 0.0
      %537 = vmatpush2.msra.mxu0 0.0
      %538 = vmatprep.subr.mxu0 0.0
      %539 = vmatpush2.msra.mxu0 0.0
      %540 = vmatprep.subr.mxu0 0.0
      %541 = vmatpush2.msra.mxu0 0.0
      %542 = vmatprep.subr.mxu0 0.0
      %543 = vmatpush2.msra.mxu0 0.0
      %544 = vmatprep.subr.mxu0 0.0
      %545 = vmatpush2.msra.mxu0 0.0
      %546 = vmatprep.subr.mxu0 0.0
      %547 = vmatpush2.msra.mxu0 0.0
      %548 = vmatprep.subr.mxu0 0.0
      %549 = vmatpush2.msra.mxu0 0.0
      %550 = vmatprep.subr.mxu0 0.0
      %551 = vmatpush2.msra.mxu0 0.0
      %552 = vmatprep.subr.mxu0 0.0
      %553 = vmatpush2.msra.mxu0 0.0
      %554 = vmatprep.subr.mxu0 0.0
      %555 = vmatpush2.msra.mxu0 0.0
      %556 = vmatprep.subr.mxu0 0.0
      %557 = vmatpush2.msra.mxu0 0.0
      %558 = vmatprep.subr.mxu0 0.0
      %559 = vmatpush2.msra.mxu0 0.0
      %560 = vmatprep.subr.mxu0 0.0
      %561 = vmatpush2.msra.mxu0 0.0
      %562 = vmatprep.subr.mxu0 0.0
      %563 = vmatpush2.msra.mxu0 0.0
      %564 = vmatprep.subr.mxu0 0.0
      %565 = vmatpush2.msra.mxu0 0.0
      %566 = vmatprep.mubr.f32.mxu0 0.0
      %v567 = vand.u32 %v419, 4294901760
      %568 = vmatmul.mubr.f32.gmra.mxu0 %v567
      %v569 = vpop.f32.mrf.mxu0
      %v570 = vadd.f32 %v494, %v569
      %v571 = vpop.f32.mrf.mxu0
      %572 = vdwg.mxu0
      %573 = vmatprep.subr.mxu0 0.0
      %574 = vmatpush1.msra.mxu0 0.0
      %575 = vmatprep.subr.mxu0 0.0
      %576 = vmatpush1.msra.mxu0 0.0
      %577 = vmatprep.subr.mxu0 0.0
      %578 = vmatpush1.msra.mxu0 0.0
      %579 = vmatprep.subr.mxu0 0.0
      %580 = vmatpush1.msra.mxu0 0.0
      %581 = vmatprep.subr.mxu0 0.0
      %582 = vmatpush1.msra.mxu0 0.0
      %583 = vmatprep.subr.mxu0 0.0
      %584 = vmatpush1.msra.mxu0 0.0
      %585 = vmatprep.subr.mxu0 0.0
      %586 = vmatpush1.msra.mxu0 0.0
      %587 = vmatprep.subr.mxu0 0.0
      %588 = vmatpush1.msra.mxu0 0.0
      %589 = vmatprep.subr.mxu0 0.0
      %590 = vmatpush1.msra.mxu0 0.0
      %591 = vmatprep.subr.mxu0 0.0
      %592 = vmatpush1.msra.mxu0 0.0
      %593 = vmatprep.subr.mxu0 0.0
      %594 = vmatpush1.msra.mxu0 0.0
      %595 = vmatprep.subr.mxu0 0.0
      %596 = vmatpush1.msra.mxu0 0.0
      %597 = vmatprep.subr.mxu0 0.0
      %598 = vmatpush1.msra.mxu0 0.0
      %599 = vmatprep.subr.mxu0 0.0
      %600 = vmatpush1.msra.mxu0 0.0
      %601 = vmatprep.subr.mxu0 0.0
      %602 = vmatpush1.msra.mxu0 0.0
      %603 = vmatprep.subr.mxu0 0.0
      %v604 = vand.u32 %v409, 4294901760
      %v605 = vsub.f32 %v409, %v604
      %606 = vmatpush1.msra.mxu0 %v605
      %607 = vmatprep.subr.mxu0 0.0
      %608 = vmatpush2.msra.mxu0 0.0
      %609 = vmatprep.subr.mxu0 0.0
      %610 = vmatpush2.msra.mxu0 0.0
      %611 = vmatprep.subr.mxu0 0.0
      %612 = vmatpush2.msra.mxu0 0.0
      %613 = vmatprep.subr.mxu0 0.0
      %614 = vmatpush2.msra.mxu0 0.0
      %615 = vmatprep.subr.mxu0 0.0
      %616 = vmatpush2.msra.mxu0 0.0
      %617 = vmatprep.subr.mxu0 0.0
      %618 = vmatpush2.msra.mxu0 0.0
      %619 = vmatprep.subr.mxu0 0.0
      %620 = vmatpush2.msra.mxu0 0.0
      %621 = vmatprep.subr.mxu0 0.0
      %622 = vmatpush2.msra.mxu0 0.0
      %623 = vmatprep.subr.mxu0 0.0
      %624 = vmatpush2.msra.mxu0 0.0
      %625 = vmatprep.subr.mxu0 0.0
      %626 = vmatpush2.msra.mxu0 0.0
      %627 = vmatprep.subr.mxu0 0.0
      %628 = vmatpush2.msra.mxu0 0.0
      %629 = vmatprep.subr.mxu0 0.0
      %630 = vmatpush2.msra.mxu0 0.0
      %631 = vmatprep.subr.mxu0 0.0
      %632 = vmatpush2.msra.mxu0 0.0
      %633 = vmatprep.subr.mxu0 0.0
      %634 = vmatpush2.msra.mxu0 0.0
      %635 = vmatprep.subr.mxu0 0.0
      %636 = vmatpush2.msra.mxu0 0.0
      %637 = vmatprep.subr.mxu0 0.0
      %638 = vmatpush2.msra.mxu0 0.0
      %639 = vmatprep.mubr.f32.mxu0 0.0
      %v640 = vand.u32 %v419, 4294901760
      %v641 = vsub.f32 %v419, %v640
      %642 = vmatmul.mubr.f32.gmra.mxu0 %v641
      %v643 = vpop.f32.mrf.mxu0
      %v644 = vadd.f32 %v570, %v643
      %v645 = vpop.f32.mrf.mxu0
      %646 = vdwg.mxu0
      %647 = vmatprep.subr.mxu0 0.0
      %648 = vmatpush1.msra.mxu0 0.0
      %649 = vmatprep.subr.mxu0 0.0
      %650 = vmatpush1.msra.mxu0 0.0
      %651 = vmatprep.subr.mxu0 0.0
      %652 = vmatpush1.msra.mxu0 0.0
      %653 = vmatprep.subr.mxu0 0.0
      %654 = vmatpush1.msra.mxu0 0.0
      %655 = vmatprep.subr.mxu0 0.0
      %656 = vmatpush1.msra.mxu0 0.0
      %657 = vmatprep.subr.mxu0 0.0
      %658 = vmatpush1.msra.mxu0 0.0
      %659 = vmatprep.subr.mxu0 0.0
      %660 = vmatpush1.msra.mxu0 0.0
      %661 = vmatprep.subr.mxu0 0.0
      %662 = vmatpush1.msra.mxu0 0.0
      %663 = vmatprep.subr.mxu0 0.0
      %664 = vmatpush1.msra.mxu0 0.0
      %665 = vmatprep.subr.mxu0 0.0
      %666 = vmatpush1.msra.mxu0 0.0
      %667 = vmatprep.subr.mxu0 0.0
      %668 = vmatpush1.msra.mxu0 0.0
      %669 = vmatprep.subr.mxu0 0.0
      %670 = vmatpush1.msra.mxu0 0.0
      %671 = vmatprep.subr.mxu0 0.0
      %672 = vmatpush1.msra.mxu0 0.0
      %673 = vmatprep.subr.mxu0 0.0
      %674 = vmatpush1.msra.mxu0 0.0
      %675 = vmatprep.subr.mxu0 0.0
      %676 = vmatpush1.msra.mxu0 0.0
      %677 = vmatprep.subr.mxu0 0.0
      %v678 = vand.u32 %v409, 4294901760
      %679 = vmatpush1.msra.mxu0 %v678
      %680 = vmatprep.subr.mxu0 0.0
      %681 = vmatpush2.msra.mxu0 0.0
      %682 = vmatprep.subr.mxu0 0.0
      %683 = vmatpush2.msra.mxu0 0.0
      %684 = vmatprep.subr.mxu0 0.0
      %685 = vmatpush2.msra.mxu0 0.0
      %686 = vmatprep.subr.mxu0 0.0
      %687 = vmatpush2.msra.mxu0 0.0
      %688 = vmatprep.subr.mxu0 0.0
      %689 = vmatpush2.msra.mxu0 0.0
      %690 = vmatprep.subr.mxu0 0.0
      %691 = vmatpush2.msra.mxu0 0.0
      %692 = vmatprep.subr.mxu0 0.0
      %693 = vmatpush2.msra.mxu0 0.0
      %694 = vmatprep.subr.mxu0 0.0
      %695 = vmatpush2.msra.mxu0 0.0
      %696 = vmatprep.subr.mxu0 0.0
      %697 = vmatpush2.msra.mxu0 0.0
      %698 = vmatprep.subr.mxu0 0.0
      %699 = vmatpush2.msra.mxu0 0.0
      %700 = vmatprep.subr.mxu0 0.0
      %701 = vmatpush2.msra.mxu0 0.0
      %702 = vmatprep.subr.mxu0 0.0
      %703 = vmatpush2.msra.mxu0 0.0
      %704 = vmatprep.subr.mxu0 0.0
      %705 = vmatpush2.msra.mxu0 0.0
      %706 = vmatprep.subr.mxu0 0.0
      %707 = vmatpush2.msra.mxu0 0.0
      %708 = vmatprep.subr.mxu0 0.0
      %709 = vmatpush2.msra.mxu0 0.0
      %710 = vmatprep.subr.mxu0 0.0
      %711 = vmatpush2.msra.mxu0 0.0
      %712 = vmatprep.mubr.f32.mxu0 0.0
      %v713 = vand.u32 %v419, 4294901760
      %v714 = vsub.f32 %v419, %v713
      %v715 = vand.u32 %v714, 4294901760
      %716 = vmatmul.mubr.f32.gmra.mxu0 %v715
      %v717 = vpop.f32.mrf.mxu0
      %v718 = vadd.f32 %v644, %v717
      %v719 = vpop.f32.mrf.mxu0
      %720 = vdwg.mxu0
      %721 = vmatprep.subr.mxu0 0.0
      %722 = vmatpush1.msra.mxu0 0.0
      %723 = vmatprep.subr.mxu0 0.0
      %724 = vmatpush1.msra.mxu0 0.0
      %725 = vmatprep.subr.mxu0 0.0
      %726 = vmatpush1.msra.mxu0 0.0
      %727 = vmatprep.subr.mxu0 0.0
      %728 = vmatpush1.msra.mxu0 0.0
      %729 = vmatprep.subr.mxu0 0.0
      %730 = vmatpush1.msra.mxu0 0.0
      %731 = vmatprep.subr.mxu0 0.0
      %732 = vmatpush1.msra.mxu0 0.0
      %733 = vmatprep.subr.mxu0 0.0
      %734 = vmatpush1.msra.mxu0 0.0
      %735 = vmatprep.subr.mxu0 0.0
      %736 = vmatpush1.msra.mxu0 0.0
      %737 = vmatprep.subr.mxu0 0.0
      %738 = vmatpush1.msra.mxu0 0.0
      %739 = vmatprep.subr.mxu0 0.0
      %740 = vmatpush1.msra.mxu0 0.0
      %741 = vmatprep.subr.mxu0 0.0
      %742 = vmatpush1.msra.mxu0 0.0
      %743 = vmatprep.subr.mxu0 0.0
      %744 = vmatpush1.msra.mxu0 0.0
      %745 = vmatprep.subr.mxu0 0.0
      %746 = vmatpush1.msra.mxu0 0.0
      %747 = vmatprep.subr.mxu0 0.0
      %748 = vmatpush1.msra.mxu0 0.0
      %749 = vmatprep.subr.mxu0 0.0
      %750 = vmatpush1.msra.mxu0 0.0
      %751 = vmatprep.subr.mxu0 0.0
      %v752 = vand.u32 %v409, 4294901760
      %v753 = vsub.f32 %v409, %v752
      %v754 = vand.u32 %v753, 4294901760
      %755 = vmatpush1.msra.mxu0 %v754
      %756 = vmatprep.subr.mxu0 0.0
      %757 = vmatpush2.msra.mxu0 0.0
      %758 = vmatprep.subr.mxu0 0.0
      %759 = vmatpush2.msra.mxu0 0.0
      %760 = vmatprep.subr.mxu0 0.0
      %761 = vmatpush2.msra.mxu0 0.0
      %762 = vmatprep.subr.mxu0 0.0
      %763 = vmatpush2.msra.mxu0 0.0
      %764 = vmatprep.subr.mxu0 0.0
      %765 = vmatpush2.msra.mxu0 0.0
      %766 = vmatprep.subr.mxu0 0.0
      %767 = vmatpush2.msra.mxu0 0.0
      %768 = vmatprep.subr.mxu0 0.0
      %769 = vmatpush2.msra.mxu0 0.0
      %770 = vmatprep.subr.mxu0 0.0
      %771 = vmatpush2.msra.mxu0 0.0
      %772 = vmatprep.subr.mxu0 0.0
      %773 = vmatpush2.msra.mxu0 0.0
      %774 = vmatprep.subr.mxu0 0.0
      %775 = vmatpush2.msra.mxu0 0.0
      %776 = vmatprep.subr.mxu0 0.0
      %777 = vmatpush2.msra.mxu0 0.0
      %778 = vmatprep.subr.mxu0 0.0
      %779 = vmatpush2.msra.mxu0 0.0
      %780 = vmatprep.subr.mxu0 0.0
      %781 = vmatpush2.msra.mxu0 0.0
      %782 = vmatprep.subr.mxu0 0.0
      %783 = vmatpush2.msra.mxu0 0.0
      %784 = vmatprep.subr.mxu0 0.0
      %785 = vmatpush2.msra.mxu0 0.0
      %786 = vmatprep.subr.mxu0 0.0
      %787 = vmatpush2.msra.mxu0 0.0
      %788 = vmatprep.mubr.f32.mxu0 0.0
      %v789 = vand.u32 %v419, 4294901760
      %790 = vmatmul.mubr.f32.gmra.mxu0 %v789
      %v791 = vpop.f32.mrf.mxu0
      %v792 = vadd.f32 %v718, %v791
      %v793 = vpop.f32.mrf.mxu0
      %794 = vdwg.mxu0
      %795 = vmatprep.subr.mxu0 0.0
      %796 = vmatpush1.msra.mxu0 0.0
      %797 = vmatprep.subr.mxu0 0.0
      %798 = vmatpush1.msra.mxu0 0.0
      %799 = vmatprep.subr.mxu0 0.0
      %800 = vmatpush1.msra.mxu0 0.0
      %801 = vmatprep.subr.mxu0 0.0
      %802 = vmatpush1.msra.mxu0 0.0
      %803 = vmatprep.subr.mxu0 0.0
      %804 = vmatpush1.msra.mxu0 0.0
      %805 = vmatprep.subr.mxu0 0.0
      %806 = vmatpush1.msra.mxu0 0.0
      %807 = vmatprep.subr.mxu0 0.0
      %808 = vmatpush1.msra.mxu0 0.0
      %809 = vmatprep.subr.mxu0 0.0
      %810 = vmatpush1.msra.mxu0 0.0
      %811 = vmatprep.subr.mxu0 0.0
      %812 = vmatpush1.msra.mxu0 0.0
      %813 = vmatprep.subr.mxu0 0.0
      %814 = vmatpush1.msra.mxu0 0.0
      %815 = vmatprep.subr.mxu0 0.0
      %816 = vmatpush1.msra.mxu0 0.0
      %817 = vmatprep.subr.mxu0 0.0
      %818 = vmatpush1.msra.mxu0 0.0
      %819 = vmatprep.subr.mxu0 0.0
      %820 = vmatpush1.msra.mxu0 0.0
      %821 = vmatprep.subr.mxu0 0.0
      %822 = vmatpush1.msra.mxu0 0.0
      %823 = vmatprep.subr.mxu0 0.0
      %824 = vmatpush1.msra.mxu0 0.0
      %825 = vmatprep.subr.mxu0 0.0
      %v826 = vand.u32 %v409, 4294901760
      %827 = vmatpush1.msra.mxu0 %v826
      %828 = vmatprep.subr.mxu0 0.0
      %829 = vmatpush2.msra.mxu0 0.0
      %830 = vmatprep.subr.mxu0 0.0
      %831 = vmatpush2.msra.mxu0 0.0
      %832 = vmatprep.subr.mxu0 0.0
      %833 = vmatpush2.msra.mxu0 0.0
      %834 = vmatprep.subr.mxu0 0.0
      %835 = vmatpush2.msra.mxu0 0.0
      %836 = vmatprep.subr.mxu0 0.0
      %837 = vmatpush2.msra.mxu0 0.0
      %838 = vmatprep.subr.mxu0 0.0
      %839 = vmatpush2.msra.mxu0 0.0
      %840 = vmatprep.subr.mxu0 0.0
      %841 = vmatpush2.msra.mxu0 0.0
      %842 = vmatprep.subr.mxu0 0.0
      %843 = vmatpush2.msra.mxu0 0.0
      %844 = vmatprep.subr.mxu0 0.0
      %845 = vmatpush2.msra.mxu0 0.0
      %846 = vmatprep.subr.mxu0 0.0
      %847 = vmatpush2.msra.mxu0 0.0
      %848 = vmatprep.subr.mxu0 0.0
      %849 = vmatpush2.msra.mxu0 0.0
      %850 = vmatprep.subr.mxu0 0.0
      %851 = vmatpush2.msra.mxu0 0.0
      %852 = vmatprep.subr.mxu0 0.0
      %853 = vmatpush2.msra.mxu0 0.0
      %854 = vmatprep.subr.mxu0 0.0
      %855 = vmatpush2.msra.mxu0 0.0
      %856 = vmatprep.subr.mxu0 0.0
      %857 = vmatpush2.msra.mxu0 0.0
      %858 = vmatprep.subr.mxu0 0.0
      %859 = vmatpush2.msra.mxu0 0.0
      %860 = vmatprep.mubr.f32.mxu0 0.0
      %v861 = vand.u32 %v419, 4294901760
      %862 = vmatmul.mubr.f32.gmra.mxu0 %v861
      %v863 = vpop.f32.mrf.mxu0
      %v864 = vadd.f32 %v792, %v863
      %v865 = vpop.f32.mrf.mxu0
      %866 = vdwg.mxu0
      %v867 = vld [vmem:[%s9] sm:$0xff]
      %v868 = vld [vmem:[%s10] sm:$0xff]
      %v869 = vld [vmem:[%s11] sm:$0xff]
      %v870 = vmax.f32 %v864, 0.0
      %v871 = vmin.f32 %v864, 0.0
      %873 = vset.pattern.permute.xlu0 0
      %874 = vperm.xlu0 %873, %v867
      %v875 = vpop.permute.xlu0 %874
      %v877 = vmul.f32 %v875, %v871
      %v878 = vadd.f32 %v870, %v877
      %vm879 = vcmask 130048
      %v880 = vsel %vm879, %v878, 0.0
      %v881 = vrot.slane %v880, 4
      %v882 = vadd.f32 %v880, %v881
      %v883 = vrot.slane %v882, 2
      %v884 = vadd.f32 %v882, %v883
      %v885 = vrot.slane %v884, 1
      %v886 = vadd.f32 %v884, %v885
      %v887 = vmul.f32 %v878, %v878
      %v888 = vsel %vm879, %v887, 0.0
      %v889 = vrot.slane %v888, 4
      %v890 = vadd.f32 %v888, %v889
      %v891 = vrot.slane %v890, 2
      %v892 = vadd.f32 %v890, %v891
      %v893 = vrot.slane %v892, 1
      %v894 = vadd.f32 %v892, %v893
      %vm895 = vcmask 1040384
      %v896 = vsel %vm895, %v886, %v894
      %v897 = vlaneseq
      %v898 = vshrl.u32 %v897, 7
      %v899 = vadd.s32 %v898, 8
      %v900 = vlaneseq
      %v901 = vand.u32 %v900, 127
      %vm902 = vcmp.le.s32.totalorder %v898, %v901
      %vm903 = vcmp.le.s32.totalorder %v899, %v901
      %v904 = vsel %vm902, 1, 0
      %v905 = vsel %vm903, 1, 0
      %v906 = vcvt.s32.f32 %v904
      %v907 = vcvt.s32.f32 %v905
      %v909 = vsel %vm879, %v896, 0
      %911 = vmatprep.subr.mxu0 0.0
      %912 = vmatpush1.msra.mxu0 0.0
      %913 = vmatprep.subr.mxu0 0.0
      %914 = vmatpush1.msra.mxu0 0.0
      %915 = vmatprep.subr.mxu0 0.0
      %916 = vmatpush1.msra.mxu0 0.0
      %917 = vmatprep.subr.mxu0 0.0
      %918 = vmatpush1.msra.mxu0 0.0
      %919 = vmatprep.subr.mxu0 0.0
      %920 = vmatpush1.msra.mxu0 0.0
      %921 = vmatprep.subr.mxu0 0.0
      %922 = vmatpush1.msra.mxu0 0.0
      %923 = vmatprep.subr.mxu0 0.0
      %924 = vmatpush1.msra.mxu0 0.0
      %925 = vmatprep.subr.mxu0 0.0
      %926 = vmatpush1.msra.mxu0 0.0
      %927 = vmatprep.subr.mxu0 0.0
      %928 = vmatpush1.msra.mxu0 0.0
      %929 = vmatprep.subr.mxu0 0.0
      %930 = vmatpush1.msra.mxu0 0.0
      %931 = vmatprep.subr.mxu0 0.0
      %932 = vmatpush1.msra.mxu0 0.0
      %933 = vmatprep.subr.mxu0 0.0
      %934 = vmatpush1.msra.mxu0 0.0
      %935 = vmatprep.subr.mxu0 0.0
      %936 = vmatpush1.msra.mxu0 0.0
      %937 = vmatprep.subr.mxu0 0.0
      %938 = vmatpush1.msra.mxu0 0.0
      %939 = vmatprep.subr.mxu0 0.0
      %v940 = vand.u32 %v907, 4294901760
      %941 = vmatpush1.msra.mxu0 %v940
      %942 = vmatprep.subr.mxu0 0.0
      %v943 = vand.u32 %v906, 4294901760
      %944 = vmatpush1.msra.mxu0 %v943
      %945 = vmatprep.subr.mxu0 0.0
      %946 = vmatpush2.msra.mxu0 0.0
      %947 = vmatprep.subr.mxu0 0.0
      %948 = vmatpush2.msra.mxu0 0.0
      %949 = vmatprep.subr.mxu0 0.0
      %950 = vmatpush2.msra.mxu0 0.0
      %951 = vmatprep.subr.mxu0 0.0
      %952 = vmatpush2.msra.mxu0 0.0
      %953 = vmatprep.subr.mxu0 0.0
      %954 = vmatpush2.msra.mxu0 0.0
      %955 = vmatprep.subr.mxu0 0.0
      %956 = vmatpush2.msra.mxu0 0.0
      %957 = vmatprep.subr.mxu0 0.0
      %958 = vmatpush2.msra.mxu0 0.0
      %959 = vmatprep.subr.mxu0 0.0
      %960 = vmatpush2.msra.mxu0 0.0
      %961 = vmatprep.subr.mxu0 0.0
      %962 = vmatpush2.msra.mxu0 0.0
      %963 = vmatprep.subr.mxu0 0.0
      %964 = vmatpush2.msra.mxu0 0.0
      %965 = vmatprep.subr.mxu0 0.0
      %966 = vmatpush2.msra.mxu0 0.0
      %967 = vmatprep.subr.mxu0 0.0
      %968 = vmatpush2.msra.mxu0 0.0
      %969 = vmatprep.subr.mxu0 0.0
      %970 = vmatpush2.msra.mxu0 0.0
      %971 = vmatprep.subr.mxu0 0.0
      %972 = vmatpush2.msra.mxu0 0.0
      %973 = vmatprep.subr.mxu0 0.0
      %974 = vmatpush2.msra.mxu0 0.0
      %975 = vmatprep.subr.mxu0 0.0
      %976 = vmatpush2.msra.mxu0 0.0
      %977 = vmatprep.mubr.f32.mxu0 0.0
      %v978 = vand.u32 %v909, 4294901760
      %v979 = vsub.f32 %v909, %v978
      %v980 = vand.u32 %v979, 4294901760
      %v981 = vsub.f32 %v979, %v980
      %v982 = vand.u32 %v981, 4294901760
      %983 = vmatmul.mubr.f32.gmra.mxu0 %v982
      %v984 = vpop.f32.mrf.mxu0
      %v985 = vadd.f32 0.0, %v984
      %v986 = vpop.f32.mrf.mxu0
      %987 = vdwg.mxu0
      %988 = vmatprep.subr.mxu0 0.0
      %989 = vmatpush1.msra.mxu0 0.0
      %990 = vmatprep.subr.mxu0 0.0
      %991 = vmatpush1.msra.mxu0 0.0
      %992 = vmatprep.subr.mxu0 0.0
      %993 = vmatpush1.msra.mxu0 0.0
      %994 = vmatprep.subr.mxu0 0.0
      %995 = vmatpush1.msra.mxu0 0.0
      %996 = vmatprep.subr.mxu0 0.0
      %997 = vmatpush1.msra.mxu0 0.0
      %998 = vmatprep.subr.mxu0 0.0
      %999 = vmatpush1.msra.mxu0 0.0
      %1000 = vmatprep.subr.mxu0 0.0
      %1001 = vmatpush1.msra.mxu0 0.0
      %1002 = vmatprep.subr.mxu0 0.0
      %1003 = vmatpush1.msra.mxu0 0.0
      %1004 = vmatprep.subr.mxu0 0.0
      %1005 = vmatpush1.msra.mxu0 0.0
      %1006 = vmatprep.subr.mxu0 0.0
      %1007 = vmatpush1.msra.mxu0 0.0
      %1008 = vmatprep.subr.mxu0 0.0
      %1009 = vmatpush1.msra.mxu0 0.0
      %1010 = vmatprep.subr.mxu0 0.0
      %1011 = vmatpush1.msra.mxu0 0.0
      %1012 = vmatprep.subr.mxu0 0.0
      %1013 = vmatpush1.msra.mxu0 0.0
      %1014 = vmatprep.subr.mxu0 0.0
      %1015 = vmatpush1.msra.mxu0 0.0
      %1016 = vmatprep.subr.mxu0 0.0
      %v1017 = vand.u32 %v907, 4294901760
      %v1018 = vsub.f32 %v907, %v1017
      %v1019 = vand.u32 %v1018, 4294901760
      %v1020 = vsub.f32 %v1018, %v1019
      %v1021 = vand.u32 %v1020, 4294901760
      %1022 = vmatpush1.msra.mxu0 %v1021
      %1023 = vmatprep.subr.mxu0 0.0
      %v1024 = vand.u32 %v906, 4294901760
      %v1025 = vsub.f32 %v906, %v1024
      %v1026 = vand.u32 %v1025, 4294901760
      %v1027 = vsub.f32 %v1025, %v1026
      %v1028 = vand.u32 %v1027, 4294901760
      %1029 = vmatpush1.msra.mxu0 %v1028
      %1030 = vmatprep.subr.mxu0 0.0
      %1031 = vmatpush2.msra.mxu0 0.0
      %1032 = vmatprep.subr.mxu0 0.0
      %1033 = vmatpush2.msra.mxu0 0.0
      %1034 = vmatprep.subr.mxu0 0.0
      %1035 = vmatpush2.msra.mxu0 0.0
      %1036 = vmatprep.subr.mxu0 0.0
      %1037 = vmatpush2.msra.mxu0 0.0
      %1038 = vmatprep.subr.mxu0 0.0
      %1039 = vmatpush2.msra.mxu0 0.0
      %1040 = vmatprep.subr.mxu0 0.0
      %1041 = vmatpush2.msra.mxu0 0.0
      %1042 = vmatprep.subr.mxu0 0.0
      %1043 = vmatpush2.msra.mxu0 0.0
      %1044 = vmatprep.subr.mxu0 0.0
      %1045 = vmatpush2.msra.mxu0 0.0
      %1046 = vmatprep.subr.mxu0 0.0
      %1047 = vmatpush2.msra.mxu0 0.0
      %1048 = vmatprep.subr.mxu0 0.0
      %1049 = vmatpush2.msra.mxu0 0.0
      %1050 = vmatprep.subr.mxu0 0.0
      %1051 = vmatpush2.msra.mxu0 0.0
      %1052 = vmatprep.subr.mxu0 0.0
      %1053 = vmatpush2.msra.mxu0 0.0
      %1054 = vmatprep.subr.mxu0 0.0
      %1055 = vmatpush2.msra.mxu0 0.0
      %1056 = vmatprep.subr.mxu0 0.0
      %1057 = vmatpush2.msra.mxu0 0.0
      %1058 = vmatprep.subr.mxu0 0.0
      %1059 = vmatpush2.msra.mxu0 0.0
      %1060 = vmatprep.subr.mxu0 0.0
      %1061 = vmatpush2.msra.mxu0 0.0
      %1062 = vmatprep.mubr.f32.mxu0 0.0
      %v1063 = vand.u32 %v909, 4294901760
      %1064 = vmatmul.mubr.f32.gmra.mxu0 %v1063
      %v1065 = vpop.f32.mrf.mxu0
      %v1066 = vadd.f32 %v985, %v1065
      %v1067 = vpop.f32.mrf.mxu0
      %1068 = vdwg.mxu0
      %1069 = vmatprep.subr.mxu0 0.0
      %1070 = vmatpush1.msra.mxu0 0.0
      %1071 = vmatprep.subr.mxu0 0.0
      %1072 = vmatpush1.msra.mxu0 0.0
      %1073 = vmatprep.subr.mxu0 0.0
      %1074 = vmatpush1.msra.mxu0 0.0
      %1075 = vmatprep.subr.mxu0 0.0
      %1076 = vmatpush1.msra.mxu0 0.0
      %1077 = vmatprep.subr.mxu0 0.0
      %1078 = vmatpush1.msra.mxu0 0.0
      %1079 = vmatprep.subr.mxu0 0.0
      %1080 = vmatpush1.msra.mxu0 0.0
      %1081 = vmatprep.subr.mxu0 0.0
      %1082 = vmatpush1.msra.mxu0 0.0
      %1083 = vmatprep.subr.mxu0 0.0
      %1084 = vmatpush1.msra.mxu0 0.0
      %1085 = vmatprep.subr.mxu0 0.0
      %1086 = vmatpush1.msra.mxu0 0.0
      %1087 = vmatprep.subr.mxu0 0.0
      %1088 = vmatpush1.msra.mxu0 0.0
      %1089 = vmatprep.subr.mxu0 0.0
      %1090 = vmatpush1.msra.mxu0 0.0
      %1091 = vmatprep.subr.mxu0 0.0
      %1092 = vmatpush1.msra.mxu0 0.0
      %1093 = vmatprep.subr.mxu0 0.0
      %1094 = vmatpush1.msra.mxu0 0.0
      %1095 = vmatprep.subr.mxu0 0.0
      %1096 = vmatpush1.msra.mxu0 0.0
      %1097 = vmatprep.subr.mxu0 0.0
      %v1098 = vand.u32 %v907, 4294901760
      %v1099 = vsub.f32 %v907, %v1098
      %1100 = vmatpush1.msra.mxu0 %v1099
      %1101 = vmatprep.subr.mxu0 0.0
      %v1102 = vand.u32 %v906, 4294901760
      %v1103 = vsub.f32 %v906, %v1102
      %1104 = vmatpush1.msra.mxu0 %v1103
      %1105 = vmatprep.subr.mxu0 0.0
      %1106 = vmatpush2.msra.mxu0 0.0
      %1107 = vmatprep.subr.mxu0 0.0
      %1108 = vmatpush2.msra.mxu0 0.0
      %1109 = vmatprep.subr.mxu0 0.0
      %1110 = vmatpush2.msra.mxu0 0.0
      %1111 = vmatprep.subr.mxu0 0.0
      %1112 = vmatpush2.msra.mxu0 0.0
      %1113 = vmatprep.subr.mxu0 0.0
      %1114 = vmatpush2.msra.mxu0 0.0
      %1115 = vmatprep.subr.mxu0 0.0
      %1116 = vmatpush2.msra.mxu0 0.0
      %1117 = vmatprep.subr.mxu0 0.0
      %1118 = vmatpush2.msra.mxu0 0.0
      %1119 = vmatprep.subr.mxu0 0.0
      %1120 = vmatpush2.msra.mxu0 0.0
      %1121 = vmatprep.subr.mxu0 0.0
      %1122 = vmatpush2.msra.mxu0 0.0
      %1123 = vmatprep.subr.mxu0 0.0
      %1124 = vmatpush2.msra.mxu0 0.0
      %1125 = vmatprep.subr.mxu0 0.0
      %1126 = vmatpush2.msra.mxu0 0.0
      %1127 = vmatprep.subr.mxu0 0.0
      %1128 = vmatpush2.msra.mxu0 0.0
      %1129 = vmatprep.subr.mxu0 0.0
      %1130 = vmatpush2.msra.mxu0 0.0
      %1131 = vmatprep.subr.mxu0 0.0
      %1132 = vmatpush2.msra.mxu0 0.0
      %1133 = vmatprep.subr.mxu0 0.0
      %1134 = vmatpush2.msra.mxu0 0.0
      %1135 = vmatprep.subr.mxu0 0.0
      %1136 = vmatpush2.msra.mxu0 0.0
      %1137 = vmatprep.mubr.f32.mxu0 0.0
      %v1138 = vand.u32 %v909, 4294901760
      %v1139 = vsub.f32 %v909, %v1138
      %1140 = vmatmul.mubr.f32.gmra.mxu0 %v1139
      %v1141 = vpop.f32.mrf.mxu0
      %v1142 = vadd.f32 %v1066, %v1141
      %v1143 = vpop.f32.mrf.mxu0
      %1144 = vdwg.mxu0
      %1145 = vmatprep.subr.mxu0 0.0
      %1146 = vmatpush1.msra.mxu0 0.0
      %1147 = vmatprep.subr.mxu0 0.0
      %1148 = vmatpush1.msra.mxu0 0.0
      %1149 = vmatprep.subr.mxu0 0.0
      %1150 = vmatpush1.msra.mxu0 0.0
      %1151 = vmatprep.subr.mxu0 0.0
      %1152 = vmatpush1.msra.mxu0 0.0
      %1153 = vmatprep.subr.mxu0 0.0
      %1154 = vmatpush1.msra.mxu0 0.0
      %1155 = vmatprep.subr.mxu0 0.0
      %1156 = vmatpush1.msra.mxu0 0.0
      %1157 = vmatprep.subr.mxu0 0.0
      %1158 = vmatpush1.msra.mxu0 0.0
      %1159 = vmatprep.subr.mxu0 0.0
      %1160 = vmatpush1.msra.mxu0 0.0
      %1161 = vmatprep.subr.mxu0 0.0
      %1162 = vmatpush1.msra.mxu0 0.0
      %1163 = vmatprep.subr.mxu0 0.0
      %1164 = vmatpush1.msra.mxu0 0.0
      %1165 = vmatprep.subr.mxu0 0.0
      %1166 = vmatpush1.msra.mxu0 0.0
      %1167 = vmatprep.subr.mxu0 0.0
      %1168 = vmatpush1.msra.mxu0 0.0
      %1169 = vmatprep.subr.mxu0 0.0
      %1170 = vmatpush1.msra.mxu0 0.0
      %1171 = vmatprep.subr.mxu0 0.0
      %1172 = vmatpush1.msra.mxu0 0.0
      %1173 = vmatprep.subr.mxu0 0.0
      %v1174 = vand.u32 %v907, 4294901760
      %1175 = vmatpush1.msra.mxu0 %v1174
      %1176 = vmatprep.subr.mxu0 0.0
      %v1177 = vand.u32 %v906, 4294901760
      %1178 = vmatpush1.msra.mxu0 %v1177
      %1179 = vmatprep.subr.mxu0 0.0
      %1180 = vmatpush2.msra.mxu0 0.0
      %1181 = vmatprep.subr.mxu0 0.0
      %1182 = vmatpush2.msra.mxu0 0.0
      %1183 = vmatprep.subr.mxu0 0.0
      %1184 = vmatpush2.msra.mxu0 0.0
      %1185 = vmatprep.subr.mxu0 0.0
      %1186 = vmatpush2.msra.mxu0 0.0
      %1187 = vmatprep.subr.mxu0 0.0
      %1188 = vmatpush2.msra.mxu0 0.0
      %1189 = vmatprep.subr.mxu0 0.0
      %1190 = vmatpush2.msra.mxu0 0.0
      %1191 = vmatprep.subr.mxu0 0.0
      %1192 = vmatpush2.msra.mxu0 0.0
      %1193 = vmatprep.subr.mxu0 0.0
      %1194 = vmatpush2.msra.mxu0 0.0
      %1195 = vmatprep.subr.mxu0 0.0
      %1196 = vmatpush2.msra.mxu0 0.0
      %1197 = vmatprep.subr.mxu0 0.0
      %1198 = vmatpush2.msra.mxu0 0.0
      %1199 = vmatprep.subr.mxu0 0.0
      %1200 = vmatpush2.msra.mxu0 0.0
      %1201 = vmatprep.subr.mxu0 0.0
      %1202 = vmatpush2.msra.mxu0 0.0
      %1203 = vmatprep.subr.mxu0 0.0
      %1204 = vmatpush2.msra.mxu0 0.0
      %1205 = vmatprep.subr.mxu0 0.0
      %1206 = vmatpush2.msra.mxu0 0.0
      %1207 = vmatprep.subr.mxu0 0.0
      %1208 = vmatpush2.msra.mxu0 0.0
      %1209 = vmatprep.subr.mxu0 0.0
      %1210 = vmatpush2.msra.mxu0 0.0
      %1211 = vmatprep.mubr.f32.mxu0 0.0
      %v1212 = vand.u32 %v909, 4294901760
      %v1213 = vsub.f32 %v909, %v1212
      %v1214 = vand.u32 %v1213, 4294901760
      %1215 = vmatmul.mubr.f32.gmra.mxu0 %v1214
      %v1216 = vpop.f32.mrf.mxu0
      %v1217 = vadd.f32 %v1142, %v1216
      %v1218 = vpop.f32.mrf.mxu0
      %1219 = vdwg.mxu0
      %1220 = vmatprep.subr.mxu0 0.0
      %1221 = vmatpush1.msra.mxu0 0.0
      %1222 = vmatprep.subr.mxu0 0.0
      %1223 = vmatpush1.msra.mxu0 0.0
      %1224 = vmatprep.subr.mxu0 0.0
      %1225 = vmatpush1.msra.mxu0 0.0
      %1226 = vmatprep.subr.mxu0 0.0
      %1227 = vmatpush1.msra.mxu0 0.0
      %1228 = vmatprep.subr.mxu0 0.0
      %1229 = vmatpush1.msra.mxu0 0.0
      %1230 = vmatprep.subr.mxu0 0.0
      %1231 = vmatpush1.msra.mxu0 0.0
      %1232 = vmatprep.subr.mxu0 0.0
      %1233 = vmatpush1.msra.mxu0 0.0
      %1234 = vmatprep.subr.mxu0 0.0
      %1235 = vmatpush1.msra.mxu0 0.0
      %1236 = vmatprep.subr.mxu0 0.0
      %1237 = vmatpush1.msra.mxu0 0.0
      %1238 = vmatprep.subr.mxu0 0.0
      %1239 = vmatpush1.msra.mxu0 0.0
      %1240 = vmatprep.subr.mxu0 0.0
      %1241 = vmatpush1.msra.mxu0 0.0
      %1242 = vmatprep.subr.mxu0 0.0
      %1243 = vmatpush1.msra.mxu0 0.0
      %1244 = vmatprep.subr.mxu0 0.0
      %1245 = vmatpush1.msra.mxu0 0.0
      %1246 = vmatprep.subr.mxu0 0.0
      %1247 = vmatpush1.msra.mxu0 0.0
      %1248 = vmatprep.subr.mxu0 0.0
      %v1249 = vand.u32 %v907, 4294901760
      %v1250 = vsub.f32 %v907, %v1249
      %v1251 = vand.u32 %v1250, 4294901760
      %1252 = vmatpush1.msra.mxu0 %v1251
      %1253 = vmatprep.subr.mxu0 0.0
      %v1254 = vand.u32 %v906, 4294901760
      %v1255 = vsub.f32 %v906, %v1254
      %v1256 = vand.u32 %v1255, 4294901760
      %1257 = vmatpush1.msra.mxu0 %v1256
      %1258 = vmatprep.subr.mxu0 0.0
      %1259 = vmatpush2.msra.mxu0 0.0
      %1260 = vmatprep.subr.mxu0 0.0
      %1261 = vmatpush2.msra.mxu0 0.0
      %1262 = vmatprep.subr.mxu0 0.0
      %1263 = vmatpush2.msra.mxu0 0.0
      %1264 = vmatprep.subr.mxu0 0.0
      %1265 = vmatpush2.msra.mxu0 0.0
      %1266 = vmatprep.subr.mxu0 0.0
      %1267 = vmatpush2.msra.mxu0 0.0
      %1268 = vmatprep.subr.mxu0 0.0
      %1269 = vmatpush2.msra.mxu0 0.0
      %1270 = vmatprep.subr.mxu0 0.0
      %1271 = vmatpush2.msra.mxu0 0.0
      %1272 = vmatprep.subr.mxu0 0.0
      %1273 = vmatpush2.msra.mxu0 0.0
      %1274 = vmatprep.subr.mxu0 0.0
      %1275 = vmatpush2.msra.mxu0 0.0
      %1276 = vmatprep.subr.mxu0 0.0
      %1277 = vmatpush2.msra.mxu0 0.0
      %1278 = vmatprep.subr.mxu0 0.0
      %1279 = vmatpush2.msra.mxu0 0.0
      %1280 = vmatprep.subr.mxu0 0.0
      %1281 = vmatpush2.msra.mxu0 0.0
      %1282 = vmatprep.subr.mxu0 0.0
      %1283 = vmatpush2.msra.mxu0 0.0
      %1284 = vmatprep.subr.mxu0 0.0
      %1285 = vmatpush2.msra.mxu0 0.0
      %1286 = vmatprep.subr.mxu0 0.0
      %1287 = vmatpush2.msra.mxu0 0.0
      %1288 = vmatprep.subr.mxu0 0.0
      %1289 = vmatpush2.msra.mxu0 0.0
      %1290 = vmatprep.mubr.f32.mxu0 0.0
      %v1291 = vand.u32 %v909, 4294901760
      %1292 = vmatmul.mubr.f32.gmra.mxu0 %v1291
      %v1293 = vpop.f32.mrf.mxu0
      %v1294 = vadd.f32 %v1217, %v1293
      %v1295 = vpop.f32.mrf.mxu0
      %1296 = vdwg.mxu0
      %1297 = vmatprep.subr.mxu0 0.0
      %1298 = vmatpush1.msra.mxu0 0.0
      %1299 = vmatprep.subr.mxu0 0.0
      %1300 = vmatpush1.msra.mxu0 0.0
      %1301 = vmatprep.subr.mxu0 0.0
      %1302 = vmatpush1.msra.mxu0 0.0
      %1303 = vmatprep.subr.mxu0 0.0
      %1304 = vmatpush1.msra.mxu0 0.0
      %1305 = vmatprep.subr.mxu0 0.0
      %1306 = vmatpush1.msra.mxu0 0.0
      %1307 = vmatprep.subr.mxu0 0.0
      %1308 = vmatpush1.msra.mxu0 0.0
      %1309 = vmatprep.subr.mxu0 0.0
      %1310 = vmatpush1.msra.mxu0 0.0
      %1311 = vmatprep.subr.mxu0 0.0
      %1312 = vmatpush1.msra.mxu0 0.0
      %1313 = vmatprep.subr.mxu0 0.0
      %1314 = vmatpush1.msra.mxu0 0.0
      %1315 = vmatprep.subr.mxu0 0.0
      %1316 = vmatpush1.msra.mxu0 0.0
      %1317 = vmatprep.subr.mxu0 0.0
      %1318 = vmatpush1.msra.mxu0 0.0
      %1319 = vmatprep.subr.mxu0 0.0
      %1320 = vmatpush1.msra.mxu0 0.0
      %1321 = vmatprep.subr.mxu0 0.0
      %1322 = vmatpush1.msra.mxu0 0.0
      %1323 = vmatprep.subr.mxu0 0.0
      %1324 = vmatpush1.msra.mxu0 0.0
      %1325 = vmatprep.subr.mxu0 0.0
      %v1326 = vand.u32 %v907, 4294901760
      %1327 = vmatpush1.msra.mxu0 %v1326
      %1328 = vmatprep.subr.mxu0 0.0
      %v1329 = vand.u32 %v906, 4294901760
      %1330 = vmatpush1.msra.mxu0 %v1329
      %1331 = vmatprep.subr.mxu0 0.0
      %1332 = vmatpush2.msra.mxu0 0.0
      %1333 = vmatprep.subr.mxu0 0.0
      %1334 = vmatpush2.msra.mxu0 0.0
      %1335 = vmatprep.subr.mxu0 0.0
      %1336 = vmatpush2.msra.mxu0 0.0
      %1337 = vmatprep.subr.mxu0 0.0
      %1338 = vmatpush2.msra.mxu0 0.0
      %1339 = vmatprep.subr.mxu0 0.0
      %1340 = vmatpush2.msra.mxu0 0.0
      %1341 = vmatprep.subr.mxu0 0.0
      %1342 = vmatpush2.msra.mxu0 0.0
      %1343 = vmatprep.subr.mxu0 0.0
      %1344 = vmatpush2.msra.mxu0 0.0
      %1345 = vmatprep.subr.mxu0 0.0
      %1346 = vmatpush2.msra.mxu0 0.0
      %1347 = vmatprep.subr.mxu0 0.0
      %1348 = vmatpush2.msra.mxu0 0.0
      %1349 = vmatprep.subr.mxu0 0.0
      %1350 = vmatpush2.msra.mxu0 0.0
      %1351 = vmatprep.subr.mxu0 0.0
      %1352 = vmatpush2.msra.mxu0 0.0
      %1353 = vmatprep.subr.mxu0 0.0
      %1354 = vmatpush2.msra.mxu0 0.0
      %1355 = vmatprep.subr.mxu0 0.0
      %1356 = vmatpush2.msra.mxu0 0.0
      %1357 = vmatprep.subr.mxu0 0.0
      %1358 = vmatpush2.msra.mxu0 0.0
      %1359 = vmatprep.subr.mxu0 0.0
      %1360 = vmatpush2.msra.mxu0 0.0
      %1361 = vmatprep.subr.mxu0 0.0
      %1362 = vmatpush2.msra.mxu0 0.0
      %1363 = vmatprep.mubr.f32.mxu0 0.0
      %v1364 = vand.u32 %v909, 4294901760
      %1365 = vmatmul.mubr.f32.gmra.mxu0 %v1364
      %v1366 = vpop.f32.mrf.mxu0
      %v1367 = vadd.f32 %v1294, %v1366
      %v1368 = vpop.f32.mrf.mxu0
      %1369 = vdwg.mxu0
      %v1370 = vcvt.s32.f32 %v901
      %v1371 = vadd.f32 %v1370, 1.0
      %v1372 = vmul.f32 %v1371, 8.0
      %v1373 = vrcp.pop %v1372
      %v1374 = vmul.f32 %v1367, %v1373
      %v1375 = vmul.f32 %v1374, 2.0
      %v1376 = vmul.f32 %v1375, %v1367
      %v1378 = vrot.slane %v1376, 7
      %v1380 = vsub.f32 %v1367, %v1378
      %v1381 = vmul.f32 %v1380, %v1373
      %v1382 = vmul.f32 %v1374, %v1374
      %v1384 = vrot.slane %v1382, 7
      %v1386 = vadd.f32 %v1381, %v1384
      %v1387 = vadd.f32 %v1386, 1e-05
      %v1388 = vrsqrt.pop %v1387
      %v1389 = vlaneseq
      %v1390 = vshrl.u32 %v1389, 7
      %v1391 = vsub.s32 0, %v1390
      %v1392 = vrot.slane %v1374, %v1391
      %v1393 = vsub.f32 %v878, %v1392
      %v1394 = vlaneseq
      %v1395 = vshrl.u32 %v1394, 7
      %v1396 = vsub.s32 1, %v1395
      %v1397 = vrot.slane %v1388, %v1396
      %v1398 = vmul.f32 %v1393, %v1397
      %1400 = vset.pattern.permute.xlu0 0
      %1401 = vperm.xlu0 %1400, %v868
      %v1402 = vpop.permute.xlu0 %1401
      %v1404 = vmul.f32 %v1398, %v1402
      %1406 = vset.pattern.permute.xlu0 0
      %1407 = vperm.xlu0 %1406, %v869
      %v1408 = vpop.permute.xlu0 %1407
      %v1410 = vadd.f32 %v1404, %v1408
      %v1411 = vld [vmem:[%s3] sm:$0xff]
      %v1412 = vld [vmem:[%s4] sm:$0xff]
      %1414 = vrot.lane.b32.xlu0 %v1410, 4
      %v1415 = vpop.permute.xlu0 %1414
      %vm1417 = vcmask 31744
      %v1418 = vsel %vm1417, 0.0, %v1415
      %1420 = vrot.lane.b32.xlu0 %v1418, 126
      %v1421 = vpop.permute.xlu0 %1420
      %1423 = vrot.lane.b32.xlu0 %v1418, 124
      %v1424 = vpop.permute.xlu0 %1423
      %1427 = vset.pattern.permute.xlu0 0
      %1428 = vperm.xlu0 %1427, %v1412
      %v1429 = vpop.permute.xlu0 %1428
      %vm1431 = vcmask 195584
      %v1433 = vsel %vm1431, %v1411, 0
      %1435 = vmatprep.subr.mxu0 0.0
      %1436 = vmatpush1.msra.mxu0 0.0
      %1437 = vmatprep.subr.mxu0 0.0
      %1438 = vmatpush1.msra.mxu0 0.0
      %1439 = vmatprep.subr.mxu0 0.0
      %1440 = vmatpush1.msra.mxu0 0.0
      %1441 = vmatprep.subr.mxu0 0.0
      %1442 = vmatpush1.msra.mxu0 0.0
      %1443 = vmatprep.subr.mxu0 0.0
      %1444 = vmatpush1.msra.mxu0 0.0
      %1445 = vmatprep.subr.mxu0 0.0
      %1446 = vmatpush1.msra.mxu0 0.0
      %1447 = vmatprep.subr.mxu0 0.0
      %1448 = vmatpush1.msra.mxu0 0.0
      %1449 = vmatprep.subr.mxu0 0.0
      %1450 = vmatpush1.msra.mxu0 0.0
      %1451 = vmatprep.subr.mxu0 0.0
      %1452 = vmatpush1.msra.mxu0 0.0
      %1453 = vmatprep.subr.mxu0 0.0
      %1454 = vmatpush1.msra.mxu0 0.0
      %1455 = vmatprep.subr.mxu0 0.0
      %1456 = vmatpush1.msra.mxu0 0.0
      %1457 = vmatprep.subr.mxu0 0.0
      %1458 = vmatpush1.msra.mxu0 0.0
      %1459 = vmatprep.subr.mxu0 0.0
      %1460 = vmatpush1.msra.mxu0 0.0
      %1461 = vmatprep.subr.mxu0 0.0
      %v1462 = vand.u32 %v1424, 4294901760
      %1463 = vmatpush1.msra.mxu0 %v1462
      %1464 = vmatprep.subr.mxu0 0.0
      %v1465 = vand.u32 %v1421, 4294901760
      %1466 = vmatpush1.msra.mxu0 %v1465
      %1467 = vmatprep.subr.mxu0 0.0
      %v1468 = vand.u32 %v1418, 4294901760
      %1469 = vmatpush1.msra.mxu0 %v1468
      %1470 = vmatprep.subr.mxu0 0.0
      %1471 = vmatpush2.msra.mxu0 0.0
      %1472 = vmatprep.subr.mxu0 0.0
      %1473 = vmatpush2.msra.mxu0 0.0
      %1474 = vmatprep.subr.mxu0 0.0
      %1475 = vmatpush2.msra.mxu0 0.0
      %1476 = vmatprep.subr.mxu0 0.0
      %1477 = vmatpush2.msra.mxu0 0.0
      %1478 = vmatprep.subr.mxu0 0.0
      %1479 = vmatpush2.msra.mxu0 0.0
      %1480 = vmatprep.subr.mxu0 0.0
      %1481 = vmatpush2.msra.mxu0 0.0
      %1482 = vmatprep.subr.mxu0 0.0
      %1483 = vmatpush2.msra.mxu0 0.0
      %1484 = vmatprep.subr.mxu0 0.0
      %1485 = vmatpush2.msra.mxu0 0.0
      %1486 = vmatprep.subr.mxu0 0.0
      %1487 = vmatpush2.msra.mxu0 0.0
      %1488 = vmatprep.subr.mxu0 0.0
      %1489 = vmatpush2.msra.mxu0 0.0
      %1490 = vmatprep.subr.mxu0 0.0
      %1491 = vmatpush2.msra.mxu0 0.0
      %1492 = vmatprep.subr.mxu0 0.0
      %1493 = vmatpush2.msra.mxu0 0.0
      %1494 = vmatprep.subr.mxu0 0.0
      %1495 = vmatpush2.msra.mxu0 0.0
      %1496 = vmatprep.subr.mxu0 0.0
      %1497 = vmatpush2.msra.mxu0 0.0
      %1498 = vmatprep.subr.mxu0 0.0
      %1499 = vmatpush2.msra.mxu0 0.0
      %1500 = vmatprep.subr.mxu0 0.0
      %1501 = vmatpush2.msra.mxu0 0.0
      %1502 = vmatprep.mubr.f32.mxu0 0.0
      %v1503 = vand.u32 %v1433, 4294901760
      %v1504 = vsub.f32 %v1433, %v1503
      %v1505 = vand.u32 %v1504, 4294901760
      %v1506 = vsub.f32 %v1504, %v1505
      %v1507 = vand.u32 %v1506, 4294901760
      %1508 = vmatmul.mubr.f32.gmra.mxu0 %v1507
      %v1509 = vpop.f32.mrf.mxu0
      %v1510 = vadd.f32 %v1429, %v1509
      %v1511 = vpop.f32.mrf.mxu0
      %1512 = vdwg.mxu0
      %1513 = vmatprep.subr.mxu0 0.0
      %1514 = vmatpush1.msra.mxu0 0.0
      %1515 = vmatprep.subr.mxu0 0.0
      %1516 = vmatpush1.msra.mxu0 0.0
      %1517 = vmatprep.subr.mxu0 0.0
      %1518 = vmatpush1.msra.mxu0 0.0
      %1519 = vmatprep.subr.mxu0 0.0
      %1520 = vmatpush1.msra.mxu0 0.0
      %1521 = vmatprep.subr.mxu0 0.0
      %1522 = vmatpush1.msra.mxu0 0.0
      %1523 = vmatprep.subr.mxu0 0.0
      %1524 = vmatpush1.msra.mxu0 0.0
      %1525 = vmatprep.subr.mxu0 0.0
      %1526 = vmatpush1.msra.mxu0 0.0
      %1527 = vmatprep.subr.mxu0 0.0
      %1528 = vmatpush1.msra.mxu0 0.0
      %1529 = vmatprep.subr.mxu0 0.0
      %1530 = vmatpush1.msra.mxu0 0.0
      %1531 = vmatprep.subr.mxu0 0.0
      %1532 = vmatpush1.msra.mxu0 0.0
      %1533 = vmatprep.subr.mxu0 0.0
      %1534 = vmatpush1.msra.mxu0 0.0
      %1535 = vmatprep.subr.mxu0 0.0
      %1536 = vmatpush1.msra.mxu0 0.0
      %1537 = vmatprep.subr.mxu0 0.0
      %1538 = vmatpush1.msra.mxu0 0.0
      %1539 = vmatprep.subr.mxu0 0.0
      %v1540 = vand.u32 %v1424, 4294901760
      %v1541 = vsub.f32 %v1424, %v1540
      %v1542 = vand.u32 %v1541, 4294901760
      %v1543 = vsub.f32 %v1541, %v1542
      %v1544 = vand.u32 %v1543, 4294901760
      %1545 = vmatpush1.msra.mxu0 %v1544
      %1546 = vmatprep.subr.mxu0 0.0
      %v1547 = vand.u32 %v1421, 4294901760
      %v1548 = vsub.f32 %v1421, %v1547
      %v1549 = vand.u32 %v1548, 4294901760
      %v1550 = vsub.f32 %v1548, %v1549
      %v1551 = vand.u32 %v1550, 4294901760
      %1552 = vmatpush1.msra.mxu0 %v1551
      %1553 = vmatprep.subr.mxu0 0.0
      %v1554 = vand.u32 %v1418, 4294901760
      %v1555 = vsub.f32 %v1418, %v1554
      %v1556 = vand.u32 %v1555, 4294901760
      %v1557 = vsub.f32 %v1555, %v1556
      %v1558 = vand.u32 %v1557, 4294901760
      %1559 = vmatpush1.msra.mxu0 %v1558
      %1560 = vmatprep.subr.mxu0 0.0
      %1561 = vmatpush2.msra.mxu0 0.0
      %1562 = vmatprep.subr.mxu0 0.0
      %1563 = vmatpush2.msra.mxu0 0.0
      %1564 = vmatprep.subr.mxu0 0.0
      %1565 = vmatpush2.msra.mxu0 0.0
      %1566 = vmatprep.subr.mxu0 0.0
      %1567 = vmatpush2.msra.mxu0 0.0
      %1568 = vmatprep.subr.mxu0 0.0
      %1569 = vmatpush2.msra.mxu0 0.0
      %1570 = vmatprep.subr.mxu0 0.0
      %1571 = vmatpush2.msra.mxu0 0.0
      %1572 = vmatprep.subr.mxu0 0.0
      %1573 = vmatpush2.msra.mxu0 0.0
      %1574 = vmatprep.subr.mxu0 0.0
      %1575 = vmatpush2.msra.mxu0 0.0
      %1576 = vmatprep.subr.mxu0 0.0
      %1577 = vmatpush2.msra.mxu0 0.0
      %1578 = vmatprep.subr.mxu0 0.0
      %1579 = vmatpush2.msra.mxu0 0.0
      %1580 = vmatprep.subr.mxu0 0.0
      %1581 = vmatpush2.msra.mxu0 0.0
      %1582 = vmatprep.subr.mxu0 0.0
      %1583 = vmatpush2.msra.mxu0 0.0
      %1584 = vmatprep.subr.mxu0 0.0
      %1585 = vmatpush2.msra.mxu0 0.0
      %1586 = vmatprep.subr.mxu0 0.0
      %1587 = vmatpush2.msra.mxu0 0.0
      %1588 = vmatprep.subr.mxu0 0.0
      %1589 = vmatpush2.msra.mxu0 0.0
      %1590 = vmatprep.subr.mxu0 0.0
      %1591 = vmatpush2.msra.mxu0 0.0
      %1592 = vmatprep.mubr.f32.mxu0 0.0
      %v1593 = vand.u32 %v1433, 4294901760
      %1594 = vmatmul.mubr.f32.gmra.mxu0 %v1593
      %v1595 = vpop.f32.mrf.mxu0
      %v1596 = vadd.f32 %v1510, %v1595
      %v1597 = vpop.f32.mrf.mxu0
      %1598 = vdwg.mxu0
      %1599 = vmatprep.subr.mxu0 0.0
      %1600 = vmatpush1.msra.mxu0 0.0
      %1601 = vmatprep.subr.mxu0 0.0
      %1602 = vmatpush1.msra.mxu0 0.0
      %1603 = vmatprep.subr.mxu0 0.0
      %1604 = vmatpush1.msra.mxu0 0.0
      %1605 = vmatprep.subr.mxu0 0.0
      %1606 = vmatpush1.msra.mxu0 0.0
      %1607 = vmatprep.subr.mxu0 0.0
      %1608 = vmatpush1.msra.mxu0 0.0
      %1609 = vmatprep.subr.mxu0 0.0
      %1610 = vmatpush1.msra.mxu0 0.0
      %1611 = vmatprep.subr.mxu0 0.0
      %1612 = vmatpush1.msra.mxu0 0.0
      %1613 = vmatprep.subr.mxu0 0.0
      %1614 = vmatpush1.msra.mxu0 0.0
      %1615 = vmatprep.subr.mxu0 0.0
      %1616 = vmatpush1.msra.mxu0 0.0
      %1617 = vmatprep.subr.mxu0 0.0
      %1618 = vmatpush1.msra.mxu0 0.0
      %1619 = vmatprep.subr.mxu0 0.0
      %1620 = vmatpush1.msra.mxu0 0.0
      %1621 = vmatprep.subr.mxu0 0.0
      %1622 = vmatpush1.msra.mxu0 0.0
      %1623 = vmatprep.subr.mxu0 0.0
      %1624 = vmatpush1.msra.mxu0 0.0
      %1625 = vmatprep.subr.mxu0 0.0
      %v1626 = vand.u32 %v1424, 4294901760
      %v1627 = vsub.f32 %v1424, %v1626
      %1628 = vmatpush1.msra.mxu0 %v1627
      %1629 = vmatprep.subr.mxu0 0.0
      %v1630 = vand.u32 %v1421, 4294901760
      %v1631 = vsub.f32 %v1421, %v1630
      %1632 = vmatpush1.msra.mxu0 %v1631
      %1633 = vmatprep.subr.mxu0 0.0
      %v1634 = vand.u32 %v1418, 4294901760
      %v1635 = vsub.f32 %v1418, %v1634
      %1636 = vmatpush1.msra.mxu0 %v1635
      %1637 = vmatprep.subr.mxu0 0.0
      %1638 = vmatpush2.msra.mxu0 0.0
      %1639 = vmatprep.subr.mxu0 0.0
      %1640 = vmatpush2.msra.mxu0 0.0
      %1641 = vmatprep.subr.mxu0 0.0
      %1642 = vmatpush2.msra.mxu0 0.0
      %1643 = vmatprep.subr.mxu0 0.0
      %1644 = vmatpush2.msra.mxu0 0.0
      %1645 = vmatprep.subr.mxu0 0.0
      %1646 = vmatpush2.msra.mxu0 0.0
      %1647 = vmatprep.subr.mxu0 0.0
      %1648 = vmatpush2.msra.mxu0 0.0
      %1649 = vmatprep.subr.mxu0 0.0
      %1650 = vmatpush2.msra.mxu0 0.0
      %1651 = vmatprep.subr.mxu0 0.0
      %1652 = vmatpush2.msra.mxu0 0.0
      %1653 = vmatprep.subr.mxu0 0.0
      %1654 = vmatpush2.msra.mxu0 0.0
      %1655 = vmatprep.subr.mxu0 0.0
      %1656 = vmatpush2.msra.mxu0 0.0
      %1657 = vmatprep.subr.mxu0 0.0
      %1658 = vmatpush2.msra.mxu0 0.0
      %1659 = vmatprep.subr.mxu0 0.0
      %1660 = vmatpush2.msra.mxu0 0.0
      %1661 = vmatprep.subr.mxu0 0.0
      %1662 = vmatpush2.msra.mxu0 0.0
      %1663 = vmatprep.subr.mxu0 0.0
      %1664 = vmatpush2.msra.mxu0 0.0
      %1665 = vmatprep.subr.mxu0 0.0
      %1666 = vmatpush2.msra.mxu0 0.0
      %1667 = vmatprep.subr.mxu0 0.0
      %1668 = vmatpush2.msra.mxu0 0.0
      %1669 = vmatprep.mubr.f32.mxu0 0.0
      %v1670 = vand.u32 %v1433, 4294901760
      %v1671 = vsub.f32 %v1433, %v1670
      %1672 = vmatmul.mubr.f32.gmra.mxu0 %v1671
      %v1673 = vpop.f32.mrf.mxu0
      %v1674 = vadd.f32 %v1596, %v1673
      %v1675 = vpop.f32.mrf.mxu0
      %1676 = vdwg.mxu0
      %1677 = vmatprep.subr.mxu0 0.0
      %1678 = vmatpush1.msra.mxu0 0.0
      %1679 = vmatprep.subr.mxu0 0.0
      %1680 = vmatpush1.msra.mxu0 0.0
      %1681 = vmatprep.subr.mxu0 0.0
      %1682 = vmatpush1.msra.mxu0 0.0
      %1683 = vmatprep.subr.mxu0 0.0
      %1684 = vmatpush1.msra.mxu0 0.0
      %1685 = vmatprep.subr.mxu0 0.0
      %1686 = vmatpush1.msra.mxu0 0.0
      %1687 = vmatprep.subr.mxu0 0.0
      %1688 = vmatpush1.msra.mxu0 0.0
      %1689 = vmatprep.subr.mxu0 0.0
      %1690 = vmatpush1.msra.mxu0 0.0
      %1691 = vmatprep.subr.mxu0 0.0
      %1692 = vmatpush1.msra.mxu0 0.0
      %1693 = vmatprep.subr.mxu0 0.0
      %1694 = vmatpush1.msra.mxu0 0.0
      %1695 = vmatprep.subr.mxu0 0.0
      %1696 = vmatpush1.msra.mxu0 0.0
      %1697 = vmatprep.subr.mxu0 0.0
      %1698 = vmatpush1.msra.mxu0 0.0
      %1699 = vmatprep.subr.mxu0 0.0
      %1700 = vmatpush1.msra.mxu0 0.0
      %1701 = vmatprep.subr.mxu0 0.0
      %1702 = vmatpush1.msra.mxu0 0.0
      %1703 = vmatprep.subr.mxu0 0.0
      %v1704 = vand.u32 %v1424, 4294901760
      %1705 = vmatpush1.msra.mxu0 %v1704
      %1706 = vmatprep.subr.mxu0 0.0
      %v1707 = vand.u32 %v1421, 4294901760
      %1708 = vmatpush1.msra.mxu0 %v1707
      %1709 = vmatprep.subr.mxu0 0.0
      %v1710 = vand.u32 %v1418, 4294901760
      %1711 = vmatpush1.msra.mxu0 %v1710
      %1712 = vmatprep.subr.mxu0 0.0
      %1713 = vmatpush2.msra.mxu0 0.0
      %1714 = vmatprep.subr.mxu0 0.0
      %1715 = vmatpush2.msra.mxu0 0.0
      %1716 = vmatprep.subr.mxu0 0.0
      %1717 = vmatpush2.msra.mxu0 0.0
      %1718 = vmatprep.subr.mxu0 0.0
      %1719 = vmatpush2.msra.mxu0 0.0
      %1720 = vmatprep.subr.mxu0 0.0
      %1721 = vmatpush2.msra.mxu0 0.0
      %1722 = vmatprep.subr.mxu0 0.0
      %1723 = vmatpush2.msra.mxu0 0.0
      %1724 = vmatprep.subr.mxu0 0.0
      %1725 = vmatpush2.msra.mxu0 0.0
      %1726 = vmatprep.subr.mxu0 0.0
      %1727 = vmatpush2.msra.mxu0 0.0
      %1728 = vmatprep.subr.mxu0 0.0
      %1729 = vmatpush2.msra.mxu0 0.0
      %1730 = vmatprep.subr.mxu0 0.0
      %1731 = vmatpush2.msra.mxu0 0.0
      %1732 = vmatprep.subr.mxu0 0.0
      %1733 = vmatpush2.msra.mxu0 0.0
      %1734 = vmatprep.subr.mxu0 0.0
      %1735 = vmatpush2.msra.mxu0 0.0
      %1736 = vmatprep.subr.mxu0 0.0
      %1737 = vmatpush2.msra.mxu0 0.0
      %1738 = vmatprep.subr.mxu0 0.0
      %1739 = vmatpush2.msra.mxu0 0.0
      %1740 = vmatprep.subr.mxu0 0.0
      %1741 = vmatpush2.msra.mxu0 0.0
      %1742 = vmatprep.subr.mxu0 0.0
      %1743 = vmatpush2.msra.mxu0 0.0
      %1744 = vmatprep.mubr.f32.mxu0 0.0
      %v1745 = vand.u32 %v1433, 4294901760
      %v1746 = vsub.f32 %v1433, %v1745
      %v1747 = vand.u32 %v1746, 4294901760
      %1748 = vmatmul.mubr.f32.gmra.mxu0 %v1747
      %v1749 = vpop.f32.mrf.mxu0
      %v1750 = vadd.f32 %v1674, %v1749
      %v1751 = vpop.f32.mrf.mxu0
      %1752 = vdwg.mxu0
      %1753 = vmatprep.subr.mxu0 0.0
      %1754 = vmatpush1.msra.mxu0 0.0
      %1755 = vmatprep.subr.mxu0 0.0
      %1756 = vmatpush1.msra.mxu0 0.0
      %1757 = vmatprep.subr.mxu0 0.0
      %1758 = vmatpush1.msra.mxu0 0.0
      %1759 = vmatprep.subr.mxu0 0.0
      %1760 = vmatpush1.msra.mxu0 0.0
      %1761 = vmatprep.subr.mxu0 0.0
      %1762 = vmatpush1.msra.mxu0 0.0
      %1763 = vmatprep.subr.mxu0 0.0
      %1764 = vmatpush1.msra.mxu0 0.0
      %1765 = vmatprep.subr.mxu0 0.0
      %1766 = vmatpush1.msra.mxu0 0.0
      %1767 = vmatprep.subr.mxu0 0.0
      %1768 = vmatpush1.msra.mxu0 0.0
      %1769 = vmatprep.subr.mxu0 0.0
      %1770 = vmatpush1.msra.mxu0 0.0
      %1771 = vmatprep.subr.mxu0 0.0
      %1772 = vmatpush1.msra.mxu0 0.0
      %1773 = vmatprep.subr.mxu0 0.0
      %1774 = vmatpush1.msra.mxu0 0.0
      %1775 = vmatprep.subr.mxu0 0.0
      %1776 = vmatpush1.msra.mxu0 0.0
      %1777 = vmatprep.subr.mxu0 0.0
      %1778 = vmatpush1.msra.mxu0 0.0
      %1779 = vmatprep.subr.mxu0 0.0
      %v1780 = vand.u32 %v1424, 4294901760
      %v1781 = vsub.f32 %v1424, %v1780
      %v1782 = vand.u32 %v1781, 4294901760
      %1783 = vmatpush1.msra.mxu0 %v1782
      %1784 = vmatprep.subr.mxu0 0.0
      %v1785 = vand.u32 %v1421, 4294901760
      %v1786 = vsub.f32 %v1421, %v1785
      %v1787 = vand.u32 %v1786, 4294901760
      %1788 = vmatpush1.msra.mxu0 %v1787
      %1789 = vmatprep.subr.mxu0 0.0
      %v1790 = vand.u32 %v1418, 4294901760
      %v1791 = vsub.f32 %v1418, %v1790
      %v1792 = vand.u32 %v1791, 4294901760
      %1793 = vmatpush1.msra.mxu0 %v1792
      %1794 = vmatprep.subr.mxu0 0.0
      %1795 = vmatpush2.msra.mxu0 0.0
      %1796 = vmatprep.subr.mxu0 0.0
      %1797 = vmatpush2.msra.mxu0 0.0
      %1798 = vmatprep.subr.mxu0 0.0
      %1799 = vmatpush2.msra.mxu0 0.0
      %1800 = vmatprep.subr.mxu0 0.0
      %1801 = vmatpush2.msra.mxu0 0.0
      %1802 = vmatprep.subr.mxu0 0.0
      %1803 = vmatpush2.msra.mxu0 0.0
      %1804 = vmatprep.subr.mxu0 0.0
      %1805 = vmatpush2.msra.mxu0 0.0
      %1806 = vmatprep.subr.mxu0 0.0
      %1807 = vmatpush2.msra.mxu0 0.0
      %1808 = vmatprep.subr.mxu0 0.0
      %1809 = vmatpush2.msra.mxu0 0.0
      %1810 = vmatprep.subr.mxu0 0.0
      %1811 = vmatpush2.msra.mxu0 0.0
      %1812 = vmatprep.subr.mxu0 0.0
      %1813 = vmatpush2.msra.mxu0 0.0
      %1814 = vmatprep.subr.mxu0 0.0
      %1815 = vmatpush2.msra.mxu0 0.0
      %1816 = vmatprep.subr.mxu0 0.0
      %1817 = vmatpush2.msra.mxu0 0.0
      %1818 = vmatprep.subr.mxu0 0.0
      %1819 = vmatpush2.msra.mxu0 0.0
      %1820 = vmatprep.subr.mxu0 0.0
      %1821 = vmatpush2.msra.mxu0 0.0
      %1822 = vmatprep.subr.mxu0 0.0
      %1823 = vmatpush2.msra.mxu0 0.0
      %1824 = vmatprep.subr.mxu0 0.0
      %1825 = vmatpush2.msra.mxu0 0.0
      %1826 = vmatprep.mubr.f32.mxu0 0.0
      %v1827 = vand.u32 %v1433, 4294901760
      %1828 = vmatmul.mubr.f32.gmra.mxu0 %v1827
      %v1829 = vpop.f32.mrf.mxu0
      %v1830 = vadd.f32 %v1750, %v1829
      %v1831 = vpop.f32.mrf.mxu0
      %1832 = vdwg.mxu0
      %1833 = vmatprep.subr.mxu0 0.0
      %1834 = vmatpush1.msra.mxu0 0.0
      %1835 = vmatprep.subr.mxu0 0.0
      %1836 = vmatpush1.msra.mxu0 0.0
      %1837 = vmatprep.subr.mxu0 0.0
      %1838 = vmatpush1.msra.mxu0 0.0
      %1839 = vmatprep.subr.mxu0 0.0
      %1840 = vmatpush1.msra.mxu0 0.0
      %1841 = vmatprep.subr.mxu0 0.0
      %1842 = vmatpush1.msra.mxu0 0.0
      %1843 = vmatprep.subr.mxu0 0.0
      %1844 = vmatpush1.msra.mxu0 0.0
      %1845 = vmatprep.subr.mxu0 0.0
      %1846 = vmatpush1.msra.mxu0 0.0
      %1847 = vmatprep.subr.mxu0 0.0
      %1848 = vmatpush1.msra.mxu0 0.0
      %1849 = vmatprep.subr.mxu0 0.0
      %1850 = vmatpush1.msra.mxu0 0.0
      %1851 = vmatprep.subr.mxu0 0.0
      %1852 = vmatpush1.msra.mxu0 0.0
      %1853 = vmatprep.subr.mxu0 0.0
      %1854 = vmatpush1.msra.mxu0 0.0
      %1855 = vmatprep.subr.mxu0 0.0
      %1856 = vmatpush1.msra.mxu0 0.0
      %1857 = vmatprep.subr.mxu0 0.0
      %1858 = vmatpush1.msra.mxu0 0.0
      %1859 = vmatprep.subr.mxu0 0.0
      %v1860 = vand.u32 %v1424, 4294901760
      %1861 = vmatpush1.msra.mxu0 %v1860
      %1862 = vmatprep.subr.mxu0 0.0
      %v1863 = vand.u32 %v1421, 4294901760
      %1864 = vmatpush1.msra.mxu0 %v1863
      %1865 = vmatprep.subr.mxu0 0.0
      %v1866 = vand.u32 %v1418, 4294901760
      %1867 = vmatpush1.msra.mxu0 %v1866
      %1868 = vmatprep.subr.mxu0 0.0
      %1869 = vmatpush2.msra.mxu0 0.0
      %1870 = vmatprep.subr.mxu0 0.0
      %1871 = vmatpush2.msra.mxu0 0.0
      %1872 = vmatprep.subr.mxu0 0.0
      %1873 = vmatpush2.msra.mxu0 0.0
      %1874 = vmatprep.subr.mxu0 0.0
      %1875 = vmatpush2.msra.mxu0 0.0
      %1876 = vmatprep.subr.mxu0 0.0
      %1877 = vmatpush2.msra.mxu0 0.0
      %1878 = vmatprep.subr.mxu0 0.0
      %1879 = vmatpush2.msra.mxu0 0.0
      %1880 = vmatprep.subr.mxu0 0.0
      %1881 = vmatpush2.msra.mxu0 0.0
      %1882 = vmatprep.subr.mxu0 0.0
      %1883 = vmatpush2.msra.mxu0 0.0
      %1884 = vmatprep.subr.mxu0 0.0
      %1885 = vmatpush2.msra.mxu0 0.0
      %1886 = vmatprep.subr.mxu0 0.0
      %1887 = vmatpush2.msra.mxu0 0.0
      %1888 = vmatprep.subr.mxu0 0.0
      %1889 = vmatpush2.msra.mxu0 0.0
      %1890 = vmatprep.subr.mxu0 0.0
      %1891 = vmatpush2.msra.mxu0 0.0
      %1892 = vmatprep.subr.mxu0 0.0
      %1893 = vmatpush2.msra.mxu0 0.0
      %1894 = vmatprep.subr.mxu0 0.0
      %1895 = vmatpush2.msra.mxu0 0.0
      %1896 = vmatprep.subr.mxu0 0.0
      %1897 = vmatpush2.msra.mxu0 0.0
      %1898 = vmatprep.subr.mxu0 0.0
      %1899 = vmatpush2.msra.mxu0 0.0
      %1900 = vmatprep.mubr.f32.mxu0 0.0
      %v1901 = vand.u32 %v1433, 4294901760
      %1902 = vmatmul.mubr.f32.gmra.mxu0 %v1901
      %v1903 = vpop.f32.mrf.mxu0
      %v1904 = vadd.f32 %v1830, %v1903
      %v1905 = vpop.f32.mrf.mxu0
      %1906 = vdwg.mxu0
      %s1907 = scalar_lea.vmem %s9, 8
      %v1908 = vld [vmem:[%s1907] sm:$0xff]
      %s1909 = scalar_lea.vmem %s10, 8
      %v1910 = vld [vmem:[%s1909] sm:$0xff]
      %s1911 = scalar_lea.vmem %s11, 8
      %v1912 = vld [vmem:[%s1911] sm:$0xff]
      %1914 = vset.pattern.permute.xlu0 0
      %1915 = vperm.xlu0 %1914, %v1908
      %v1916 = vpop.permute.xlu0 %1915
      %v1918 = vmul.f32 %v1916, %v871
      %v1919 = vadd.f32 %v870, %v1918
      %v1920 = vsel %vm879, %v1919, 0.0
      %v1921 = vrot.slane %v1920, 4
      %v1922 = vadd.f32 %v1920, %v1921
      %v1923 = vrot.slane %v1922, 2
      %v1924 = vadd.f32 %v1922, %v1923
      %v1925 = vrot.slane %v1924, 1
      %v1926 = vadd.f32 %v1924, %v1925
      %v1927 = vmul.f32 %v1919, %v1919
      %v1928 = vsel %vm879, %v1927, 0.0
      %v1929 = vrot.slane %v1928, 4
      %v1930 = vadd.f32 %v1928, %v1929
      %v1931 = vrot.slane %v1930, 2
      %v1932 = vadd.f32 %v1930, %v1931
      %v1933 = vrot.slane %v1932, 1
      %v1934 = vadd.f32 %v1932, %v1933
      %v1935 = vsel %vm895, %v1926, %v1934
      %v1937 = vsel %vm879, %v1935, 0
      %1939 = vmatprep.subr.mxu0 0.0
      %1940 = vmatpush1.msra.mxu0 0.0
      %1941 = vmatprep.subr.mxu0 0.0
      %1942 = vmatpush1.msra.mxu0 0.0
      %1943 = vmatprep.subr.mxu0 0.0
      %1944 = vmatpush1.msra.mxu0 0.0
      %1945 = vmatprep.subr.mxu0 0.0
      %1946 = vmatpush1.msra.mxu0 0.0
      %1947 = vmatprep.subr.mxu0 0.0
      %1948 = vmatpush1.msra.mxu0 0.0
      %1949 = vmatprep.subr.mxu0 0.0
      %1950 = vmatpush1.msra.mxu0 0.0
      %1951 = vmatprep.subr.mxu0 0.0
      %1952 = vmatpush1.msra.mxu0 0.0
      %1953 = vmatprep.subr.mxu0 0.0
      %1954 = vmatpush1.msra.mxu0 0.0
      %1955 = vmatprep.subr.mxu0 0.0
      %1956 = vmatpush1.msra.mxu0 0.0
      %1957 = vmatprep.subr.mxu0 0.0
      %1958 = vmatpush1.msra.mxu0 0.0
      %1959 = vmatprep.subr.mxu0 0.0
      %1960 = vmatpush1.msra.mxu0 0.0
      %1961 = vmatprep.subr.mxu0 0.0
      %1962 = vmatpush1.msra.mxu0 0.0
      %1963 = vmatprep.subr.mxu0 0.0
      %1964 = vmatpush1.msra.mxu0 0.0
      %1965 = vmatprep.subr.mxu0 0.0
      %1966 = vmatpush1.msra.mxu0 0.0
      %1967 = vmatprep.subr.mxu0 0.0
      %v1968 = vand.u32 %v907, 4294901760
      %1969 = vmatpush1.msra.mxu0 %v1968
      %1970 = vmatprep.subr.mxu0 0.0
      %v1971 = vand.u32 %v906, 4294901760
      %1972 = vmatpush1.msra.mxu0 %v1971
      %1973 = vmatprep.subr.mxu0 0.0
      %1974 = vmatpush2.msra.mxu0 0.0
      %1975 = vmatprep.subr.mxu0 0.0
      %1976 = vmatpush2.msra.mxu0 0.0
      %1977 = vmatprep.subr.mxu0 0.0
      %1978 = vmatpush2.msra.mxu0 0.0
      %1979 = vmatprep.subr.mxu0 0.0
      %1980 = vmatpush2.msra.mxu0 0.0
      %1981 = vmatprep.subr.mxu0 0.0
      %1982 = vmatpush2.msra.mxu0 0.0
      %1983 = vmatprep.subr.mxu0 0.0
      %1984 = vmatpush2.msra.mxu0 0.0
      %1985 = vmatprep.subr.mxu0 0.0
      %1986 = vmatpush2.msra.mxu0 0.0
      %1987 = vmatprep.subr.mxu0 0.0
      %1988 = vmatpush2.msra.mxu0 0.0
      %1989 = vmatprep.subr.mxu0 0.0
      %1990 = vmatpush2.msra.mxu0 0.0
      %1991 = vmatprep.subr.mxu0 0.0
      %1992 = vmatpush2.msra.mxu0 0.0
      %1993 = vmatprep.subr.mxu0 0.0
      %1994 = vmatpush2.msra.mxu0 0.0
      %1995 = vmatprep.subr.mxu0 0.0
      %1996 = vmatpush2.msra.mxu0 0.0
      %1997 = vmatprep.subr.mxu0 0.0
      %1998 = vmatpush2.msra.mxu0 0.0
      %1999 = vmatprep.subr.mxu0 0.0
      %2000 = vmatpush2.msra.mxu0 0.0
      %2001 = vmatprep.subr.mxu0 0.0
      %2002 = vmatpush2.msra.mxu0 0.0
      %2003 = vmatprep.subr.mxu0 0.0
      %2004 = vmatpush2.msra.mxu0 0.0
      %2005 = vmatprep.mubr.f32.mxu0 0.0
      %v2006 = vand.u32 %v1937, 4294901760
      %v2007 = vsub.f32 %v1937, %v2006
      %v2008 = vand.u32 %v2007, 4294901760
      %v2009 = vsub.f32 %v2007, %v2008
      %v2010 = vand.u32 %v2009, 4294901760
      %2011 = vmatmul.mubr.f32.gmra.mxu0 %v2010
      %v2012 = vpop.f32.mrf.mxu0
      %v2013 = vadd.f32 0.0, %v2012
      %v2014 = vpop.f32.mrf.mxu0
      %2015 = vdwg.mxu0
      %2016 = vmatprep.subr.mxu0 0.0
      %2017 = vmatpush1.msra.mxu0 0.0
      %2018 = vmatprep.subr.mxu0 0.0
      %2019 = vmatpush1.msra.mxu0 0.0
      %2020 = vmatprep.subr.mxu0 0.0
      %2021 = vmatpush1.msra.mxu0 0.0
      %2022 = vmatprep.subr.mxu0 0.0
      %2023 = vmatpush1.msra.mxu0 0.0
      %2024 = vmatprep.subr.mxu0 0.0
      %2025 = vmatpush1.msra.mxu0 0.0
      %2026 = vmatprep.subr.mxu0 0.0
      %2027 = vmatpush1.msra.mxu0 0.0
      %2028 = vmatprep.subr.mxu0 0.0
      %2029 = vmatpush1.msra.mxu0 0.0
      %2030 = vmatprep.subr.mxu0 0.0
      %2031 = vmatpush1.msra.mxu0 0.0
      %2032 = vmatprep.subr.mxu0 0.0
      %2033 = vmatpush1.msra.mxu0 0.0
      %2034 = vmatprep.subr.mxu0 0.0
      %2035 = vmatpush1.msra.mxu0 0.0
      %2036 = vmatprep.subr.mxu0 0.0
      %2037 = vmatpush1.msra.mxu0 0.0
      %2038 = vmatprep.subr.mxu0 0.0
      %2039 = vmatpush1.msra.mxu0 0.0
      %2040 = vmatprep.subr.mxu0 0.0
      %2041 = vmatpush1.msra.mxu0 0.0
      %2042 = vmatprep.subr.mxu0 0.0
      %2043 = vmatpush1.msra.mxu0 0.0
      %2044 = vmatprep.subr.mxu0 0.0
      %v2045 = vand.u32 %v907, 4294901760
      %v2046 = vsub.f32 %v907, %v2045
      %v2047 = vand.u32 %v2046, 4294901760
      %v2048 = vsub.f32 %v2046, %v2047
      %v2049 = vand.u32 %v2048, 4294901760
      %2050 = vmatpush1.msra.mxu0 %v2049
      %2051 = vmatprep.subr.mxu0 0.0
      %v2052 = vand.u32 %v906, 4294901760
      %v2053 = vsub.f32 %v906, %v2052
      %v2054 = vand.u32 %v2053, 4294901760
      %v2055 = vsub.f32 %v2053, %v2054
      %v2056 = vand.u32 %v2055, 4294901760
      %2057 = vmatpush1.msra.mxu0 %v2056
      %2058 = vmatprep.subr.mxu0 0.0
      %2059 = vmatpush2.msra.mxu0 0.0
      %2060 = vmatprep.subr.mxu0 0.0
      %2061 = vmatpush2.msra.mxu0 0.0
      %2062 = vmatprep.subr.mxu0 0.0
      %2063 = vmatpush2.msra.mxu0 0.0
      %2064 = vmatprep.subr.mxu0 0.0
      %2065 = vmatpush2.msra.mxu0 0.0
      %2066 = vmatprep.subr.mxu0 0.0
      %2067 = vmatpush2.msra.mxu0 0.0
      %2068 = vmatprep.subr.mxu0 0.0
      %2069 = vmatpush2.msra.mxu0 0.0
      %2070 = vmatprep.subr.mxu0 0.0
      %2071 = vmatpush2.msra.mxu0 0.0
      %2072 = vmatprep.subr.mxu0 0.0
      %2073 = vmatpush2.msra.mxu0 0.0
      %2074 = vmatprep.subr.mxu0 0.0
      %2075 = vmatpush2.msra.mxu0 0.0
      %2076 = vmatprep.subr.mxu0 0.0
      %2077 = vmatpush2.msra.mxu0 0.0
      %2078 = vmatprep.subr.mxu0 0.0
      %2079 = vmatpush2.msra.mxu0 0.0
      %2080 = vmatprep.subr.mxu0 0.0
      %2081 = vmatpush2.msra.mxu0 0.0
      %2082 = vmatprep.subr.mxu0 0.0
      %2083 = vmatpush2.msra.mxu0 0.0
      %2084 = vmatprep.subr.mxu0 0.0
      %2085 = vmatpush2.msra.mxu0 0.0
      %2086 = vmatprep.subr.mxu0 0.0
      %2087 = vmatpush2.msra.mxu0 0.0
      %2088 = vmatprep.subr.mxu0 0.0
      %2089 = vmatpush2.msra.mxu0 0.0
      %2090 = vmatprep.mubr.f32.mxu0 0.0
      %v2091 = vand.u32 %v1937, 4294901760
      %2092 = vmatmul.mubr.f32.gmra.mxu0 %v2091
      %v2093 = vpop.f32.mrf.mxu0
      %v2094 = vadd.f32 %v2013, %v2093
      %v2095 = vpop.f32.mrf.mxu0
      %2096 = vdwg.mxu0
      %2097 = vmatprep.subr.mxu0 0.0
      %2098 = vmatpush1.msra.mxu0 0.0
      %2099 = vmatprep.subr.mxu0 0.0
      %2100 = vmatpush1.msra.mxu0 0.0
      %2101 = vmatprep.subr.mxu0 0.0
      %2102 = vmatpush1.msra.mxu0 0.0
      %2103 = vmatprep.subr.mxu0 0.0
      %2104 = vmatpush1.msra.mxu0 0.0
      %2105 = vmatprep.subr.mxu0 0.0
      %2106 = vmatpush1.msra.mxu0 0.0
      %2107 = vmatprep.subr.mxu0 0.0
      %2108 = vmatpush1.msra.mxu0 0.0
      %2109 = vmatprep.subr.mxu0 0.0
      %2110 = vmatpush1.msra.mxu0 0.0
      %2111 = vmatprep.subr.mxu0 0.0
      %2112 = vmatpush1.msra.mxu0 0.0
      %2113 = vmatprep.subr.mxu0 0.0
      %2114 = vmatpush1.msra.mxu0 0.0
      %2115 = vmatprep.subr.mxu0 0.0
      %2116 = vmatpush1.msra.mxu0 0.0
      %2117 = vmatprep.subr.mxu0 0.0
      %2118 = vmatpush1.msra.mxu0 0.0
      %2119 = vmatprep.subr.mxu0 0.0
      %2120 = vmatpush1.msra.mxu0 0.0
      %2121 = vmatprep.subr.mxu0 0.0
      %2122 = vmatpush1.msra.mxu0 0.0
      %2123 = vmatprep.subr.mxu0 0.0
      %2124 = vmatpush1.msra.mxu0 0.0
      %2125 = vmatprep.subr.mxu0 0.0
      %v2126 = vand.u32 %v907, 4294901760
      %v2127 = vsub.f32 %v907, %v2126
      %2128 = vmatpush1.msra.mxu0 %v2127
      %2129 = vmatprep.subr.mxu0 0.0
      %v2130 = vand.u32 %v906, 4294901760
      %v2131 = vsub.f32 %v906, %v2130
      %2132 = vmatpush1.msra.mxu0 %v2131
      %2133 = vmatprep.subr.mxu0 0.0
      %2134 = vmatpush2.msra.mxu0 0.0
      %2135 = vmatprep.subr.mxu0 0.0
      %2136 = vmatpush2.msra.mxu0 0.0
      %2137 = vmatprep.subr.mxu0 0.0
      %2138 = vmatpush2.msra.mxu0 0.0
      %2139 = vmatprep.subr.mxu0 0.0
      %2140 = vmatpush2.msra.mxu0 0.0
      %2141 = vmatprep.subr.mxu0 0.0
      %2142 = vmatpush2.msra.mxu0 0.0
      %2143 = vmatprep.subr.mxu0 0.0
      %2144 = vmatpush2.msra.mxu0 0.0
      %2145 = vmatprep.subr.mxu0 0.0
      %2146 = vmatpush2.msra.mxu0 0.0
      %2147 = vmatprep.subr.mxu0 0.0
      %2148 = vmatpush2.msra.mxu0 0.0
      %2149 = vmatprep.subr.mxu0 0.0
      %2150 = vmatpush2.msra.mxu0 0.0
      %2151 = vmatprep.subr.mxu0 0.0
      %2152 = vmatpush2.msra.mxu0 0.0
      %2153 = vmatprep.subr.mxu0 0.0
      %2154 = vmatpush2.msra.mxu0 0.0
      %2155 = vmatprep.subr.mxu0 0.0
      %2156 = vmatpush2.msra.mxu0 0.0
      %2157 = vmatprep.subr.mxu0 0.0
      %2158 = vmatpush2.msra.mxu0 0.0
      %2159 = vmatprep.subr.mxu0 0.0
      %2160 = vmatpush2.msra.mxu0 0.0
      %2161 = vmatprep.subr.mxu0 0.0
      %2162 = vmatpush2.msra.mxu0 0.0
      %2163 = vmatprep.subr.mxu0 0.0
      %2164 = vmatpush2.msra.mxu0 0.0
      %2165 = vmatprep.mubr.f32.mxu0 0.0
      %v2166 = vand.u32 %v1937, 4294901760
      %v2167 = vsub.f32 %v1937, %v2166
      %2168 = vmatmul.mubr.f32.gmra.mxu0 %v2167
      %v2169 = vpop.f32.mrf.mxu0
      %v2170 = vadd.f32 %v2094, %v2169
      %v2171 = vpop.f32.mrf.mxu0
      %2172 = vdwg.mxu0
      %2173 = vmatprep.subr.mxu0 0.0
      %2174 = vmatpush1.msra.mxu0 0.0
      %2175 = vmatprep.subr.mxu0 0.0
      %2176 = vmatpush1.msra.mxu0 0.0
      %2177 = vmatprep.subr.mxu0 0.0
      %2178 = vmatpush1.msra.mxu0 0.0
      %2179 = vmatprep.subr.mxu0 0.0
      %2180 = vmatpush1.msra.mxu0 0.0
      %2181 = vmatprep.subr.mxu0 0.0
      %2182 = vmatpush1.msra.mxu0 0.0
      %2183 = vmatprep.subr.mxu0 0.0
      %2184 = vmatpush1.msra.mxu0 0.0
      %2185 = vmatprep.subr.mxu0 0.0
      %2186 = vmatpush1.msra.mxu0 0.0
      %2187 = vmatprep.subr.mxu0 0.0
      %2188 = vmatpush1.msra.mxu0 0.0
      %2189 = vmatprep.subr.mxu0 0.0
      %2190 = vmatpush1.msra.mxu0 0.0
      %2191 = vmatprep.subr.mxu0 0.0
      %2192 = vmatpush1.msra.mxu0 0.0
      %2193 = vmatprep.subr.mxu0 0.0
      %2194 = vmatpush1.msra.mxu0 0.0
      %2195 = vmatprep.subr.mxu0 0.0
      %2196 = vmatpush1.msra.mxu0 0.0
      %2197 = vmatprep.subr.mxu0 0.0
      %2198 = vmatpush1.msra.mxu0 0.0
      %2199 = vmatprep.subr.mxu0 0.0
      %2200 = vmatpush1.msra.mxu0 0.0
      %2201 = vmatprep.subr.mxu0 0.0
      %v2202 = vand.u32 %v907, 4294901760
      %2203 = vmatpush1.msra.mxu0 %v2202
      %2204 = vmatprep.subr.mxu0 0.0
      %v2205 = vand.u32 %v906, 4294901760
      %2206 = vmatpush1.msra.mxu0 %v2205
      %2207 = vmatprep.subr.mxu0 0.0
      %2208 = vmatpush2.msra.mxu0 0.0
      %2209 = vmatprep.subr.mxu0 0.0
      %2210 = vmatpush2.msra.mxu0 0.0
      %2211 = vmatprep.subr.mxu0 0.0
      %2212 = vmatpush2.msra.mxu0 0.0
      %2213 = vmatprep.subr.mxu0 0.0
      %2214 = vmatpush2.msra.mxu0 0.0
      %2215 = vmatprep.subr.mxu0 0.0
      %2216 = vmatpush2.msra.mxu0 0.0
      %2217 = vmatprep.subr.mxu0 0.0
      %2218 = vmatpush2.msra.mxu0 0.0
      %2219 = vmatprep.subr.mxu0 0.0
      %2220 = vmatpush2.msra.mxu0 0.0
      %2221 = vmatprep.subr.mxu0 0.0
      %2222 = vmatpush2.msra.mxu0 0.0
      %2223 = vmatprep.subr.mxu0 0.0
      %2224 = vmatpush2.msra.mxu0 0.0
      %2225 = vmatprep.subr.mxu0 0.0
      %2226 = vmatpush2.msra.mxu0 0.0
      %2227 = vmatprep.subr.mxu0 0.0
      %2228 = vmatpush2.msra.mxu0 0.0
      %2229 = vmatprep.subr.mxu0 0.0
      %2230 = vmatpush2.msra.mxu0 0.0
      %2231 = vmatprep.subr.mxu0 0.0
      %2232 = vmatpush2.msra.mxu0 0.0
      %2233 = vmatprep.subr.mxu0 0.0
      %2234 = vmatpush2.msra.mxu0 0.0
      %2235 = vmatprep.subr.mxu0 0.0
      %2236 = vmatpush2.msra.mxu0 0.0
      %2237 = vmatprep.subr.mxu0 0.0
      %2238 = vmatpush2.msra.mxu0 0.0
      %2239 = vmatprep.mubr.f32.mxu0 0.0
      %v2240 = vand.u32 %v1937, 4294901760
      %v2241 = vsub.f32 %v1937, %v2240
      %v2242 = vand.u32 %v2241, 4294901760
      %2243 = vmatmul.mubr.f32.gmra.mxu0 %v2242
      %v2244 = vpop.f32.mrf.mxu0
      %v2245 = vadd.f32 %v2170, %v2244
      %v2246 = vpop.f32.mrf.mxu0
      %2247 = vdwg.mxu0
      %2248 = vmatprep.subr.mxu0 0.0
      %2249 = vmatpush1.msra.mxu0 0.0
      %2250 = vmatprep.subr.mxu0 0.0
      %2251 = vmatpush1.msra.mxu0 0.0
      %2252 = vmatprep.subr.mxu0 0.0
      %2253 = vmatpush1.msra.mxu0 0.0
      %2254 = vmatprep.subr.mxu0 0.0
      %2255 = vmatpush1.msra.mxu0 0.0
      %2256 = vmatprep.subr.mxu0 0.0
      %2257 = vmatpush1.msra.mxu0 0.0
      %2258 = vmatprep.subr.mxu0 0.0
      %2259 = vmatpush1.msra.mxu0 0.0
      %2260 = vmatprep.subr.mxu0 0.0
      %2261 = vmatpush1.msra.mxu0 0.0
      %2262 = vmatprep.subr.mxu0 0.0
      %2263 = vmatpush1.msra.mxu0 0.0
      %2264 = vmatprep.subr.mxu0 0.0
      %2265 = vmatpush1.msra.mxu0 0.0
      %2266 = vmatprep.subr.mxu0 0.0
      %2267 = vmatpush1.msra.mxu0 0.0
      %2268 = vmatprep.subr.mxu0 0.0
      %2269 = vmatpush1.msra.mxu0 0.0
      %2270 = vmatprep.subr.mxu0 0.0
      %2271 = vmatpush1.msra.mxu0 0.0
      %2272 = vmatprep.subr.mxu0 0.0
      %2273 = vmatpush1.msra.mxu0 0.0
      %2274 = vmatprep.subr.mxu0 0.0
      %2275 = vmatpush1.msra.mxu0 0.0
      %2276 = vmatprep.subr.mxu0 0.0
      %v2277 = vand.u32 %v907, 4294901760
      %v2278 = vsub.f32 %v907, %v2277
      %v2279 = vand.u32 %v2278, 4294901760
      %2280 = vmatpush1.msra.mxu0 %v2279
      %2281 = vmatprep.subr.mxu0 0.0
      %v2282 = vand.u32 %v906, 4294901760
      %v2283 = vsub.f32 %v906, %v2282
      %v2284 = vand.u32 %v2283, 4294901760
      %2285 = vmatpush1.msra.mxu0 %v2284
      %2286 = vmatprep.subr.mxu0 0.0
      %2287 = vmatpush2.msra.mxu0 0.0
      %2288 = vmatprep.subr.mxu0 0.0
      %2289 = vmatpush2.msra.mxu0 0.0
      %2290 = vmatprep.subr.mxu0 0.0
      %2291 = vmatpush2.msra.mxu0 0.0
      %2292 = vmatprep.subr.mxu0 0.0
      %2293 = vmatpush2.msra.mxu0 0.0
      %2294 = vmatprep.subr.mxu0 0.0
      %2295 = vmatpush2.msra.mxu0 0.0
      %2296 = vmatprep.subr.mxu0 0.0
      %2297 = vmatpush2.msra.mxu0 0.0
      %2298 = vmatprep.subr.mxu0 0.0
      %2299 = vmatpush2.msra.mxu0 0.0
      %2300 = vmatprep.subr.mxu0 0.0
      %2301 = vmatpush2.msra.mxu0 0.0
      %2302 = vmatprep.subr.mxu0 0.0
      %2303 = vmatpush2.msra.mxu0 0.0
      %2304 = vmatprep.subr.mxu0 0.0
      %2305 = vmatpush2.msra.mxu0 0.0
      %2306 = vmatprep.subr.mxu0 0.0
      %2307 = vmatpush2.msra.mxu0 0.0
      %2308 = vmatprep.subr.mxu0 0.0
      %2309 = vmatpush2.msra.mxu0 0.0
      %2310 = vmatprep.subr.mxu0 0.0
      %2311 = vmatpush2.msra.mxu0 0.0
      %2312 = vmatprep.subr.mxu0 0.0
      %2313 = vmatpush2.msra.mxu0 0.0
      %2314 = vmatprep.subr.mxu0 0.0
      %2315 = vmatpush2.msra.mxu0 0.0
      %2316 = vmatprep.subr.mxu0 0.0
      %2317 = vmatpush2.msra.mxu0 0.0
      %2318 = vmatprep.mubr.f32.mxu0 0.0
      %v2319 = vand.u32 %v1937, 4294901760
      %2320 = vmatmul.mubr.f32.gmra.mxu0 %v2319
      %v2321 = vpop.f32.mrf.mxu0
      %v2322 = vadd.f32 %v2245, %v2321
      %v2323 = vpop.f32.mrf.mxu0
      %2324 = vdwg.mxu0
      %2325 = vmatprep.subr.mxu0 0.0
      %2326 = vmatpush1.msra.mxu0 0.0
      %2327 = vmatprep.subr.mxu0 0.0
      %2328 = vmatpush1.msra.mxu0 0.0
      %2329 = vmatprep.subr.mxu0 0.0
      %2330 = vmatpush1.msra.mxu0 0.0
      %2331 = vmatprep.subr.mxu0 0.0
      %2332 = vmatpush1.msra.mxu0 0.0
      %2333 = vmatprep.subr.mxu0 0.0
      %2334 = vmatpush1.msra.mxu0 0.0
      %2335 = vmatprep.subr.mxu0 0.0
      %2336 = vmatpush1.msra.mxu0 0.0
      %2337 = vmatprep.subr.mxu0 0.0
      %2338 = vmatpush1.msra.mxu0 0.0
      %2339 = vmatprep.subr.mxu0 0.0
      %2340 = vmatpush1.msra.mxu0 0.0
      %2341 = vmatprep.subr.mxu0 0.0
      %2342 = vmatpush1.msra.mxu0 0.0
      %2343 = vmatprep.subr.mxu0 0.0
      %2344 = vmatpush1.msra.mxu0 0.0
      %2345 = vmatprep.subr.mxu0 0.0
      %2346 = vmatpush1.msra.mxu0 0.0
      %2347 = vmatprep.subr.mxu0 0.0
      %2348 = vmatpush1.msra.mxu0 0.0
      %2349 = vmatprep.subr.mxu0 0.0
      %2350 = vmatpush1.msra.mxu0 0.0
      %2351 = vmatprep.subr.mxu0 0.0
      %2352 = vmatpush1.msra.mxu0 0.0
      %2353 = vmatprep.subr.mxu0 0.0
      %v2354 = vand.u32 %v907, 4294901760
      %2355 = vmatpush1.msra.mxu0 %v2354
      %2356 = vmatprep.subr.mxu0 0.0
      %v2357 = vand.u32 %v906, 4294901760
      %2358 = vmatpush1.msra.mxu0 %v2357
      %2359 = vmatprep.subr.mxu0 0.0
      %2360 = vmatpush2.msra.mxu0 0.0
      %2361 = vmatprep.subr.mxu0 0.0
      %2362 = vmatpush2.msra.mxu0 0.0
      %2363 = vmatprep.subr.mxu0 0.0
      %2364 = vmatpush2.msra.mxu0 0.0
      %2365 = vmatprep.subr.mxu0 0.0
      %2366 = vmatpush2.msra.mxu0 0.0
      %2367 = vmatprep.subr.mxu0 0.0
      %2368 = vmatpush2.msra.mxu0 0.0
      %2369 = vmatprep.subr.mxu0 0.0
      %2370 = vmatpush2.msra.mxu0 0.0
      %2371 = vmatprep.subr.mxu0 0.0
      %2372 = vmatpush2.msra.mxu0 0.0
      %2373 = vmatprep.subr.mxu0 0.0
      %2374 = vmatpush2.msra.mxu0 0.0
      %2375 = vmatprep.subr.mxu0 0.0
      %2376 = vmatpush2.msra.mxu0 0.0
      %2377 = vmatprep.subr.mxu0 0.0
      %2378 = vmatpush2.msra.mxu0 0.0
      %2379 = vmatprep.subr.mxu0 0.0
      %2380 = vmatpush2.msra.mxu0 0.0
      %2381 = vmatprep.subr.mxu0 0.0
      %2382 = vmatpush2.msra.mxu0 0.0
      %2383 = vmatprep.subr.mxu0 0.0
      %2384 = vmatpush2.msra.mxu0 0.0
      %2385 = vmatprep.subr.mxu0 0.0
      %2386 = vmatpush2.msra.mxu0 0.0
      %2387 = vmatprep.subr.mxu0 0.0
      %2388 = vmatpush2.msra.mxu0 0.0
      %2389 = vmatprep.subr.mxu0 0.0
      %2390 = vmatpush2.msra.mxu0 0.0
      %2391 = vmatprep.mubr.f32.mxu0 0.0
      %v2392 = vand.u32 %v1937, 4294901760
      %2393 = vmatmul.mubr.f32.gmra.mxu0 %v2392
      %v2394 = vpop.f32.mrf.mxu0
      %v2395 = vadd.f32 %v2322, %v2394
      %v2396 = vpop.f32.mrf.mxu0
      %2397 = vdwg.mxu0
      %v2398 = vmul.f32 %v2395, %v1373
      %v2399 = vmul.f32 %v2398, 2.0
      %v2400 = vmul.f32 %v2399, %v2395
      %v2402 = vrot.slane %v2400, 7
      %v2404 = vsub.f32 %v2395, %v2402
      %v2405 = vmul.f32 %v2404, %v1373
      %v2406 = vmul.f32 %v2398, %v2398
      %v2408 = vrot.slane %v2406, 7
      %v2410 = vadd.f32 %v2405, %v2408
      %v2411 = vadd.f32 %v2410, 1e-05
      %v2412 = vrsqrt.pop %v2411
      %v2413 = vlaneseq
      %v2414 = vshrl.u32 %v2413, 7
      %v2415 = vsub.s32 0, %v2414
      %v2416 = vrot.slane %v2398, %v2415
      %v2417 = vsub.f32 %v1919, %v2416
      %v2418 = vlaneseq
      %v2419 = vshrl.u32 %v2418, 7
      %v2420 = vsub.s32 1, %v2419
      %v2421 = vrot.slane %v2412, %v2420
      %v2422 = vmul.f32 %v2417, %v2421
      %2424 = vset.pattern.permute.xlu0 0
      %2425 = vperm.xlu0 %2424, %v1910
      %v2426 = vpop.permute.xlu0 %2425
      %v2428 = vmul.f32 %v2422, %v2426
      %2430 = vset.pattern.permute.xlu0 0
      %2431 = vperm.xlu0 %2430, %v1912
      %v2432 = vpop.permute.xlu0 %2431
      %v2434 = vadd.f32 %v2428, %v2432
      %v2435 = vld [vmem:[%s5] sm:$0xff]
      %v2436 = vld [vmem:[%s6] sm:$0xff]
      %2438 = vrot.lane.b32.xlu0 %v2434, 4
      %v2439 = vpop.permute.xlu0 %2438
      %v2441 = vsel %vm1417, 0.0, %v2439
      %2443 = vrot.lane.b32.xlu0 %v2441, 126
      %v2444 = vpop.permute.xlu0 %2443
      %2446 = vrot.lane.b32.xlu0 %v2441, 124
      %v2447 = vpop.permute.xlu0 %2446
      %2450 = vset.pattern.permute.xlu0 0
      %2451 = vperm.xlu0 %2450, %v2436
      %v2452 = vpop.permute.xlu0 %2451
      %v2455 = vsel %vm1431, %v2435, 0
      %2457 = vmatprep.subr.mxu0 0.0
      %2458 = vmatpush1.msra.mxu0 0.0
      %2459 = vmatprep.subr.mxu0 0.0
      %2460 = vmatpush1.msra.mxu0 0.0
      %2461 = vmatprep.subr.mxu0 0.0
      %2462 = vmatpush1.msra.mxu0 0.0
      %2463 = vmatprep.subr.mxu0 0.0
      %2464 = vmatpush1.msra.mxu0 0.0
      %2465 = vmatprep.subr.mxu0 0.0
      %2466 = vmatpush1.msra.mxu0 0.0
      %2467 = vmatprep.subr.mxu0 0.0
      %2468 = vmatpush1.msra.mxu0 0.0
      %2469 = vmatprep.subr.mxu0 0.0
      %2470 = vmatpush1.msra.mxu0 0.0
      %2471 = vmatprep.subr.mxu0 0.0
      %2472 = vmatpush1.msra.mxu0 0.0
      %2473 = vmatprep.subr.mxu0 0.0
      %2474 = vmatpush1.msra.mxu0 0.0
      %2475 = vmatprep.subr.mxu0 0.0
      %2476 = vmatpush1.msra.mxu0 0.0
      %2477 = vmatprep.subr.mxu0 0.0
      %2478 = vmatpush1.msra.mxu0 0.0
      %2479 = vmatprep.subr.mxu0 0.0
      %2480 = vmatpush1.msra.mxu0 0.0
      %2481 = vmatprep.subr.mxu0 0.0
      %2482 = vmatpush1.msra.mxu0 0.0
      %2483 = vmatprep.subr.mxu0 0.0
      %v2484 = vand.u32 %v2447, 4294901760
      %2485 = vmatpush1.msra.mxu0 %v2484
      %2486 = vmatprep.subr.mxu0 0.0
      %v2487 = vand.u32 %v2444, 4294901760
      %2488 = vmatpush1.msra.mxu0 %v2487
      %2489 = vmatprep.subr.mxu0 0.0
      %v2490 = vand.u32 %v2441, 4294901760
      %2491 = vmatpush1.msra.mxu0 %v2490
      %2492 = vmatprep.subr.mxu0 0.0
      %2493 = vmatpush2.msra.mxu0 0.0
      %2494 = vmatprep.subr.mxu0 0.0
      %2495 = vmatpush2.msra.mxu0 0.0
      %2496 = vmatprep.subr.mxu0 0.0
      %2497 = vmatpush2.msra.mxu0 0.0
      %2498 = vmatprep.subr.mxu0 0.0
      %2499 = vmatpush2.msra.mxu0 0.0
      %2500 = vmatprep.subr.mxu0 0.0
      %2501 = vmatpush2.msra.mxu0 0.0
      %2502 = vmatprep.subr.mxu0 0.0
      %2503 = vmatpush2.msra.mxu0 0.0
      %2504 = vmatprep.subr.mxu0 0.0
      %2505 = vmatpush2.msra.mxu0 0.0
      %2506 = vmatprep.subr.mxu0 0.0
      %2507 = vmatpush2.msra.mxu0 0.0
      %2508 = vmatprep.subr.mxu0 0.0
      %2509 = vmatpush2.msra.mxu0 0.0
      %2510 = vmatprep.subr.mxu0 0.0
      %2511 = vmatpush2.msra.mxu0 0.0
      %2512 = vmatprep.subr.mxu0 0.0
      %2513 = vmatpush2.msra.mxu0 0.0
      %2514 = vmatprep.subr.mxu0 0.0
      %2515 = vmatpush2.msra.mxu0 0.0
      %2516 = vmatprep.subr.mxu0 0.0
      %2517 = vmatpush2.msra.mxu0 0.0
      %2518 = vmatprep.subr.mxu0 0.0
      %2519 = vmatpush2.msra.mxu0 0.0
      %2520 = vmatprep.subr.mxu0 0.0
      %2521 = vmatpush2.msra.mxu0 0.0
      %2522 = vmatprep.subr.mxu0 0.0
      %2523 = vmatpush2.msra.mxu0 0.0
      %2524 = vmatprep.mubr.f32.mxu0 0.0
      %v2525 = vand.u32 %v2455, 4294901760
      %v2526 = vsub.f32 %v2455, %v2525
      %v2527 = vand.u32 %v2526, 4294901760
      %v2528 = vsub.f32 %v2526, %v2527
      %v2529 = vand.u32 %v2528, 4294901760
      %2530 = vmatmul.mubr.f32.gmra.mxu0 %v2529
      %v2531 = vpop.f32.mrf.mxu0
      %v2532 = vadd.f32 %v2452, %v2531
      %v2533 = vpop.f32.mrf.mxu0
      %2534 = vdwg.mxu0
      %2535 = vmatprep.subr.mxu0 0.0
      %2536 = vmatpush1.msra.mxu0 0.0
      %2537 = vmatprep.subr.mxu0 0.0
      %2538 = vmatpush1.msra.mxu0 0.0
      %2539 = vmatprep.subr.mxu0 0.0
      %2540 = vmatpush1.msra.mxu0 0.0
      %2541 = vmatprep.subr.mxu0 0.0
      %2542 = vmatpush1.msra.mxu0 0.0
      %2543 = vmatprep.subr.mxu0 0.0
      %2544 = vmatpush1.msra.mxu0 0.0
      %2545 = vmatprep.subr.mxu0 0.0
      %2546 = vmatpush1.msra.mxu0 0.0
      %2547 = vmatprep.subr.mxu0 0.0
      %2548 = vmatpush1.msra.mxu0 0.0
      %2549 = vmatprep.subr.mxu0 0.0
      %2550 = vmatpush1.msra.mxu0 0.0
      %2551 = vmatprep.subr.mxu0 0.0
      %2552 = vmatpush1.msra.mxu0 0.0
      %2553 = vmatprep.subr.mxu0 0.0
      %2554 = vmatpush1.msra.mxu0 0.0
      %2555 = vmatprep.subr.mxu0 0.0
      %2556 = vmatpush1.msra.mxu0 0.0
      %2557 = vmatprep.subr.mxu0 0.0
      %2558 = vmatpush1.msra.mxu0 0.0
      %2559 = vmatprep.subr.mxu0 0.0
      %2560 = vmatpush1.msra.mxu0 0.0
      %2561 = vmatprep.subr.mxu0 0.0
      %v2562 = vand.u32 %v2447, 4294901760
      %v2563 = vsub.f32 %v2447, %v2562
      %v2564 = vand.u32 %v2563, 4294901760
      %v2565 = vsub.f32 %v2563, %v2564
      %v2566 = vand.u32 %v2565, 4294901760
      %2567 = vmatpush1.msra.mxu0 %v2566
      %2568 = vmatprep.subr.mxu0 0.0
      %v2569 = vand.u32 %v2444, 4294901760
      %v2570 = vsub.f32 %v2444, %v2569
      %v2571 = vand.u32 %v2570, 4294901760
      %v2572 = vsub.f32 %v2570, %v2571
      %v2573 = vand.u32 %v2572, 4294901760
      %2574 = vmatpush1.msra.mxu0 %v2573
      %2575 = vmatprep.subr.mxu0 0.0
      %v2576 = vand.u32 %v2441, 4294901760
      %v2577 = vsub.f32 %v2441, %v2576
      %v2578 = vand.u32 %v2577, 4294901760
      %v2579 = vsub.f32 %v2577, %v2578
      %v2580 = vand.u32 %v2579, 4294901760
      %2581 = vmatpush1.msra.mxu0 %v2580
      %2582 = vmatprep.subr.mxu0 0.0
      %2583 = vmatpush2.msra.mxu0 0.0
      %2584 = vmatprep.subr.mxu0 0.0
      %2585 = vmatpush2.msra.mxu0 0.0
      %2586 = vmatprep.subr.mxu0 0.0
      %2587 = vmatpush2.msra.mxu0 0.0
      %2588 = vmatprep.subr.mxu0 0.0
      %2589 = vmatpush2.msra.mxu0 0.0
      %2590 = vmatprep.subr.mxu0 0.0
      %2591 = vmatpush2.msra.mxu0 0.0
      %2592 = vmatprep.subr.mxu0 0.0
      %2593 = vmatpush2.msra.mxu0 0.0
      %2594 = vmatprep.subr.mxu0 0.0
      %2595 = vmatpush2.msra.mxu0 0.0
      %2596 = vmatprep.subr.mxu0 0.0
      %2597 = vmatpush2.msra.mxu0 0.0
      %2598 = vmatprep.subr.mxu0 0.0
      %2599 = vmatpush2.msra.mxu0 0.0
      %2600 = vmatprep.subr.mxu0 0.0
      %2601 = vmatpush2.msra.mxu0 0.0
      %2602 = vmatprep.subr.mxu0 0.0
      %2603 = vmatpush2.msra.mxu0 0.0
      %2604 = vmatprep.subr.mxu0 0.0
      %2605 = vmatpush2.msra.mxu0 0.0
      %2606 = vmatprep.subr.mxu0 0.0
      %2607 = vmatpush2.msra.mxu0 0.0
      %2608 = vmatprep.subr.mxu0 0.0
      %2609 = vmatpush2.msra.mxu0 0.0
      %2610 = vmatprep.subr.mxu0 0.0
      %2611 = vmatpush2.msra.mxu0 0.0
      %2612 = vmatprep.subr.mxu0 0.0
      %2613 = vmatpush2.msra.mxu0 0.0
      %2614 = vmatprep.mubr.f32.mxu0 0.0
      %v2615 = vand.u32 %v2455, 4294901760
      %2616 = vmatmul.mubr.f32.gmra.mxu0 %v2615
      %v2617 = vpop.f32.mrf.mxu0
      %v2618 = vadd.f32 %v2532, %v2617
      %v2619 = vpop.f32.mrf.mxu0
      %2620 = vdwg.mxu0
      %2621 = vmatprep.subr.mxu0 0.0
      %2622 = vmatpush1.msra.mxu0 0.0
      %2623 = vmatprep.subr.mxu0 0.0
      %2624 = vmatpush1.msra.mxu0 0.0
      %2625 = vmatprep.subr.mxu0 0.0
      %2626 = vmatpush1.msra.mxu0 0.0
      %2627 = vmatprep.subr.mxu0 0.0
      %2628 = vmatpush1.msra.mxu0 0.0
      %2629 = vmatprep.subr.mxu0 0.0
      %2630 = vmatpush1.msra.mxu0 0.0
      %2631 = vmatprep.subr.mxu0 0.0
      %2632 = vmatpush1.msra.mxu0 0.0
      %2633 = vmatprep.subr.mxu0 0.0
      %2634 = vmatpush1.msra.mxu0 0.0
      %2635 = vmatprep.subr.mxu0 0.0
      %2636 = vmatpush1.msra.mxu0 0.0
      %2637 = vmatprep.subr.mxu0 0.0
      %2638 = vmatpush1.msra.mxu0 0.0
      %2639 = vmatprep.subr.mxu0 0.0
      %2640 = vmatpush1.msra.mxu0 0.0
      %2641 = vmatprep.subr.mxu0 0.0
      %2642 = vmatpush1.msra.mxu0 0.0
      %2643 = vmatprep.subr.mxu0 0.0
      %2644 = vmatpush1.msra.mxu0 0.0
      %2645 = vmatprep.subr.mxu0 0.0
      %2646 = vmatpush1.msra.mxu0 0.0
      %2647 = vmatprep.subr.mxu0 0.0
      %v2648 = vand.u32 %v2447, 4294901760
      %v2649 = vsub.f32 %v2447, %v2648
      %2650 = vmatpush1.msra.mxu0 %v2649
      %2651 = vmatprep.subr.mxu0 0.0
      %v2652 = vand.u32 %v2444, 4294901760
      %v2653 = vsub.f32 %v2444, %v2652
      %2654 = vmatpush1.msra.mxu0 %v2653
      %2655 = vmatprep.subr.mxu0 0.0
      %v2656 = vand.u32 %v2441, 4294901760
      %v2657 = vsub.f32 %v2441, %v2656
      %2658 = vmatpush1.msra.mxu0 %v2657
      %2659 = vmatprep.subr.mxu0 0.0
      %2660 = vmatpush2.msra.mxu0 0.0
      %2661 = vmatprep.subr.mxu0 0.0
      %2662 = vmatpush2.msra.mxu0 0.0
      %2663 = vmatprep.subr.mxu0 0.0
      %2664 = vmatpush2.msra.mxu0 0.0
      %2665 = vmatprep.subr.mxu0 0.0
      %2666 = vmatpush2.msra.mxu0 0.0
      %2667 = vmatprep.subr.mxu0 0.0
      %2668 = vmatpush2.msra.mxu0 0.0
      %2669 = vmatprep.subr.mxu0 0.0
      %2670 = vmatpush2.msra.mxu0 0.0
      %2671 = vmatprep.subr.mxu0 0.0
      %2672 = vmatpush2.msra.mxu0 0.0
      %2673 = vmatprep.subr.mxu0 0.0
      %2674 = vmatpush2.msra.mxu0 0.0
      %2675 = vmatprep.subr.mxu0 0.0
      %2676 = vmatpush2.msra.mxu0 0.0
      %2677 = vmatprep.subr.mxu0 0.0
      %2678 = vmatpush2.msra.mxu0 0.0
      %2679 = vmatprep.subr.mxu0 0.0
      %2680 = vmatpush2.msra.mxu0 0.0
      %2681 = vmatprep.subr.mxu0 0.0
      %2682 = vmatpush2.msra.mxu0 0.0
      %2683 = vmatprep.subr.mxu0 0.0
      %2684 = vmatpush2.msra.mxu0 0.0
      %2685 = vmatprep.subr.mxu0 0.0
      %2686 = vmatpush2.msra.mxu0 0.0
      %2687 = vmatprep.subr.mxu0 0.0
      %2688 = vmatpush2.msra.mxu0 0.0
      %2689 = vmatprep.subr.mxu0 0.0
      %2690 = vmatpush2.msra.mxu0 0.0
      %2691 = vmatprep.mubr.f32.mxu0 0.0
      %v2692 = vand.u32 %v2455, 4294901760
      %v2693 = vsub.f32 %v2455, %v2692
      %2694 = vmatmul.mubr.f32.gmra.mxu0 %v2693
      %v2695 = vpop.f32.mrf.mxu0
      %v2696 = vadd.f32 %v2618, %v2695
      %v2697 = vpop.f32.mrf.mxu0
      %2698 = vdwg.mxu0
      %2699 = vmatprep.subr.mxu0 0.0
      %2700 = vmatpush1.msra.mxu0 0.0
      %2701 = vmatprep.subr.mxu0 0.0
      %2702 = vmatpush1.msra.mxu0 0.0
      %2703 = vmatprep.subr.mxu0 0.0
      %2704 = vmatpush1.msra.mxu0 0.0
      %2705 = vmatprep.subr.mxu0 0.0
      %2706 = vmatpush1.msra.mxu0 0.0
      %2707 = vmatprep.subr.mxu0 0.0
      %2708 = vmatpush1.msra.mxu0 0.0
      %2709 = vmatprep.subr.mxu0 0.0
      %2710 = vmatpush1.msra.mxu0 0.0
      %2711 = vmatprep.subr.mxu0 0.0
      %2712 = vmatpush1.msra.mxu0 0.0
      %2713 = vmatprep.subr.mxu0 0.0
      %2714 = vmatpush1.msra.mxu0 0.0
      %2715 = vmatprep.subr.mxu0 0.0
      %2716 = vmatpush1.msra.mxu0 0.0
      %2717 = vmatprep.subr.mxu0 0.0
      %2718 = vmatpush1.msra.mxu0 0.0
      %2719 = vmatprep.subr.mxu0 0.0
      %2720 = vmatpush1.msra.mxu0 0.0
      %2721 = vmatprep.subr.mxu0 0.0
      %2722 = vmatpush1.msra.mxu0 0.0
      %2723 = vmatprep.subr.mxu0 0.0
      %2724 = vmatpush1.msra.mxu0 0.0
      %2725 = vmatprep.subr.mxu0 0.0
      %v2726 = vand.u32 %v2447, 4294901760
      %2727 = vmatpush1.msra.mxu0 %v2726
      %2728 = vmatprep.subr.mxu0 0.0
      %v2729 = vand.u32 %v2444, 4294901760
      %2730 = vmatpush1.msra.mxu0 %v2729
      %2731 = vmatprep.subr.mxu0 0.0
      %v2732 = vand.u32 %v2441, 4294901760
      %2733 = vmatpush1.msra.mxu0 %v2732
      %2734 = vmatprep.subr.mxu0 0.0
      %2735 = vmatpush2.msra.mxu0 0.0
      %2736 = vmatprep.subr.mxu0 0.0
      %2737 = vmatpush2.msra.mxu0 0.0
      %2738 = vmatprep.subr.mxu0 0.0
      %2739 = vmatpush2.msra.mxu0 0.0
      %2740 = vmatprep.subr.mxu0 0.0
      %2741 = vmatpush2.msra.mxu0 0.0
      %2742 = vmatprep.subr.mxu0 0.0
      %2743 = vmatpush2.msra.mxu0 0.0
      %2744 = vmatprep.subr.mxu0 0.0
      %2745 = vmatpush2.msra.mxu0 0.0
      %2746 = vmatprep.subr.mxu0 0.0
      %2747 = vmatpush2.msra.mxu0 0.0
      %2748 = vmatprep.subr.mxu0 0.0
      %2749 = vmatpush2.msra.mxu0 0.0
      %2750 = vmatprep.subr.mxu0 0.0
      %2751 = vmatpush2.msra.mxu0 0.0
      %2752 = vmatprep.subr.mxu0 0.0
      %2753 = vmatpush2.msra.mxu0 0.0
      %2754 = vmatprep.subr.mxu0 0.0
      %2755 = vmatpush2.msra.mxu0 0.0
      %2756 = vmatprep.subr.mxu0 0.0
      %2757 = vmatpush2.msra.mxu0 0.0
      %2758 = vmatprep.subr.mxu0 0.0
      %2759 = vmatpush2.msra.mxu0 0.0
      %2760 = vmatprep.subr.mxu0 0.0
      %2761 = vmatpush2.msra.mxu0 0.0
      %2762 = vmatprep.subr.mxu0 0.0
      %2763 = vmatpush2.msra.mxu0 0.0
      %2764 = vmatprep.subr.mxu0 0.0
      %2765 = vmatpush2.msra.mxu0 0.0
      %2766 = vmatprep.mubr.f32.mxu0 0.0
      %v2767 = vand.u32 %v2455, 4294901760
      %v2768 = vsub.f32 %v2455, %v2767
      %v2769 = vand.u32 %v2768, 4294901760
      %2770 = vmatmul.mubr.f32.gmra.mxu0 %v2769
      %v2771 = vpop.f32.mrf.mxu0
      %v2772 = vadd.f32 %v2696, %v2771
      %v2773 = vpop.f32.mrf.mxu0
      %2774 = vdwg.mxu0
      %2775 = vmatprep.subr.mxu0 0.0
      %2776 = vmatpush1.msra.mxu0 0.0
      %2777 = vmatprep.subr.mxu0 0.0
      %2778 = vmatpush1.msra.mxu0 0.0
      %2779 = vmatprep.subr.mxu0 0.0
      %2780 = vmatpush1.msra.mxu0 0.0
      %2781 = vmatprep.subr.mxu0 0.0
      %2782 = vmatpush1.msra.mxu0 0.0
      %2783 = vmatprep.subr.mxu0 0.0
      %2784 = vmatpush1.msra.mxu0 0.0
      %2785 = vmatprep.subr.mxu0 0.0
      %2786 = vmatpush1.msra.mxu0 0.0
      %2787 = vmatprep.subr.mxu0 0.0
      %2788 = vmatpush1.msra.mxu0 0.0
      %2789 = vmatprep.subr.mxu0 0.0
      %2790 = vmatpush1.msra.mxu0 0.0
      %2791 = vmatprep.subr.mxu0 0.0
      %2792 = vmatpush1.msra.mxu0 0.0
      %2793 = vmatprep.subr.mxu0 0.0
      %2794 = vmatpush1.msra.mxu0 0.0
      %2795 = vmatprep.subr.mxu0 0.0
      %2796 = vmatpush1.msra.mxu0 0.0
      %2797 = vmatprep.subr.mxu0 0.0
      %2798 = vmatpush1.msra.mxu0 0.0
      %2799 = vmatprep.subr.mxu0 0.0
      %2800 = vmatpush1.msra.mxu0 0.0
      %2801 = vmatprep.subr.mxu0 0.0
      %v2802 = vand.u32 %v2447, 4294901760
      %v2803 = vsub.f32 %v2447, %v2802
      %v2804 = vand.u32 %v2803, 4294901760
      %2805 = vmatpush1.msra.mxu0 %v2804
      %2806 = vmatprep.subr.mxu0 0.0
      %v2807 = vand.u32 %v2444, 4294901760
      %v2808 = vsub.f32 %v2444, %v2807
      %v2809 = vand.u32 %v2808, 4294901760
      %2810 = vmatpush1.msra.mxu0 %v2809
      %2811 = vmatprep.subr.mxu0 0.0
      %v2812 = vand.u32 %v2441, 4294901760
      %v2813 = vsub.f32 %v2441, %v2812
      %v2814 = vand.u32 %v2813, 4294901760
      %2815 = vmatpush1.msra.mxu0 %v2814
      %2816 = vmatprep.subr.mxu0 0.0
      %2817 = vmatpush2.msra.mxu0 0.0
      %2818 = vmatprep.subr.mxu0 0.0
      %2819 = vmatpush2.msra.mxu0 0.0
      %2820 = vmatprep.subr.mxu0 0.0
      %2821 = vmatpush2.msra.mxu0 0.0
      %2822 = vmatprep.subr.mxu0 0.0
      %2823 = vmatpush2.msra.mxu0 0.0
      %2824 = vmatprep.subr.mxu0 0.0
      %2825 = vmatpush2.msra.mxu0 0.0
      %2826 = vmatprep.subr.mxu0 0.0
      %2827 = vmatpush2.msra.mxu0 0.0
      %2828 = vmatprep.subr.mxu0 0.0
      %2829 = vmatpush2.msra.mxu0 0.0
      %2830 = vmatprep.subr.mxu0 0.0
      %2831 = vmatpush2.msra.mxu0 0.0
      %2832 = vmatprep.subr.mxu0 0.0
      %2833 = vmatpush2.msra.mxu0 0.0
      %2834 = vmatprep.subr.mxu0 0.0
      %2835 = vmatpush2.msra.mxu0 0.0
      %2836 = vmatprep.subr.mxu0 0.0
      %2837 = vmatpush2.msra.mxu0 0.0
      %2838 = vmatprep.subr.mxu0 0.0
      %2839 = vmatpush2.msra.mxu0 0.0
      %2840 = vmatprep.subr.mxu0 0.0
      %2841 = vmatpush2.msra.mxu0 0.0
      %2842 = vmatprep.subr.mxu0 0.0
      %2843 = vmatpush2.msra.mxu0 0.0
      %2844 = vmatprep.subr.mxu0 0.0
      %2845 = vmatpush2.msra.mxu0 0.0
      %2846 = vmatprep.subr.mxu0 0.0
      %2847 = vmatpush2.msra.mxu0 0.0
      %2848 = vmatprep.mubr.f32.mxu0 0.0
      %v2849 = vand.u32 %v2455, 4294901760
      %2850 = vmatmul.mubr.f32.gmra.mxu0 %v2849
      %v2851 = vpop.f32.mrf.mxu0
      %v2852 = vadd.f32 %v2772, %v2851
      %v2853 = vpop.f32.mrf.mxu0
      %2854 = vdwg.mxu0
      %2855 = vmatprep.subr.mxu0 0.0
      %2856 = vmatpush1.msra.mxu0 0.0
      %2857 = vmatprep.subr.mxu0 0.0
      %2858 = vmatpush1.msra.mxu0 0.0
      %2859 = vmatprep.subr.mxu0 0.0
      %2860 = vmatpush1.msra.mxu0 0.0
      %2861 = vmatprep.subr.mxu0 0.0
      %2862 = vmatpush1.msra.mxu0 0.0
      %2863 = vmatprep.subr.mxu0 0.0
      %2864 = vmatpush1.msra.mxu0 0.0
      %2865 = vmatprep.subr.mxu0 0.0
      %2866 = vmatpush1.msra.mxu0 0.0
      %2867 = vmatprep.subr.mxu0 0.0
      %2868 = vmatpush1.msra.mxu0 0.0
      %2869 = vmatprep.subr.mxu0 0.0
      %2870 = vmatpush1.msra.mxu0 0.0
      %2871 = vmatprep.subr.mxu0 0.0
      %2872 = vmatpush1.msra.mxu0 0.0
      %2873 = vmatprep.subr.mxu0 0.0
      %2874 = vmatpush1.msra.mxu0 0.0
      %2875 = vmatprep.subr.mxu0 0.0
      %2876 = vmatpush1.msra.mxu0 0.0
      %2877 = vmatprep.subr.mxu0 0.0
      %2878 = vmatpush1.msra.mxu0 0.0
      %2879 = vmatprep.subr.mxu0 0.0
      %2880 = vmatpush1.msra.mxu0 0.0
      %2881 = vmatprep.subr.mxu0 0.0
      %v2882 = vand.u32 %v2447, 4294901760
      %2883 = vmatpush1.msra.mxu0 %v2882
      %2884 = vmatprep.subr.mxu0 0.0
      %v2885 = vand.u32 %v2444, 4294901760
      %2886 = vmatpush1.msra.mxu0 %v2885
      %2887 = vmatprep.subr.mxu0 0.0
      %v2888 = vand.u32 %v2441, 4294901760
      %2889 = vmatpush1.msra.mxu0 %v2888
      %2890 = vmatprep.subr.mxu0 0.0
      %2891 = vmatpush2.msra.mxu0 0.0
      %2892 = vmatprep.subr.mxu0 0.0
      %2893 = vmatpush2.msra.mxu0 0.0
      %2894 = vmatprep.subr.mxu0 0.0
      %2895 = vmatpush2.msra.mxu0 0.0
      %2896 = vmatprep.subr.mxu0 0.0
      %2897 = vmatpush2.msra.mxu0 0.0
      %2898 = vmatprep.subr.mxu0 0.0
      %2899 = vmatpush2.msra.mxu0 0.0
      %2900 = vmatprep.subr.mxu0 0.0
      %2901 = vmatpush2.msra.mxu0 0.0
      %2902 = vmatprep.subr.mxu0 0.0
      %2903 = vmatpush2.msra.mxu0 0.0
      %2904 = vmatprep.subr.mxu0 0.0
      %2905 = vmatpush2.msra.mxu0 0.0
      %2906 = vmatprep.subr.mxu0 0.0
      %2907 = vmatpush2.msra.mxu0 0.0
      %2908 = vmatprep.subr.mxu0 0.0
      %2909 = vmatpush2.msra.mxu0 0.0
      %2910 = vmatprep.subr.mxu0 0.0
      %2911 = vmatpush2.msra.mxu0 0.0
      %2912 = vmatprep.subr.mxu0 0.0
      %2913 = vmatpush2.msra.mxu0 0.0
      %2914 = vmatprep.subr.mxu0 0.0
      %2915 = vmatpush2.msra.mxu0 0.0
      %2916 = vmatprep.subr.mxu0 0.0
      %2917 = vmatpush2.msra.mxu0 0.0
      %2918 = vmatprep.subr.mxu0 0.0
      %2919 = vmatpush2.msra.mxu0 0.0
      %2920 = vmatprep.subr.mxu0 0.0
      %2921 = vmatpush2.msra.mxu0 0.0
      %2922 = vmatprep.mubr.f32.mxu0 0.0
      %v2923 = vand.u32 %v2455, 4294901760
      %2924 = vmatmul.mubr.f32.gmra.mxu0 %v2923
      %v2925 = vpop.f32.mrf.mxu0
      %v2926 = vadd.f32 %v2852, %v2925
      %v2927 = vpop.f32.mrf.mxu0
      %2928 = vdwg.mxu0
      %v2929 = vxor.u32 %v2926, 2147483648
      %v2930 = vmul.f32 %v2929, 1.442695
      %v2931 = vpow.pop %v2930
      %v2932 = vadd.f32 %v2931, 1.0
      %v2933 = vrcp.pop %v2932
      %v2934 = vmul.f32 1.0, %v2933
      %v2935 = vmul.f32 %v1904, %v2934
      %s2936 = scalar_lea.vmem %s9, 16
      %v2937 = vld [vmem:[%s2936] sm:$0xff]
      %s2938 = scalar_lea.vmem %s10, 16
      %v2939 = vld [vmem:[%s2938] sm:$0xff]
      %s2940 = scalar_lea.vmem %s11, 16
      %v2941 = vld [vmem:[%s2940] sm:$0xff]
      %v2942 = vmax.f32 %v2935, 0.0
      %v2943 = vmin.f32 %v2935, 0.0
      %2945 = vset.pattern.permute.xlu0 0
      %2946 = vperm.xlu0 %2945, %v2937
      %v2947 = vpop.permute.xlu0 %2946
      %v2949 = vmul.f32 %v2947, %v2943
      %v2950 = vadd.f32 %v2942, %v2949
      %v2951 = vsel %vm879, %v2950, 0.0
      %v2952 = vrot.slane %v2951, 4
      %v2953 = vadd.f32 %v2951, %v2952
      %v2954 = vrot.slane %v2953, 2
      %v2955 = vadd.f32 %v2953, %v2954
      %v2956 = vrot.slane %v2955, 1
      %v2957 = vadd.f32 %v2955, %v2956
      %v2958 = vmul.f32 %v2950, %v2950
      %v2959 = vsel %vm879, %v2958, 0.0
      %v2960 = vrot.slane %v2959, 4
      %v2961 = vadd.f32 %v2959, %v2960
      %v2962 = vrot.slane %v2961, 2
      %v2963 = vadd.f32 %v2961, %v2962
      %v2964 = vrot.slane %v2963, 1
      %v2965 = vadd.f32 %v2963, %v2964
      %v2966 = vsel %vm895, %v2957, %v2965
      %v2968 = vsel %vm879, %v2966, 0
      %2970 = vmatprep.subr.mxu0 0.0
      %2971 = vmatpush1.msra.mxu0 0.0
      %2972 = vmatprep.subr.mxu0 0.0
      %2973 = vmatpush1.msra.mxu0 0.0
      %2974 = vmatprep.subr.mxu0 0.0
      %2975 = vmatpush1.msra.mxu0 0.0
      %2976 = vmatprep.subr.mxu0 0.0
      %2977 = vmatpush1.msra.mxu0 0.0
      %2978 = vmatprep.subr.mxu0 0.0
      %2979 = vmatpush1.msra.mxu0 0.0
      %2980 = vmatprep.subr.mxu0 0.0
      %2981 = vmatpush1.msra.mxu0 0.0
      %2982 = vmatprep.subr.mxu0 0.0
      %2983 = vmatpush1.msra.mxu0 0.0
      %2984 = vmatprep.subr.mxu0 0.0
      %2985 = vmatpush1.msra.mxu0 0.0
      %2986 = vmatprep.subr.mxu0 0.0
      %2987 = vmatpush1.msra.mxu0 0.0
      %2988 = vmatprep.subr.mxu0 0.0
      %2989 = vmatpush1.msra.mxu0 0.0
      %2990 = vmatprep.subr.mxu0 0.0
      %2991 = vmatpush1.msra.mxu0 0.0
      %2992 = vmatprep.subr.mxu0 0.0
      %2993 = vmatpush1.msra.mxu0 0.0
      %2994 = vmatprep.subr.mxu0 0.0
      %2995 = vmatpush1.msra.mxu0 0.0
      %2996 = vmatprep.subr.mxu0 0.0
      %2997 = vmatpush1.msra.mxu0 0.0
      %2998 = vmatprep.subr.mxu0 0.0
      %v2999 = vand.u32 %v907, 4294901760
      %3000 = vmatpush1.msra.mxu0 %v2999
      %3001 = vmatprep.subr.mxu0 0.0
      %v3002 = vand.u32 %v906, 4294901760
      %3003 = vmatpush1.msra.mxu0 %v3002
      %3004 = vmatprep.subr.mxu0 0.0
      %3005 = vmatpush2.msra.mxu0 0.0
      %3006 = vmatprep.subr.mxu0 0.0
      %3007 = vmatpush2.msra.mxu0 0.0
      %3008 = vmatprep.subr.mxu0 0.0
      %3009 = vmatpush2.msra.mxu0 0.0
      %3010 = vmatprep.subr.mxu0 0.0
      %3011 = vmatpush2.msra.mxu0 0.0
      %3012 = vmatprep.subr.mxu0 0.0
      %3013 = vmatpush2.msra.mxu0 0.0
      %3014 = vmatprep.subr.mxu0 0.0
      %3015 = vmatpush2.msra.mxu0 0.0
      %3016 = vmatprep.subr.mxu0 0.0
      %3017 = vmatpush2.msra.mxu0 0.0
      %3018 = vmatprep.subr.mxu0 0.0
      %3019 = vmatpush2.msra.mxu0 0.0
      %3020 = vmatprep.subr.mxu0 0.0
      %3021 = vmatpush2.msra.mxu0 0.0
      %3022 = vmatprep.subr.mxu0 0.0
      %3023 = vmatpush2.msra.mxu0 0.0
      %3024 = vmatprep.subr.mxu0 0.0
      %3025 = vmatpush2.msra.mxu0 0.0
      %3026 = vmatprep.subr.mxu0 0.0
      %3027 = vmatpush2.msra.mxu0 0.0
      %3028 = vmatprep.subr.mxu0 0.0
      %3029 = vmatpush2.msra.mxu0 0.0
      %3030 = vmatprep.subr.mxu0 0.0
      %3031 = vmatpush2.msra.mxu0 0.0
      %3032 = vmatprep.subr.mxu0 0.0
      %3033 = vmatpush2.msra.mxu0 0.0
      %3034 = vmatprep.subr.mxu0 0.0
      %3035 = vmatpush2.msra.mxu0 0.0
      %3036 = vmatprep.mubr.f32.mxu0 0.0
      %v3037 = vand.u32 %v2968, 4294901760
      %v3038 = vsub.f32 %v2968, %v3037
      %v3039 = vand.u32 %v3038, 4294901760
      %v3040 = vsub.f32 %v3038, %v3039
      %v3041 = vand.u32 %v3040, 4294901760
      %3042 = vmatmul.mubr.f32.gmra.mxu0 %v3041
      %v3043 = vpop.f32.mrf.mxu0
      %v3044 = vadd.f32 0.0, %v3043
      %v3045 = vpop.f32.mrf.mxu0
      %3046 = vdwg.mxu0
      %3047 = vmatprep.subr.mxu0 0.0
      %3048 = vmatpush1.msra.mxu0 0.0
      %3049 = vmatprep.subr.mxu0 0.0
      %3050 = vmatpush1.msra.mxu0 0.0
      %3051 = vmatprep.subr.mxu0 0.0
      %3052 = vmatpush1.msra.mxu0 0.0
      %3053 = vmatprep.subr.mxu0 0.0
      %3054 = vmatpush1.msra.mxu0 0.0
      %3055 = vmatprep.subr.mxu0 0.0
      %3056 = vmatpush1.msra.mxu0 0.0
      %3057 = vmatprep.subr.mxu0 0.0
      %3058 = vmatpush1.msra.mxu0 0.0
      %3059 = vmatprep.subr.mxu0 0.0
      %3060 = vmatpush1.msra.mxu0 0.0
      %3061 = vmatprep.subr.mxu0 0.0
      %3062 = vmatpush1.msra.mxu0 0.0
      %3063 = vmatprep.subr.mxu0 0.0
      %3064 = vmatpush1.msra.mxu0 0.0
      %3065 = vmatprep.subr.mxu0 0.0
      %3066 = vmatpush1.msra.mxu0 0.0
      %3067 = vmatprep.subr.mxu0 0.0
      %3068 = vmatpush1.msra.mxu0 0.0
      %3069 = vmatprep.subr.mxu0 0.0
      %3070 = vmatpush1.msra.mxu0 0.0
      %3071 = vmatprep.subr.mxu0 0.0
      %3072 = vmatpush1.msra.mxu0 0.0
      %3073 = vmatprep.subr.mxu0 0.0
      %3074 = vmatpush1.msra.mxu0 0.0
      %3075 = vmatprep.subr.mxu0 0.0
      %v3076 = vand.u32 %v907, 4294901760
      %v3077 = vsub.f32 %v907, %v3076
      %v3078 = vand.u32 %v3077, 4294901760
      %v3079 = vsub.f32 %v3077, %v3078
      %v3080 = vand.u32 %v3079, 4294901760
      %3081 = vmatpush1.msra.mxu0 %v3080
      %3082 = vmatprep.subr.mxu0 0.0
      %v3083 = vand.u32 %v906, 4294901760
      %v3084 = vsub.f32 %v906, %v3083
      %v3085 = vand.u32 %v3084, 4294901760
      %v3086 = vsub.f32 %v3084, %v3085
      %v3087 = vand.u32 %v3086, 4294901760
      %3088 = vmatpush1.msra.mxu0 %v3087
      %3089 = vmatprep.subr.mxu0 0.0
      %3090 = vmatpush2.msra.mxu0 0.0
      %3091 = vmatprep.subr.mxu0 0.0
      %3092 = vmatpush2.msra.mxu0 0.0
      %3093 = vmatprep.subr.mxu0 0.0
      %3094 = vmatpush2.msra.mxu0 0.0
      %3095 = vmatprep.subr.mxu0 0.0
      %3096 = vmatpush2.msra.mxu0 0.0
      %3097 = vmatprep.subr.mxu0 0.0
      %3098 = vmatpush2.msra.mxu0 0.0
      %3099 = vmatprep.subr.mxu0 0.0
      %3100 = vmatpush2.msra.mxu0 0.0
      %3101 = vmatprep.subr.mxu0 0.0
      %3102 = vmatpush2.msra.mxu0 0.0
      %3103 = vmatprep.subr.mxu0 0.0
      %3104 = vmatpush2.msra.mxu0 0.0
      %3105 = vmatprep.subr.mxu0 0.0
      %3106 = vmatpush2.msra.mxu0 0.0
      %3107 = vmatprep.subr.mxu0 0.0
      %3108 = vmatpush2.msra.mxu0 0.0
      %3109 = vmatprep.subr.mxu0 0.0
      %3110 = vmatpush2.msra.mxu0 0.0
      %3111 = vmatprep.subr.mxu0 0.0
      %3112 = vmatpush2.msra.mxu0 0.0
      %3113 = vmatprep.subr.mxu0 0.0
      %3114 = vmatpush2.msra.mxu0 0.0
      %3115 = vmatprep.subr.mxu0 0.0
      %3116 = vmatpush2.msra.mxu0 0.0
      %3117 = vmatprep.subr.mxu0 0.0
      %3118 = vmatpush2.msra.mxu0 0.0
      %3119 = vmatprep.subr.mxu0 0.0
      %3120 = vmatpush2.msra.mxu0 0.0
      %3121 = vmatprep.mubr.f32.mxu0 0.0
      %v3122 = vand.u32 %v2968, 4294901760
      %3123 = vmatmul.mubr.f32.gmra.mxu0 %v3122
      %v3124 = vpop.f32.mrf.mxu0
      %v3125 = vadd.f32 %v3044, %v3124
      %v3126 = vpop.f32.mrf.mxu0
      %3127 = vdwg.mxu0
      %3128 = vmatprep.subr.mxu0 0.0
      %3129 = vmatpush1.msra.mxu0 0.0
      %3130 = vmatprep.subr.mxu0 0.0
      %3131 = vmatpush1.msra.mxu0 0.0
      %3132 = vmatprep.subr.mxu0 0.0
      %3133 = vmatpush1.msra.mxu0 0.0
      %3134 = vmatprep.subr.mxu0 0.0
      %3135 = vmatpush1.msra.mxu0 0.0
      %3136 = vmatprep.subr.mxu0 0.0
      %3137 = vmatpush1.msra.mxu0 0.0
      %3138 = vmatprep.subr.mxu0 0.0
      %3139 = vmatpush1.msra.mxu0 0.0
      %3140 = vmatprep.subr.mxu0 0.0
      %3141 = vmatpush1.msra.mxu0 0.0
      %3142 = vmatprep.subr.mxu0 0.0
      %3143 = vmatpush1.msra.mxu0 0.0
      %3144 = vmatprep.subr.mxu0 0.0
      %3145 = vmatpush1.msra.mxu0 0.0
      %3146 = vmatprep.subr.mxu0 0.0
      %3147 = vmatpush1.msra.mxu0 0.0
      %3148 = vmatprep.subr.mxu0 0.0
      %3149 = vmatpush1.msra.mxu0 0.0
      %3150 = vmatprep.subr.mxu0 0.0
      %3151 = vmatpush1.msra.mxu0 0.0
      %3152 = vmatprep.subr.mxu0 0.0
      %3153 = vmatpush1.msra.mxu0 0.0
      %3154 = vmatprep.subr.mxu0 0.0
      %3155 = vmatpush1.msra.mxu0 0.0
      %3156 = vmatprep.subr.mxu0 0.0
      %v3157 = vand.u32 %v907, 4294901760
      %v3158 = vsub.f32 %v907, %v3157
      %3159 = vmatpush1.msra.mxu0 %v3158
      %3160 = vmatprep.subr.mxu0 0.0
      %v3161 = vand.u32 %v906, 4294901760
      %v3162 = vsub.f32 %v906, %v3161
      %3163 = vmatpush1.msra.mxu0 %v3162
      %3164 = vmatprep.subr.mxu0 0.0
      %3165 = vmatpush2.msra.mxu0 0.0
      %3166 = vmatprep.subr.mxu0 0.0
      %3167 = vmatpush2.msra.mxu0 0.0
      %3168 = vmatprep.subr.mxu0 0.0
      %3169 = vmatpush2.msra.mxu0 0.0
      %3170 = vmatprep.subr.mxu0 0.0
      %3171 = vmatpush2.msra.mxu0 0.0
      %3172 = vmatprep.subr.mxu0 0.0
      %3173 = vmatpush2.msra.mxu0 0.0
      %3174 = vmatprep.subr.mxu0 0.0
      %3175 = vmatpush2.msra.mxu0 0.0
      %3176 = vmatprep.subr.mxu0 0.0
      %3177 = vmatpush2.msra.mxu0 0.0
      %3178 = vmatprep.subr.mxu0 0.0
      %3179 = vmatpush2.msra.mxu0 0.0
      %3180 = vmatprep.subr.mxu0 0.0
      %3181 = vmatpush2.msra.mxu0 0.0
      %3182 = vmatprep.subr.mxu0 0.0
      %3183 = vmatpush2.msra.mxu0 0.0
      %3184 = vmatprep.subr.mxu0 0.0
      %3185 = vmatpush2.msra.mxu0 0.0
      %3186 = vmatprep.subr.mxu0 0.0
      %3187 = vmatpush2.msra.mxu0 0.0
      %3188 = vmatprep.subr.mxu0 0.0
      %3189 = vmatpush2.msra.mxu0 0.0
      %3190 = vmatprep.subr.mxu0 0.0
      %3191 = vmatpush2.msra.mxu0 0.0
      %3192 = vmatprep.subr.mxu0 0.0
      %3193 = vmatpush2.msra.mxu0 0.0
      %3194 = vmatprep.subr.mxu0 0.0
      %3195 = vmatpush2.msra.mxu0 0.0
      %3196 = vmatprep.mubr.f32.mxu0 0.0
      %v3197 = vand.u32 %v2968, 4294901760
      %v3198 = vsub.f32 %v2968, %v3197
      %3199 = vmatmul.mubr.f32.gmra.mxu0 %v3198
      %v3200 = vpop.f32.mrf.mxu0
      %v3201 = vadd.f32 %v3125, %v3200
      %v3202 = vpop.f32.mrf.mxu0
      %3203 = vdwg.mxu0
      %3204 = vmatprep.subr.mxu0 0.0
      %3205 = vmatpush1.msra.mxu0 0.0
      %3206 = vmatprep.subr.mxu0 0.0
      %3207 = vmatpush1.msra.mxu0 0.0
      %3208 = vmatprep.subr.mxu0 0.0
      %3209 = vmatpush1.msra.mxu0 0.0
      %3210 = vmatprep.subr.mxu0 0.0
      %3211 = vmatpush1.msra.mxu0 0.0
      %3212 = vmatprep.subr.mxu0 0.0
      %3213 = vmatpush1.msra.mxu0 0.0
      %3214 = vmatprep.subr.mxu0 0.0
      %3215 = vmatpush1.msra.mxu0 0.0
      %3216 = vmatprep.subr.mxu0 0.0
      %3217 = vmatpush1.msra.mxu0 0.0
      %3218 = vmatprep.subr.mxu0 0.0
      %3219 = vmatpush1.msra.mxu0 0.0
      %3220 = vmatprep.subr.mxu0 0.0
      %3221 = vmatpush1.msra.mxu0 0.0
      %3222 = vmatprep.subr.mxu0 0.0
      %3223 = vmatpush1.msra.mxu0 0.0
      %3224 = vmatprep.subr.mxu0 0.0
      %3225 = vmatpush1.msra.mxu0 0.0
      %3226 = vmatprep.subr.mxu0 0.0
      %3227 = vmatpush1.msra.mxu0 0.0
      %3228 = vmatprep.subr.mxu0 0.0
      %3229 = vmatpush1.msra.mxu0 0.0
      %3230 = vmatprep.subr.mxu0 0.0
      %3231 = vmatpush1.msra.mxu0 0.0
      %3232 = vmatprep.subr.mxu0 0.0
      %v3233 = vand.u32 %v907, 4294901760
      %3234 = vmatpush1.msra.mxu0 %v3233
      %3235 = vmatprep.subr.mxu0 0.0
      %v3236 = vand.u32 %v906, 4294901760
      %3237 = vmatpush1.msra.mxu0 %v3236
      %3238 = vmatprep.subr.mxu0 0.0
      %3239 = vmatpush2.msra.mxu0 0.0
      %3240 = vmatprep.subr.mxu0 0.0
      %3241 = vmatpush2.msra.mxu0 0.0
      %3242 = vmatprep.subr.mxu0 0.0
      %3243 = vmatpush2.msra.mxu0 0.0
      %3244 = vmatprep.subr.mxu0 0.0
      %3245 = vmatpush2.msra.mxu0 0.0
      %3246 = vmatprep.subr.mxu0 0.0
      %3247 = vmatpush2.msra.mxu0 0.0
      %3248 = vmatprep.subr.mxu0 0.0
      %3249 = vmatpush2.msra.mxu0 0.0
      %3250 = vmatprep.subr.mxu0 0.0
      %3251 = vmatpush2.msra.mxu0 0.0
      %3252 = vmatprep.subr.mxu0 0.0
      %3253 = vmatpush2.msra.mxu0 0.0
      %3254 = vmatprep.subr.mxu0 0.0
      %3255 = vmatpush2.msra.mxu0 0.0
      %3256 = vmatprep.subr.mxu0 0.0
      %3257 = vmatpush2.msra.mxu0 0.0
      %3258 = vmatprep.subr.mxu0 0.0
      %3259 = vmatpush2.msra.mxu0 0.0
      %3260 = vmatprep.subr.mxu0 0.0
      %3261 = vmatpush2.msra.mxu0 0.0
      %3262 = vmatprep.subr.mxu0 0.0
      %3263 = vmatpush2.msra.mxu0 0.0
      %3264 = vmatprep.subr.mxu0 0.0
      %3265 = vmatpush2.msra.mxu0 0.0
      %3266 = vmatprep.subr.mxu0 0.0
      %3267 = vmatpush2.msra.mxu0 0.0
      %3268 = vmatprep.subr.mxu0 0.0
      %3269 = vmatpush2.msra.mxu0 0.0
      %3270 = vmatprep.mubr.f32.mxu0 0.0
      %v3271 = vand.u32 %v2968, 4294901760
      %v3272 = vsub.f32 %v2968, %v3271
      %v3273 = vand.u32 %v3272, 4294901760
      %3274 = vmatmul.mubr.f32.gmra.mxu0 %v3273
      %v3275 = vpop.f32.mrf.mxu0
      %v3276 = vadd.f32 %v3201, %v3275
      %v3277 = vpop.f32.mrf.mxu0
      %3278 = vdwg.mxu0
      %3279 = vmatprep.subr.mxu0 0.0
      %3280 = vmatpush1.msra.mxu0 0.0
      %3281 = vmatprep.subr.mxu0 0.0
      %3282 = vmatpush1.msra.mxu0 0.0
      %3283 = vmatprep.subr.mxu0 0.0
      %3284 = vmatpush1.msra.mxu0 0.0
      %3285 = vmatprep.subr.mxu0 0.0
      %3286 = vmatpush1.msra.mxu0 0.0
      %3287 = vmatprep.subr.mxu0 0.0
      %3288 = vmatpush1.msra.mxu0 0.0
      %3289 = vmatprep.subr.mxu0 0.0
      %3290 = vmatpush1.msra.mxu0 0.0
      %3291 = vmatprep.subr.mxu0 0.0
      %3292 = vmatpush1.msra.mxu0 0.0
      %3293 = vmatprep.subr.mxu0 0.0
      %3294 = vmatpush1.msra.mxu0 0.0
      %3295 = vmatprep.subr.mxu0 0.0
      %3296 = vmatpush1.msra.mxu0 0.0
      %3297 = vmatprep.subr.mxu0 0.0
      %3298 = vmatpush1.msra.mxu0 0.0
      %3299 = vmatprep.subr.mxu0 0.0
      %3300 = vmatpush1.msra.mxu0 0.0
      %3301 = vmatprep.subr.mxu0 0.0
      %3302 = vmatpush1.msra.mxu0 0.0
      %3303 = vmatprep.subr.mxu0 0.0
      %3304 = vmatpush1.msra.mxu0 0.0
      %3305 = vmatprep.subr.mxu0 0.0
      %3306 = vmatpush1.msra.mxu0 0.0
      %3307 = vmatprep.subr.mxu0 0.0
      %v3308 = vand.u32 %v907, 4294901760
      %v3309 = vsub.f32 %v907, %v3308
      %v3310 = vand.u32 %v3309, 4294901760
      %3311 = vmatpush1.msra.mxu0 %v3310
      %3312 = vmatprep.subr.mxu0 0.0
      %v3313 = vand.u32 %v906, 4294901760
      %v3314 = vsub.f32 %v906, %v3313
      %v3315 = vand.u32 %v3314, 4294901760
      %3316 = vmatpush1.msra.mxu0 %v3315
      %3317 = vmatprep.subr.mxu0 0.0
      %3318 = vmatpush2.msra.mxu0 0.0
      %3319 = vmatprep.subr.mxu0 0.0
      %3320 = vmatpush2.msra.mxu0 0.0
      %3321 = vmatprep.subr.mxu0 0.0
      %3322 = vmatpush2.msra.mxu0 0.0
      %3323 = vmatprep.subr.mxu0 0.0
      %3324 = vmatpush2.msra.mxu0 0.0
      %3325 = vmatprep.subr.mxu0 0.0
      %3326 = vmatpush2.msra.mxu0 0.0
      %3327 = vmatprep.subr.mxu0 0.0
      %3328 = vmatpush2.msra.mxu0 0.0
      %3329 = vmatprep.subr.mxu0 0.0
      %3330 = vmatpush2.msra.mxu0 0.0
      %3331 = vmatprep.subr.mxu0 0.0
      %3332 = vmatpush2.msra.mxu0 0.0
      %3333 = vmatprep.subr.mxu0 0.0
      %3334 = vmatpush2.msra.mxu0 0.0
      %3335 = vmatprep.subr.mxu0 0.0
      %3336 = vmatpush2.msra.mxu0 0.0
      %3337 = vmatprep.subr.mxu0 0.0
      %3338 = vmatpush2.msra.mxu0 0.0
      %3339 = vmatprep.subr.mxu0 0.0
      %3340 = vmatpush2.msra.mxu0 0.0
      %3341 = vmatprep.subr.mxu0 0.0
      %3342 = vmatpush2.msra.mxu0 0.0
      %3343 = vmatprep.subr.mxu0 0.0
      %3344 = vmatpush2.msra.mxu0 0.0
      %3345 = vmatprep.subr.mxu0 0.0
      %3346 = vmatpush2.msra.mxu0 0.0
      %3347 = vmatprep.subr.mxu0 0.0
      %3348 = vmatpush2.msra.mxu0 0.0
      %3349 = vmatprep.mubr.f32.mxu0 0.0
      %v3350 = vand.u32 %v2968, 4294901760
      %3351 = vmatmul.mubr.f32.gmra.mxu0 %v3350
      %v3352 = vpop.f32.mrf.mxu0
      %v3353 = vadd.f32 %v3276, %v3352
      %v3354 = vpop.f32.mrf.mxu0
      %3355 = vdwg.mxu0
      %3356 = vmatprep.subr.mxu0 0.0
      %3357 = vmatpush1.msra.mxu0 0.0
      %3358 = vmatprep.subr.mxu0 0.0
      %3359 = vmatpush1.msra.mxu0 0.0
      %3360 = vmatprep.subr.mxu0 0.0
      %3361 = vmatpush1.msra.mxu0 0.0
      %3362 = vmatprep.subr.mxu0 0.0
      %3363 = vmatpush1.msra.mxu0 0.0
      %3364 = vmatprep.subr.mxu0 0.0
      %3365 = vmatpush1.msra.mxu0 0.0
      %3366 = vmatprep.subr.mxu0 0.0
      %3367 = vmatpush1.msra.mxu0 0.0
      %3368 = vmatprep.subr.mxu0 0.0
      %3369 = vmatpush1.msra.mxu0 0.0
      %3370 = vmatprep.subr.mxu0 0.0
      %3371 = vmatpush1.msra.mxu0 0.0
      %3372 = vmatprep.subr.mxu0 0.0
      %3373 = vmatpush1.msra.mxu0 0.0
      %3374 = vmatprep.subr.mxu0 0.0
      %3375 = vmatpush1.msra.mxu0 0.0
      %3376 = vmatprep.subr.mxu0 0.0
      %3377 = vmatpush1.msra.mxu0 0.0
      %3378 = vmatprep.subr.mxu0 0.0
      %3379 = vmatpush1.msra.mxu0 0.0
      %3380 = vmatprep.subr.mxu0 0.0
      %3381 = vmatpush1.msra.mxu0 0.0
      %3382 = vmatprep.subr.mxu0 0.0
      %3383 = vmatpush1.msra.mxu0 0.0
      %3384 = vmatprep.subr.mxu0 0.0
      %v3385 = vand.u32 %v907, 4294901760
      %3386 = vmatpush1.msra.mxu0 %v3385
      %3387 = vmatprep.subr.mxu0 0.0
      %v3388 = vand.u32 %v906, 4294901760
      %3389 = vmatpush1.msra.mxu0 %v3388
      %3390 = vmatprep.subr.mxu0 0.0
      %3391 = vmatpush2.msra.mxu0 0.0
      %3392 = vmatprep.subr.mxu0 0.0
      %3393 = vmatpush2.msra.mxu0 0.0
      %3394 = vmatprep.subr.mxu0 0.0
      %3395 = vmatpush2.msra.mxu0 0.0
      %3396 = vmatprep.subr.mxu0 0.0
      %3397 = vmatpush2.msra.mxu0 0.0
      %3398 = vmatprep.subr.mxu0 0.0
      %3399 = vmatpush2.msra.mxu0 0.0
      %3400 = vmatprep.subr.mxu0 0.0
      %3401 = vmatpush2.msra.mxu0 0.0
      %3402 = vmatprep.subr.mxu0 0.0
      %3403 = vmatpush2.msra.mxu0 0.0
      %3404 = vmatprep.subr.mxu0 0.0
      %3405 = vmatpush2.msra.mxu0 0.0
      %3406 = vmatprep.subr.mxu0 0.0
      %3407 = vmatpush2.msra.mxu0 0.0
      %3408 = vmatprep.subr.mxu0 0.0
      %3409 = vmatpush2.msra.mxu0 0.0
      %3410 = vmatprep.subr.mxu0 0.0
      %3411 = vmatpush2.msra.mxu0 0.0
      %3412 = vmatprep.subr.mxu0 0.0
      %3413 = vmatpush2.msra.mxu0 0.0
      %3414 = vmatprep.subr.mxu0 0.0
      %3415 = vmatpush2.msra.mxu0 0.0
      %3416 = vmatprep.subr.mxu0 0.0
      %3417 = vmatpush2.msra.mxu0 0.0
      %3418 = vmatprep.subr.mxu0 0.0
      %3419 = vmatpush2.msra.mxu0 0.0
      %3420 = vmatprep.subr.mxu0 0.0
      %3421 = vmatpush2.msra.mxu0 0.0
      %3422 = vmatprep.mubr.f32.mxu0 0.0
      %v3423 = vand.u32 %v2968, 4294901760
      %3424 = vmatmul.mubr.f32.gmra.mxu0 %v3423
      %v3425 = vpop.f32.mrf.mxu0
      %v3426 = vadd.f32 %v3353, %v3425
      %v3427 = vpop.f32.mrf.mxu0
      %3428 = vdwg.mxu0
      %v3429 = vmul.f32 %v3426, %v1373
      %v3430 = vmul.f32 %v3429, 2.0
      %v3431 = vmul.f32 %v3430, %v3426
      %v3433 = vrot.slane %v3431, 7
      %v3435 = vsub.f32 %v3426, %v3433
      %v3436 = vmul.f32 %v3435, %v1373
      %v3437 = vmul.f32 %v3429, %v3429
      %v3439 = vrot.slane %v3437, 7
      %v3441 = vadd.f32 %v3436, %v3439
      %v3442 = vadd.f32 %v3441, 1e-05
      %v3443 = vrsqrt.pop %v3442
      %v3444 = vlaneseq
      %v3445 = vshrl.u32 %v3444, 7
      %v3446 = vsub.s32 0, %v3445
      %v3447 = vrot.slane %v3429, %v3446
      %v3448 = vsub.f32 %v2950, %v3447
      %v3449 = vlaneseq
      %v3450 = vshrl.u32 %v3449, 7
      %v3451 = vsub.s32 1, %v3450
      %v3452 = vrot.slane %v3443, %v3451
      %v3453 = vmul.f32 %v3448, %v3452
      %3455 = vset.pattern.permute.xlu0 0
      %3456 = vperm.xlu0 %3455, %v2939
      %v3457 = vpop.permute.xlu0 %3456
      %v3459 = vmul.f32 %v3453, %v3457
      %3461 = vset.pattern.permute.xlu0 0
      %3462 = vperm.xlu0 %3461, %v2941
      %v3463 = vpop.permute.xlu0 %3462
      %v3465 = vadd.f32 %v3459, %v3463
      %v3466 = vld [vmem:[%s7] sm:$0xff]
      %v3467 = vld [vmem:[%s8] sm:$0xff]
      %3469 = vset.pattern.permute.xlu0 0
      %3470 = vperm.xlu0 %3469, %v3467
      %v3471 = vpop.permute.xlu0 %3470
      %v3474 = vsel %vm417, %v3466, 0
      %3476 = vmatprep.subr.mxu0 0.0
      %3477 = vmatpush1.msra.mxu0 0.0
      %3478 = vmatprep.subr.mxu0 0.0
      %3479 = vmatpush1.msra.mxu0 0.0
      %3480 = vmatprep.subr.mxu0 0.0
      %3481 = vmatpush1.msra.mxu0 0.0
      %3482 = vmatprep.subr.mxu0 0.0
      %3483 = vmatpush1.msra.mxu0 0.0
      %3484 = vmatprep.subr.mxu0 0.0
      %3485 = vmatpush1.msra.mxu0 0.0
      %3486 = vmatprep.subr.mxu0 0.0
      %3487 = vmatpush1.msra.mxu0 0.0
      %3488 = vmatprep.subr.mxu0 0.0
      %3489 = vmatpush1.msra.mxu0 0.0
      %3490 = vmatprep.subr.mxu0 0.0
      %3491 = vmatpush1.msra.mxu0 0.0
      %3492 = vmatprep.subr.mxu0 0.0
      %3493 = vmatpush1.msra.mxu0 0.0
      %3494 = vmatprep.subr.mxu0 0.0
      %3495 = vmatpush1.msra.mxu0 0.0
      %3496 = vmatprep.subr.mxu0 0.0
      %3497 = vmatpush1.msra.mxu0 0.0
      %3498 = vmatprep.subr.mxu0 0.0
      %3499 = vmatpush1.msra.mxu0 0.0
      %3500 = vmatprep.subr.mxu0 0.0
      %3501 = vmatpush1.msra.mxu0 0.0
      %3502 = vmatprep.subr.mxu0 0.0
      %3503 = vmatpush1.msra.mxu0 0.0
      %3504 = vmatprep.subr.mxu0 0.0
      %3505 = vmatpush1.msra.mxu0 0.0
      %3506 = vmatprep.subr.mxu0 0.0
      %v3507 = vand.u32 %v3465, 4294901760
      %3508 = vmatpush1.msra.mxu0 %v3507
      %3509 = vmatprep.subr.mxu0 0.0
      %3510 = vmatpush2.msra.mxu0 0.0
      %3511 = vmatprep.subr.mxu0 0.0
      %3512 = vmatpush2.msra.mxu0 0.0
      %3513 = vmatprep.subr.mxu0 0.0
      %3514 = vmatpush2.msra.mxu0 0.0
      %3515 = vmatprep.subr.mxu0 0.0
      %3516 = vmatpush2.msra.mxu0 0.0
      %3517 = vmatprep.subr.mxu0 0.0
      %3518 = vmatpush2.msra.mxu0 0.0
      %3519 = vmatprep.subr.mxu0 0.0
      %3520 = vmatpush2.msra.mxu0 0.0
      %3521 = vmatprep.subr.mxu0 0.0
      %3522 = vmatpush2.msra.mxu0 0.0
      %3523 = vmatprep.subr.mxu0 0.0
      %3524 = vmatpush2.msra.mxu0 0.0
      %3525 = vmatprep.subr.mxu0 0.0
      %3526 = vmatpush2.msra.mxu0 0.0
      %3527 = vmatprep.subr.mxu0 0.0
      %3528 = vmatpush2.msra.mxu0 0.0
      %3529 = vmatprep.subr.mxu0 0.0
      %3530 = vmatpush2.msra.mxu0 0.0
      %3531 = vmatprep.subr.mxu0 0.0
      %3532 = vmatpush2.msra.mxu0 0.0
      %3533 = vmatprep.subr.mxu0 0.0
      %3534 = vmatpush2.msra.mxu0 0.0
      %3535 = vmatprep.subr.mxu0 0.0
      %3536 = vmatpush2.msra.mxu0 0.0
      %3537 = vmatprep.subr.mxu0 0.0
      %3538 = vmatpush2.msra.mxu0 0.0
      %3539 = vmatprep.subr.mxu0 0.0
      %3540 = vmatpush2.msra.mxu0 0.0
      %3541 = vmatprep.mubr.f32.mxu0 0.0
      %v3542 = vand.u32 %v3474, 4294901760
      %v3543 = vsub.f32 %v3474, %v3542
      %v3544 = vand.u32 %v3543, 4294901760
      %v3545 = vsub.f32 %v3543, %v3544
      %v3546 = vand.u32 %v3545, 4294901760
      %3547 = vmatmul.mubr.f32.gmra.mxu0 %v3546
      %v3548 = vpop.f32.mrf.mxu0
      %v3549 = vadd.f32 %v3471, %v3548
      %v3550 = vpop.f32.mrf.mxu0
      %3551 = vdwg.mxu0
      %3552 = vmatprep.subr.mxu0 0.0
      %3553 = vmatpush1.msra.mxu0 0.0
      %3554 = vmatprep.subr.mxu0 0.0
      %3555 = vmatpush1.msra.mxu0 0.0
      %3556 = vmatprep.subr.mxu0 0.0
      %3557 = vmatpush1.msra.mxu0 0.0
      %3558 = vmatprep.subr.mxu0 0.0
      %3559 = vmatpush1.msra.mxu0 0.0
      %3560 = vmatprep.subr.mxu0 0.0
      %3561 = vmatpush1.msra.mxu0 0.0
      %3562 = vmatprep.subr.mxu0 0.0
      %3563 = vmatpush1.msra.mxu0 0.0
      %3564 = vmatprep.subr.mxu0 0.0
      %3565 = vmatpush1.msra.mxu0 0.0
      %3566 = vmatprep.subr.mxu0 0.0
      %3567 = vmatpush1.msra.mxu0 0.0
      %3568 = vmatprep.subr.mxu0 0.0
      %3569 = vmatpush1.msra.mxu0 0.0
      %3570 = vmatprep.subr.mxu0 0.0
      %3571 = vmatpush1.msra.mxu0 0.0
      %3572 = vmatprep.subr.mxu0 0.0
      %3573 = vmatpush1.msra.mxu0 0.0
      %3574 = vmatprep.subr.mxu0 0.0
      %3575 = vmatpush1.msra.mxu0 0.0
      %3576 = vmatprep.subr.mxu0 0.0
      %3577 = vmatpush1.msra.mxu0 0.0
      %3578 = vmatprep.subr.mxu0 0.0
      %3579 = vmatpush1.msra.mxu0 0.0
      %3580 = vmatprep.subr.mxu0 0.0
      %3581 = vmatpush1.msra.mxu0 0.0
      %3582 = vmatprep.subr.mxu0 0.0
      %v3583 = vand.u32 %v3465, 4294901760
      %v3584 = vsub.f32 %v3465, %v3583
      %v3585 = vand.u32 %v3584, 4294901760
      %v3586 = vsub.f32 %v3584, %v3585
      %v3587 = vand.u32 %v3586, 4294901760
      %3588 = vmatpush1.msra.mxu0 %v3587
      %3589 = vmatprep.subr.mxu0 0.0
      %3590 = vmatpush2.msra.mxu0 0.0
      %3591 = vmatprep.subr.mxu0 0.0
      %3592 = vmatpush2.msra.mxu0 0.0
      %3593 = vmatprep.subr.mxu0 0.0
      %3594 = vmatpush2.msra.mxu0 0.0
      %3595 = vmatprep.subr.mxu0 0.0
      %3596 = vmatpush2.msra.mxu0 0.0
      %3597 = vmatprep.subr.mxu0 0.0
      %3598 = vmatpush2.msra.mxu0 0.0
      %3599 = vmatprep.subr.mxu0 0.0
      %3600 = vmatpush2.msra.mxu0 0.0
      %3601 = vmatprep.subr.mxu0 0.0
      %3602 = vmatpush2.msra.mxu0 0.0
      %3603 = vmatprep.subr.mxu0 0.0
      %3604 = vmatpush2.msra.mxu0 0.0
      %3605 = vmatprep.subr.mxu0 0.0
      %3606 = vmatpush2.msra.mxu0 0.0
      %3607 = vmatprep.subr.mxu0 0.0
      %3608 = vmatpush2.msra.mxu0 0.0
      %3609 = vmatprep.subr.mxu0 0.0
      %3610 = vmatpush2.msra.mxu0 0.0
      %3611 = vmatprep.subr.mxu0 0.0
      %3612 = vmatpush2.msra.mxu0 0.0
      %3613 = vmatprep.subr.mxu0 0.0
      %3614 = vmatpush2.msra.mxu0 0.0
      %3615 = vmatprep.subr.mxu0 0.0
      %3616 = vmatpush2.msra.mxu0 0.0
      %3617 = vmatprep.subr.mxu0 0.0
      %3618 = vmatpush2.msra.mxu0 0.0
      %3619 = vmatprep.subr.mxu0 0.0
      %3620 = vmatpush2.msra.mxu0 0.0
      %3621 = vmatprep.mubr.f32.mxu0 0.0
      %v3622 = vand.u32 %v3474, 4294901760
      %3623 = vmatmul.mubr.f32.gmra.mxu0 %v3622
      %v3624 = vpop.f32.mrf.mxu0
      %v3625 = vadd.f32 %v3549, %v3624
      %v3626 = vpop.f32.mrf.mxu0
      %3627 = vdwg.mxu0
      %3628 = vmatprep.subr.mxu0 0.0
      %3629 = vmatpush1.msra.mxu0 0.0
      %3630 = vmatprep.subr.mxu0 0.0
      %3631 = vmatpush1.msra.mxu0 0.0
      %3632 = vmatprep.subr.mxu0 0.0
      %3633 = vmatpush1.msra.mxu0 0.0
      %3634 = vmatprep.subr.mxu0 0.0
      %3635 = vmatpush1.msra.mxu0 0.0
      %3636 = vmatprep.subr.mxu0 0.0
      %3637 = vmatpush1.msra.mxu0 0.0
      %3638 = vmatprep.subr.mxu0 0.0
      %3639 = vmatpush1.msra.mxu0 0.0
      %3640 = vmatprep.subr.mxu0 0.0
      %3641 = vmatpush1.msra.mxu0 0.0
      %3642 = vmatprep.subr.mxu0 0.0
      %3643 = vmatpush1.msra.mxu0 0.0
      %3644 = vmatprep.subr.mxu0 0.0
      %3645 = vmatpush1.msra.mxu0 0.0
      %3646 = vmatprep.subr.mxu0 0.0
      %3647 = vmatpush1.msra.mxu0 0.0
      %3648 = vmatprep.subr.mxu0 0.0
      %3649 = vmatpush1.msra.mxu0 0.0
      %3650 = vmatprep.subr.mxu0 0.0
      %3651 = vmatpush1.msra.mxu0 0.0
      %3652 = vmatprep.subr.mxu0 0.0
      %3653 = vmatpush1.msra.mxu0 0.0
      %3654 = vmatprep.subr.mxu0 0.0
      %3655 = vmatpush1.msra.mxu0 0.0
      %3656 = vmatprep.subr.mxu0 0.0
      %3657 = vmatpush1.msra.mxu0 0.0
      %3658 = vmatprep.subr.mxu0 0.0
      %v3659 = vand.u32 %v3465, 4294901760
      %v3660 = vsub.f32 %v3465, %v3659
      %3661 = vmatpush1.msra.mxu0 %v3660
      %3662 = vmatprep.subr.mxu0 0.0
      %3663 = vmatpush2.msra.mxu0 0.0
      %3664 = vmatprep.subr.mxu0 0.0
      %3665 = vmatpush2.msra.mxu0 0.0
      %3666 = vmatprep.subr.mxu0 0.0
      %3667 = vmatpush2.msra.mxu0 0.0
      %3668 = vmatprep.subr.mxu0 0.0
      %3669 = vmatpush2.msra.mxu0 0.0
      %3670 = vmatprep.subr.mxu0 0.0
      %3671 = vmatpush2.msra.mxu0 0.0
      %3672 = vmatprep.subr.mxu0 0.0
      %3673 = vmatpush2.msra.mxu0 0.0
      %3674 = vmatprep.subr.mxu0 0.0
      %3675 = vmatpush2.msra.mxu0 0.0
      %3676 = vmatprep.subr.mxu0 0.0
      %3677 = vmatpush2.msra.mxu0 0.0
      %3678 = vmatprep.subr.mxu0 0.0
      %3679 = vmatpush2.msra.mxu0 0.0
      %3680 = vmatprep.subr.mxu0 0.0
      %3681 = vmatpush2.msra.mxu0 0.0
      %3682 = vmatprep.subr.mxu0 0.0
      %3683 = vmatpush2.msra.mxu0 0.0
      %3684 = vmatprep.subr.mxu0 0.0
      %3685 = vmatpush2.msra.mxu0 0.0
      %3686 = vmatprep.subr.mxu0 0.0
      %3687 = vmatpush2.msra.mxu0 0.0
      %3688 = vmatprep.subr.mxu0 0.0
      %3689 = vmatpush2.msra.mxu0 0.0
      %3690 = vmatprep.subr.mxu0 0.0
      %3691 = vmatpush2.msra.mxu0 0.0
      %3692 = vmatprep.subr.mxu0 0.0
      %3693 = vmatpush2.msra.mxu0 0.0
      %3694 = vmatprep.mubr.f32.mxu0 0.0
      %v3695 = vand.u32 %v3474, 4294901760
      %v3696 = vsub.f32 %v3474, %v3695
      %3697 = vmatmul.mubr.f32.gmra.mxu0 %v3696
      %v3698 = vpop.f32.mrf.mxu0
      %v3699 = vadd.f32 %v3625, %v3698
      %v3700 = vpop.f32.mrf.mxu0
      %3701 = vdwg.mxu0
      %3702 = vmatprep.subr.mxu0 0.0
      %3703 = vmatpush1.msra.mxu0 0.0
      %3704 = vmatprep.subr.mxu0 0.0
      %3705 = vmatpush1.msra.mxu0 0.0
      %3706 = vmatprep.subr.mxu0 0.0
      %3707 = vmatpush1.msra.mxu0 0.0
      %3708 = vmatprep.subr.mxu0 0.0
      %3709 = vmatpush1.msra.mxu0 0.0
      %3710 = vmatprep.subr.mxu0 0.0
      %3711 = vmatpush1.msra.mxu0 0.0
      %3712 = vmatprep.subr.mxu0 0.0
      %3713 = vmatpush1.msra.mxu0 0.0
      %3714 = vmatprep.subr.mxu0 0.0
      %3715 = vmatpush1.msra.mxu0 0.0
      %3716 = vmatprep.subr.mxu0 0.0
      %3717 = vmatpush1.msra.mxu0 0.0
      %3718 = vmatprep.subr.mxu0 0.0
      %3719 = vmatpush1.msra.mxu0 0.0
      %3720 = vmatprep.subr.mxu0 0.0
      %3721 = vmatpush1.msra.mxu0 0.0
      %3722 = vmatprep.subr.mxu0 0.0
      %3723 = vmatpush1.msra.mxu0 0.0
      %3724 = vmatprep.subr.mxu0 0.0
      %3725 = vmatpush1.msra.mxu0 0.0
      %3726 = vmatprep.subr.mxu0 0.0
      %3727 = vmatpush1.msra.mxu0 0.0
      %3728 = vmatprep.subr.mxu0 0.0
      %3729 = vmatpush1.msra.mxu0 0.0
      %3730 = vmatprep.subr.mxu0 0.0
      %3731 = vmatpush1.msra.mxu0 0.0
      %3732 = vmatprep.subr.mxu0 0.0
      %v3733 = vand.u32 %v3465, 4294901760
      %3734 = vmatpush1.msra.mxu0 %v3733
      %3735 = vmatprep.subr.mxu0 0.0
      %3736 = vmatpush2.msra.mxu0 0.0
      %3737 = vmatprep.subr.mxu0 0.0
      %3738 = vmatpush2.msra.mxu0 0.0
      %3739 = vmatprep.subr.mxu0 0.0
      %3740 = vmatpush2.msra.mxu0 0.0
      %3741 = vmatprep.subr.mxu0 0.0
      %3742 = vmatpush2.msra.mxu0 0.0
      %3743 = vmatprep.subr.mxu0 0.0
      %3744 = vmatpush2.msra.mxu0 0.0
      %3745 = vmatprep.subr.mxu0 0.0
      %3746 = vmatpush2.msra.mxu0 0.0
      %3747 = vmatprep.subr.mxu0 0.0
      %3748 = vmatpush2.msra.mxu0 0.0
      %3749 = vmatprep.subr.mxu0 0.0
      %3750 = vmatpush2.msra.mxu0 0.0
      %3751 = vmatprep.subr.mxu0 0.0
      %3752 = vmatpush2.msra.mxu0 0.0
      %3753 = vmatprep.subr.mxu0 0.0
      %3754 = vmatpush2.msra.mxu0 0.0
      %3755 = vmatprep.subr.mxu0 0.0
      %3756 = vmatpush2.msra.mxu0 0.0
      %3757 = vmatprep.subr.mxu0 0.0
      %3758 = vmatpush2.msra.mxu0 0.0
      %3759 = vmatprep.subr.mxu0 0.0
      %3760 = vmatpush2.msra.mxu0 0.0
      %3761 = vmatprep.subr.mxu0 0.0
      %3762 = vmatpush2.msra.mxu0 0.0
      %3763 = vmatprep.subr.mxu0 0.0
      %3764 = vmatpush2.msra.mxu0 0.0
      %3765 = vmatprep.subr.mxu0 0.0
      %3766 = vmatpush2.msra.mxu0 0.0
      %3767 = vmatprep.mubr.f32.mxu0 0.0
      %v3768 = vand.u32 %v3474, 4294901760
      %v3769 = vsub.f32 %v3474, %v3768
      %v3770 = vand.u32 %v3769, 4294901760
      %3771 = vmatmul.mubr.f32.gmra.mxu0 %v3770
      %v3772 = vpop.f32.mrf.mxu0
      %v3773 = vadd.f32 %v3699, %v3772
      %v3774 = vpop.f32.mrf.mxu0
      %3775 = vdwg.mxu0
      %3776 = vmatprep.subr.mxu0 0.0
      %3777 = vmatpush1.msra.mxu0 0.0
      %3778 = vmatprep.subr.mxu0 0.0
      %3779 = vmatpush1.msra.mxu0 0.0
      %3780 = vmatprep.subr.mxu0 0.0
      %3781 = vmatpush1.msra.mxu0 0.0
      %3782 = vmatprep.subr.mxu0 0.0
      %3783 = vmatpush1.msra.mxu0 0.0
      %3784 = vmatprep.subr.mxu0 0.0
      %3785 = vmatpush1.msra.mxu0 0.0
      %3786 = vmatprep.subr.mxu0 0.0
      %3787 = vmatpush1.msra.mxu0 0.0
      %3788 = vmatprep.subr.mxu0 0.0
      %3789 = vmatpush1.msra.mxu0 0.0
      %3790 = vmatprep.subr.mxu0 0.0
      %3791 = vmatpush1.msra.mxu0 0.0
      %3792 = vmatprep.subr.mxu0 0.0
      %3793 = vmatpush1.msra.mxu0 0.0
      %3794 = vmatprep.subr.mxu0 0.0
      %3795 = vmatpush1.msra.mxu0 0.0
      %3796 = vmatprep.subr.mxu0 0.0
      %3797 = vmatpush1.msra.mxu0 0.0
      %3798 = vmatprep.subr.mxu0 0.0
      %3799 = vmatpush1.msra.mxu0 0.0
      %3800 = vmatprep.subr.mxu0 0.0
      %3801 = vmatpush1.msra.mxu0 0.0
      %3802 = vmatprep.subr.mxu0 0.0
      %3803 = vmatpush1.msra.mxu0 0.0
      %3804 = vmatprep.subr.mxu0 0.0
      %3805 = vmatpush1.msra.mxu0 0.0
      %3806 = vmatprep.subr.mxu0 0.0
      %v3807 = vand.u32 %v3465, 4294901760
      %v3808 = vsub.f32 %v3465, %v3807
      %v3809 = vand.u32 %v3808, 4294901760
      %3810 = vmatpush1.msra.mxu0 %v3809
      %3811 = vmatprep.subr.mxu0 0.0
      %3812 = vmatpush2.msra.mxu0 0.0
      %3813 = vmatprep.subr.mxu0 0.0
      %3814 = vmatpush2.msra.mxu0 0.0
      %3815 = vmatprep.subr.mxu0 0.0
      %3816 = vmatpush2.msra.mxu0 0.0
      %3817 = vmatprep.subr.mxu0 0.0
      %3818 = vmatpush2.msra.mxu0 0.0
      %3819 = vmatprep.subr.mxu0 0.0
      %3820 = vmatpush2.msra.mxu0 0.0
      %3821 = vmatprep.subr.mxu0 0.0
      %3822 = vmatpush2.msra.mxu0 0.0
      %3823 = vmatprep.subr.mxu0 0.0
      %3824 = vmatpush2.msra.mxu0 0.0
      %3825 = vmatprep.subr.mxu0 0.0
      %3826 = vmatpush2.msra.mxu0 0.0
      %3827 = vmatprep.subr.mxu0 0.0
      %3828 = vmatpush2.msra.mxu0 0.0
      %3829 = vmatprep.subr.mxu0 0.0
      %3830 = vmatpush2.msra.mxu0 0.0
      %3831 = vmatprep.subr.mxu0 0.0
      %3832 = vmatpush2.msra.mxu0 0.0
      %3833 = vmatprep.subr.mxu0 0.0
      %3834 = vmatpush2.msra.mxu0 0.0
      %3835 = vmatprep.subr.mxu0 0.0
      %3836 = vmatpush2.msra.mxu0 0.0
      %3837 = vmatprep.subr.mxu0 0.0
      %3838 = vmatpush2.msra.mxu0 0.0
      %3839 = vmatprep.subr.mxu0 0.0
      %3840 = vmatpush2.msra.mxu0 0.0
      %3841 = vmatprep.subr.mxu0 0.0
      %3842 = vmatpush2.msra.mxu0 0.0
      %3843 = vmatprep.mubr.f32.mxu0 0.0
      %v3844 = vand.u32 %v3474, 4294901760
      %3845 = vmatmul.mubr.f32.gmra.mxu0 %v3844
      %v3846 = vpop.f32.mrf.mxu0
      %v3847 = vadd.f32 %v3773, %v3846
      %v3848 = vpop.f32.mrf.mxu0
      %3849 = vdwg.mxu0
      %3850 = vmatprep.subr.mxu0 0.0
      %3851 = vmatpush1.msra.mxu0 0.0
      %3852 = vmatprep.subr.mxu0 0.0
      %3853 = vmatpush1.msra.mxu0 0.0
      %3854 = vmatprep.subr.mxu0 0.0
      %3855 = vmatpush1.msra.mxu0 0.0
      %3856 = vmatprep.subr.mxu0 0.0
      %3857 = vmatpush1.msra.mxu0 0.0
      %3858 = vmatprep.subr.mxu0 0.0
      %3859 = vmatpush1.msra.mxu0 0.0
      %3860 = vmatprep.subr.mxu0 0.0
      %3861 = vmatpush1.msra.mxu0 0.0
      %3862 = vmatprep.subr.mxu0 0.0
      %3863 = vmatpush1.msra.mxu0 0.0
      %3864 = vmatprep.subr.mxu0 0.0
      %3865 = vmatpush1.msra.mxu0 0.0
      %3866 = vmatprep.subr.mxu0 0.0
      %3867 = vmatpush1.msra.mxu0 0.0
      %3868 = vmatprep.subr.mxu0 0.0
      %3869 = vmatpush1.msra.mxu0 0.0
      %3870 = vmatprep.subr.mxu0 0.0
      %3871 = vmatpush1.msra.mxu0 0.0
      %3872 = vmatprep.subr.mxu0 0.0
      %3873 = vmatpush1.msra.mxu0 0.0
      %3874 = vmatprep.subr.mxu0 0.0
      %3875 = vmatpush1.msra.mxu0 0.0
      %3876 = vmatprep.subr.mxu0 0.0
      %3877 = vmatpush1.msra.mxu0 0.0
      %3878 = vmatprep.subr.mxu0 0.0
      %3879 = vmatpush1.msra.mxu0 0.0
      %3880 = vmatprep.subr.mxu0 0.0
      %v3881 = vand.u32 %v3465, 4294901760
      %3882 = vmatpush1.msra.mxu0 %v3881
      %3883 = vmatprep.subr.mxu0 0.0
      %3884 = vmatpush2.msra.mxu0 0.0
      %3885 = vmatprep.subr.mxu0 0.0
      %3886 = vmatpush2.msra.mxu0 0.0
      %3887 = vmatprep.subr.mxu0 0.0
      %3888 = vmatpush2.msra.mxu0 0.0
      %3889 = vmatprep.subr.mxu0 0.0
      %3890 = vmatpush2.msra.mxu0 0.0
      %3891 = vmatprep.subr.mxu0 0.0
      %3892 = vmatpush2.msra.mxu0 0.0
      %3893 = vmatprep.subr.mxu0 0.0
      %3894 = vmatpush2.msra.mxu0 0.0
      %3895 = vmatprep.subr.mxu0 0.0
      %3896 = vmatpush2.msra.mxu0 0.0
      %3897 = vmatprep.subr.mxu0 0.0
      %3898 = vmatpush2.msra.mxu0 0.0
      %3899 = vmatprep.subr.mxu0 0.0
      %3900 = vmatpush2.msra.mxu0 0.0
      %3901 = vmatprep.subr.mxu0 0.0
      %3902 = vmatpush2.msra.mxu0 0.0
      %3903 = vmatprep.subr.mxu0 0.0
      %3904 = vmatpush2.msra.mxu0 0.0
      %3905 = vmatprep.subr.mxu0 0.0
      %3906 = vmatpush2.msra.mxu0 0.0
      %3907 = vmatprep.subr.mxu0 0.0
      %3908 = vmatpush2.msra.mxu0 0.0
      %3909 = vmatprep.subr.mxu0 0.0
      %3910 = vmatpush2.msra.mxu0 0.0
      %3911 = vmatprep.subr.mxu0 0.0
      %3912 = vmatpush2.msra.mxu0 0.0
      %3913 = vmatprep.subr.mxu0 0.0
      %3914 = vmatpush2.msra.mxu0 0.0
      %3915 = vmatprep.mubr.f32.mxu0 0.0
      %v3916 = vand.u32 %v3474, 4294901760
      %3917 = vmatmul.mubr.f32.gmra.mxu0 %v3916
      %v3918 = vpop.f32.mrf.mxu0
      %v3919 = vadd.f32 %v3847, %v3918
      %v3920 = vpop.f32.mrf.mxu0
      %3921 = vdwg.mxu0
      %v3922 = vadd.f32 %v3919, %v409
      %3923 = vst.msk [vmem:[%s408] sm:$0xff] %vm879, %v3922
      %p3924 = scmp.lt.s32.totalorder %s23, 1
      %s3925 = scalar_select %p3924, %s23, 1
      %s3926 = smul.addr %s3925, 8
      %s3927 = scalar_lea.vmem %s12, %s3926
      // Predicated region
      $region69: #{refine_block_fwd.12} parent=67 // pred_check
        %p3928 = pneg %p298
      $region70: #{refine_block_fwd.12} parent=67 // pred_check_branch
        %3930 = sbr.rel (%p3928) target = $region72
      $region71: #{refine_block_fwd.12} parent=67 // pred_region
        _
      $region72: #{refine_block_fwd.12} parent=67 // pred_fallthru
        _
    $region68: #{refine_block_fwd.12} parent=5 // pred_fallthru
      _
    %p3931 = scmp.le.s32.totalorder 2, %s18
    // Predicated region
    $region73: #{refine_block_fwd.12} parent=5 // pred_check
      %p3932 = pneg %p3931
    $region74: #{refine_block_fwd.12} parent=5 // pred_check_branch
      %3934 = sbr.rel (%p3932) target = $region76
    $region75: #{refine_block_fwd.12} parent=5 // pred_region
      %s3935 = ssub.s32 %s18, 2
      // Predicated region
      $region77: #{refine_block_fwd.12} parent=75 // pred_check
        %p3936 = pneg %p304
      $region78: #{refine_block_fwd.12} parent=75 // pred_check_branch
        %3938 = sbr.rel (%p3936) target = $region80
      $region79: #{refine_block_fwd.12} parent=75 // pred_region
        %p3939 = scmp.lt.s32.totalorder %s24, 1
        %s3940 = scalar_select %p3939, %s24, 1
        %s3941 = smul.addr %s3940, 8
        %s3942 = scalar_lea.vmem %s12, %s3941
      $region80: #{refine_block_fwd.12} parent=75 // pred_fallthru
        _
    $region76: #{refine_block_fwd.12} parent=5 // pred_fallthru
      _
  $region6: #{refine_block_fwd.12} parent=0 // loop_footer
    %s22 = sadd.s32 1, %s18
  $region7: #{refine_block_fwd.12} parent=0 // loop_footer_branch
    %17 = sbr.rel target = $region3
  $region8: #{refine_block_fwd.12} parent=0 // loop_exit
    _

</llo_original>
